<compile_context>
chip_gen: v7x
topology: tpu7x:2x2x1
jax: 0.10.0
libtpu: 0.0.40
codegen_flags: <defaults>
</compile_context>

<pallas_src>
import itertools

import numpy as np
import jax
import jax.numpy as jnp
from jax.experimental import pallas as pl
from jax.experimental.pallas import tpu as pltpu

D = 10                       # extraction window length / stride
NW = 3                       # 30 days / 10 = 3 windows
NF = 9                       # raw feature rows
NSHIFT = (NF - 1) // 2       # 4 cyclic shifts cover all C(9,2)=36 pairs once (NF odd)
NPAIR = NF * (NF - 1) // 2   # 36
NROW = 2 * NPAIR + 5 * NF    # 117 rows after extraction concat
NBLK = NW + 3                # 3 window blocks + mean/max/min pooled blocks
NGROUP = 2 * NSHIFT + 5      # 13 feature groups of NF rows each
SLOT = 16                    # 8-aligned slot height for each 9-row group
KPAD = NGROUP * SLOT         # 208 padded contraction dim for linear1
FLAT = NBLK * NROW           # 702-dim flattened feature vector
HID = 30
BN_EPS = 1e-5

_PAIRS = list(itertools.combinations(range(NF), 2))
_PAIR_IDX = {p: n for n, p in enumerate(_PAIRS)}
PAIR_I = jnp.array([p[0] for p in _PAIRS], dtype=jnp.int32)
PAIR_J = jnp.array([p[1] for p in _PAIRS], dtype=jnp.int32)


def _round_up(x, m):
    return (x + m - 1) // m * m


# --------------------------------------------------------------------------
# Fused kernel: one batch tile (bt samples on lanes) per grid step.
#   x_ref : (NW, D, NF, bt)        w1_ref : (NBLK, HID, KPAD)
#   b1_ref: (HID, 1)               w2_ref : (1, HID)     b2_ref: (1, 1)
#   o_ref : (1, bt)                feat_ref (scratch): (NBLK, KPAD, bt)
# --------------------------------------------------------------------------
def _alphanet_kernel(x_ref, w1_ref, b1_ref, w2_ref, b2_ref, o_ref, feat_ref):
    bt = x_ref.shape[3]
    inv_d = jnp.float32(1.0 / D)
    wdec = [float(2.0 * (d + 1) / (D * (D + 1))) for d in range(D)]
    zpad = jnp.zeros((SLOT - NF, bt), jnp.float32)

    def shifted(a, k):
        # rows shifted cyclically "up" by k: result[i, :] = a[(i + k) % NF, :]
        # (explicit slice+concat so the pair<->row mapping is unambiguous;
        #  equivalent to a sublane rotation, handled off the VALU path)
        return jnp.concatenate([a[k:, :], a[:k, :]], axis=0)

    def store_group(blk, g, val):
        # 9 valid rows + 7 zero rows -> full 16-row (8-aligned) slot; the
        # matching w1 pad columns are zero, zeros keep the pad rows NaN-free,
        # and every store is a full unmasked vreg store.
        feat_ref[blk, g * SLOT:(g + 1) * SLOT, :] = jnp.concatenate(
            [val, zpad], axis=0)

    for w in range(NW):
        # ---- single streaming pass over the 10 days (only moments stay live)
        x0 = x_ref[w, 0, :, :]                              # (NF, bt)
        acc_s = x0
        acc_sq = x0 * x0
        acc_dec = x0 * wdec[0]
        acc_xy = [x0 * shifted(x0, k) for k in range(1, NSHIFT + 1)]
        for d in range(1, D):
            xd = x_ref[w, d, :, :]
            acc_s = acc_s + xd
            acc_sq = acc_sq + xd * xd
            acc_dec = acc_dec + xd * wdec[d]
            for k in range(1, NSHIFT + 1):
                acc_xy[k - 1] = acc_xy[k - 1] + xd * shifted(xd, k)

        mean = acc_s * inv_d                                # ts_mean_extract
        var = acc_sq * inv_d - mean * mean
        rstd = jax.lax.rsqrt(var)                           # EUP path
        std = var * rstd                                    # ts_stddev (= sqrt(var))
        zscore = mean * rstd                                # ts_zscore
        ret = x_ref[w, D - 1, :, :] / x_ref[w, 0, :, :] - 1.0   # ts_return

        # pairwise cov / corr from raw cross moments: pair(i) = (i, (i+k)%9)
        for k in range(1, NSHIFT + 1):
            mk = shifted(mean, k)
            rk = shifted(rstd, k)
            cov_k = acc_xy[k - 1] * inv_d - mean * mk       # ts_cov
            corr_k = cov_k * (rstd * rk)                    # ts_corr
            store_group(w, k - 1, corr_k)                   # slots 0..3
            store_group(w, NSHIFT + k - 1, cov_k)           # slots 4..7
        store_group(w, 2 * NSHIFT + 0, std)                 # slot 8
        store_group(w, 2 * NSHIFT + 1, zscore)              # slot 9
        store_group(w, 2 * NSHIFT + 2, ret)                 # slot 10
        store_group(w, 2 * NSHIFT + 3, acc_dec)             # slot 11: ts_decaylinear
        store_group(w, 2 * NSHIFT + 4, mean)                # slot 12

    # ---- time pooling across the 3 window blocks (BN scales folded into w1;
    #      max/min commute with the positive BN scale, mean keeps the raw sum)
    for g in range(NGROUP):
        lo, hi = g * SLOT, (g + 1) * SLOT
        f0 = feat_ref[0, lo:hi, :]
        f1 = feat_ref[1, lo:hi, :]
        f2 = feat_ref[2, lo:hi, :]
        feat_ref[3, lo:hi, :] = f0 + f1 + f2                           # ts_mean_pool
        feat_ref[4, lo:hi, :] = jnp.maximum(jnp.maximum(f0, f1), f2)   # ts_max
        feat_ref[5, lo:hi, :] = jnp.minimum(jnp.minimum(f0, f1), f2)   # ts_min

    # ---- linear1 (+ folded BN scales) over the 6 aligned blocks, relu, linear2
    acc = jnp.dot(w1_ref[0], feat_ref[0], preferred_element_type=jnp.float32)
    for blk in range(1, NBLK):
        acc = acc + jnp.dot(w1_ref[blk], feat_ref[blk],
                            preferred_element_type=jnp.float32)
    h = jnp.maximum(acc + b1_ref[...], 0.0)               # dropout = identity (eval)
    y = jnp.dot(w2_ref[...], h, preferred_element_type=jnp.float32) + b2_ref[...]
    o_ref[...] = y                                        # y*weights+bias folded into w2/b2


# --------------------------------------------------------------------------
# Wrapper: fold BN / final affine into the weights, permute & zero-pad w1
# columns to the kernel's (block, slot, row) feature layout, tile the batch.
# --------------------------------------------------------------------------
def _prep_params(params):
    w1, b1, w2, b2, weights, bias = params
    s = 1.0 / np.sqrt(1.0 + BN_EPS)       # eval-mode BatchNorm2d(1), fresh stats
    blk_scale = [s, s, s, s * s / 3.0, s * s, s * s]

    cols = np.zeros((NBLK, KPAD), dtype=np.int32)
    scl = np.zeros((NBLK, KPAD), dtype=np.float32)
    for g in range(NGROUP):
        for i in range(NF):
            if g < 2 * NSHIFT:                            # corr / cov pair groups
                k = g % NSHIFT + 1
                j = (i + k) % NF
                r = _PAIR_IDX[(min(i, j), max(i, j))]
                if g >= NSHIFT:
                    r += NPAIR                            # cov rows follow corr rows
            else:                                         # std/zscore/ret/dec/mean
                r = 2 * NPAIR + (g - 2 * NSHIFT) * NF + i
            kcol = g * SLOT + i
            for blk in range(NBLK):
                if blk < NW:
                    cols[blk, kcol] = r * NW + blk                       # window blocks
                else:
                    cols[blk, kcol] = NW * NROW + (blk - NW) * NROW + r  # pooled blocks
                scl[blk, kcol] = blk_scale[blk]
    # pad columns keep scale 0 -> exact zero weights

    w1g = jnp.asarray(w1, jnp.float32)[:, cols] * jnp.asarray(scl)       # (HID, NBLK, KPAD)
    w1k = jnp.transpose(w1g, (1, 0, 2))                                  # (NBLK, HID, KPAD)
    b1k = jnp.asarray(b1, jnp.float32).reshape(HID, 1)
    w2k = (jnp.asarray(w2, jnp.float32) * weights[0]).reshape(1, HID)    # fold y*w + b
    b2k = (jnp.asarray(b2, jnp.float32) * weights[0] + bias[0]).reshape(1, 1)
    return w1k, b1k, w2k, b2k


def alphanet_forward(xb, params, block_b=512):
    # block_b: samples per grid step (multiple of 128). 512 amortizes the
    # ~0.35us per-step overhead; on v7x keep batch/block_b >= 2 so the single
    # "parallel" grid axis shards across both TensorCores.
    assert block_b % 128 == 0
    w1k, b1k, w2k, b2k = _prep_params(params)

    B = xb.shape[0]
    # TODO(synk): this reshape+transpose is an extra XLA HBM pass; produce or
    # cache the (NW, D, NF, B) batch-in-lanes layout upstream if e2e latency matters.
    x = xb[:, 0].astype(jnp.float32)                        # (B, 9, 30)
    x = x.reshape(B, NF, NW, D).transpose(2, 3, 1, 0)       # (NW, D, NF, B)

    bt = min(block_b, _round_up(B, 128))
    Bp = _round_up(B, bt)
    if Bp != B:
        # edge-pad with replicated real samples so the padded lanes stay finite
        x = jnp.pad(x, ((0, 0), (0, 0), (0, 0), (0, Bp - B)), mode="edge")

    out = pl.pallas_call(
        _alphanet_kernel,
        out_shape=jax.ShapeDtypeStruct((1, Bp), jnp.float32),
        grid=(Bp // bt,),
        in_specs=[
            pl.BlockSpec((NW, D, NF, bt), lambda b: (0, 0, 0, b)),
            pl.BlockSpec((NBLK, HID, KPAD), lambda b: (0, 0, 0)),
            pl.BlockSpec((HID, 1), lambda b: (0, 0)),
            pl.BlockSpec((1, HID), lambda b: (0, 0)),
            pl.BlockSpec((1, 1), lambda b: (0, 0)),
        ],
        out_specs=pl.BlockSpec((1, bt), lambda b: (0, b)),
        scratch_shapes=[pltpu.VMEM((NBLK, KPAD, bt), jnp.float32)],
        compiler_params=pltpu.CompilerParams(
            dimension_semantics=("parallel",)),
    )(x, w1k, b1k, w2k, b2k)
    return out[0, :B]


# --------------------------------------------------------------------------
# Pure-JAX reference (mirrors the PyTorch module, eval mode)
# --------------------------------------------------------------------------
def alphanet_forward_ref(xb, params):
    w1, b1, w2, b2, weights, bias = params
    B = xb.shape[0]
    x = xb[:, 0].astype(jnp.float32)
    xw = x.reshape(B, NF, NW, D)
    xi = xw[:, PAIR_I]
    xj = xw[:, PAIR_J]

    mean = xw.mean(-1)
    std = jnp.sqrt(((xw - mean[..., None]) ** 2).mean(-1))
    ci = xi - xi.mean(-1, keepdims=True)
    cj = xj - xj.mean(-1, keepdims=True)
    cov = (ci * cj).mean(-1)
    corr = cov / (jnp.sqrt((ci * ci).mean(-1)) * jnp.sqrt((cj * cj).mean(-1)))
    zscore = mean / std
    ret = xw[..., -1] / xw[..., 0] - 1.0
    wdec = jnp.arange(1, D + 1, dtype=jnp.float32) * (2.0 / (D * (D + 1)))
    decay = (xw * wdec).sum(-1)

    s = 1.0 / np.sqrt(1.0 + BN_EPS)
    feat = jnp.concatenate([corr, cov, std, zscore, ret, decay, mean], axis=1) * s  # (B,117,3)
    pmean = feat.mean(-1) * s
    pmax = feat.max(-1) * s
    pmin = feat.min(-1) * s
    vec = jnp.concatenate([feat.reshape(B, NROW * NW), pmean, pmax, pmin], axis=1)  # (B,702)
    h = jnp.maximum(vec @ w1.T + b1, 0.0)
    y = h @ w2.T + b2
    return (y * weights[0] + bias[0]).reshape(-1)


def trunc_normal(key, shape, std=0.09):
    return jax.random.truncated_normal(key, -2.0, 2.0, shape, jnp.float32) * std


if __name__ == "__main__":
    key = jax.random.PRNGKey(0)
    k1, k2, k3, k4, k5, k6, kx = jax.random.split(key, 7)

    # deterministic truncated-normal init (mirrors module __init__ shapes,
    # PyTorch layout: linear1.weight (30, 702), linear2.weight (1, 30))
    w1 = trunc_normal(k1, (HID, FLAT))
    b1 = trunc_normal(k2, (HID,))
    w2 = trunc_normal(k3, (1, HID))
    b2 = trunc_normal(k4, (1,))
    weights = trunc_normal(k5, (1,))
    bias = trunc_normal(k6, (1,))
    params = (w1, b1, w2, b2, weights, bias)

    # input "data picture": (B, 1, 9 features, 30 days); positive values so
    # ts_return's divide is well behaved
    B = 2
    xb = jax.random.uniform(kx, (B, 1, NF, NW * D), jnp.float32,
                            minval=0.5, maxval=1.5)

    out = jax.block_until_ready(alphanet_forward(xb, params))
    ref = jax.block_until_ready(alphanet_forward_ref(xb, params))

    assert out.shape == (B,)
    assert jnp.allclose(out, ref, atol=1e-4, rtol=1e-4), (out, ref)
    print("KERNEL_OK")
</pallas_src>

<mosaic_0001>
module attributes {stable_mosaic.version = 11 : i64} {
  func.func @_alphanet_kernel(%arg0: i32, %arg1: memref<3x10x9x128xf32, #tpu.memory_space<vmem>>, %arg2: memref<6x30x208xf32, #tpu.memory_space<vmem>>, %arg3: memref<30x1xf32, #tpu.memory_space<vmem>>, %arg4: memref<1x30xf32, #tpu.memory_space<vmem>>, %arg5: memref<1x1xf32, #tpu.memory_space<vmem>>, %arg6: memref<1x128xf32, #tpu.memory_space<vmem>>, %arg7: memref<6x208x128xf32, #tpu.memory_space<vmem>>) attributes {dimension_semantics = [#tpu.dimension_semantics<parallel>], iteration_bounds = array<i64: 1>, scalar_prefetch = 0 : i64, scratch_operands = 1 : i64, tpu.core_type = #tpu.core_type<tc>, window_params = [{transform_indices = @transform_0, window_bounds = array<i64: 3, 10, 9, 128>}, {pipeline_mode = #tpu.pipeline_mode<synchronous>, transform_indices = @transform_1, window_bounds = array<i64: 6, 30, 208>}, {pipeline_mode = #tpu.pipeline_mode<synchronous>, transform_indices = @transform_2, window_bounds = array<i64: 30, 1>}, {pipeline_mode = #tpu.pipeline_mode<synchronous>, transform_indices = @transform_3, window_bounds = array<i64: 1, 30>}, {pipeline_mode = #tpu.pipeline_mode<synchronous>, transform_indices = @transform_4, window_bounds = array<i64: 1, 1>}, {transform_indices = @transform_5, window_bounds = array<i64: 1, 128>}]} {
    %cst = arith.constant 0.000000e+00 : f32
    %0 = vector.broadcast %cst : f32 to vector<7x128xf32>
    %c0 = arith.constant 0 : index
    %c0_0 = arith.constant 0 : index
    %c0_1 = arith.constant 0 : index
    %c0_2 = arith.constant 0 : index
    %1 = vector.load %arg1[%c0, %c0_0, %c0_1, %c0_2] : memref<3x10x9x128xf32, #tpu.memory_space<vmem>>, vector<1x1x9x128xf32>
    %2 = vector.shape_cast %1 : vector<1x1x9x128xf32> to vector<9x128xf32>
    %3 = arith.mulf %2, %2 : vector<9x128xf32>
    %cst_3 = arith.constant 0.0181818176 : f32
    %4 = vector.broadcast %cst_3 : f32 to vector<9x128xf32>
    %5 = arith.mulf %2, %4 : vector<9x128xf32>
    %6 = vector.extract_strided_slice %2 {offsets = [1, 0], sizes = [8, 128], strides = [1, 1]} : vector<9x128xf32> to vector<8x128xf32>
    %7 = vector.extract_strided_slice %2 {offsets = [0, 0], sizes = [1, 128], strides = [1, 1]} : vector<9x128xf32> to vector<1x128xf32>
    %8 = tpu.concatenate %6, %7 in 0 : vector<8x128xf32>, vector<1x128xf32> -> vector<9x128xf32>
    %9 = arith.mulf %2, %8 : vector<9x128xf32>
    %10 = vector.extract_strided_slice %2 {offsets = [2, 0], sizes = [7, 128], strides = [1, 1]} : vector<9x128xf32> to vector<7x128xf32>
    %11 = vector.extract_strided_slice %2 {offsets = [0, 0], sizes = [2, 128], strides = [1, 1]} : vector<9x128xf32> to vector<2x128xf32>
    %12 = tpu.concatenate %10, %11 in 0 : vector<7x128xf32>, vector<2x128xf32> -> vector<9x128xf32>
    %13 = arith.mulf %2, %12 : vector<9x128xf32>
    %14 = vector.extract_strided_slice %2 {offsets = [3, 0], sizes = [6, 128], strides = [1, 1]} : vector<9x128xf32> to vector<6x128xf32>
    %15 = vector.extract_strided_slice %2 {offsets = [0, 0], sizes = [3, 128], strides = [1, 1]} : vector<9x128xf32> to vector<3x128xf32>
    %16 = tpu.concatenate %14, %15 in 0 : vector<6x128xf32>, vector<3x128xf32> -> vector<9x128xf32>
    %17 = arith.mulf %2, %16 : vector<9x128xf32>
    %18 = vector.extract_strided_slice %2 {offsets = [4, 0], sizes = [5, 128], strides = [1, 1]} : vector<9x128xf32> to vector<5x128xf32>
    %19 = vector.extract_strided_slice %2 {offsets = [0, 0], sizes = [4, 128], strides = [1, 1]} : vector<9x128xf32> to vector<4x128xf32>
    %20 = tpu.concatenate %18, %19 in 0 : vector<5x128xf32>, vector<4x128xf32> -> vector<9x128xf32>
    %21 = arith.mulf %2, %20 : vector<9x128xf32>
    %c0_4 = arith.constant 0 : index
    %c1 = arith.constant 1 : index
    %c0_5 = arith.constant 0 : index
    %c0_6 = arith.constant 0 : index
    %22 = vector.load %arg1[%c0_4, %c1, %c0_5, %c0_6] : memref<3x10x9x128xf32, #tpu.memory_space<vmem>>, vector<1x1x9x128xf32>
    %23 = vector.shape_cast %22 : vector<1x1x9x128xf32> to vector<9x128xf32>
    %24 = arith.addf %2, %23 : vector<9x128xf32>
    %25 = arith.mulf %23, %23 : vector<9x128xf32>
    %26 = arith.addf %3, %25 : vector<9x128xf32>
    %cst_7 = arith.constant 0.0363636352 : f32
    %27 = vector.broadcast %cst_7 : f32 to vector<9x128xf32>
    %28 = arith.mulf %23, %27 : vector<9x128xf32>
    %29 = arith.addf %5, %28 : vector<9x128xf32>
    %30 = vector.extract_strided_slice %23 {offsets = [1, 0], sizes = [8, 128], strides = [1, 1]} : vector<9x128xf32> to vector<8x128xf32>
    %31 = vector.extract_strided_slice %23 {offsets = [0, 0], sizes = [1, 128], strides = [1, 1]} : vector<9x128xf32> to vector<1x128xf32>
    %32 = tpu.concatenate %30, %31 in 0 : vector<8x128xf32>, vector<1x128xf32> -> vector<9x128xf32>
    %33 = arith.mulf %23, %32 : vector<9x128xf32>
    %34 = arith.addf %9, %33 : vector<9x128xf32>
    %35 = vector.extract_strided_slice %23 {offsets = [2, 0], sizes = [7, 128], strides = [1, 1]} : vector<9x128xf32> to vector<7x128xf32>
    %36 = vector.extract_strided_slice %23 {offsets = [0, 0], sizes = [2, 128], strides = [1, 1]} : vector<9x128xf32> to vector<2x128xf32>
    %37 = tpu.concatenate %35, %36 in 0 : vector<7x128xf32>, vector<2x128xf32> -> vector<9x128xf32>
    %38 = arith.mulf %23, %37 : vector<9x128xf32>
    %39 = arith.addf %13, %38 : vector<9x128xf32>
    %40 = vector.extract_strided_slice %23 {offsets = [3, 0], sizes = [6, 128], strides = [1, 1]} : vector<9x128xf32> to vector<6x128xf32>
    %41 = vector.extract_strided_slice %23 {offsets = [0, 0], sizes = [3, 128], strides = [1, 1]} : vector<9x128xf32> to vector<3x128xf32>
    %42 = tpu.concatenate %40, %41 in 0 : vector<6x128xf32>, vector<3x128xf32> -> vector<9x128xf32>
    %43 = arith.mulf %23, %42 : vector<9x128xf32>
    %44 = arith.addf %17, %43 : vector<9x128xf32>
    %45 = vector.extract_strided_slice %23 {offsets = [4, 0], sizes = [5, 128], strides = [1, 1]} : vector<9x128xf32> to vector<5x128xf32>
    %46 = vector.extract_strided_slice %23 {offsets = [0, 0], sizes = [4, 128], strides = [1, 1]} : vector<9x128xf32> to vector<4x128xf32>
    %47 = tpu.concatenate %45, %46 in 0 : vector<5x128xf32>, vector<4x128xf32> -> vector<9x128xf32>
    %48 = arith.mulf %23, %47 : vector<9x128xf32>
    %49 = arith.addf %21, %48 : vector<9x128xf32>
    %c0_8 = arith.constant 0 : index
    %c2 = arith.constant 2 : index
    %c0_9 = arith.constant 0 : index
    %c0_10 = arith.constant 0 : index
    %50 = vector.load %arg1[%c0_8, %c2, %c0_9, %c0_10] : memref<3x10x9x128xf32, #tpu.memory_space<vmem>>, vector<1x1x9x128xf32>
    %51 = vector.shape_cast %50 : vector<1x1x9x128xf32> to vector<9x128xf32>
    %52 = arith.addf %24, %51 : vector<9x128xf32>
    %53 = arith.mulf %51, %51 : vector<9x128xf32>
    %54 = arith.addf %26, %53 : vector<9x128xf32>
    %cst_11 = arith.constant 0.0545454547 : f32
    %55 = vector.broadcast %cst_11 : f32 to vector<9x128xf32>
    %56 = arith.mulf %51, %55 : vector<9x128xf32>
    %57 = arith.addf %29, %56 : vector<9x128xf32>
    %58 = vector.extract_strided_slice %51 {offsets = [1, 0], sizes = [8, 128], strides = [1, 1]} : vector<9x128xf32> to vector<8x128xf32>
    %59 = vector.extract_strided_slice %51 {offsets = [0, 0], sizes = [1, 128], strides = [1, 1]} : vector<9x128xf32> to vector<1x128xf32>
    %60 = tpu.concatenate %58, %59 in 0 : vector<8x128xf32>, vector<1x128xf32> -> vector<9x128xf32>
    %61 = arith.mulf %51, %60 : vector<9x128xf32>
    %62 = arith.addf %34, %61 : vector<9x128xf32>
    %63 = vector.extract_strided_slice %51 {offsets = [2, 0], sizes = [7, 128], strides = [1, 1]} : vector<9x128xf32> to vector<7x128xf32>
    %64 = vector.extract_strided_slice %51 {offsets = [0, 0], sizes = [2, 128], strides = [1, 1]} : vector<9x128xf32> to vector<2x128xf32>
    %65 = tpu.concatenate %63, %64 in 0 : vector<7x128xf32>, vector<2x128xf32> -> vector<9x128xf32>
    %66 = arith.mulf %51, %65 : vector<9x128xf32>
    %67 = arith.addf %39, %66 : vector<9x128xf32>
    %68 = vector.extract_strided_slice %51 {offsets = [3, 0], sizes = [6, 128], strides = [1, 1]} : vector<9x128xf32> to vector<6x128xf32>
    %69 = vector.extract_strided_slice %51 {offsets = [0, 0], sizes = [3, 128], strides = [1, 1]} : vector<9x128xf32> to vector<3x128xf32>
    %70 = tpu.concatenate %68, %69 in 0 : vector<6x128xf32>, vector<3x128xf32> -> vector<9x128xf32>
    %71 = arith.mulf %51, %70 : vector<9x128xf32>
    %72 = arith.addf %44, %71 : vector<9x128xf32>
    %73 = vector.extract_strided_slice %51 {offsets = [4, 0], sizes = [5, 128], strides = [1, 1]} : vector<9x128xf32> to vector<5x128xf32>
    %74 = vector.extract_strided_slice %51 {offsets = [0, 0], sizes = [4, 128], strides = [1, 1]} : vector<9x128xf32> to vector<4x128xf32>
    %75 = tpu.concatenate %73, %74 in 0 : vector<5x128xf32>, vector<4x128xf32> -> vector<9x128xf32>
    %76 = arith.mulf %51, %75 : vector<9x128xf32>
    %77 = arith.addf %49, %76 : vector<9x128xf32>
    %c0_12 = arith.constant 0 : index
    %c3 = arith.constant 3 : index
    %c0_13 = arith.constant 0 : index
    %c0_14 = arith.constant 0 : index
    %78 = vector.load %arg1[%c0_12, %c3, %c0_13, %c0_14] : memref<3x10x9x128xf32, #tpu.memory_space<vmem>>, vector<1x1x9x128xf32>
    %79 = vector.shape_cast %78 : vector<1x1x9x128xf32> to vector<9x128xf32>
    %80 = arith.addf %52, %79 : vector<9x128xf32>
    %81 = arith.mulf %79, %79 : vector<9x128xf32>
    %82 = arith.addf %54, %81 : vector<9x128xf32>
    %cst_15 = arith.constant 0.0727272704 : f32
    %83 = vector.broadcast %cst_15 : f32 to vector<9x128xf32>
    %84 = arith.mulf %79, %83 : vector<9x128xf32>
    %85 = arith.addf %57, %84 : vector<9x128xf32>
    %86 = vector.extract_strided_slice %79 {offsets = [1, 0], sizes = [8, 128], strides = [1, 1]} : vector<9x128xf32> to vector<8x128xf32>
    %87 = vector.extract_strided_slice %79 {offsets = [0, 0], sizes = [1, 128], strides = [1, 1]} : vector<9x128xf32> to vector<1x128xf32>
    %88 = tpu.concatenate %86, %87 in 0 : vector<8x128xf32>, vector<1x128xf32> -> vector<9x128xf32>
    %89 = arith.mulf %79, %88 : vector<9x128xf32>
    %90 = arith.addf %62, %89 : vector<9x128xf32>
    %91 = vector.extract_strided_slice %79 {offsets = [2, 0], sizes = [7, 128], strides = [1, 1]} : vector<9x128xf32> to vector<7x128xf32>
    %92 = vector.extract_strided_slice %79 {offsets = [0, 0], sizes = [2, 128], strides = [1, 1]} : vector<9x128xf32> to vector<2x128xf32>
    %93 = tpu.concatenate %91, %92 in 0 : vector<7x128xf32>, vector<2x128xf32> -> vector<9x128xf32>
    %94 = arith.mulf %79, %93 : vector<9x128xf32>
    %95 = arith.addf %67, %94 : vector<9x128xf32>
    %96 = vector.extract_strided_slice %79 {offsets = [3, 0], sizes = [6, 128], strides = [1, 1]} : vector<9x128xf32> to vector<6x128xf32>
    %97 = vector.extract_strided_slice %79 {offsets = [0, 0], sizes = [3, 128], strides = [1, 1]} : vector<9x128xf32> to vector<3x128xf32>
    %98 = tpu.concatenate %96, %97 in 0 : vector<6x128xf32>, vector<3x128xf32> -> vector<9x128xf32>
    %99 = arith.mulf %79, %98 : vector<9x128xf32>
    %100 = arith.addf %72, %99 : vector<9x128xf32>
    %101 = vector.extract_strided_slice %79 {offsets = [4, 0], sizes = [5, 128], strides = [1, 1]} : vector<9x128xf32> to vector<5x128xf32>
    %102 = vector.extract_strided_slice %79 {offsets = [0, 0], sizes = [4, 128], strides = [1, 1]} : vector<9x128xf32> to vector<4x128xf32>
    %103 = tpu.concatenate %101, %102 in 0 : vector<5x128xf32>, vector<4x128xf32> -> vector<9x128xf32>
    %104 = arith.mulf %79, %103 : vector<9x128xf32>
    %105 = arith.addf %77, %104 : vector<9x128xf32>
    %c0_16 = arith.constant 0 : index
    %c4 = arith.constant 4 : index
    %c0_17 = arith.constant 0 : index
    %c0_18 = arith.constant 0 : index
    %106 = vector.load %arg1[%c0_16, %c4, %c0_17, %c0_18] : memref<3x10x9x128xf32, #tpu.memory_space<vmem>>, vector<1x1x9x128xf32>
    %107 = vector.shape_cast %106 : vector<1x1x9x128xf32> to vector<9x128xf32>
    %108 = arith.addf %80, %107 : vector<9x128xf32>
    %109 = arith.mulf %107, %107 : vector<9x128xf32>
    %110 = arith.addf %82, %109 : vector<9x128xf32>
    %cst_19 = arith.constant 0.0909090936 : f32
    %111 = vector.broadcast %cst_19 : f32 to vector<9x128xf32>
    %112 = arith.mulf %107, %111 : vector<9x128xf32>
    %113 = arith.addf %85, %112 : vector<9x128xf32>
    %114 = vector.extract_strided_slice %107 {offsets = [1, 0], sizes = [8, 128], strides = [1, 1]} : vector<9x128xf32> to vector<8x128xf32>
    %115 = vector.extract_strided_slice %107 {offsets = [0, 0], sizes = [1, 128], strides = [1, 1]} : vector<9x128xf32> to vector<1x128xf32>
    %116 = tpu.concatenate %114, %115 in 0 : vector<8x128xf32>, vector<1x128xf32> -> vector<9x128xf32>
    %117 = arith.mulf %107, %116 : vector<9x128xf32>
    %118 = arith.addf %90, %117 : vector<9x128xf32>
    %119 = vector.extract_strided_slice %107 {offsets = [2, 0], sizes = [7, 128], strides = [1, 1]} : vector<9x128xf32> to vector<7x128xf32>
    %120 = vector.extract_strided_slice %107 {offsets = [0, 0], sizes = [2, 128], strides = [1, 1]} : vector<9x128xf32> to vector<2x128xf32>
    %121 = tpu.concatenate %119, %120 in 0 : vector<7x128xf32>, vector<2x128xf32> -> vector<9x128xf32>
    %122 = arith.mulf %107, %121 : vector<9x128xf32>
    %123 = arith.addf %95, %122 : vector<9x128xf32>
    %124 = vector.extract_strided_slice %107 {offsets = [3, 0], sizes = [6, 128], strides = [1, 1]} : vector<9x128xf32> to vector<6x128xf32>
    %125 = vector.extract_strided_slice %107 {offsets = [0, 0], sizes = [3, 128], strides = [1, 1]} : vector<9x128xf32> to vector<3x128xf32>
    %126 = tpu.concatenate %124, %125 in 0 : vector<6x128xf32>, vector<3x128xf32> -> vector<9x128xf32>
    %127 = arith.mulf %107, %126 : vector<9x128xf32>
    %128 = arith.addf %100, %127 : vector<9x128xf32>
    %129 = vector.extract_strided_slice %107 {offsets = [4, 0], sizes = [5, 128], strides = [1, 1]} : vector<9x128xf32> to vector<5x128xf32>
    %130 = vector.extract_strided_slice %107 {offsets = [0, 0], sizes = [4, 128], strides = [1, 1]} : vector<9x128xf32> to vector<4x128xf32>
    %131 = tpu.concatenate %129, %130 in 0 : vector<5x128xf32>, vector<4x128xf32> -> vector<9x128xf32>
    %132 = arith.mulf %107, %131 : vector<9x128xf32>
    %133 = arith.addf %105, %132 : vector<9x128xf32>
    %c0_20 = arith.constant 0 : index
    %c5 = arith.constant 5 : index
    %c0_21 = arith.constant 0 : index
    %c0_22 = arith.constant 0 : index
    %134 = vector.load %arg1[%c0_20, %c5, %c0_21, %c0_22] : memref<3x10x9x128xf32, #tpu.memory_space<vmem>>, vector<1x1x9x128xf32>
    %135 = vector.shape_cast %134 : vector<1x1x9x128xf32> to vector<9x128xf32>
    %136 = arith.addf %108, %135 : vector<9x128xf32>
    %137 = arith.mulf %135, %135 : vector<9x128xf32>
    %138 = arith.addf %110, %137 : vector<9x128xf32>
    %cst_23 = arith.constant 0.109090909 : f32
    %139 = vector.broadcast %cst_23 : f32 to vector<9x128xf32>
    %140 = arith.mulf %135, %139 : vector<9x128xf32>
    %141 = arith.addf %113, %140 : vector<9x128xf32>
    %142 = vector.extract_strided_slice %135 {offsets = [1, 0], sizes = [8, 128], strides = [1, 1]} : vector<9x128xf32> to vector<8x128xf32>
    %143 = vector.extract_strided_slice %135 {offsets = [0, 0], sizes = [1, 128], strides = [1, 1]} : vector<9x128xf32> to vector<1x128xf32>
    %144 = tpu.concatenate %142, %143 in 0 : vector<8x128xf32>, vector<1x128xf32> -> vector<9x128xf32>
    %145 = arith.mulf %135, %144 : vector<9x128xf32>
    %146 = arith.addf %118, %145 : vector<9x128xf32>
    %147 = vector.extract_strided_slice %135 {offsets = [2, 0], sizes = [7, 128], strides = [1, 1]} : vector<9x128xf32> to vector<7x128xf32>
    %148 = vector.extract_strided_slice %135 {offsets = [0, 0], sizes = [2, 128], strides = [1, 1]} : vector<9x128xf32> to vector<2x128xf32>
    %149 = tpu.concatenate %147, %148 in 0 : vector<7x128xf32>, vector<2x128xf32> -> vector<9x128xf32>
    %150 = arith.mulf %135, %149 : vector<9x128xf32>
    %151 = arith.addf %123, %150 : vector<9x128xf32>
    %152 = vector.extract_strided_slice %135 {offsets = [3, 0], sizes = [6, 128], strides = [1, 1]} : vector<9x128xf32> to vector<6x128xf32>
    %153 = vector.extract_strided_slice %135 {offsets = [0, 0], sizes = [3, 128], strides = [1, 1]} : vector<9x128xf32> to vector<3x128xf32>
    %154 = tpu.concatenate %152, %153 in 0 : vector<6x128xf32>, vector<3x128xf32> -> vector<9x128xf32>
    %155 = arith.mulf %135, %154 : vector<9x128xf32>
    %156 = arith.addf %128, %155 : vector<9x128xf32>
    %157 = vector.extract_strided_slice %135 {offsets = [4, 0], sizes = [5, 128], strides = [1, 1]} : vector<9x128xf32> to vector<5x128xf32>
    %158 = vector.extract_strided_slice %135 {offsets = [0, 0], sizes = [4, 128], strides = [1, 1]} : vector<9x128xf32> to vector<4x128xf32>
    %159 = tpu.concatenate %157, %158 in 0 : vector<5x128xf32>, vector<4x128xf32> -> vector<9x128xf32>
    %160 = arith.mulf %135, %159 : vector<9x128xf32>
    %161 = arith.addf %133, %160 : vector<9x128xf32>
    %c0_24 = arith.constant 0 : index
    %c6 = arith.constant 6 : index
    %c0_25 = arith.constant 0 : index
    %c0_26 = arith.constant 0 : index
    %162 = vector.load %arg1[%c0_24, %c6, %c0_25, %c0_26] : memref<3x10x9x128xf32, #tpu.memory_space<vmem>>, vector<1x1x9x128xf32>
    %163 = vector.shape_cast %162 : vector<1x1x9x128xf32> to vector<9x128xf32>
    %164 = arith.addf %136, %163 : vector<9x128xf32>
    %165 = arith.mulf %163, %163 : vector<9x128xf32>
    %166 = arith.addf %138, %165 : vector<9x128xf32>
    %cst_27 = arith.constant 0.127272725 : f32
    %167 = vector.broadcast %cst_27 : f32 to vector<9x128xf32>
    %168 = arith.mulf %163, %167 : vector<9x128xf32>
    %169 = arith.addf %141, %168 : vector<9x128xf32>
    %170 = vector.extract_strided_slice %163 {offsets = [1, 0], sizes = [8, 128], strides = [1, 1]} : vector<9x128xf32> to vector<8x128xf32>
    %171 = vector.extract_strided_slice %163 {offsets = [0, 0], sizes = [1, 128], strides = [1, 1]} : vector<9x128xf32> to vector<1x128xf32>
    %172 = tpu.concatenate %170, %171 in 0 : vector<8x128xf32>, vector<1x128xf32> -> vector<9x128xf32>
    %173 = arith.mulf %163, %172 : vector<9x128xf32>
    %174 = arith.addf %146, %173 : vector<9x128xf32>
    %175 = vector.extract_strided_slice %163 {offsets = [2, 0], sizes = [7, 128], strides = [1, 1]} : vector<9x128xf32> to vector<7x128xf32>
    %176 = vector.extract_strided_slice %163 {offsets = [0, 0], sizes = [2, 128], strides = [1, 1]} : vector<9x128xf32> to vector<2x128xf32>
    %177 = tpu.concatenate %175, %176 in 0 : vector<7x128xf32>, vector<2x128xf32> -> vector<9x128xf32>
    %178 = arith.mulf %163, %177 : vector<9x128xf32>
    %179 = arith.addf %151, %178 : vector<9x128xf32>
    %180 = vector.extract_strided_slice %163 {offsets = [3, 0], sizes = [6, 128], strides = [1, 1]} : vector<9x128xf32> to vector<6x128xf32>
    %181 = vector.extract_strided_slice %163 {offsets = [0, 0], sizes = [3, 128], strides = [1, 1]} : vector<9x128xf32> to vector<3x128xf32>
    %182 = tpu.concatenate %180, %181 in 0 : vector<6x128xf32>, vector<3x128xf32> -> vector<9x128xf32>
    %183 = arith.mulf %163, %182 : vector<9x128xf32>
    %184 = arith.addf %156, %183 : vector<9x128xf32>
    %185 = vector.extract_strided_slice %163 {offsets = [4, 0], sizes = [5, 128], strides = [1, 1]} : vector<9x128xf32> to vector<5x128xf32>
    %186 = vector.extract_strided_slice %163 {offsets = [0, 0], sizes = [4, 128], strides = [1, 1]} : vector<9x128xf32> to vector<4x128xf32>
    %187 = tpu.concatenate %185, %186 in 0 : vector<5x128xf32>, vector<4x128xf32> -> vector<9x128xf32>
    %188 = arith.mulf %163, %187 : vector<9x128xf32>
    %189 = arith.addf %161, %188 : vector<9x128xf32>
    %c0_28 = arith.constant 0 : index
    %c7 = arith.constant 7 : index
    %c0_29 = arith.constant 0 : index
    %c0_30 = arith.constant 0 : index
    %190 = vector.load %arg1[%c0_28, %c7, %c0_29, %c0_30] : memref<3x10x9x128xf32, #tpu.memory_space<vmem>>, vector<1x1x9x128xf32>
    %191 = vector.shape_cast %190 : vector<1x1x9x128xf32> to vector<9x128xf32>
    %192 = arith.addf %164, %191 : vector<9x128xf32>
    %193 = arith.mulf %191, %191 : vector<9x128xf32>
    %194 = arith.addf %166, %193 : vector<9x128xf32>
    %cst_31 = arith.constant 0.145454541 : f32
    %195 = vector.broadcast %cst_31 : f32 to vector<9x128xf32>
    %196 = arith.mulf %191, %195 : vector<9x128xf32>
    %197 = arith.addf %169, %196 : vector<9x128xf32>
    %198 = vector.extract_strided_slice %191 {offsets = [1, 0], sizes = [8, 128], strides = [1, 1]} : vector<9x128xf32> to vector<8x128xf32>
    %199 = vector.extract_strided_slice %191 {offsets = [0, 0], sizes = [1, 128], strides = [1, 1]} : vector<9x128xf32> to vector<1x128xf32>
    %200 = tpu.concatenate %198, %199 in 0 : vector<8x128xf32>, vector<1x128xf32> -> vector<9x128xf32>
    %201 = arith.mulf %191, %200 : vector<9x128xf32>
    %202 = arith.addf %174, %201 : vector<9x128xf32>
    %203 = vector.extract_strided_slice %191 {offsets = [2, 0], sizes = [7, 128], strides = [1, 1]} : vector<9x128xf32> to vector<7x128xf32>
    %204 = vector.extract_strided_slice %191 {offsets = [0, 0], sizes = [2, 128], strides = [1, 1]} : vector<9x128xf32> to vector<2x128xf32>
    %205 = tpu.concatenate %203, %204 in 0 : vector<7x128xf32>, vector<2x128xf32> -> vector<9x128xf32>
    %206 = arith.mulf %191, %205 : vector<9x128xf32>
    %207 = arith.addf %179, %206 : vector<9x128xf32>
    %208 = vector.extract_strided_slice %191 {offsets = [3, 0], sizes = [6, 128], strides = [1, 1]} : vector<9x128xf32> to vector<6x128xf32>
    %209 = vector.extract_strided_slice %191 {offsets = [0, 0], sizes = [3, 128], strides = [1, 1]} : vector<9x128xf32> to vector<3x128xf32>
    %210 = tpu.concatenate %208, %209 in 0 : vector<6x128xf32>, vector<3x128xf32> -> vector<9x128xf32>
    %211 = arith.mulf %191, %210 : vector<9x128xf32>
    %212 = arith.addf %184, %211 : vector<9x128xf32>
    %213 = vector.extract_strided_slice %191 {offsets = [4, 0], sizes = [5, 128], strides = [1, 1]} : vector<9x128xf32> to vector<5x128xf32>
    %214 = vector.extract_strided_slice %191 {offsets = [0, 0], sizes = [4, 128], strides = [1, 1]} : vector<9x128xf32> to vector<4x128xf32>
    %215 = tpu.concatenate %213, %214 in 0 : vector<5x128xf32>, vector<4x128xf32> -> vector<9x128xf32>
    %216 = arith.mulf %191, %215 : vector<9x128xf32>
    %217 = arith.addf %189, %216 : vector<9x128xf32>
    %c0_32 = arith.constant 0 : index
    %c8 = arith.constant 8 : index
    %c0_33 = arith.constant 0 : index
    %c0_34 = arith.constant 0 : index
    %218 = vector.load %arg1[%c0_32, %c8, %c0_33, %c0_34] : memref<3x10x9x128xf32, #tpu.memory_space<vmem>>, vector<1x1x9x128xf32>
    %219 = vector.shape_cast %218 : vector<1x1x9x128xf32> to vector<9x128xf32>
    %220 = arith.addf %192, %219 : vector<9x128xf32>
    %221 = arith.mulf %219, %219 : vector<9x128xf32>
    %222 = arith.addf %194, %221 : vector<9x128xf32>
    %cst_35 = arith.constant 0.163636357 : f32
    %223 = vector.broadcast %cst_35 : f32 to vector<9x128xf32>
    %224 = arith.mulf %219, %223 : vector<9x128xf32>
    %225 = arith.addf %197, %224 : vector<9x128xf32>
    %226 = vector.extract_strided_slice %219 {offsets = [1, 0], sizes = [8, 128], strides = [1, 1]} : vector<9x128xf32> to vector<8x128xf32>
    %227 = vector.extract_strided_slice %219 {offsets = [0, 0], sizes = [1, 128], strides = [1, 1]} : vector<9x128xf32> to vector<1x128xf32>
    %228 = tpu.concatenate %226, %227 in 0 : vector<8x128xf32>, vector<1x128xf32> -> vector<9x128xf32>
    %229 = arith.mulf %219, %228 : vector<9x128xf32>
    %230 = arith.addf %202, %229 : vector<9x128xf32>
    %231 = vector.extract_strided_slice %219 {offsets = [2, 0], sizes = [7, 128], strides = [1, 1]} : vector<9x128xf32> to vector<7x128xf32>
    %232 = vector.extract_strided_slice %219 {offsets = [0, 0], sizes = [2, 128], strides = [1, 1]} : vector<9x128xf32> to vector<2x128xf32>
    %233 = tpu.concatenate %231, %232 in 0 : vector<7x128xf32>, vector<2x128xf32> -> vector<9x128xf32>
    %234 = arith.mulf %219, %233 : vector<9x128xf32>
    %235 = arith.addf %207, %234 : vector<9x128xf32>
    %236 = vector.extract_strided_slice %219 {offsets = [3, 0], sizes = [6, 128], strides = [1, 1]} : vector<9x128xf32> to vector<6x128xf32>
    %237 = vector.extract_strided_slice %219 {offsets = [0, 0], sizes = [3, 128], strides = [1, 1]} : vector<9x128xf32> to vector<3x128xf32>
    %238 = tpu.concatenate %236, %237 in 0 : vector<6x128xf32>, vector<3x128xf32> -> vector<9x128xf32>
    %239 = arith.mulf %219, %238 : vector<9x128xf32>
    %240 = arith.addf %212, %239 : vector<9x128xf32>
    %241 = vector.extract_strided_slice %219 {offsets = [4, 0], sizes = [5, 128], strides = [1, 1]} : vector<9x128xf32> to vector<5x128xf32>
    %242 = vector.extract_strided_slice %219 {offsets = [0, 0], sizes = [4, 128], strides = [1, 1]} : vector<9x128xf32> to vector<4x128xf32>
    %243 = tpu.concatenate %241, %242 in 0 : vector<5x128xf32>, vector<4x128xf32> -> vector<9x128xf32>
    %244 = arith.mulf %219, %243 : vector<9x128xf32>
    %245 = arith.addf %217, %244 : vector<9x128xf32>
    %c0_36 = arith.constant 0 : index
    %c9 = arith.constant 9 : index
    %c0_37 = arith.constant 0 : index
    %c0_38 = arith.constant 0 : index
    %246 = vector.load %arg1[%c0_36, %c9, %c0_37, %c0_38] : memref<3x10x9x128xf32, #tpu.memory_space<vmem>>, vector<1x1x9x128xf32>
    %247 = vector.shape_cast %246 : vector<1x1x9x128xf32> to vector<9x128xf32>
    %248 = arith.addf %220, %247 : vector<9x128xf32>
    %249 = arith.mulf %247, %247 : vector<9x128xf32>
    %250 = arith.addf %222, %249 : vector<9x128xf32>
    %cst_39 = arith.constant 0.181818187 : f32
    %251 = vector.broadcast %cst_39 : f32 to vector<9x128xf32>
    %252 = arith.mulf %247, %251 : vector<9x128xf32>
    %253 = arith.addf %225, %252 : vector<9x128xf32>
    %254 = vector.extract_strided_slice %247 {offsets = [1, 0], sizes = [8, 128], strides = [1, 1]} : vector<9x128xf32> to vector<8x128xf32>
    %255 = vector.extract_strided_slice %247 {offsets = [0, 0], sizes = [1, 128], strides = [1, 1]} : vector<9x128xf32> to vector<1x128xf32>
    %256 = tpu.concatenate %254, %255 in 0 : vector<8x128xf32>, vector<1x128xf32> -> vector<9x128xf32>
    %257 = arith.mulf %247, %256 : vector<9x128xf32>
    %258 = arith.addf %230, %257 : vector<9x128xf32>
    %259 = vector.extract_strided_slice %247 {offsets = [2, 0], sizes = [7, 128], strides = [1, 1]} : vector<9x128xf32> to vector<7x128xf32>
    %260 = vector.extract_strided_slice %247 {offsets = [0, 0], sizes = [2, 128], strides = [1, 1]} : vector<9x128xf32> to vector<2x128xf32>
    %261 = tpu.concatenate %259, %260 in 0 : vector<7x128xf32>, vector<2x128xf32> -> vector<9x128xf32>
    %262 = arith.mulf %247, %261 : vector<9x128xf32>
    %263 = arith.addf %235, %262 : vector<9x128xf32>
    %264 = vector.extract_strided_slice %247 {offsets = [3, 0], sizes = [6, 128], strides = [1, 1]} : vector<9x128xf32> to vector<6x128xf32>
    %265 = vector.extract_strided_slice %247 {offsets = [0, 0], sizes = [3, 128], strides = [1, 1]} : vector<9x128xf32> to vector<3x128xf32>
    %266 = tpu.concatenate %264, %265 in 0 : vector<6x128xf32>, vector<3x128xf32> -> vector<9x128xf32>
    %267 = arith.mulf %247, %266 : vector<9x128xf32>
    %268 = arith.addf %240, %267 : vector<9x128xf32>
    %269 = vector.extract_strided_slice %247 {offsets = [4, 0], sizes = [5, 128], strides = [1, 1]} : vector<9x128xf32> to vector<5x128xf32>
    %270 = vector.extract_strided_slice %247 {offsets = [0, 0], sizes = [4, 128], strides = [1, 1]} : vector<9x128xf32> to vector<4x128xf32>
    %271 = tpu.concatenate %269, %270 in 0 : vector<5x128xf32>, vector<4x128xf32> -> vector<9x128xf32>
    %272 = arith.mulf %247, %271 : vector<9x128xf32>
    %273 = arith.addf %245, %272 : vector<9x128xf32>
    %cst_40 = arith.constant 1.000000e-01 : f32
    %274 = vector.broadcast %cst_40 : f32 to vector<9x128xf32>
    %275 = arith.mulf %248, %274 : vector<9x128xf32>
    %cst_41 = arith.constant 1.000000e-01 : f32
    %276 = vector.broadcast %cst_41 : f32 to vector<9x128xf32>
    %277 = arith.mulf %250, %276 : vector<9x128xf32>
    %278 = arith.mulf %275, %275 : vector<9x128xf32>
    %279 = arith.subf %277, %278 : vector<9x128xf32>
    %280 = math.rsqrt %279 : vector<9x128xf32>
    %281 = arith.mulf %279, %280 : vector<9x128xf32>
    %282 = arith.mulf %275, %280 : vector<9x128xf32>
    %c0_42 = arith.constant 0 : index
    %c9_43 = arith.constant 9 : index
    %c0_44 = arith.constant 0 : index
    %c0_45 = arith.constant 0 : index
    %283 = vector.load %arg1[%c0_42, %c9_43, %c0_44, %c0_45] : memref<3x10x9x128xf32, #tpu.memory_space<vmem>>, vector<1x1x9x128xf32>
    %284 = vector.shape_cast %283 : vector<1x1x9x128xf32> to vector<9x128xf32>
    %c0_46 = arith.constant 0 : index
    %c0_47 = arith.constant 0 : index
    %c0_48 = arith.constant 0 : index
    %c0_49 = arith.constant 0 : index
    %285 = vector.load %arg1[%c0_46, %c0_47, %c0_48, %c0_49] : memref<3x10x9x128xf32, #tpu.memory_space<vmem>>, vector<1x1x9x128xf32>
    %286 = vector.shape_cast %285 : vector<1x1x9x128xf32> to vector<9x128xf32>
    %287 = arith.divf %284, %286 : vector<9x128xf32>
    %cst_50 = arith.constant 1.000000e+00 : f32
    %288 = vector.broadcast %cst_50 : f32 to vector<9x128xf32>
    %289 = arith.subf %287, %288 : vector<9x128xf32>
    %290 = vector.extract_strided_slice %275 {offsets = [1, 0], sizes = [8, 128], strides = [1, 1]} : vector<9x128xf32> to vector<8x128xf32>
    %291 = vector.extract_strided_slice %275 {offsets = [0, 0], sizes = [1, 128], strides = [1, 1]} : vector<9x128xf32> to vector<1x128xf32>
    %292 = tpu.concatenate %290, %291 in 0 : vector<8x128xf32>, vector<1x128xf32> -> vector<9x128xf32>
    %293 = vector.extract_strided_slice %280 {offsets = [1, 0], sizes = [8, 128], strides = [1, 1]} : vector<9x128xf32> to vector<8x128xf32>
    %294 = vector.extract_strided_slice %280 {offsets = [0, 0], sizes = [1, 128], strides = [1, 1]} : vector<9x128xf32> to vector<1x128xf32>
    %295 = tpu.concatenate %293, %294 in 0 : vector<8x128xf32>, vector<1x128xf32> -> vector<9x128xf32>
    %cst_51 = arith.constant 1.000000e-01 : f32
    %296 = vector.broadcast %cst_51 : f32 to vector<9x128xf32>
    %297 = arith.mulf %258, %296 : vector<9x128xf32>
    %298 = arith.mulf %275, %292 : vector<9x128xf32>
    %299 = arith.subf %297, %298 : vector<9x128xf32>
    %300 = arith.mulf %280, %295 : vector<9x128xf32>
    %301 = arith.mulf %299, %300 : vector<9x128xf32>
    %302 = tpu.concatenate %301, %0 in 0 : vector<9x128xf32>, vector<7x128xf32> -> vector<16x128xf32>
    %c0_52 = arith.constant 0 : index
    %c0_53 = arith.constant 0 : index
    %c0_54 = arith.constant 0 : index
    %303 = vector.load %arg7[%c0_52, %c0_53, %c0_54] : memref<6x208x128xf32, #tpu.memory_space<vmem>>, vector<1x16x128xf32>
    %304 = vector.shape_cast %303 : vector<1x16x128xf32> to vector<16x128xf32>
    %305 = vector.shape_cast %302 : vector<16x128xf32> to vector<1x16x128xf32>
    tpu.vector_store %arg7[%c0_52, %c0_53, %c0_54], %305 {strides = array<i32>} : memref<6x208x128xf32, #tpu.memory_space<vmem>>, vector<1x16x128xf32>,
    %306 = tpu.concatenate %299, %0 in 0 : vector<9x128xf32>, vector<7x128xf32> -> vector<16x128xf32>
    %c0_55 = arith.constant 0 : index
    %c64 = arith.constant 64 : index
    %c0_56 = arith.constant 0 : index
    %307 = vector.load %arg7[%c0_55, %c64, %c0_56] : memref<6x208x128xf32, #tpu.memory_space<vmem>>, vector<1x16x128xf32>
    %308 = vector.shape_cast %307 : vector<1x16x128xf32> to vector<16x128xf32>
    %309 = vector.shape_cast %306 : vector<16x128xf32> to vector<1x16x128xf32>
    tpu.vector_store %arg7[%c0_55, %c64, %c0_56], %309 {strides = array<i32>} : memref<6x208x128xf32, #tpu.memory_space<vmem>>, vector<1x16x128xf32>,
    %310 = vector.extract_strided_slice %275 {offsets = [2, 0], sizes = [7, 128], strides = [1, 1]} : vector<9x128xf32> to vector<7x128xf32>
    %311 = vector.extract_strided_slice %275 {offsets = [0, 0], sizes = [2, 128], strides = [1, 1]} : vector<9x128xf32> to vector<2x128xf32>
    %312 = tpu.concatenate %310, %311 in 0 : vector<7x128xf32>, vector<2x128xf32> -> vector<9x128xf32>
    %313 = vector.extract_strided_slice %280 {offsets = [2, 0], sizes = [7, 128], strides = [1, 1]} : vector<9x128xf32> to vector<7x128xf32>
    %314 = vector.extract_strided_slice %280 {offsets = [0, 0], sizes = [2, 128], strides = [1, 1]} : vector<9x128xf32> to vector<2x128xf32>
    %315 = tpu.concatenate %313, %314 in 0 : vector<7x128xf32>, vector<2x128xf32> -> vector<9x128xf32>
    %cst_57 = arith.constant 1.000000e-01 : f32
    %316 = vector.broadcast %cst_57 : f32 to vector<9x128xf32>
    %317 = arith.mulf %263, %316 : vector<9x128xf32>
    %318 = arith.mulf %275, %312 : vector<9x128xf32>
    %319 = arith.subf %317, %318 : vector<9x128xf32>
    %320 = arith.mulf %280, %315 : vector<9x128xf32>
    %321 = arith.mulf %319, %320 : vector<9x128xf32>
    %322 = tpu.concatenate %321, %0 in 0 : vector<9x128xf32>, vector<7x128xf32> -> vector<16x128xf32>
    %c0_58 = arith.constant 0 : index
    %c16 = arith.constant 16 : index
    %c0_59 = arith.constant 0 : index
    %323 = vector.load %arg7[%c0_58, %c16, %c0_59] : memref<6x208x128xf32, #tpu.memory_space<vmem>>, vector<1x16x128xf32>
    %324 = vector.shape_cast %323 : vector<1x16x128xf32> to vector<16x128xf32>
    %325 = vector.shape_cast %322 : vector<16x128xf32> to vector<1x16x128xf32>
    tpu.vector_store %arg7[%c0_58, %c16, %c0_59], %325 {strides = array<i32>} : memref<6x208x128xf32, #tpu.memory_space<vmem>>, vector<1x16x128xf32>,
    %326 = tpu.concatenate %319, %0 in 0 : vector<9x128xf32>, vector<7x128xf32> -> vector<16x128xf32>
    %c0_60 = arith.constant 0 : index
    %c80 = arith.constant 80 : index
    %c0_61 = arith.constant 0 : index
    %327 = vector.load %arg7[%c0_60, %c80, %c0_61] : memref<6x208x128xf32, #tpu.memory_space<vmem>>, vector<1x16x128xf32>
    %328 = vector.shape_cast %327 : vector<1x16x128xf32> to vector<16x128xf32>
    %329 = vector.shape_cast %326 : vector<16x128xf32> to vector<1x16x128xf32>
    tpu.vector_store %arg7[%c0_60, %c80, %c0_61], %329 {strides = array<i32>} : memref<6x208x128xf32, #tpu.memory_space<vmem>>, vector<1x16x128xf32>,
    %330 = vector.extract_strided_slice %275 {offsets = [3, 0], sizes = [6, 128], strides = [1, 1]} : vector<9x128xf32> to vector<6x128xf32>
    %331 = vector.extract_strided_slice %275 {offsets = [0, 0], sizes = [3, 128], strides = [1, 1]} : vector<9x128xf32> to vector<3x128xf32>
    %332 = tpu.concatenate %330, %331 in 0 : vector<6x128xf32>, vector<3x128xf32> -> vector<9x128xf32>
    %333 = vector.extract_strided_slice %280 {offsets = [3, 0], sizes = [6, 128], strides = [1, 1]} : vector<9x128xf32> to vector<6x128xf32>
    %334 = vector.extract_strided_slice %280 {offsets = [0, 0], sizes = [3, 128], strides = [1, 1]} : vector<9x128xf32> to vector<3x128xf32>
    %335 = tpu.concatenate %333, %334 in 0 : vector<6x128xf32>, vector<3x128xf32> -> vector<9x128xf32>
    %cst_62 = arith.constant 1.000000e-01 : f32
    %336 = vector.broadcast %cst_62 : f32 to vector<9x128xf32>
    %337 = arith.mulf %268, %336 : vector<9x128xf32>
    %338 = arith.mulf %275, %332 : vector<9x128xf32>
    %339 = arith.subf %337, %338 : vector<9x128xf32>
    %340 = arith.mulf %280, %335 : vector<9x128xf32>
    %341 = arith.mulf %339, %340 : vector<9x128xf32>
    %342 = tpu.concatenate %341, %0 in 0 : vector<9x128xf32>, vector<7x128xf32> -> vector<16x128xf32>
    %c0_63 = arith.constant 0 : index
    %c32 = arith.constant 32 : index
    %c0_64 = arith.constant 0 : index
    %343 = vector.load %arg7[%c0_63, %c32, %c0_64] : memref<6x208x128xf32, #tpu.memory_space<vmem>>, vector<1x16x128xf32>
    %344 = vector.shape_cast %343 : vector<1x16x128xf32> to vector<16x128xf32>
    %345 = vector.shape_cast %342 : vector<16x128xf32> to vector<1x16x128xf32>
    tpu.vector_store %arg7[%c0_63, %c32, %c0_64], %345 {strides = array<i32>} : memref<6x208x128xf32, #tpu.memory_space<vmem>>, vector<1x16x128xf32>,
    %346 = tpu.concatenate %339, %0 in 0 : vector<9x128xf32>, vector<7x128xf32> -> vector<16x128xf32>
    %c0_65 = arith.constant 0 : index
    %c96 = arith.constant 96 : index
    %c0_66 = arith.constant 0 : index
    %347 = vector.load %arg7[%c0_65, %c96, %c0_66] : memref<6x208x128xf32, #tpu.memory_space<vmem>>, vector<1x16x128xf32>
    %348 = vector.shape_cast %347 : vector<1x16x128xf32> to vector<16x128xf32>
    %349 = vector.shape_cast %346 : vector<16x128xf32> to vector<1x16x128xf32>
    tpu.vector_store %arg7[%c0_65, %c96, %c0_66], %349 {strides = array<i32>} : memref<6x208x128xf32, #tpu.memory_space<vmem>>, vector<1x16x128xf32>,
    %350 = vector.extract_strided_slice %275 {offsets = [4, 0], sizes = [5, 128], strides = [1, 1]} : vector<9x128xf32> to vector<5x128xf32>
    %351 = vector.extract_strided_slice %275 {offsets = [0, 0], sizes = [4, 128], strides = [1, 1]} : vector<9x128xf32> to vector<4x128xf32>
    %352 = tpu.concatenate %350, %351 in 0 : vector<5x128xf32>, vector<4x128xf32> -> vector<9x128xf32>
    %353 = vector.extract_strided_slice %280 {offsets = [4, 0], sizes = [5, 128], strides = [1, 1]} : vector<9x128xf32> to vector<5x128xf32>
    %354 = vector.extract_strided_slice %280 {offsets = [0, 0], sizes = [4, 128], strides = [1, 1]} : vector<9x128xf32> to vector<4x128xf32>
    %355 = tpu.concatenate %353, %354 in 0 : vector<5x128xf32>, vector<4x128xf32> -> vector<9x128xf32>
    %cst_67 = arith.constant 1.000000e-01 : f32
    %356 = vector.broadcast %cst_67 : f32 to vector<9x128xf32>
    %357 = arith.mulf %273, %356 : vector<9x128xf32>
    %358 = arith.mulf %275, %352 : vector<9x128xf32>
    %359 = arith.subf %357, %358 : vector<9x128xf32>
    %360 = arith.mulf %280, %355 : vector<9x128xf32>
    %361 = arith.mulf %359, %360 : vector<9x128xf32>
    %362 = tpu.concatenate %361, %0 in 0 : vector<9x128xf32>, vector<7x128xf32> -> vector<16x128xf32>
    %c0_68 = arith.constant 0 : index
    %c48 = arith.constant 48 : index
    %c0_69 = arith.constant 0 : index
    %363 = vector.load %arg7[%c0_68, %c48, %c0_69] : memref<6x208x128xf32, #tpu.memory_space<vmem>>, vector<1x16x128xf32>
    %364 = vector.shape_cast %363 : vector<1x16x128xf32> to vector<16x128xf32>
    %365 = vector.shape_cast %362 : vector<16x128xf32> to vector<1x16x128xf32>
    tpu.vector_store %arg7[%c0_68, %c48, %c0_69], %365 {strides = array<i32>} : memref<6x208x128xf32, #tpu.memory_space<vmem>>, vector<1x16x128xf32>,
    %366 = tpu.concatenate %359, %0 in 0 : vector<9x128xf32>, vector<7x128xf32> -> vector<16x128xf32>
    %c0_70 = arith.constant 0 : index
    %c112 = arith.constant 112 : index
    %c0_71 = arith.constant 0 : index
    %367 = vector.load %arg7[%c0_70, %c112, %c0_71] : memref<6x208x128xf32, #tpu.memory_space<vmem>>, vector<1x16x128xf32>
    %368 = vector.shape_cast %367 : vector<1x16x128xf32> to vector<16x128xf32>
    %369 = vector.shape_cast %366 : vector<16x128xf32> to vector<1x16x128xf32>
    tpu.vector_store %arg7[%c0_70, %c112, %c0_71], %369 {strides = array<i32>} : memref<6x208x128xf32, #tpu.memory_space<vmem>>, vector<1x16x128xf32>,
    %370 = tpu.concatenate %281, %0 in 0 : vector<9x128xf32>, vector<7x128xf32> -> vector<16x128xf32>
    %c0_72 = arith.constant 0 : index
    %c128 = arith.constant 128 : index
    %c0_73 = arith.constant 0 : index
    %371 = vector.load %arg7[%c0_72, %c128, %c0_73] : memref<6x208x128xf32, #tpu.memory_space<vmem>>, vector<1x16x128xf32>
    %372 = vector.shape_cast %371 : vector<1x16x128xf32> to vector<16x128xf32>
    %373 = vector.shape_cast %370 : vector<16x128xf32> to vector<1x16x128xf32>
    tpu.vector_store %arg7[%c0_72, %c128, %c0_73], %373 {strides = array<i32>} : memref<6x208x128xf32, #tpu.memory_space<vmem>>, vector<1x16x128xf32>,
    %374 = tpu.concatenate %282, %0 in 0 : vector<9x128xf32>, vector<7x128xf32> -> vector<16x128xf32>
    %c0_74 = arith.constant 0 : index
    %c144 = arith.constant 144 : index
    %c0_75 = arith.constant 0 : index
    %375 = vector.load %arg7[%c0_74, %c144, %c0_75] : memref<6x208x128xf32, #tpu.memory_space<vmem>>, vector<1x16x128xf32>
    %376 = vector.shape_cast %375 : vector<1x16x128xf32> to vector<16x128xf32>
    %377 = vector.shape_cast %374 : vector<16x128xf32> to vector<1x16x128xf32>
    tpu.vector_store %arg7[%c0_74, %c144, %c0_75], %377 {strides = array<i32>} : memref<6x208x128xf32, #tpu.memory_space<vmem>>, vector<1x16x128xf32>,
    %378 = tpu.concatenate %289, %0 in 0 : vector<9x128xf32>, vector<7x128xf32> -> vector<16x128xf32>
    %c0_76 = arith.constant 0 : index
    %c160 = arith.constant 160 : index
    %c0_77 = arith.constant 0 : index
    %379 = vector.load %arg7[%c0_76, %c160, %c0_77] : memref<6x208x128xf32, #tpu.memory_space<vmem>>, vector<1x16x128xf32>
    %380 = vector.shape_cast %379 : vector<1x16x128xf32> to vector<16x128xf32>
    %381 = vector.shape_cast %378 : vector<16x128xf32> to vector<1x16x128xf32>
    tpu.vector_store %arg7[%c0_76, %c160, %c0_77], %381 {strides = array<i32>} : memref<6x208x128xf32, #tpu.memory_space<vmem>>, vector<1x16x128xf32>,
    %382 = tpu.concatenate %253, %0 in 0 : vector<9x128xf32>, vector<7x128xf32> -> vector<16x128xf32>
    %c0_78 = arith.constant 0 : index
    %c176 = arith.constant 176 : index
    %c0_79 = arith.constant 0 : index
    %383 = vector.load %arg7[%c0_78, %c176, %c0_79] : memref<6x208x128xf32, #tpu.memory_space<vmem>>, vector<1x16x128xf32>
    %384 = vector.shape_cast %383 : vector<1x16x128xf32> to vector<16x128xf32>
    %385 = vector.shape_cast %382 : vector<16x128xf32> to vector<1x16x128xf32>
    tpu.vector_store %arg7[%c0_78, %c176, %c0_79], %385 {strides = array<i32>} : memref<6x208x128xf32, #tpu.memory_space<vmem>>, vector<1x16x128xf32>,
    %386 = tpu.concatenate %275, %0 in 0 : vector<9x128xf32>, vector<7x128xf32> -> vector<16x128xf32>
    %c0_80 = arith.constant 0 : index
    %c192 = arith.constant 192 : index
    %c0_81 = arith.constant 0 : index
    %387 = vector.load %arg7[%c0_80, %c192, %c0_81] : memref<6x208x128xf32, #tpu.memory_space<vmem>>, vector<1x16x128xf32>
    %388 = vector.shape_cast %387 : vector<1x16x128xf32> to vector<16x128xf32>
    %389 = vector.shape_cast %386 : vector<16x128xf32> to vector<1x16x128xf32>
    tpu.vector_store %arg7[%c0_80, %c192, %c0_81], %389 {strides = array<i32>} : memref<6x208x128xf32, #tpu.memory_space<vmem>>, vector<1x16x128xf32>,
    %c1_82 = arith.constant 1 : index
    %c0_83 = arith.constant 0 : index
    %c0_84 = arith.constant 0 : index
    %c0_85 = arith.constant 0 : index
    %390 = vector.load %arg1[%c1_82, %c0_83, %c0_84, %c0_85] : memref<3x10x9x128xf32, #tpu.memory_space<vmem>>, vector<1x1x9x128xf32>
    %391 = vector.shape_cast %390 : vector<1x1x9x128xf32> to vector<9x128xf32>
    %392 = arith.mulf %391, %391 : vector<9x128xf32>
    %cst_86 = arith.constant 0.0181818176 : f32
    %393 = vector.broadcast %cst_86 : f32 to vector<9x128xf32>
    %394 = arith.mulf %391, %393 : vector<9x128xf32>
    %395 = vector.extract_strided_slice %391 {offsets = [1, 0], sizes = [8, 128], strides = [1, 1]} : vector<9x128xf32> to vector<8x128xf32>
    %396 = vector.extract_strided_slice %391 {offsets = [0, 0], sizes = [1, 128], strides = [1, 1]} : vector<9x128xf32> to vector<1x128xf32>
    %397 = tpu.concatenate %395, %396 in 0 : vector<8x128xf32>, vector<1x128xf32> -> vector<9x128xf32>
    %398 = arith.mulf %391, %397 : vector<9x128xf32>
    %399 = vector.extract_strided_slice %391 {offsets = [2, 0], sizes = [7, 128], strides = [1, 1]} : vector<9x128xf32> to vector<7x128xf32>
    %400 = vector.extract_strided_slice %391 {offsets = [0, 0], sizes = [2, 128], strides = [1, 1]} : vector<9x128xf32> to vector<2x128xf32>
    %401 = tpu.concatenate %399, %400 in 0 : vector<7x128xf32>, vector<2x128xf32> -> vector<9x128xf32>
    %402 = arith.mulf %391, %401 : vector<9x128xf32>
    %403 = vector.extract_strided_slice %391 {offsets = [3, 0], sizes = [6, 128], strides = [1, 1]} : vector<9x128xf32> to vector<6x128xf32>
    %404 = vector.extract_strided_slice %391 {offsets = [0, 0], sizes = [3, 128], strides = [1, 1]} : vector<9x128xf32> to vector<3x128xf32>
    %405 = tpu.concatenate %403, %404 in 0 : vector<6x128xf32>, vector<3x128xf32> -> vector<9x128xf32>
    %406 = arith.mulf %391, %405 : vector<9x128xf32>
    %407 = vector.extract_strided_slice %391 {offsets = [4, 0], sizes = [5, 128], strides = [1, 1]} : vector<9x128xf32> to vector<5x128xf32>
    %408 = vector.extract_strided_slice %391 {offsets = [0, 0], sizes = [4, 128], strides = [1, 1]} : vector<9x128xf32> to vector<4x128xf32>
    %409 = tpu.concatenate %407, %408 in 0 : vector<5x128xf32>, vector<4x128xf32> -> vector<9x128xf32>
    %410 = arith.mulf %391, %409 : vector<9x128xf32>
    %c1_87 = arith.constant 1 : index
    %c1_88 = arith.constant 1 : index
    %c0_89 = arith.constant 0 : index
    %c0_90 = arith.constant 0 : index
    %411 = vector.load %arg1[%c1_87, %c1_88, %c0_89, %c0_90] : memref<3x10x9x128xf32, #tpu.memory_space<vmem>>, vector<1x1x9x128xf32>
    %412 = vector.shape_cast %411 : vector<1x1x9x128xf32> to vector<9x128xf32>
    %413 = arith.addf %391, %412 : vector<9x128xf32>
    %414 = arith.mulf %412, %412 : vector<9x128xf32>
    %415 = arith.addf %392, %414 : vector<9x128xf32>
    %cst_91 = arith.constant 0.0363636352 : f32
    %416 = vector.broadcast %cst_91 : f32 to vector<9x128xf32>
    %417 = arith.mulf %412, %416 : vector<9x128xf32>
    %418 = arith.addf %394, %417 : vector<9x128xf32>
    %419 = vector.extract_strided_slice %412 {offsets = [1, 0], sizes = [8, 128], strides = [1, 1]} : vector<9x128xf32> to vector<8x128xf32>
    %420 = vector.extract_strided_slice %412 {offsets = [0, 0], sizes = [1, 128], strides = [1, 1]} : vector<9x128xf32> to vector<1x128xf32>
    %421 = tpu.concatenate %419, %420 in 0 : vector<8x128xf32>, vector<1x128xf32> -> vector<9x128xf32>
    %422 = arith.mulf %412, %421 : vector<9x128xf32>
    %423 = arith.addf %398, %422 : vector<9x128xf32>
    %424 = vector.extract_strided_slice %412 {offsets = [2, 0], sizes = [7, 128], strides = [1, 1]} : vector<9x128xf32> to vector<7x128xf32>
    %425 = vector.extract_strided_slice %412 {offsets = [0, 0], sizes = [2, 128], strides = [1, 1]} : vector<9x128xf32> to vector<2x128xf32>
    %426 = tpu.concatenate %424, %425 in 0 : vector<7x128xf32>, vector<2x128xf32> -> vector<9x128xf32>
    %427 = arith.mulf %412, %426 : vector<9x128xf32>
    %428 = arith.addf %402, %427 : vector<9x128xf32>
    %429 = vector.extract_strided_slice %412 {offsets = [3, 0], sizes = [6, 128], strides = [1, 1]} : vector<9x128xf32> to vector<6x128xf32>
    %430 = vector.extract_strided_slice %412 {offsets = [0, 0], sizes = [3, 128], strides = [1, 1]} : vector<9x128xf32> to vector<3x128xf32>
    %431 = tpu.concatenate %429, %430 in 0 : vector<6x128xf32>, vector<3x128xf32> -> vector<9x128xf32>
    %432 = arith.mulf %412, %431 : vector<9x128xf32>
    %433 = arith.addf %406, %432 : vector<9x128xf32>
    %434 = vector.extract_strided_slice %412 {offsets = [4, 0], sizes = [5, 128], strides = [1, 1]} : vector<9x128xf32> to vector<5x128xf32>
    %435 = vector.extract_strided_slice %412 {offsets = [0, 0], sizes = [4, 128], strides = [1, 1]} : vector<9x128xf32> to vector<4x128xf32>
    %436 = tpu.concatenate %434, %435 in 0 : vector<5x128xf32>, vector<4x128xf32> -> vector<9x128xf32>
    %437 = arith.mulf %412, %436 : vector<9x128xf32>
    %438 = arith.addf %410, %437 : vector<9x128xf32>
    %c1_92 = arith.constant 1 : index
    %c2_93 = arith.constant 2 : index
    %c0_94 = arith.constant 0 : index
    %c0_95 = arith.constant 0 : index
    %439 = vector.load %arg1[%c1_92, %c2_93, %c0_94, %c0_95] : memref<3x10x9x128xf32, #tpu.memory_space<vmem>>, vector<1x1x9x128xf32>
    %440 = vector.shape_cast %439 : vector<1x1x9x128xf32> to vector<9x128xf32>
    %441 = arith.addf %413, %440 : vector<9x128xf32>
    %442 = arith.mulf %440, %440 : vector<9x128xf32>
    %443 = arith.addf %415, %442 : vector<9x128xf32>
    %cst_96 = arith.constant 0.0545454547 : f32
    %444 = vector.broadcast %cst_96 : f32 to vector<9x128xf32>
    %445 = arith.mulf %440, %444 : vector<9x128xf32>
    %446 = arith.addf %418, %445 : vector<9x128xf32>
    %447 = vector.extract_strided_slice %440 {offsets = [1, 0], sizes = [8, 128], strides = [1, 1]} : vector<9x128xf32> to vector<8x128xf32>
    %448 = vector.extract_strided_slice %440 {offsets = [0, 0], sizes = [1, 128], strides = [1, 1]} : vector<9x128xf32> to vector<1x128xf32>
    %449 = tpu.concatenate %447, %448 in 0 : vector<8x128xf32>, vector<1x128xf32> -> vector<9x128xf32>
    %450 = arith.mulf %440, %449 : vector<9x128xf32>
    %451 = arith.addf %423, %450 : vector<9x128xf32>
    %452 = vector.extract_strided_slice %440 {offsets = [2, 0], sizes = [7, 128], strides = [1, 1]} : vector<9x128xf32> to vector<7x128xf32>
    %453 = vector.extract_strided_slice %440 {offsets = [0, 0], sizes = [2, 128], strides = [1, 1]} : vector<9x128xf32> to vector<2x128xf32>
    %454 = tpu.concatenate %452, %453 in 0 : vector<7x128xf32>, vector<2x128xf32> -> vector<9x128xf32>
    %455 = arith.mulf %440, %454 : vector<9x128xf32>
    %456 = arith.addf %428, %455 : vector<9x128xf32>
    %457 = vector.extract_strided_slice %440 {offsets = [3, 0], sizes = [6, 128], strides = [1, 1]} : vector<9x128xf32> to vector<6x128xf32>
    %458 = vector.extract_strided_slice %440 {offsets = [0, 0], sizes = [3, 128], strides = [1, 1]} : vector<9x128xf32> to vector<3x128xf32>
    %459 = tpu.concatenate %457, %458 in 0 : vector<6x128xf32>, vector<3x128xf32> -> vector<9x128xf32>
    %460 = arith.mulf %440, %459 : vector<9x128xf32>
    %461 = arith.addf %433, %460 : vector<9x128xf32>
    %462 = vector.extract_strided_slice %440 {offsets = [4, 0], sizes = [5, 128], strides = [1, 1]} : vector<9x128xf32> to vector<5x128xf32>
    %463 = vector.extract_strided_slice %440 {offsets = [0, 0], sizes = [4, 128], strides = [1, 1]} : vector<9x128xf32> to vector<4x128xf32>
    %464 = tpu.concatenate %462, %463 in 0 : vector<5x128xf32>, vector<4x128xf32> -> vector<9x128xf32>
    %465 = arith.mulf %440, %464 : vector<9x128xf32>
    %466 = arith.addf %438, %465 : vector<9x128xf32>
    %c1_97 = arith.constant 1 : index
    %c3_98 = arith.constant 3 : index
    %c0_99 = arith.constant 0 : index
    %c0_100 = arith.constant 0 : index
    %467 = vector.load %arg1[%c1_97, %c3_98, %c0_99, %c0_100] : memref<3x10x9x128xf32, #tpu.memory_space<vmem>>, vector<1x1x9x128xf32>
    %468 = vector.shape_cast %467 : vector<1x1x9x128xf32> to vector<9x128xf32>
    %469 = arith.addf %441, %468 : vector<9x128xf32>
    %470 = arith.mulf %468, %468 : vector<9x128xf32>
    %471 = arith.addf %443, %470 : vector<9x128xf32>
    %cst_101 = arith.constant 0.0727272704 : f32
    %472 = vector.broadcast %cst_101 : f32 to vector<9x128xf32>
    %473 = arith.mulf %468, %472 : vector<9x128xf32>
    %474 = arith.addf %446, %473 : vector<9x128xf32>
    %475 = vector.extract_strided_slice %468 {offsets = [1, 0], sizes = [8, 128], strides = [1, 1]} : vector<9x128xf32> to vector<8x128xf32>
    %476 = vector.extract_strided_slice %468 {offsets = [0, 0], sizes = [1, 128], strides = [1, 1]} : vector<9x128xf32> to vector<1x128xf32>
    %477 = tpu.concatenate %475, %476 in 0 : vector<8x128xf32>, vector<1x128xf32> -> vector<9x128xf32>
    %478 = arith.mulf %468, %477 : vector<9x128xf32>
    %479 = arith.addf %451, %478 : vector<9x128xf32>
    %480 = vector.extract_strided_slice %468 {offsets = [2, 0], sizes = [7, 128], strides = [1, 1]} : vector<9x128xf32> to vector<7x128xf32>
    %481 = vector.extract_strided_slice %468 {offsets = [0, 0], sizes = [2, 128], strides = [1, 1]} : vector<9x128xf32> to vector<2x128xf32>
    %482 = tpu.concatenate %480, %481 in 0 : vector<7x128xf32>, vector<2x128xf32> -> vector<9x128xf32>
    %483 = arith.mulf %468, %482 : vector<9x128xf32>
    %484 = arith.addf %456, %483 : vector<9x128xf32>
    %485 = vector.extract_strided_slice %468 {offsets = [3, 0], sizes = [6, 128], strides = [1, 1]} : vector<9x128xf32> to vector<6x128xf32>
    %486 = vector.extract_strided_slice %468 {offsets = [0, 0], sizes = [3, 128], strides = [1, 1]} : vector<9x128xf32> to vector<3x128xf32>
    %487 = tpu.concatenate %485, %486 in 0 : vector<6x128xf32>, vector<3x128xf32> -> vector<9x128xf32>
    %488 = arith.mulf %468, %487 : vector<9x128xf32>
    %489 = arith.addf %461, %488 : vector<9x128xf32>
    %490 = vector.extract_strided_slice %468 {offsets = [4, 0], sizes = [5, 128], strides = [1, 1]} : vector<9x128xf32> to vector<5x128xf32>
    %491 = vector.extract_strided_slice %468 {offsets = [0, 0], sizes = [4, 128], strides = [1, 1]} : vector<9x128xf32> to vector<4x128xf32>
    %492 = tpu.concatenate %490, %491 in 0 : vector<5x128xf32>, vector<4x128xf32> -> vector<9x128xf32>
    %493 = arith.mulf %468, %492 : vector<9x128xf32>
    %494 = arith.addf %466, %493 : vector<9x128xf32>
    %c1_102 = arith.constant 1 : index
    %c4_103 = arith.constant 4 : index
    %c0_104 = arith.constant 0 : index
    %c0_105 = arith.constant 0 : index
    %495 = vector.load %arg1[%c1_102, %c4_103, %c0_104, %c0_105] : memref<3x10x9x128xf32, #tpu.memory_space<vmem>>, vector<1x1x9x128xf32>
    %496 = vector.shape_cast %495 : vector<1x1x9x128xf32> to vector<9x128xf32>
    %497 = arith.addf %469, %496 : vector<9x128xf32>
    %498 = arith.mulf %496, %496 : vector<9x128xf32>
    %499 = arith.addf %471, %498 : vector<9x128xf32>
    %cst_106 = arith.constant 0.0909090936 : f32
    %500 = vector.broadcast %cst_106 : f32 to vector<9x128xf32>
    %501 = arith.mulf %496, %500 : vector<9x128xf32>
    %502 = arith.addf %474, %501 : vector<9x128xf32>
    %503 = vector.extract_strided_slice %496 {offsets = [1, 0], sizes = [8, 128], strides = [1, 1]} : vector<9x128xf32> to vector<8x128xf32>
    %504 = vector.extract_strided_slice %496 {offsets = [0, 0], sizes = [1, 128], strides = [1, 1]} : vector<9x128xf32> to vector<1x128xf32>
    %505 = tpu.concatenate %503, %504 in 0 : vector<8x128xf32>, vector<1x128xf32> -> vector<9x128xf32>
    %506 = arith.mulf %496, %505 : vector<9x128xf32>
    %507 = arith.addf %479, %506 : vector<9x128xf32>
    %508 = vector.extract_strided_slice %496 {offsets = [2, 0], sizes = [7, 128], strides = [1, 1]} : vector<9x128xf32> to vector<7x128xf32>
    %509 = vector.extract_strided_slice %496 {offsets = [0, 0], sizes = [2, 128], strides = [1, 1]} : vector<9x128xf32> to vector<2x128xf32>
    %510 = tpu.concatenate %508, %509 in 0 : vector<7x128xf32>, vector<2x128xf32> -> vector<9x128xf32>
    %511 = arith.mulf %496, %510 : vector<9x128xf32>
    %512 = arith.addf %484, %511 : vector<9x128xf32>
    %513 = vector.extract_strided_slice %496 {offsets = [3, 0], sizes = [6, 128], strides = [1, 1]} : vector<9x128xf32> to vector<6x128xf32>
    %514 = vector.extract_strided_slice %496 {offsets = [0, 0], sizes = [3, 128], strides = [1, 1]} : vector<9x128xf32> to vector<3x128xf32>
    %515 = tpu.concatenate %513, %514 in 0 : vector<6x128xf32>, vector<3x128xf32> -> vector<9x128xf32>
    %516 = arith.mulf %496, %515 : vector<9x128xf32>
    %517 = arith.addf %489, %516 : vector<9x128xf32>
    %518 = vector.extract_strided_slice %496 {offsets = [4, 0], sizes = [5, 128], strides = [1, 1]} : vector<9x128xf32> to vector<5x128xf32>
    %519 = vector.extract_strided_slice %496 {offsets = [0, 0], sizes = [4, 128], strides = [1, 1]} : vector<9x128xf32> to vector<4x128xf32>
    %520 = tpu.concatenate %518, %519 in 0 : vector<5x128xf32>, vector<4x128xf32> -> vector<9x128xf32>
    %521 = arith.mulf %496, %520 : vector<9x128xf32>
    %522 = arith.addf %494, %521 : vector<9x128xf32>
    %c1_107 = arith.constant 1 : index
    %c5_108 = arith.constant 5 : index
    %c0_109 = arith.constant 0 : index
    %c0_110 = arith.constant 0 : index
    %523 = vector.load %arg1[%c1_107, %c5_108, %c0_109, %c0_110] : memref<3x10x9x128xf32, #tpu.memory_space<vmem>>, vector<1x1x9x128xf32>
    %524 = vector.shape_cast %523 : vector<1x1x9x128xf32> to vector<9x128xf32>
    %525 = arith.addf %497, %524 : vector<9x128xf32>
    %526 = arith.mulf %524, %524 : vector<9x128xf32>
    %527 = arith.addf %499, %526 : vector<9x128xf32>
    %cst_111 = arith.constant 0.109090909 : f32
    %528 = vector.broadcast %cst_111 : f32 to vector<9x128xf32>
    %529 = arith.mulf %524, %528 : vector<9x128xf32>
    %530 = arith.addf %502, %529 : vector<9x128xf32>
    %531 = vector.extract_strided_slice %524 {offsets = [1, 0], sizes = [8, 128], strides = [1, 1]} : vector<9x128xf32> to vector<8x128xf32>
    %532 = vector.extract_strided_slice %524 {offsets = [0, 0], sizes = [1, 128], strides = [1, 1]} : vector<9x128xf32> to vector<1x128xf32>
    %533 = tpu.concatenate %531, %532 in 0 : vector<8x128xf32>, vector<1x128xf32> -> vector<9x128xf32>
    %534 = arith.mulf %524, %533 : vector<9x128xf32>
    %535 = arith.addf %507, %534 : vector<9x128xf32>
    %536 = vector.extract_strided_slice %524 {offsets = [2, 0], sizes = [7, 128], strides = [1, 1]} : vector<9x128xf32> to vector<7x128xf32>
    %537 = vector.extract_strided_slice %524 {offsets = [0, 0], sizes = [2, 128], strides = [1, 1]} : vector<9x128xf32> to vector<2x128xf32>
    %538 = tpu.concatenate %536, %537 in 0 : vector<7x128xf32>, vector<2x128xf32> -> vector<9x128xf32>
    %539 = arith.mulf %524, %538 : vector<9x128xf32>
    %540 = arith.addf %512, %539 : vector<9x128xf32>
    %541 = vector.extract_strided_slice %524 {offsets = [3, 0], sizes = [6, 128], strides = [1, 1]} : vector<9x128xf32> to vector<6x128xf32>
    %542 = vector.extract_strided_slice %524 {offsets = [0, 0], sizes = [3, 128], strides = [1, 1]} : vector<9x128xf32> to vector<3x128xf32>
    %543 = tpu.concatenate %541, %542 in 0 : vector<6x128xf32>, vector<3x128xf32> -> vector<9x128xf32>
    %544 = arith.mulf %524, %543 : vector<9x128xf32>
    %545 = arith.addf %517, %544 : vector<9x128xf32>
    %546 = vector.extract_strided_slice %524 {offsets = [4, 0], sizes = [5, 128], strides = [1, 1]} : vector<9x128xf32> to vector<5x128xf32>
    %547 = vector.extract_strided_slice %524 {offsets = [0, 0], sizes = [4, 128], strides = [1, 1]} : vector<9x128xf32> to vector<4x128xf32>
    %548 = tpu.concatenate %546, %547 in 0 : vector<5x128xf32>, vector<4x128xf32> -> vector<9x128xf32>
    %549 = arith.mulf %524, %548 : vector<9x128xf32>
    %550 = arith.addf %522, %549 : vector<9x128xf32>
    %c1_112 = arith.constant 1 : index
    %c6_113 = arith.constant 6 : index
    %c0_114 = arith.constant 0 : index
    %c0_115 = arith.constant 0 : index
    %551 = vector.load %arg1[%c1_112, %c6_113, %c0_114, %c0_115] : memref<3x10x9x128xf32, #tpu.memory_space<vmem>>, vector<1x1x9x128xf32>
    %552 = vector.shape_cast %551 : vector<1x1x9x128xf32> to vector<9x128xf32>
    %553 = arith.addf %525, %552 : vector<9x128xf32>
    %554 = arith.mulf %552, %552 : vector<9x128xf32>
    %555 = arith.addf %527, %554 : vector<9x128xf32>
    %cst_116 = arith.constant 0.127272725 : f32
    %556 = vector.broadcast %cst_116 : f32 to vector<9x128xf32>
    %557 = arith.mulf %552, %556 : vector<9x128xf32>
    %558 = arith.addf %530, %557 : vector<9x128xf32>
    %559 = vector.extract_strided_slice %552 {offsets = [1, 0], sizes = [8, 128], strides = [1, 1]} : vector<9x128xf32> to vector<8x128xf32>
    %560 = vector.extract_strided_slice %552 {offsets = [0, 0], sizes = [1, 128], strides = [1, 1]} : vector<9x128xf32> to vector<1x128xf32>
    %561 = tpu.concatenate %559, %560 in 0 : vector<8x128xf32>, vector<1x128xf32> -> vector<9x128xf32>
    %562 = arith.mulf %552, %561 : vector<9x128xf32>
    %563 = arith.addf %535, %562 : vector<9x128xf32>
    %564 = vector.extract_strided_slice %552 {offsets = [2, 0], sizes = [7, 128], strides = [1, 1]} : vector<9x128xf32> to vector<7x128xf32>
    %565 = vector.extract_strided_slice %552 {offsets = [0, 0], sizes = [2, 128], strides = [1, 1]} : vector<9x128xf32> to vector<2x128xf32>
    %566 = tpu.concatenate %564, %565 in 0 : vector<7x128xf32>, vector<2x128xf32> -> vector<9x128xf32>
    %567 = arith.mulf %552, %566 : vector<9x128xf32>
    %568 = arith.addf %540, %567 : vector<9x128xf32>
    %569 = vector.extract_strided_slice %552 {offsets = [3, 0], sizes = [6, 128], strides = [1, 1]} : vector<9x128xf32> to vector<6x128xf32>
    %570 = vector.extract_strided_slice %552 {offsets = [0, 0], sizes = [3, 128], strides = [1, 1]} : vector<9x128xf32> to vector<3x128xf32>
    %571 = tpu.concatenate %569, %570 in 0 : vector<6x128xf32>, vector<3x128xf32> -> vector<9x128xf32>
    %572 = arith.mulf %552, %571 : vector<9x128xf32>
    %573 = arith.addf %545, %572 : vector<9x128xf32>
    %574 = vector.extract_strided_slice %552 {offsets = [4, 0], sizes = [5, 128], strides = [1, 1]} : vector<9x128xf32> to vector<5x128xf32>
    %575 = vector.extract_strided_slice %552 {offsets = [0, 0], sizes = [4, 128], strides = [1, 1]} : vector<9x128xf32> to vector<4x128xf32>
    %576 = tpu.concatenate %574, %575 in 0 : vector<5x128xf32>, vector<4x128xf32> -> vector<9x128xf32>
    %577 = arith.mulf %552, %576 : vector<9x128xf32>
    %578 = arith.addf %550, %577 : vector<9x128xf32>
    %c1_117 = arith.constant 1 : index
    %c7_118 = arith.constant 7 : index
    %c0_119 = arith.constant 0 : index
    %c0_120 = arith.constant 0 : index
    %579 = vector.load %arg1[%c1_117, %c7_118, %c0_119, %c0_120] : memref<3x10x9x128xf32, #tpu.memory_space<vmem>>, vector<1x1x9x128xf32>
    %580 = vector.shape_cast %579 : vector<1x1x9x128xf32> to vector<9x128xf32>
    %581 = arith.addf %553, %580 : vector<9x128xf32>
    %582 = arith.mulf %580, %580 : vector<9x128xf32>
    %583 = arith.addf %555, %582 : vector<9x128xf32>
    %cst_121 = arith.constant 0.145454541 : f32
    %584 = vector.broadcast %cst_121 : f32 to vector<9x128xf32>
    %585 = arith.mulf %580, %584 : vector<9x128xf32>
    %586 = arith.addf %558, %585 : vector<9x128xf32>
    %587 = vector.extract_strided_slice %580 {offsets = [1, 0], sizes = [8, 128], strides = [1, 1]} : vector<9x128xf32> to vector<8x128xf32>
    %588 = vector.extract_strided_slice %580 {offsets = [0, 0], sizes = [1, 128], strides = [1, 1]} : vector<9x128xf32> to vector<1x128xf32>
    %589 = tpu.concatenate %587, %588 in 0 : vector<8x128xf32>, vector<1x128xf32> -> vector<9x128xf32>
    %590 = arith.mulf %580, %589 : vector<9x128xf32>
    %591 = arith.addf %563, %590 : vector<9x128xf32>
    %592 = vector.extract_strided_slice %580 {offsets = [2, 0], sizes = [7, 128], strides = [1, 1]} : vector<9x128xf32> to vector<7x128xf32>
    %593 = vector.extract_strided_slice %580 {offsets = [0, 0], sizes = [2, 128], strides = [1, 1]} : vector<9x128xf32> to vector<2x128xf32>
    %594 = tpu.concatenate %592, %593 in 0 : vector<7x128xf32>, vector<2x128xf32> -> vector<9x128xf32>
    %595 = arith.mulf %580, %594 : vector<9x128xf32>
    %596 = arith.addf %568, %595 : vector<9x128xf32>
    %597 = vector.extract_strided_slice %580 {offsets = [3, 0], sizes = [6, 128], strides = [1, 1]} : vector<9x128xf32> to vector<6x128xf32>
    %598 = vector.extract_strided_slice %580 {offsets = [0, 0], sizes = [3, 128], strides = [1, 1]} : vector<9x128xf32> to vector<3x128xf32>
    %599 = tpu.concatenate %597, %598 in 0 : vector<6x128xf32>, vector<3x128xf32> -> vector<9x128xf32>
    %600 = arith.mulf %580, %599 : vector<9x128xf32>
    %601 = arith.addf %573, %600 : vector<9x128xf32>
    %602 = vector.extract_strided_slice %580 {offsets = [4, 0], sizes = [5, 128], strides = [1, 1]} : vector<9x128xf32> to vector<5x128xf32>
    %603 = vector.extract_strided_slice %580 {offsets = [0, 0], sizes = [4, 128], strides = [1, 1]} : vector<9x128xf32> to vector<4x128xf32>
    %604 = tpu.concatenate %602, %603 in 0 : vector<5x128xf32>, vector<4x128xf32> -> vector<9x128xf32>
    %605 = arith.mulf %580, %604 : vector<9x128xf32>
    %606 = arith.addf %578, %605 : vector<9x128xf32>
    %c1_122 = arith.constant 1 : index
    %c8_123 = arith.constant 8 : index
    %c0_124 = arith.constant 0 : index
    %c0_125 = arith.constant 0 : index
    %607 = vector.load %arg1[%c1_122, %c8_123, %c0_124, %c0_125] : memref<3x10x9x128xf32, #tpu.memory_space<vmem>>, vector<1x1x9x128xf32>
    %608 = vector.shape_cast %607 : vector<1x1x9x128xf32> to vector<9x128xf32>
    %609 = arith.addf %581, %608 : vector<9x128xf32>
    %610 = arith.mulf %608, %608 : vector<9x128xf32>
    %611 = arith.addf %583, %610 : vector<9x128xf32>
    %cst_126 = arith.constant 0.163636357 : f32
    %612 = vector.broadcast %cst_126 : f32 to vector<9x128xf32>
    %613 = arith.mulf %608, %612 : vector<9x128xf32>
    %614 = arith.addf %586, %613 : vector<9x128xf32>
    %615 = vector.extract_strided_slice %608 {offsets = [1, 0], sizes = [8, 128], strides = [1, 1]} : vector<9x128xf32> to vector<8x128xf32>
    %616 = vector.extract_strided_slice %608 {offsets = [0, 0], sizes = [1, 128], strides = [1, 1]} : vector<9x128xf32> to vector<1x128xf32>
    %617 = tpu.concatenate %615, %616 in 0 : vector<8x128xf32>, vector<1x128xf32> -> vector<9x128xf32>
    %618 = arith.mulf %608, %617 : vector<9x128xf32>
    %619 = arith.addf %591, %618 : vector<9x128xf32>
    %620 = vector.extract_strided_slice %608 {offsets = [2, 0], sizes = [7, 128], strides = [1, 1]} : vector<9x128xf32> to vector<7x128xf32>
    %621 = vector.extract_strided_slice %608 {offsets = [0, 0], sizes = [2, 128], strides = [1, 1]} : vector<9x128xf32> to vector<2x128xf32>
    %622 = tpu.concatenate %620, %621 in 0 : vector<7x128xf32>, vector<2x128xf32> -> vector<9x128xf32>
    %623 = arith.mulf %608, %622 : vector<9x128xf32>
    %624 = arith.addf %596, %623 : vector<9x128xf32>
    %625 = vector.extract_strided_slice %608 {offsets = [3, 0], sizes = [6, 128], strides = [1, 1]} : vector<9x128xf32> to vector<6x128xf32>
    %626 = vector.extract_strided_slice %608 {offsets = [0, 0], sizes = [3, 128], strides = [1, 1]} : vector<9x128xf32> to vector<3x128xf32>
    %627 = tpu.concatenate %625, %626 in 0 : vector<6x128xf32>, vector<3x128xf32> -> vector<9x128xf32>
    %628 = arith.mulf %608, %627 : vector<9x128xf32>
    %629 = arith.addf %601, %628 : vector<9x128xf32>
    %630 = vector.extract_strided_slice %608 {offsets = [4, 0], sizes = [5, 128], strides = [1, 1]} : vector<9x128xf32> to vector<5x128xf32>
    %631 = vector.extract_strided_slice %608 {offsets = [0, 0], sizes = [4, 128], strides = [1, 1]} : vector<9x128xf32> to vector<4x128xf32>
    %632 = tpu.concatenate %630, %631 in 0 : vector<5x128xf32>, vector<4x128xf32> -> vector<9x128xf32>
    %633 = arith.mulf %608, %632 : vector<9x128xf32>
    %634 = arith.addf %606, %633 : vector<9x128xf32>
    %c1_127 = arith.constant 1 : index
    %c9_128 = arith.constant 9 : index
    %c0_129 = arith.constant 0 : index
    %c0_130 = arith.constant 0 : index
    %635 = vector.load %arg1[%c1_127, %c9_128, %c0_129, %c0_130] : memref<3x10x9x128xf32, #tpu.memory_space<vmem>>, vector<1x1x9x128xf32>
    %636 = vector.shape_cast %635 : vector<1x1x9x128xf32> to vector<9x128xf32>
    %637 = arith.addf %609, %636 : vector<9x128xf32>
    %638 = arith.mulf %636, %636 : vector<9x128xf32>
    %639 = arith.addf %611, %638 : vector<9x128xf32>
    %cst_131 = arith.constant 0.181818187 : f32
    %640 = vector.broadcast %cst_131 : f32 to vector<9x128xf32>
    %641 = arith.mulf %636, %640 : vector<9x128xf32>
    %642 = arith.addf %614, %641 : vector<9x128xf32>
    %643 = vector.extract_strided_slice %636 {offsets = [1, 0], sizes = [8, 128], strides = [1, 1]} : vector<9x128xf32> to vector<8x128xf32>
    %644 = vector.extract_strided_slice %636 {offsets = [0, 0], sizes = [1, 128], strides = [1, 1]} : vector<9x128xf32> to vector<1x128xf32>
    %645 = tpu.concatenate %643, %644 in 0 : vector<8x128xf32>, vector<1x128xf32> -> vector<9x128xf32>
    %646 = arith.mulf %636, %645 : vector<9x128xf32>
    %647 = arith.addf %619, %646 : vector<9x128xf32>
    %648 = vector.extract_strided_slice %636 {offsets = [2, 0], sizes = [7, 128], strides = [1, 1]} : vector<9x128xf32> to vector<7x128xf32>
    %649 = vector.extract_strided_slice %636 {offsets = [0, 0], sizes = [2, 128], strides = [1, 1]} : vector<9x128xf32> to vector<2x128xf32>
    %650 = tpu.concatenate %648, %649 in 0 : vector<7x128xf32>, vector<2x128xf32> -> vector<9x128xf32>
    %651 = arith.mulf %636, %650 : vector<9x128xf32>
    %652 = arith.addf %624, %651 : vector<9x128xf32>
    %653 = vector.extract_strided_slice %636 {offsets = [3, 0], sizes = [6, 128], strides = [1, 1]} : vector<9x128xf32> to vector<6x128xf32>
    %654 = vector.extract_strided_slice %636 {offsets = [0, 0], sizes = [3, 128], strides = [1, 1]} : vector<9x128xf32> to vector<3x128xf32>
    %655 = tpu.concatenate %653, %654 in 0 : vector<6x128xf32>, vector<3x128xf32> -> vector<9x128xf32>
    %656 = arith.mulf %636, %655 : vector<9x128xf32>
    %657 = arith.addf %629, %656 : vector<9x128xf32>
    %658 = vector.extract_strided_slice %636 {offsets = [4, 0], sizes = [5, 128], strides = [1, 1]} : vector<9x128xf32> to vector<5x128xf32>
    %659 = vector.extract_strided_slice %636 {offsets = [0, 0], sizes = [4, 128], strides = [1, 1]} : vector<9x128xf32> to vector<4x128xf32>
    %660 = tpu.concatenate %658, %659 in 0 : vector<5x128xf32>, vector<4x128xf32> -> vector<9x128xf32>
    %661 = arith.mulf %636, %660 : vector<9x128xf32>
    %662 = arith.addf %634, %661 : vector<9x128xf32>
    %cst_132 = arith.constant 1.000000e-01 : f32
    %663 = vector.broadcast %cst_132 : f32 to vector<9x128xf32>
    %664 = arith.mulf %637, %663 : vector<9x128xf32>
    %cst_133 = arith.constant 1.000000e-01 : f32
    %665 = vector.broadcast %cst_133 : f32 to vector<9x128xf32>
    %666 = arith.mulf %639, %665 : vector<9x128xf32>
    %667 = arith.mulf %664, %664 : vector<9x128xf32>
    %668 = arith.subf %666, %667 : vector<9x128xf32>
    %669 = math.rsqrt %668 : vector<9x128xf32>
    %670 = arith.mulf %668, %669 : vector<9x128xf32>
    %671 = arith.mulf %664, %669 : vector<9x128xf32>
    %c1_134 = arith.constant 1 : index
    %c9_135 = arith.constant 9 : index
    %c0_136 = arith.constant 0 : index
    %c0_137 = arith.constant 0 : index
    %672 = vector.load %arg1[%c1_134, %c9_135, %c0_136, %c0_137] : memref<3x10x9x128xf32, #tpu.memory_space<vmem>>, vector<1x1x9x128xf32>
    %673 = vector.shape_cast %672 : vector<1x1x9x128xf32> to vector<9x128xf32>
    %c1_138 = arith.constant 1 : index
    %c0_139 = arith.constant 0 : index
    %c0_140 = arith.constant 0 : index
    %c0_141 = arith.constant 0 : index
    %674 = vector.load %arg1[%c1_138, %c0_139, %c0_140, %c0_141] : memref<3x10x9x128xf32, #tpu.memory_space<vmem>>, vector<1x1x9x128xf32>
    %675 = vector.shape_cast %674 : vector<1x1x9x128xf32> to vector<9x128xf32>
    %676 = arith.divf %673, %675 : vector<9x128xf32>
    %cst_142 = arith.constant 1.000000e+00 : f32
    %677 = vector.broadcast %cst_142 : f32 to vector<9x128xf32>
    %678 = arith.subf %676, %677 : vector<9x128xf32>
    %679 = vector.extract_strided_slice %664 {offsets = [1, 0], sizes = [8, 128], strides = [1, 1]} : vector<9x128xf32> to vector<8x128xf32>
    %680 = vector.extract_strided_slice %664 {offsets = [0, 0], sizes = [1, 128], strides = [1, 1]} : vector<9x128xf32> to vector<1x128xf32>
    %681 = tpu.concatenate %679, %680 in 0 : vector<8x128xf32>, vector<1x128xf32> -> vector<9x128xf32>
    %682 = vector.extract_strided_slice %669 {offsets = [1, 0], sizes = [8, 128], strides = [1, 1]} : vector<9x128xf32> to vector<8x128xf32>
    %683 = vector.extract_strided_slice %669 {offsets = [0, 0], sizes = [1, 128], strides = [1, 1]} : vector<9x128xf32> to vector<1x128xf32>
    %684 = tpu.concatenate %682, %683 in 0 : vector<8x128xf32>, vector<1x128xf32> -> vector<9x128xf32>
    %cst_143 = arith.constant 1.000000e-01 : f32
    %685 = vector.broadcast %cst_143 : f32 to vector<9x128xf32>
    %686 = arith.mulf %647, %685 : vector<9x128xf32>
    %687 = arith.mulf %664, %681 : vector<9x128xf32>
    %688 = arith.subf %686, %687 : vector<9x128xf32>
    %689 = arith.mulf %669, %684 : vector<9x128xf32>
    %690 = arith.mulf %688, %689 : vector<9x128xf32>
    %691 = tpu.concatenate %690, %0 in 0 : vector<9x128xf32>, vector<7x128xf32> -> vector<16x128xf32>
    %c1_144 = arith.constant 1 : index
    %c0_145 = arith.constant 0 : index
    %c0_146 = arith.constant 0 : index
    %692 = vector.load %arg7[%c1_144, %c0_145, %c0_146] : memref<6x208x128xf32, #tpu.memory_space<vmem>>, vector<1x16x128xf32>
    %693 = vector.shape_cast %692 : vector<1x16x128xf32> to vector<16x128xf32>
    %694 = vector.shape_cast %691 : vector<16x128xf32> to vector<1x16x128xf32>
    tpu.vector_store %arg7[%c1_144, %c0_145, %c0_146], %694 {strides = array<i32>} : memref<6x208x128xf32, #tpu.memory_space<vmem>>, vector<1x16x128xf32>,
    %695 = tpu.concatenate %688, %0 in 0 : vector<9x128xf32>, vector<7x128xf32> -> vector<16x128xf32>
    %c1_147 = arith.constant 1 : index
    %c64_148 = arith.constant 64 : index
    %c0_149 = arith.constant 0 : index
    %696 = vector.load %arg7[%c1_147, %c64_148, %c0_149] : memref<6x208x128xf32, #tpu.memory_space<vmem>>, vector<1x16x128xf32>
    %697 = vector.shape_cast %696 : vector<1x16x128xf32> to vector<16x128xf32>
    %698 = vector.shape_cast %695 : vector<16x128xf32> to vector<1x16x128xf32>
    tpu.vector_store %arg7[%c1_147, %c64_148, %c0_149], %698 {strides = array<i32>} : memref<6x208x128xf32, #tpu.memory_space<vmem>>, vector<1x16x128xf32>,
    %699 = vector.extract_strided_slice %664 {offsets = [2, 0], sizes = [7, 128], strides = [1, 1]} : vector<9x128xf32> to vector<7x128xf32>
    %700 = vector.extract_strided_slice %664 {offsets = [0, 0], sizes = [2, 128], strides = [1, 1]} : vector<9x128xf32> to vector<2x128xf32>
    %701 = tpu.concatenate %699, %700 in 0 : vector<7x128xf32>, vector<2x128xf32> -> vector<9x128xf32>
    %702 = vector.extract_strided_slice %669 {offsets = [2, 0], sizes = [7, 128], strides = [1, 1]} : vector<9x128xf32> to vector<7x128xf32>
    %703 = vector.extract_strided_slice %669 {offsets = [0, 0], sizes = [2, 128], strides = [1, 1]} : vector<9x128xf32> to vector<2x128xf32>
    %704 = tpu.concatenate %702, %703 in 0 : vector<7x128xf32>, vector<2x128xf32> -> vector<9x128xf32>
    %cst_150 = arith.constant 1.000000e-01 : f32
    %705 = vector.broadcast %cst_150 : f32 to vector<9x128xf32>
    %706 = arith.mulf %652, %705 : vector<9x128xf32>
    %707 = arith.mulf %664, %701 : vector<9x128xf32>
    %708 = arith.subf %706, %707 : vector<9x128xf32>
    %709 = arith.mulf %669, %704 : vector<9x128xf32>
    %710 = arith.mulf %708, %709 : vector<9x128xf32>
    %711 = tpu.concatenate %710, %0 in 0 : vector<9x128xf32>, vector<7x128xf32> -> vector<16x128xf32>
    %c1_151 = arith.constant 1 : index
    %c16_152 = arith.constant 16 : index
    %c0_153 = arith.constant 0 : index
    %712 = vector.load %arg7[%c1_151, %c16_152, %c0_153] : memref<6x208x128xf32, #tpu.memory_space<vmem>>, vector<1x16x128xf32>
    %713 = vector.shape_cast %712 : vector<1x16x128xf32> to vector<16x128xf32>
    %714 = vector.shape_cast %711 : vector<16x128xf32> to vector<1x16x128xf32>
    tpu.vector_store %arg7[%c1_151, %c16_152, %c0_153], %714 {strides = array<i32>} : memref<6x208x128xf32, #tpu.memory_space<vmem>>, vector<1x16x128xf32>,
    %715 = tpu.concatenate %708, %0 in 0 : vector<9x128xf32>, vector<7x128xf32> -> vector<16x128xf32>
    %c1_154 = arith.constant 1 : index
    %c80_155 = arith.constant 80 : index
    %c0_156 = arith.constant 0 : index
    %716 = vector.load %arg7[%c1_154, %c80_155, %c0_156] : memref<6x208x128xf32, #tpu.memory_space<vmem>>, vector<1x16x128xf32>
    %717 = vector.shape_cast %716 : vector<1x16x128xf32> to vector<16x128xf32>
    %718 = vector.shape_cast %715 : vector<16x128xf32> to vector<1x16x128xf32>
    tpu.vector_store %arg7[%c1_154, %c80_155, %c0_156], %718 {strides = array<i32>} : memref<6x208x128xf32, #tpu.memory_space<vmem>>, vector<1x16x128xf32>,
    %719 = vector.extract_strided_slice %664 {offsets = [3, 0], sizes = [6, 128], strides = [1, 1]} : vector<9x128xf32> to vector<6x128xf32>
    %720 = vector.extract_strided_slice %664 {offsets = [0, 0], sizes = [3, 128], strides = [1, 1]} : vector<9x128xf32> to vector<3x128xf32>
    %721 = tpu.concatenate %719, %720 in 0 : vector<6x128xf32>, vector<3x128xf32> -> vector<9x128xf32>
    %722 = vector.extract_strided_slice %669 {offsets = [3, 0], sizes = [6, 128], strides = [1, 1]} : vector<9x128xf32> to vector<6x128xf32>
    %723 = vector.extract_strided_slice %669 {offsets = [0, 0], sizes = [3, 128], strides = [1, 1]} : vector<9x128xf32> to vector<3x128xf32>
    %724 = tpu.concatenate %722, %723 in 0 : vector<6x128xf32>, vector<3x128xf32> -> vector<9x128xf32>
    %cst_157 = arith.constant 1.000000e-01 : f32
    %725 = vector.broadcast %cst_157 : f32 to vector<9x128xf32>
    %726 = arith.mulf %657, %725 : vector<9x128xf32>
    %727 = arith.mulf %664, %721 : vector<9x128xf32>
    %728 = arith.subf %726, %727 : vector<9x128xf32>
    %729 = arith.mulf %669, %724 : vector<9x128xf32>
    %730 = arith.mulf %728, %729 : vector<9x128xf32>
    %731 = tpu.concatenate %730, %0 in 0 : vector<9x128xf32>, vector<7x128xf32> -> vector<16x128xf32>
    %c1_158 = arith.constant 1 : index
    %c32_159 = arith.constant 32 : index
    %c0_160 = arith.constant 0 : index
    %732 = vector.load %arg7[%c1_158, %c32_159, %c0_160] : memref<6x208x128xf32, #tpu.memory_space<vmem>>, vector<1x16x128xf32>
    %733 = vector.shape_cast %732 : vector<1x16x128xf32> to vector<16x128xf32>
    %734 = vector.shape_cast %731 : vector<16x128xf32> to vector<1x16x128xf32>
    tpu.vector_store %arg7[%c1_158, %c32_159, %c0_160], %734 {strides = array<i32>} : memref<6x208x128xf32, #tpu.memory_space<vmem>>, vector<1x16x128xf32>,
    %735 = tpu.concatenate %728, %0 in 0 : vector<9x128xf32>, vector<7x128xf32> -> vector<16x128xf32>
    %c1_161 = arith.constant 1 : index
    %c96_162 = arith.constant 96 : index
    %c0_163 = arith.constant 0 : index
    %736 = vector.load %arg7[%c1_161, %c96_162, %c0_163] : memref<6x208x128xf32, #tpu.memory_space<vmem>>, vector<1x16x128xf32>
    %737 = vector.shape_cast %736 : vector<1x16x128xf32> to vector<16x128xf32>
    %738 = vector.shape_cast %735 : vector<16x128xf32> to vector<1x16x128xf32>
    tpu.vector_store %arg7[%c1_161, %c96_162, %c0_163], %738 {strides = array<i32>} : memref<6x208x128xf32, #tpu.memory_space<vmem>>, vector<1x16x128xf32>,
    %739 = vector.extract_strided_slice %664 {offsets = [4, 0], sizes = [5, 128], strides = [1, 1]} : vector<9x128xf32> to vector<5x128xf32>
    %740 = vector.extract_strided_slice %664 {offsets = [0, 0], sizes = [4, 128], strides = [1, 1]} : vector<9x128xf32> to vector<4x128xf32>
    %741 = tpu.concatenate %739, %740 in 0 : vector<5x128xf32>, vector<4x128xf32> -> vector<9x128xf32>
    %742 = vector.extract_strided_slice %669 {offsets = [4, 0], sizes = [5, 128], strides = [1, 1]} : vector<9x128xf32> to vector<5x128xf32>
    %743 = vector.extract_strided_slice %669 {offsets = [0, 0], sizes = [4, 128], strides = [1, 1]} : vector<9x128xf32> to vector<4x128xf32>
    %744 = tpu.concatenate %742, %743 in 0 : vector<5x128xf32>, vector<4x128xf32> -> vector<9x128xf32>
    %cst_164 = arith.constant 1.000000e-01 : f32
    %745 = vector.broadcast %cst_164 : f32 to vector<9x128xf32>
    %746 = arith.mulf %662, %745 : vector<9x128xf32>
    %747 = arith.mulf %664, %741 : vector<9x128xf32>
    %748 = arith.subf %746, %747 : vector<9x128xf32>
    %749 = arith.mulf %669, %744 : vector<9x128xf32>
    %750 = arith.mulf %748, %749 : vector<9x128xf32>
    %751 = tpu.concatenate %750, %0 in 0 : vector<9x128xf32>, vector<7x128xf32> -> vector<16x128xf32>
    %c1_165 = arith.constant 1 : index
    %c48_166 = arith.constant 48 : index
    %c0_167 = arith.constant 0 : index
    %752 = vector.load %arg7[%c1_165, %c48_166, %c0_167] : memref<6x208x128xf32, #tpu.memory_space<vmem>>, vector<1x16x128xf32>
    %753 = vector.shape_cast %752 : vector<1x16x128xf32> to vector<16x128xf32>
    %754 = vector.shape_cast %751 : vector<16x128xf32> to vector<1x16x128xf32>
    tpu.vector_store %arg7[%c1_165, %c48_166, %c0_167], %754 {strides = array<i32>} : memref<6x208x128xf32, #tpu.memory_space<vmem>>, vector<1x16x128xf32>,
    %755 = tpu.concatenate %748, %0 in 0 : vector<9x128xf32>, vector<7x128xf32> -> vector<16x128xf32>
    %c1_168 = arith.constant 1 : index
    %c112_169 = arith.constant 112 : index
    %c0_170 = arith.constant 0 : index
    %756 = vector.load %arg7[%c1_168, %c112_169, %c0_170] : memref<6x208x128xf32, #tpu.memory_space<vmem>>, vector<1x16x128xf32>
    %757 = vector.shape_cast %756 : vector<1x16x128xf32> to vector<16x128xf32>
    %758 = vector.shape_cast %755 : vector<16x128xf32> to vector<1x16x128xf32>
    tpu.vector_store %arg7[%c1_168, %c112_169, %c0_170], %758 {strides = array<i32>} : memref<6x208x128xf32, #tpu.memory_space<vmem>>, vector<1x16x128xf32>,
    %759 = tpu.concatenate %670, %0 in 0 : vector<9x128xf32>, vector<7x128xf32> -> vector<16x128xf32>
    %c1_171 = arith.constant 1 : index
    %c128_172 = arith.constant 128 : index
    %c0_173 = arith.constant 0 : index
    %760 = vector.load %arg7[%c1_171, %c128_172, %c0_173] : memref<6x208x128xf32, #tpu.memory_space<vmem>>, vector<1x16x128xf32>
    %761 = vector.shape_cast %760 : vector<1x16x128xf32> to vector<16x128xf32>
    %762 = vector.shape_cast %759 : vector<16x128xf32> to vector<1x16x128xf32>
    tpu.vector_store %arg7[%c1_171, %c128_172, %c0_173], %762 {strides = array<i32>} : memref<6x208x128xf32, #tpu.memory_space<vmem>>, vector<1x16x128xf32>,
    %763 = tpu.concatenate %671, %0 in 0 : vector<9x128xf32>, vector<7x128xf32> -> vector<16x128xf32>
    %c1_174 = arith.constant 1 : index
    %c144_175 = arith.constant 144 : index
    %c0_176 = arith.constant 0 : index
    %764 = vector.load %arg7[%c1_174, %c144_175, %c0_176] : memref<6x208x128xf32, #tpu.memory_space<vmem>>, vector<1x16x128xf32>
    %765 = vector.shape_cast %764 : vector<1x16x128xf32> to vector<16x128xf32>
    %766 = vector.shape_cast %763 : vector<16x128xf32> to vector<1x16x128xf32>
    tpu.vector_store %arg7[%c1_174, %c144_175, %c0_176], %766 {strides = array<i32>} : memref<6x208x128xf32, #tpu.memory_space<vmem>>, vector<1x16x128xf32>,
    %767 = tpu.concatenate %678, %0 in 0 : vector<9x128xf32>, vector<7x128xf32> -> vector<16x128xf32>
    %c1_177 = arith.constant 1 : index
    %c160_178 = arith.constant 160 : index
    %c0_179 = arith.constant 0 : index
    %768 = vector.load %arg7[%c1_177, %c160_178, %c0_179] : memref<6x208x128xf32, #tpu.memory_space<vmem>>, vector<1x16x128xf32>
    %769 = vector.shape_cast %768 : vector<1x16x128xf32> to vector<16x128xf32>
    %770 = vector.shape_cast %767 : vector<16x128xf32> to vector<1x16x128xf32>
    tpu.vector_store %arg7[%c1_177, %c160_178, %c0_179], %770 {strides = array<i32>} : memref<6x208x128xf32, #tpu.memory_space<vmem>>, vector<1x16x128xf32>,
    %771 = tpu.concatenate %642, %0 in 0 : vector<9x128xf32>, vector<7x128xf32> -> vector<16x128xf32>
    %c1_180 = arith.constant 1 : index
    %c176_181 = arith.constant 176 : index
    %c0_182 = arith.constant 0 : index
    %772 = vector.load %arg7[%c1_180, %c176_181, %c0_182] : memref<6x208x128xf32, #tpu.memory_space<vmem>>, vector<1x16x128xf32>
    %773 = vector.shape_cast %772 : vector<1x16x128xf32> to vector<16x128xf32>
    %774 = vector.shape_cast %771 : vector<16x128xf32> to vector<1x16x128xf32>
    tpu.vector_store %arg7[%c1_180, %c176_181, %c0_182], %774 {strides = array<i32>} : memref<6x208x128xf32, #tpu.memory_space<vmem>>, vector<1x16x128xf32>,
    %775 = tpu.concatenate %664, %0 in 0 : vector<9x128xf32>, vector<7x128xf32> -> vector<16x128xf32>
    %c1_183 = arith.constant 1 : index
    %c192_184 = arith.constant 192 : index
    %c0_185 = arith.constant 0 : index
    %776 = vector.load %arg7[%c1_183, %c192_184, %c0_185] : memref<6x208x128xf32, #tpu.memory_space<vmem>>, vector<1x16x128xf32>
    %777 = vector.shape_cast %776 : vector<1x16x128xf32> to vector<16x128xf32>
    %778 = vector.shape_cast %775 : vector<16x128xf32> to vector<1x16x128xf32>
    tpu.vector_store %arg7[%c1_183, %c192_184, %c0_185], %778 {strides = array<i32>} : memref<6x208x128xf32, #tpu.memory_space<vmem>>, vector<1x16x128xf32>,
    %c2_186 = arith.constant 2 : index
    %c0_187 = arith.constant 0 : index
    %c0_188 = arith.constant 0 : index
    %c0_189 = arith.constant 0 : index
    %779 = vector.load %arg1[%c2_186, %c0_187, %c0_188, %c0_189] : memref<3x10x9x128xf32, #tpu.memory_space<vmem>>, vector<1x1x9x128xf32>
    %780 = vector.shape_cast %779 : vector<1x1x9x128xf32> to vector<9x128xf32>
    %781 = arith.mulf %780, %780 : vector<9x128xf32>
    %cst_190 = arith.constant 0.0181818176 : f32
    %782 = vector.broadcast %cst_190 : f32 to vector<9x128xf32>
    %783 = arith.mulf %780, %782 : vector<9x128xf32>
    %784 = vector.extract_strided_slice %780 {offsets = [1, 0], sizes = [8, 128], strides = [1, 1]} : vector<9x128xf32> to vector<8x128xf32>
    %785 = vector.extract_strided_slice %780 {offsets = [0, 0], sizes = [1, 128], strides = [1, 1]} : vector<9x128xf32> to vector<1x128xf32>
    %786 = tpu.concatenate %784, %785 in 0 : vector<8x128xf32>, vector<1x128xf32> -> vector<9x128xf32>
    %787 = arith.mulf %780, %786 : vector<9x128xf32>
    %788 = vector.extract_strided_slice %780 {offsets = [2, 0], sizes = [7, 128], strides = [1, 1]} : vector<9x128xf32> to vector<7x128xf32>
    %789 = vector.extract_strided_slice %780 {offsets = [0, 0], sizes = [2, 128], strides = [1, 1]} : vector<9x128xf32> to vector<2x128xf32>
    %790 = tpu.concatenate %788, %789 in 0 : vector<7x128xf32>, vector<2x128xf32> -> vector<9x128xf32>
    %791 = arith.mulf %780, %790 : vector<9x128xf32>
    %792 = vector.extract_strided_slice %780 {offsets = [3, 0], sizes = [6, 128], strides = [1, 1]} : vector<9x128xf32> to vector<6x128xf32>
    %793 = vector.extract_strided_slice %780 {offsets = [0, 0], sizes = [3, 128], strides = [1, 1]} : vector<9x128xf32> to vector<3x128xf32>
    %794 = tpu.concatenate %792, %793 in 0 : vector<6x128xf32>, vector<3x128xf32> -> vector<9x128xf32>
    %795 = arith.mulf %780, %794 : vector<9x128xf32>
    %796 = vector.extract_strided_slice %780 {offsets = [4, 0], sizes = [5, 128], strides = [1, 1]} : vector<9x128xf32> to vector<5x128xf32>
    %797 = vector.extract_strided_slice %780 {offsets = [0, 0], sizes = [4, 128], strides = [1, 1]} : vector<9x128xf32> to vector<4x128xf32>
    %798 = tpu.concatenate %796, %797 in 0 : vector<5x128xf32>, vector<4x128xf32> -> vector<9x128xf32>
    %799 = arith.mulf %780, %798 : vector<9x128xf32>
    %c2_191 = arith.constant 2 : index
    %c1_192 = arith.constant 1 : index
    %c0_193 = arith.constant 0 : index
    %c0_194 = arith.constant 0 : index
    %800 = vector.load %arg1[%c2_191, %c1_192, %c0_193, %c0_194] : memref<3x10x9x128xf32, #tpu.memory_space<vmem>>, vector<1x1x9x128xf32>
    %801 = vector.shape_cast %800 : vector<1x1x9x128xf32> to vector<9x128xf32>
    %802 = arith.addf %780, %801 : vector<9x128xf32>
    %803 = arith.mulf %801, %801 : vector<9x128xf32>
    %804 = arith.addf %781, %803 : vector<9x128xf32>
    %cst_195 = arith.constant 0.0363636352 : f32
    %805 = vector.broadcast %cst_195 : f32 to vector<9x128xf32>
    %806 = arith.mulf %801, %805 : vector<9x128xf32>
    %807 = arith.addf %783, %806 : vector<9x128xf32>
    %808 = vector.extract_strided_slice %801 {offsets = [1, 0], sizes = [8, 128], strides = [1, 1]} : vector<9x128xf32> to vector<8x128xf32>
    %809 = vector.extract_strided_slice %801 {offsets = [0, 0], sizes = [1, 128], strides = [1, 1]} : vector<9x128xf32> to vector<1x128xf32>
    %810 = tpu.concatenate %808, %809 in 0 : vector<8x128xf32>, vector<1x128xf32> -> vector<9x128xf32>
    %811 = arith.mulf %801, %810 : vector<9x128xf32>
    %812 = arith.addf %787, %811 : vector<9x128xf32>
    %813 = vector.extract_strided_slice %801 {offsets = [2, 0], sizes = [7, 128], strides = [1, 1]} : vector<9x128xf32> to vector<7x128xf32>
    %814 = vector.extract_strided_slice %801 {offsets = [0, 0], sizes = [2, 128], strides = [1, 1]} : vector<9x128xf32> to vector<2x128xf32>
    %815 = tpu.concatenate %813, %814 in 0 : vector<7x128xf32>, vector<2x128xf32> -> vector<9x128xf32>
    %816 = arith.mulf %801, %815 : vector<9x128xf32>
    %817 = arith.addf %791, %816 : vector<9x128xf32>
    %818 = vector.extract_strided_slice %801 {offsets = [3, 0], sizes = [6, 128], strides = [1, 1]} : vector<9x128xf32> to vector<6x128xf32>
    %819 = vector.extract_strided_slice %801 {offsets = [0, 0], sizes = [3, 128], strides = [1, 1]} : vector<9x128xf32> to vector<3x128xf32>
    %820 = tpu.concatenate %818, %819 in 0 : vector<6x128xf32>, vector<3x128xf32> -> vector<9x128xf32>
    %821 = arith.mulf %801, %820 : vector<9x128xf32>
    %822 = arith.addf %795, %821 : vector<9x128xf32>
    %823 = vector.extract_strided_slice %801 {offsets = [4, 0], sizes = [5, 128], strides = [1, 1]} : vector<9x128xf32> to vector<5x128xf32>
    %824 = vector.extract_strided_slice %801 {offsets = [0, 0], sizes = [4, 128], strides = [1, 1]} : vector<9x128xf32> to vector<4x128xf32>
    %825 = tpu.concatenate %823, %824 in 0 : vector<5x128xf32>, vector<4x128xf32> -> vector<9x128xf32>
    %826 = arith.mulf %801, %825 : vector<9x128xf32>
    %827 = arith.addf %799, %826 : vector<9x128xf32>
    %c2_196 = arith.constant 2 : index
    %c2_197 = arith.constant 2 : index
    %c0_198 = arith.constant 0 : index
    %c0_199 = arith.constant 0 : index
    %828 = vector.load %arg1[%c2_196, %c2_197, %c0_198, %c0_199] : memref<3x10x9x128xf32, #tpu.memory_space<vmem>>, vector<1x1x9x128xf32>
    %829 = vector.shape_cast %828 : vector<1x1x9x128xf32> to vector<9x128xf32>
    %830 = arith.addf %802, %829 : vector<9x128xf32>
    %831 = arith.mulf %829, %829 : vector<9x128xf32>
    %832 = arith.addf %804, %831 : vector<9x128xf32>
    %cst_200 = arith.constant 0.0545454547 : f32
    %833 = vector.broadcast %cst_200 : f32 to vector<9x128xf32>
    %834 = arith.mulf %829, %833 : vector<9x128xf32>
    %835 = arith.addf %807, %834 : vector<9x128xf32>
    %836 = vector.extract_strided_slice %829 {offsets = [1, 0], sizes = [8, 128], strides = [1, 1]} : vector<9x128xf32> to vector<8x128xf32>
    %837 = vector.extract_strided_slice %829 {offsets = [0, 0], sizes = [1, 128], strides = [1, 1]} : vector<9x128xf32> to vector<1x128xf32>
    %838 = tpu.concatenate %836, %837 in 0 : vector<8x128xf32>, vector<1x128xf32> -> vector<9x128xf32>
    %839 = arith.mulf %829, %838 : vector<9x128xf32>
    %840 = arith.addf %812, %839 : vector<9x128xf32>
    %841 = vector.extract_strided_slice %829 {offsets = [2, 0], sizes = [7, 128], strides = [1, 1]} : vector<9x128xf32> to vector<7x128xf32>
    %842 = vector.extract_strided_slice %829 {offsets = [0, 0], sizes = [2, 128], strides = [1, 1]} : vector<9x128xf32> to vector<2x128xf32>
    %843 = tpu.concatenate %841, %842 in 0 : vector<7x128xf32>, vector<2x128xf32> -> vector<9x128xf32>
    %844 = arith.mulf %829, %843 : vector<9x128xf32>
    %845 = arith.addf %817, %844 : vector<9x128xf32>
    %846 = vector.extract_strided_slice %829 {offsets = [3, 0], sizes = [6, 128], strides = [1, 1]} : vector<9x128xf32> to vector<6x128xf32>
    %847 = vector.extract_strided_slice %829 {offsets = [0, 0], sizes = [3, 128], strides = [1, 1]} : vector<9x128xf32> to vector<3x128xf32>
    %848 = tpu.concatenate %846, %847 in 0 : vector<6x128xf32>, vector<3x128xf32> -> vector<9x128xf32>
    %849 = arith.mulf %829, %848 : vector<9x128xf32>
    %850 = arith.addf %822, %849 : vector<9x128xf32>
    %851 = vector.extract_strided_slice %829 {offsets = [4, 0], sizes = [5, 128], strides = [1, 1]} : vector<9x128xf32> to vector<5x128xf32>
    %852 = vector.extract_strided_slice %829 {offsets = [0, 0], sizes = [4, 128], strides = [1, 1]} : vector<9x128xf32> to vector<4x128xf32>
    %853 = tpu.concatenate %851, %852 in 0 : vector<5x128xf32>, vector<4x128xf32> -> vector<9x128xf32>
    %854 = arith.mulf %829, %853 : vector<9x128xf32>
    %855 = arith.addf %827, %854 : vector<9x128xf32>
    %c2_201 = arith.constant 2 : index
    %c3_202 = arith.constant 3 : index
    %c0_203 = arith.constant 0 : index
    %c0_204 = arith.constant 0 : index
    %856 = vector.load %arg1[%c2_201, %c3_202, %c0_203, %c0_204] : memref<3x10x9x128xf32, #tpu.memory_space<vmem>>, vector<1x1x9x128xf32>
    %857 = vector.shape_cast %856 : vector<1x1x9x128xf32> to vector<9x128xf32>
    %858 = arith.addf %830, %857 : vector<9x128xf32>
    %859 = arith.mulf %857, %857 : vector<9x128xf32>
    %860 = arith.addf %832, %859 : vector<9x128xf32>
    %cst_205 = arith.constant 0.0727272704 : f32
    %861 = vector.broadcast %cst_205 : f32 to vector<9x128xf32>
    %862 = arith.mulf %857, %861 : vector<9x128xf32>
    %863 = arith.addf %835, %862 : vector<9x128xf32>
    %864 = vector.extract_strided_slice %857 {offsets = [1, 0], sizes = [8, 128], strides = [1, 1]} : vector<9x128xf32> to vector<8x128xf32>
    %865 = vector.extract_strided_slice %857 {offsets = [0, 0], sizes = [1, 128], strides = [1, 1]} : vector<9x128xf32> to vector<1x128xf32>
    %866 = tpu.concatenate %864, %865 in 0 : vector<8x128xf32>, vector<1x128xf32> -> vector<9x128xf32>
    %867 = arith.mulf %857, %866 : vector<9x128xf32>
    %868 = arith.addf %840, %867 : vector<9x128xf32>
    %869 = vector.extract_strided_slice %857 {offsets = [2, 0], sizes = [7, 128], strides = [1, 1]} : vector<9x128xf32> to vector<7x128xf32>
    %870 = vector.extract_strided_slice %857 {offsets = [0, 0], sizes = [2, 128], strides = [1, 1]} : vector<9x128xf32> to vector<2x128xf32>
    %871 = tpu.concatenate %869, %870 in 0 : vector<7x128xf32>, vector<2x128xf32> -> vector<9x128xf32>
    %872 = arith.mulf %857, %871 : vector<9x128xf32>
    %873 = arith.addf %845, %872 : vector<9x128xf32>
    %874 = vector.extract_strided_slice %857 {offsets = [3, 0], sizes = [6, 128], strides = [1, 1]} : vector<9x128xf32> to vector<6x128xf32>
    %875 = vector.extract_strided_slice %857 {offsets = [0, 0], sizes = [3, 128], strides = [1, 1]} : vector<9x128xf32> to vector<3x128xf32>
    %876 = tpu.concatenate %874, %875 in 0 : vector<6x128xf32>, vector<3x128xf32> -> vector<9x128xf32>
    %877 = arith.mulf %857, %876 : vector<9x128xf32>
    %878 = arith.addf %850, %877 : vector<9x128xf32>
    %879 = vector.extract_strided_slice %857 {offsets = [4, 0], sizes = [5, 128], strides = [1, 1]} : vector<9x128xf32> to vector<5x128xf32>
    %880 = vector.extract_strided_slice %857 {offsets = [0, 0], sizes = [4, 128], strides = [1, 1]} : vector<9x128xf32> to vector<4x128xf32>
    %881 = tpu.concatenate %879, %880 in 0 : vector<5x128xf32>, vector<4x128xf32> -> vector<9x128xf32>
    %882 = arith.mulf %857, %881 : vector<9x128xf32>
    %883 = arith.addf %855, %882 : vector<9x128xf32>
    %c2_206 = arith.constant 2 : index
    %c4_207 = arith.constant 4 : index
    %c0_208 = arith.constant 0 : index
    %c0_209 = arith.constant 0 : index
    %884 = vector.load %arg1[%c2_206, %c4_207, %c0_208, %c0_209] : memref<3x10x9x128xf32, #tpu.memory_space<vmem>>, vector<1x1x9x128xf32>
    %885 = vector.shape_cast %884 : vector<1x1x9x128xf32> to vector<9x128xf32>
    %886 = arith.addf %858, %885 : vector<9x128xf32>
    %887 = arith.mulf %885, %885 : vector<9x128xf32>
    %888 = arith.addf %860, %887 : vector<9x128xf32>
    %cst_210 = arith.constant 0.0909090936 : f32
    %889 = vector.broadcast %cst_210 : f32 to vector<9x128xf32>
    %890 = arith.mulf %885, %889 : vector<9x128xf32>
    %891 = arith.addf %863, %890 : vector<9x128xf32>
    %892 = vector.extract_strided_slice %885 {offsets = [1, 0], sizes = [8, 128], strides = [1, 1]} : vector<9x128xf32> to vector<8x128xf32>
    %893 = vector.extract_strided_slice %885 {offsets = [0, 0], sizes = [1, 128], strides = [1, 1]} : vector<9x128xf32> to vector<1x128xf32>
    %894 = tpu.concatenate %892, %893 in 0 : vector<8x128xf32>, vector<1x128xf32> -> vector<9x128xf32>
    %895 = arith.mulf %885, %894 : vector<9x128xf32>
    %896 = arith.addf %868, %895 : vector<9x128xf32>
    %897 = vector.extract_strided_slice %885 {offsets = [2, 0], sizes = [7, 128], strides = [1, 1]} : vector<9x128xf32> to vector<7x128xf32>
    %898 = vector.extract_strided_slice %885 {offsets = [0, 0], sizes = [2, 128], strides = [1, 1]} : vector<9x128xf32> to vector<2x128xf32>
    %899 = tpu.concatenate %897, %898 in 0 : vector<7x128xf32>, vector<2x128xf32> -> vector<9x128xf32>
    %900 = arith.mulf %885, %899 : vector<9x128xf32>
    %901 = arith.addf %873, %900 : vector<9x128xf32>
    %902 = vector.extract_strided_slice %885 {offsets = [3, 0], sizes = [6, 128], strides = [1, 1]} : vector<9x128xf32> to vector<6x128xf32>
    %903 = vector.extract_strided_slice %885 {offsets = [0, 0], sizes = [3, 128], strides = [1, 1]} : vector<9x128xf32> to vector<3x128xf32>
    %904 = tpu.concatenate %902, %903 in 0 : vector<6x128xf32>, vector<3x128xf32> -> vector<9x128xf32>
    %905 = arith.mulf %885, %904 : vector<9x128xf32>
    %906 = arith.addf %878, %905 : vector<9x128xf32>
    %907 = vector.extract_strided_slice %885 {offsets = [4, 0], sizes = [5, 128], strides = [1, 1]} : vector<9x128xf32> to vector<5x128xf32>
    %908 = vector.extract_strided_slice %885 {offsets = [0, 0], sizes = [4, 128], strides = [1, 1]} : vector<9x128xf32> to vector<4x128xf32>
    %909 = tpu.concatenate %907, %908 in 0 : vector<5x128xf32>, vector<4x128xf32> -> vector<9x128xf32>
    %910 = arith.mulf %885, %909 : vector<9x128xf32>
    %911 = arith.addf %883, %910 : vector<9x128xf32>
    %c2_211 = arith.constant 2 : index
    %c5_212 = arith.constant 5 : index
    %c0_213 = arith.constant 0 : index
    %c0_214 = arith.constant 0 : index
    %912 = vector.load %arg1[%c2_211, %c5_212, %c0_213, %c0_214] : memref<3x10x9x128xf32, #tpu.memory_space<vmem>>, vector<1x1x9x128xf32>
    %913 = vector.shape_cast %912 : vector<1x1x9x128xf32> to vector<9x128xf32>
    %914 = arith.addf %886, %913 : vector<9x128xf32>
    %915 = arith.mulf %913, %913 : vector<9x128xf32>
    %916 = arith.addf %888, %915 : vector<9x128xf32>
    %cst_215 = arith.constant 0.109090909 : f32
    %917 = vector.broadcast %cst_215 : f32 to vector<9x128xf32>
    %918 = arith.mulf %913, %917 : vector<9x128xf32>
    %919 = arith.addf %891, %918 : vector<9x128xf32>
    %920 = vector.extract_strided_slice %913 {offsets = [1, 0], sizes = [8, 128], strides = [1, 1]} : vector<9x128xf32> to vector<8x128xf32>
    %921 = vector.extract_strided_slice %913 {offsets = [0, 0], sizes = [1, 128], strides = [1, 1]} : vector<9x128xf32> to vector<1x128xf32>
    %922 = tpu.concatenate %920, %921 in 0 : vector<8x128xf32>, vector<1x128xf32> -> vector<9x128xf32>
    %923 = arith.mulf %913, %922 : vector<9x128xf32>
    %924 = arith.addf %896, %923 : vector<9x128xf32>
    %925 = vector.extract_strided_slice %913 {offsets = [2, 0], sizes = [7, 128], strides = [1, 1]} : vector<9x128xf32> to vector<7x128xf32>
    %926 = vector.extract_strided_slice %913 {offsets = [0, 0], sizes = [2, 128], strides = [1, 1]} : vector<9x128xf32> to vector<2x128xf32>
    %927 = tpu.concatenate %925, %926 in 0 : vector<7x128xf32>, vector<2x128xf32> -> vector<9x128xf32>
    %928 = arith.mulf %913, %927 : vector<9x128xf32>
    %929 = arith.addf %901, %928 : vector<9x128xf32>
    %930 = vector.extract_strided_slice %913 {offsets = [3, 0], sizes = [6, 128], strides = [1, 1]} : vector<9x128xf32> to vector<6x128xf32>
    %931 = vector.extract_strided_slice %913 {offsets = [0, 0], sizes = [3, 128], strides = [1, 1]} : vector<9x128xf32> to vector<3x128xf32>
    %932 = tpu.concatenate %930, %931 in 0 : vector<6x128xf32>, vector<3x128xf32> -> vector<9x128xf32>
    %933 = arith.mulf %913, %932 : vector<9x128xf32>
    %934 = arith.addf %906, %933 : vector<9x128xf32>
    %935 = vector.extract_strided_slice %913 {offsets = [4, 0], sizes = [5, 128], strides = [1, 1]} : vector<9x128xf32> to vector<5x128xf32>
    %936 = vector.extract_strided_slice %913 {offsets = [0, 0], sizes = [4, 128], strides = [1, 1]} : vector<9x128xf32> to vector<4x128xf32>
    %937 = tpu.concatenate %935, %936 in 0 : vector<5x128xf32>, vector<4x128xf32> -> vector<9x128xf32>
    %938 = arith.mulf %913, %937 : vector<9x128xf32>
    %939 = arith.addf %911, %938 : vector<9x128xf32>
    %c2_216 = arith.constant 2 : index
    %c6_217 = arith.constant 6 : index
    %c0_218 = arith.constant 0 : index
    %c0_219 = arith.constant 0 : index
    %940 = vector.load %arg1[%c2_216, %c6_217, %c0_218, %c0_219] : memref<3x10x9x128xf32, #tpu.memory_space<vmem>>, vector<1x1x9x128xf32>
    %941 = vector.shape_cast %940 : vector<1x1x9x128xf32> to vector<9x128xf32>
    %942 = arith.addf %914, %941 : vector<9x128xf32>
    %943 = arith.mulf %941, %941 : vector<9x128xf32>
    %944 = arith.addf %916, %943 : vector<9x128xf32>
    %cst_220 = arith.constant 0.127272725 : f32
    %945 = vector.broadcast %cst_220 : f32 to vector<9x128xf32>
    %946 = arith.mulf %941, %945 : vector<9x128xf32>
    %947 = arith.addf %919, %946 : vector<9x128xf32>
    %948 = vector.extract_strided_slice %941 {offsets = [1, 0], sizes = [8, 128], strides = [1, 1]} : vector<9x128xf32> to vector<8x128xf32>
    %949 = vector.extract_strided_slice %941 {offsets = [0, 0], sizes = [1, 128], strides = [1, 1]} : vector<9x128xf32> to vector<1x128xf32>
    %950 = tpu.concatenate %948, %949 in 0 : vector<8x128xf32>, vector<1x128xf32> -> vector<9x128xf32>
    %951 = arith.mulf %941, %950 : vector<9x128xf32>
    %952 = arith.addf %924, %951 : vector<9x128xf32>
    %953 = vector.extract_strided_slice %941 {offsets = [2, 0], sizes = [7, 128], strides = [1, 1]} : vector<9x128xf32> to vector<7x128xf32>
    %954 = vector.extract_strided_slice %941 {offsets = [0, 0], sizes = [2, 128], strides = [1, 1]} : vector<9x128xf32> to vector<2x128xf32>
    %955 = tpu.concatenate %953, %954 in 0 : vector<7x128xf32>, vector<2x128xf32> -> vector<9x128xf32>
    %956 = arith.mulf %941, %955 : vector<9x128xf32>
    %957 = arith.addf %929, %956 : vector<9x128xf32>
    %958 = vector.extract_strided_slice %941 {offsets = [3, 0], sizes = [6, 128], strides = [1, 1]} : vector<9x128xf32> to vector<6x128xf32>
    %959 = vector.extract_strided_slice %941 {offsets = [0, 0], sizes = [3, 128], strides = [1, 1]} : vector<9x128xf32> to vector<3x128xf32>
    %960 = tpu.concatenate %958, %959 in 0 : vector<6x128xf32>, vector<3x128xf32> -> vector<9x128xf32>
    %961 = arith.mulf %941, %960 : vector<9x128xf32>
    %962 = arith.addf %934, %961 : vector<9x128xf32>
    %963 = vector.extract_strided_slice %941 {offsets = [4, 0], sizes = [5, 128], strides = [1, 1]} : vector<9x128xf32> to vector<5x128xf32>
    %964 = vector.extract_strided_slice %941 {offsets = [0, 0], sizes = [4, 128], strides = [1, 1]} : vector<9x128xf32> to vector<4x128xf32>
    %965 = tpu.concatenate %963, %964 in 0 : vector<5x128xf32>, vector<4x128xf32> -> vector<9x128xf32>
    %966 = arith.mulf %941, %965 : vector<9x128xf32>
    %967 = arith.addf %939, %966 : vector<9x128xf32>
    %c2_221 = arith.constant 2 : index
    %c7_222 = arith.constant 7 : index
    %c0_223 = arith.constant 0 : index
    %c0_224 = arith.constant 0 : index
    %968 = vector.load %arg1[%c2_221, %c7_222, %c0_223, %c0_224] : memref<3x10x9x128xf32, #tpu.memory_space<vmem>>, vector<1x1x9x128xf32>
    %969 = vector.shape_cast %968 : vector<1x1x9x128xf32> to vector<9x128xf32>
    %970 = arith.addf %942, %969 : vector<9x128xf32>
    %971 = arith.mulf %969, %969 : vector<9x128xf32>
    %972 = arith.addf %944, %971 : vector<9x128xf32>
    %cst_225 = arith.constant 0.145454541 : f32
    %973 = vector.broadcast %cst_225 : f32 to vector<9x128xf32>
    %974 = arith.mulf %969, %973 : vector<9x128xf32>
    %975 = arith.addf %947, %974 : vector<9x128xf32>
    %976 = vector.extract_strided_slice %969 {offsets = [1, 0], sizes = [8, 128], strides = [1, 1]} : vector<9x128xf32> to vector<8x128xf32>
    %977 = vector.extract_strided_slice %969 {offsets = [0, 0], sizes = [1, 128], strides = [1, 1]} : vector<9x128xf32> to vector<1x128xf32>
    %978 = tpu.concatenate %976, %977 in 0 : vector<8x128xf32>, vector<1x128xf32> -> vector<9x128xf32>
    %979 = arith.mulf %969, %978 : vector<9x128xf32>
    %980 = arith.addf %952, %979 : vector<9x128xf32>
    %981 = vector.extract_strided_slice %969 {offsets = [2, 0], sizes = [7, 128], strides = [1, 1]} : vector<9x128xf32> to vector<7x128xf32>
    %982 = vector.extract_strided_slice %969 {offsets = [0, 0], sizes = [2, 128], strides = [1, 1]} : vector<9x128xf32> to vector<2x128xf32>
    %983 = tpu.concatenate %981, %982 in 0 : vector<7x128xf32>, vector<2x128xf32> -> vector<9x128xf32>
    %984 = arith.mulf %969, %983 : vector<9x128xf32>
    %985 = arith.addf %957, %984 : vector<9x128xf32>
    %986 = vector.extract_strided_slice %969 {offsets = [3, 0], sizes = [6, 128], strides = [1, 1]} : vector<9x128xf32> to vector<6x128xf32>
    %987 = vector.extract_strided_slice %969 {offsets = [0, 0], sizes = [3, 128], strides = [1, 1]} : vector<9x128xf32> to vector<3x128xf32>
    %988 = tpu.concatenate %986, %987 in 0 : vector<6x128xf32>, vector<3x128xf32> -> vector<9x128xf32>
    %989 = arith.mulf %969, %988 : vector<9x128xf32>
    %990 = arith.addf %962, %989 : vector<9x128xf32>
    %991 = vector.extract_strided_slice %969 {offsets = [4, 0], sizes = [5, 128], strides = [1, 1]} : vector<9x128xf32> to vector<5x128xf32>
    %992 = vector.extract_strided_slice %969 {offsets = [0, 0], sizes = [4, 128], strides = [1, 1]} : vector<9x128xf32> to vector<4x128xf32>
    %993 = tpu.concatenate %991, %992 in 0 : vector<5x128xf32>, vector<4x128xf32> -> vector<9x128xf32>
    %994 = arith.mulf %969, %993 : vector<9x128xf32>
    %995 = arith.addf %967, %994 : vector<9x128xf32>
    %c2_226 = arith.constant 2 : index
    %c8_227 = arith.constant 8 : index
    %c0_228 = arith.constant 0 : index
    %c0_229 = arith.constant 0 : index
    %996 = vector.load %arg1[%c2_226, %c8_227, %c0_228, %c0_229] : memref<3x10x9x128xf32, #tpu.memory_space<vmem>>, vector<1x1x9x128xf32>
    %997 = vector.shape_cast %996 : vector<1x1x9x128xf32> to vector<9x128xf32>
    %998 = arith.addf %970, %997 : vector<9x128xf32>
    %999 = arith.mulf %997, %997 : vector<9x128xf32>
    %1000 = arith.addf %972, %999 : vector<9x128xf32>
    %cst_230 = arith.constant 0.163636357 : f32
    %1001 = vector.broadcast %cst_230 : f32 to vector<9x128xf32>
    %1002 = arith.mulf %997, %1001 : vector<9x128xf32>
    %1003 = arith.addf %975, %1002 : vector<9x128xf32>
    %1004 = vector.extract_strided_slice %997 {offsets = [1, 0], sizes = [8, 128], strides = [1, 1]} : vector<9x128xf32> to vector<8x128xf32>
    %1005 = vector.extract_strided_slice %997 {offsets = [0, 0], sizes = [1, 128], strides = [1, 1]} : vector<9x128xf32> to vector<1x128xf32>
    %1006 = tpu.concatenate %1004, %1005 in 0 : vector<8x128xf32>, vector<1x128xf32> -> vector<9x128xf32>
    %1007 = arith.mulf %997, %1006 : vector<9x128xf32>
    %1008 = arith.addf %980, %1007 : vector<9x128xf32>
    %1009 = vector.extract_strided_slice %997 {offsets = [2, 0], sizes = [7, 128], strides = [1, 1]} : vector<9x128xf32> to vector<7x128xf32>
    %1010 = vector.extract_strided_slice %997 {offsets = [0, 0], sizes = [2, 128], strides = [1, 1]} : vector<9x128xf32> to vector<2x128xf32>
    %1011 = tpu.concatenate %1009, %1010 in 0 : vector<7x128xf32>, vector<2x128xf32> -> vector<9x128xf32>
    %1012 = arith.mulf %997, %1011 : vector<9x128xf32>
    %1013 = arith.addf %985, %1012 : vector<9x128xf32>
    %1014 = vector.extract_strided_slice %997 {offsets = [3, 0], sizes = [6, 128], strides = [1, 1]} : vector<9x128xf32> to vector<6x128xf32>
    %1015 = vector.extract_strided_slice %997 {offsets = [0, 0], sizes = [3, 128], strides = [1, 1]} : vector<9x128xf32> to vector<3x128xf32>
    %1016 = tpu.concatenate %1014, %1015 in 0 : vector<6x128xf32>, vector<3x128xf32> -> vector<9x128xf32>
    %1017 = arith.mulf %997, %1016 : vector<9x128xf32>
    %1018 = arith.addf %990, %1017 : vector<9x128xf32>
    %1019 = vector.extract_strided_slice %997 {offsets = [4, 0], sizes = [5, 128], strides = [1, 1]} : vector<9x128xf32> to vector<5x128xf32>
    %1020 = vector.extract_strided_slice %997 {offsets = [0, 0], sizes = [4, 128], strides = [1, 1]} : vector<9x128xf32> to vector<4x128xf32>
    %1021 = tpu.concatenate %1019, %1020 in 0 : vector<5x128xf32>, vector<4x128xf32> -> vector<9x128xf32>
    %1022 = arith.mulf %997, %1021 : vector<9x128xf32>
    %1023 = arith.addf %995, %1022 : vector<9x128xf32>
    %c2_231 = arith.constant 2 : index
    %c9_232 = arith.constant 9 : index
    %c0_233 = arith.constant 0 : index
    %c0_234 = arith.constant 0 : index
    %1024 = vector.load %arg1[%c2_231, %c9_232, %c0_233, %c0_234] : memref<3x10x9x128xf32, #tpu.memory_space<vmem>>, vector<1x1x9x128xf32>
    %1025 = vector.shape_cast %1024 : vector<1x1x9x128xf32> to vector<9x128xf32>
    %1026 = arith.addf %998, %1025 : vector<9x128xf32>
    %1027 = arith.mulf %1025, %1025 : vector<9x128xf32>
    %1028 = arith.addf %1000, %1027 : vector<9x128xf32>
    %cst_235 = arith.constant 0.181818187 : f32
    %1029 = vector.broadcast %cst_235 : f32 to vector<9x128xf32>
    %1030 = arith.mulf %1025, %1029 : vector<9x128xf32>
    %1031 = arith.addf %1003, %1030 : vector<9x128xf32>
    %1032 = vector.extract_strided_slice %1025 {offsets = [1, 0], sizes = [8, 128], strides = [1, 1]} : vector<9x128xf32> to vector<8x128xf32>
    %1033 = vector.extract_strided_slice %1025 {offsets = [0, 0], sizes = [1, 128], strides = [1, 1]} : vector<9x128xf32> to vector<1x128xf32>
    %1034 = tpu.concatenate %1032, %1033 in 0 : vector<8x128xf32>, vector<1x128xf32> -> vector<9x128xf32>
    %1035 = arith.mulf %1025, %1034 : vector<9x128xf32>
    %1036 = arith.addf %1008, %1035 : vector<9x128xf32>
    %1037 = vector.extract_strided_slice %1025 {offsets = [2, 0], sizes = [7, 128], strides = [1, 1]} : vector<9x128xf32> to vector<7x128xf32>
    %1038 = vector.extract_strided_slice %1025 {offsets = [0, 0], sizes = [2, 128], strides = [1, 1]} : vector<9x128xf32> to vector<2x128xf32>
    %1039 = tpu.concatenate %1037, %1038 in 0 : vector<7x128xf32>, vector<2x128xf32> -> vector<9x128xf32>
    %1040 = arith.mulf %1025, %1039 : vector<9x128xf32>
    %1041 = arith.addf %1013, %1040 : vector<9x128xf32>
    %1042 = vector.extract_strided_slice %1025 {offsets = [3, 0], sizes = [6, 128], strides = [1, 1]} : vector<9x128xf32> to vector<6x128xf32>
    %1043 = vector.extract_strided_slice %1025 {offsets = [0, 0], sizes = [3, 128], strides = [1, 1]} : vector<9x128xf32> to vector<3x128xf32>
    %1044 = tpu.concatenate %1042, %1043 in 0 : vector<6x128xf32>, vector<3x128xf32> -> vector<9x128xf32>
    %1045 = arith.mulf %1025, %1044 : vector<9x128xf32>
    %1046 = arith.addf %1018, %1045 : vector<9x128xf32>
    %1047 = vector.extract_strided_slice %1025 {offsets = [4, 0], sizes = [5, 128], strides = [1, 1]} : vector<9x128xf32> to vector<5x128xf32>
    %1048 = vector.extract_strided_slice %1025 {offsets = [0, 0], sizes = [4, 128], strides = [1, 1]} : vector<9x128xf32> to vector<4x128xf32>
    %1049 = tpu.concatenate %1047, %1048 in 0 : vector<5x128xf32>, vector<4x128xf32> -> vector<9x128xf32>
    %1050 = arith.mulf %1025, %1049 : vector<9x128xf32>
    %1051 = arith.addf %1023, %1050 : vector<9x128xf32>
    %cst_236 = arith.constant 1.000000e-01 : f32
    %1052 = vector.broadcast %cst_236 : f32 to vector<9x128xf32>
    %1053 = arith.mulf %1026, %1052 : vector<9x128xf32>
    %cst_237 = arith.constant 1.000000e-01 : f32
    %1054 = vector.broadcast %cst_237 : f32 to vector<9x128xf32>
    %1055 = arith.mulf %1028, %1054 : vector<9x128xf32>
    %1056 = arith.mulf %1053, %1053 : vector<9x128xf32>
    %1057 = arith.subf %1055, %1056 : vector<9x128xf32>
    %1058 = math.rsqrt %1057 : vector<9x128xf32>
    %1059 = arith.mulf %1057, %1058 : vector<9x128xf32>
    %1060 = arith.mulf %1053, %1058 : vector<9x128xf32>
    %c2_238 = arith.constant 2 : index
    %c9_239 = arith.constant 9 : index
    %c0_240 = arith.constant 0 : index
    %c0_241 = arith.constant 0 : index
    %1061 = vector.load %arg1[%c2_238, %c9_239, %c0_240, %c0_241] : memref<3x10x9x128xf32, #tpu.memory_space<vmem>>, vector<1x1x9x128xf32>
    %1062 = vector.shape_cast %1061 : vector<1x1x9x128xf32> to vector<9x128xf32>
    %c2_242 = arith.constant 2 : index
    %c0_243 = arith.constant 0 : index
    %c0_244 = arith.constant 0 : index
    %c0_245 = arith.constant 0 : index
    %1063 = vector.load %arg1[%c2_242, %c0_243, %c0_244, %c0_245] : memref<3x10x9x128xf32, #tpu.memory_space<vmem>>, vector<1x1x9x128xf32>
    %1064 = vector.shape_cast %1063 : vector<1x1x9x128xf32> to vector<9x128xf32>
    %1065 = arith.divf %1062, %1064 : vector<9x128xf32>
    %cst_246 = arith.constant 1.000000e+00 : f32
    %1066 = vector.broadcast %cst_246 : f32 to vector<9x128xf32>
    %1067 = arith.subf %1065, %1066 : vector<9x128xf32>
    %1068 = vector.extract_strided_slice %1053 {offsets = [1, 0], sizes = [8, 128], strides = [1, 1]} : vector<9x128xf32> to vector<8x128xf32>
    %1069 = vector.extract_strided_slice %1053 {offsets = [0, 0], sizes = [1, 128], strides = [1, 1]} : vector<9x128xf32> to vector<1x128xf32>
    %1070 = tpu.concatenate %1068, %1069 in 0 : vector<8x128xf32>, vector<1x128xf32> -> vector<9x128xf32>
    %1071 = vector.extract_strided_slice %1058 {offsets = [1, 0], sizes = [8, 128], strides = [1, 1]} : vector<9x128xf32> to vector<8x128xf32>
    %1072 = vector.extract_strided_slice %1058 {offsets = [0, 0], sizes = [1, 128], strides = [1, 1]} : vector<9x128xf32> to vector<1x128xf32>
    %1073 = tpu.concatenate %1071, %1072 in 0 : vector<8x128xf32>, vector<1x128xf32> -> vector<9x128xf32>
    %cst_247 = arith.constant 1.000000e-01 : f32
    %1074 = vector.broadcast %cst_247 : f32 to vector<9x128xf32>
    %1075 = arith.mulf %1036, %1074 : vector<9x128xf32>
    %1076 = arith.mulf %1053, %1070 : vector<9x128xf32>
    %1077 = arith.subf %1075, %1076 : vector<9x128xf32>
    %1078 = arith.mulf %1058, %1073 : vector<9x128xf32>
    %1079 = arith.mulf %1077, %1078 : vector<9x128xf32>
    %1080 = tpu.concatenate %1079, %0 in 0 : vector<9x128xf32>, vector<7x128xf32> -> vector<16x128xf32>
    %c2_248 = arith.constant 2 : index
    %c0_249 = arith.constant 0 : index
    %c0_250 = arith.constant 0 : index
    %1081 = vector.load %arg7[%c2_248, %c0_249, %c0_250] : memref<6x208x128xf32, #tpu.memory_space<vmem>>, vector<1x16x128xf32>
    %1082 = vector.shape_cast %1081 : vector<1x16x128xf32> to vector<16x128xf32>
    %1083 = vector.shape_cast %1080 : vector<16x128xf32> to vector<1x16x128xf32>
    tpu.vector_store %arg7[%c2_248, %c0_249, %c0_250], %1083 {strides = array<i32>} : memref<6x208x128xf32, #tpu.memory_space<vmem>>, vector<1x16x128xf32>,
    %1084 = tpu.concatenate %1077, %0 in 0 : vector<9x128xf32>, vector<7x128xf32> -> vector<16x128xf32>
    %c2_251 = arith.constant 2 : index
    %c64_252 = arith.constant 64 : index
    %c0_253 = arith.constant 0 : index
    %1085 = vector.load %arg7[%c2_251, %c64_252, %c0_253] : memref<6x208x128xf32, #tpu.memory_space<vmem>>, vector<1x16x128xf32>
    %1086 = vector.shape_cast %1085 : vector<1x16x128xf32> to vector<16x128xf32>
    %1087 = vector.shape_cast %1084 : vector<16x128xf32> to vector<1x16x128xf32>
    tpu.vector_store %arg7[%c2_251, %c64_252, %c0_253], %1087 {strides = array<i32>} : memref<6x208x128xf32, #tpu.memory_space<vmem>>, vector<1x16x128xf32>,
    %1088 = vector.extract_strided_slice %1053 {offsets = [2, 0], sizes = [7, 128], strides = [1, 1]} : vector<9x128xf32> to vector<7x128xf32>
    %1089 = vector.extract_strided_slice %1053 {offsets = [0, 0], sizes = [2, 128], strides = [1, 1]} : vector<9x128xf32> to vector<2x128xf32>
    %1090 = tpu.concatenate %1088, %1089 in 0 : vector<7x128xf32>, vector<2x128xf32> -> vector<9x128xf32>
    %1091 = vector.extract_strided_slice %1058 {offsets = [2, 0], sizes = [7, 128], strides = [1, 1]} : vector<9x128xf32> to vector<7x128xf32>
    %1092 = vector.extract_strided_slice %1058 {offsets = [0, 0], sizes = [2, 128], strides = [1, 1]} : vector<9x128xf32> to vector<2x128xf32>
    %1093 = tpu.concatenate %1091, %1092 in 0 : vector<7x128xf32>, vector<2x128xf32> -> vector<9x128xf32>
    %cst_254 = arith.constant 1.000000e-01 : f32
    %1094 = vector.broadcast %cst_254 : f32 to vector<9x128xf32>
    %1095 = arith.mulf %1041, %1094 : vector<9x128xf32>
    %1096 = arith.mulf %1053, %1090 : vector<9x128xf32>
    %1097 = arith.subf %1095, %1096 : vector<9x128xf32>
    %1098 = arith.mulf %1058, %1093 : vector<9x128xf32>
    %1099 = arith.mulf %1097, %1098 : vector<9x128xf32>
    %1100 = tpu.concatenate %1099, %0 in 0 : vector<9x128xf32>, vector<7x128xf32> -> vector<16x128xf32>
    %c2_255 = arith.constant 2 : index
    %c16_256 = arith.constant 16 : index
    %c0_257 = arith.constant 0 : index
    %1101 = vector.load %arg7[%c2_255, %c16_256, %c0_257] : memref<6x208x128xf32, #tpu.memory_space<vmem>>, vector<1x16x128xf32>
    %1102 = vector.shape_cast %1101 : vector<1x16x128xf32> to vector<16x128xf32>
    %1103 = vector.shape_cast %1100 : vector<16x128xf32> to vector<1x16x128xf32>
    tpu.vector_store %arg7[%c2_255, %c16_256, %c0_257], %1103 {strides = array<i32>} : memref<6x208x128xf32, #tpu.memory_space<vmem>>, vector<1x16x128xf32>,
    %1104 = tpu.concatenate %1097, %0 in 0 : vector<9x128xf32>, vector<7x128xf32> -> vector<16x128xf32>
    %c2_258 = arith.constant 2 : index
    %c80_259 = arith.constant 80 : index
    %c0_260 = arith.constant 0 : index
    %1105 = vector.load %arg7[%c2_258, %c80_259, %c0_260] : memref<6x208x128xf32, #tpu.memory_space<vmem>>, vector<1x16x128xf32>
    %1106 = vector.shape_cast %1105 : vector<1x16x128xf32> to vector<16x128xf32>
    %1107 = vector.shape_cast %1104 : vector<16x128xf32> to vector<1x16x128xf32>
    tpu.vector_store %arg7[%c2_258, %c80_259, %c0_260], %1107 {strides = array<i32>} : memref<6x208x128xf32, #tpu.memory_space<vmem>>, vector<1x16x128xf32>,
    %1108 = vector.extract_strided_slice %1053 {offsets = [3, 0], sizes = [6, 128], strides = [1, 1]} : vector<9x128xf32> to vector<6x128xf32>
    %1109 = vector.extract_strided_slice %1053 {offsets = [0, 0], sizes = [3, 128], strides = [1, 1]} : vector<9x128xf32> to vector<3x128xf32>
    %1110 = tpu.concatenate %1108, %1109 in 0 : vector<6x128xf32>, vector<3x128xf32> -> vector<9x128xf32>
    %1111 = vector.extract_strided_slice %1058 {offsets = [3, 0], sizes = [6, 128], strides = [1, 1]} : vector<9x128xf32> to vector<6x128xf32>
    %1112 = vector.extract_strided_slice %1058 {offsets = [0, 0], sizes = [3, 128], strides = [1, 1]} : vector<9x128xf32> to vector<3x128xf32>
    %1113 = tpu.concatenate %1111, %1112 in 0 : vector<6x128xf32>, vector<3x128xf32> -> vector<9x128xf32>
    %cst_261 = arith.constant 1.000000e-01 : f32
    %1114 = vector.broadcast %cst_261 : f32 to vector<9x128xf32>
    %1115 = arith.mulf %1046, %1114 : vector<9x128xf32>
    %1116 = arith.mulf %1053, %1110 : vector<9x128xf32>
    %1117 = arith.subf %1115, %1116 : vector<9x128xf32>
    %1118 = arith.mulf %1058, %1113 : vector<9x128xf32>
    %1119 = arith.mulf %1117, %1118 : vector<9x128xf32>
    %1120 = tpu.concatenate %1119, %0 in 0 : vector<9x128xf32>, vector<7x128xf32> -> vector<16x128xf32>
    %c2_262 = arith.constant 2 : index
    %c32_263 = arith.constant 32 : index
    %c0_264 = arith.constant 0 : index
    %1121 = vector.load %arg7[%c2_262, %c32_263, %c0_264] : memref<6x208x128xf32, #tpu.memory_space<vmem>>, vector<1x16x128xf32>
    %1122 = vector.shape_cast %1121 : vector<1x16x128xf32> to vector<16x128xf32>
    %1123 = vector.shape_cast %1120 : vector<16x128xf32> to vector<1x16x128xf32>
    tpu.vector_store %arg7[%c2_262, %c32_263, %c0_264], %1123 {strides = array<i32>} : memref<6x208x128xf32, #tpu.memory_space<vmem>>, vector<1x16x128xf32>,
    %1124 = tpu.concatenate %1117, %0 in 0 : vector<9x128xf32>, vector<7x128xf32> -> vector<16x128xf32>
    %c2_265 = arith.constant 2 : index
    %c96_266 = arith.constant 96 : index
    %c0_267 = arith.constant 0 : index
    %1125 = vector.load %arg7[%c2_265, %c96_266, %c0_267] : memref<6x208x128xf32, #tpu.memory_space<vmem>>, vector<1x16x128xf32>
    %1126 = vector.shape_cast %1125 : vector<1x16x128xf32> to vector<16x128xf32>
    %1127 = vector.shape_cast %1124 : vector<16x128xf32> to vector<1x16x128xf32>
    tpu.vector_store %arg7[%c2_265, %c96_266, %c0_267], %1127 {strides = array<i32>} : memref<6x208x128xf32, #tpu.memory_space<vmem>>, vector<1x16x128xf32>,
    %1128 = vector.extract_strided_slice %1053 {offsets = [4, 0], sizes = [5, 128], strides = [1, 1]} : vector<9x128xf32> to vector<5x128xf32>
    %1129 = vector.extract_strided_slice %1053 {offsets = [0, 0], sizes = [4, 128], strides = [1, 1]} : vector<9x128xf32> to vector<4x128xf32>
    %1130 = tpu.concatenate %1128, %1129 in 0 : vector<5x128xf32>, vector<4x128xf32> -> vector<9x128xf32>
    %1131 = vector.extract_strided_slice %1058 {offsets = [4, 0], sizes = [5, 128], strides = [1, 1]} : vector<9x128xf32> to vector<5x128xf32>
    %1132 = vector.extract_strided_slice %1058 {offsets = [0, 0], sizes = [4, 128], strides = [1, 1]} : vector<9x128xf32> to vector<4x128xf32>
    %1133 = tpu.concatenate %1131, %1132 in 0 : vector<5x128xf32>, vector<4x128xf32> -> vector<9x128xf32>
    %cst_268 = arith.constant 1.000000e-01 : f32
    %1134 = vector.broadcast %cst_268 : f32 to vector<9x128xf32>
    %1135 = arith.mulf %1051, %1134 : vector<9x128xf32>
    %1136 = arith.mulf %1053, %1130 : vector<9x128xf32>
    %1137 = arith.subf %1135, %1136 : vector<9x128xf32>
    %1138 = arith.mulf %1058, %1133 : vector<9x128xf32>
    %1139 = arith.mulf %1137, %1138 : vector<9x128xf32>
    %1140 = tpu.concatenate %1139, %0 in 0 : vector<9x128xf32>, vector<7x128xf32> -> vector<16x128xf32>
    %c2_269 = arith.constant 2 : index
    %c48_270 = arith.constant 48 : index
    %c0_271 = arith.constant 0 : index
    %1141 = vector.load %arg7[%c2_269, %c48_270, %c0_271] : memref<6x208x128xf32, #tpu.memory_space<vmem>>, vector<1x16x128xf32>
    %1142 = vector.shape_cast %1141 : vector<1x16x128xf32> to vector<16x128xf32>
    %1143 = vector.shape_cast %1140 : vector<16x128xf32> to vector<1x16x128xf32>
    tpu.vector_store %arg7[%c2_269, %c48_270, %c0_271], %1143 {strides = array<i32>} : memref<6x208x128xf32, #tpu.memory_space<vmem>>, vector<1x16x128xf32>,
    %1144 = tpu.concatenate %1137, %0 in 0 : vector<9x128xf32>, vector<7x128xf32> -> vector<16x128xf32>
    %c2_272 = arith.constant 2 : index
    %c112_273 = arith.constant 112 : index
    %c0_274 = arith.constant 0 : index
    %1145 = vector.load %arg7[%c2_272, %c112_273, %c0_274] : memref<6x208x128xf32, #tpu.memory_space<vmem>>, vector<1x16x128xf32>
    %1146 = vector.shape_cast %1145 : vector<1x16x128xf32> to vector<16x128xf32>
    %1147 = vector.shape_cast %1144 : vector<16x128xf32> to vector<1x16x128xf32>
    tpu.vector_store %arg7[%c2_272, %c112_273, %c0_274], %1147 {strides = array<i32>} : memref<6x208x128xf32, #tpu.memory_space<vmem>>, vector<1x16x128xf32>,
    %1148 = tpu.concatenate %1059, %0 in 0 : vector<9x128xf32>, vector<7x128xf32> -> vector<16x128xf32>
    %c2_275 = arith.constant 2 : index
    %c128_276 = arith.constant 128 : index
    %c0_277 = arith.constant 0 : index
    %1149 = vector.load %arg7[%c2_275, %c128_276, %c0_277] : memref<6x208x128xf32, #tpu.memory_space<vmem>>, vector<1x16x128xf32>
    %1150 = vector.shape_cast %1149 : vector<1x16x128xf32> to vector<16x128xf32>
    %1151 = vector.shape_cast %1148 : vector<16x128xf32> to vector<1x16x128xf32>
    tpu.vector_store %arg7[%c2_275, %c128_276, %c0_277], %1151 {strides = array<i32>} : memref<6x208x128xf32, #tpu.memory_space<vmem>>, vector<1x16x128xf32>,
    %1152 = tpu.concatenate %1060, %0 in 0 : vector<9x128xf32>, vector<7x128xf32> -> vector<16x128xf32>
    %c2_278 = arith.constant 2 : index
    %c144_279 = arith.constant 144 : index
    %c0_280 = arith.constant 0 : index
    %1153 = vector.load %arg7[%c2_278, %c144_279, %c0_280] : memref<6x208x128xf32, #tpu.memory_space<vmem>>, vector<1x16x128xf32>
    %1154 = vector.shape_cast %1153 : vector<1x16x128xf32> to vector<16x128xf32>
    %1155 = vector.shape_cast %1152 : vector<16x128xf32> to vector<1x16x128xf32>
    tpu.vector_store %arg7[%c2_278, %c144_279, %c0_280], %1155 {strides = array<i32>} : memref<6x208x128xf32, #tpu.memory_space<vmem>>, vector<1x16x128xf32>,
    %1156 = tpu.concatenate %1067, %0 in 0 : vector<9x128xf32>, vector<7x128xf32> -> vector<16x128xf32>
    %c2_281 = arith.constant 2 : index
    %c160_282 = arith.constant 160 : index
    %c0_283 = arith.constant 0 : index
    %1157 = vector.load %arg7[%c2_281, %c160_282, %c0_283] : memref<6x208x128xf32, #tpu.memory_space<vmem>>, vector<1x16x128xf32>
    %1158 = vector.shape_cast %1157 : vector<1x16x128xf32> to vector<16x128xf32>
    %1159 = vector.shape_cast %1156 : vector<16x128xf32> to vector<1x16x128xf32>
    tpu.vector_store %arg7[%c2_281, %c160_282, %c0_283], %1159 {strides = array<i32>} : memref<6x208x128xf32, #tpu.memory_space<vmem>>, vector<1x16x128xf32>,
    %1160 = tpu.concatenate %1031, %0 in 0 : vector<9x128xf32>, vector<7x128xf32> -> vector<16x128xf32>
    %c2_284 = arith.constant 2 : index
    %c176_285 = arith.constant 176 : index
    %c0_286 = arith.constant 0 : index
    %1161 = vector.load %arg7[%c2_284, %c176_285, %c0_286] : memref<6x208x128xf32, #tpu.memory_space<vmem>>, vector<1x16x128xf32>
    %1162 = vector.shape_cast %1161 : vector<1x16x128xf32> to vector<16x128xf32>
    %1163 = vector.shape_cast %1160 : vector<16x128xf32> to vector<1x16x128xf32>
    tpu.vector_store %arg7[%c2_284, %c176_285, %c0_286], %1163 {strides = array<i32>} : memref<6x208x128xf32, #tpu.memory_space<vmem>>, vector<1x16x128xf32>,
    %1164 = tpu.concatenate %1053, %0 in 0 : vector<9x128xf32>, vector<7x128xf32> -> vector<16x128xf32>
    %c2_287 = arith.constant 2 : index
    %c192_288 = arith.constant 192 : index
    %c0_289 = arith.constant 0 : index
    %1165 = vector.load %arg7[%c2_287, %c192_288, %c0_289] : memref<6x208x128xf32, #tpu.memory_space<vmem>>, vector<1x16x128xf32>
    %1166 = vector.shape_cast %1165 : vector<1x16x128xf32> to vector<16x128xf32>
    %1167 = vector.shape_cast %1164 : vector<16x128xf32> to vector<1x16x128xf32>
    tpu.vector_store %arg7[%c2_287, %c192_288, %c0_289], %1167 {strides = array<i32>} : memref<6x208x128xf32, #tpu.memory_space<vmem>>, vector<1x16x128xf32>,
    %c0_290 = arith.constant 0 : index
    %c0_291 = arith.constant 0 : index
    %c0_292 = arith.constant 0 : index
    %1168 = vector.load %arg7[%c0_290, %c0_291, %c0_292] : memref<6x208x128xf32, #tpu.memory_space<vmem>>, vector<1x16x128xf32>
    %1169 = vector.shape_cast %1168 : vector<1x16x128xf32> to vector<16x128xf32>
    %c1_293 = arith.constant 1 : index
    %c0_294 = arith.constant 0 : index
    %c0_295 = arith.constant 0 : index
    %1170 = vector.load %arg7[%c1_293, %c0_294, %c0_295] : memref<6x208x128xf32, #tpu.memory_space<vmem>>, vector<1x16x128xf32>
    %1171 = vector.shape_cast %1170 : vector<1x16x128xf32> to vector<16x128xf32>
    %c2_296 = arith.constant 2 : index
    %c0_297 = arith.constant 0 : index
    %c0_298 = arith.constant 0 : index
    %1172 = vector.load %arg7[%c2_296, %c0_297, %c0_298] : memref<6x208x128xf32, #tpu.memory_space<vmem>>, vector<1x16x128xf32>
    %1173 = vector.shape_cast %1172 : vector<1x16x128xf32> to vector<16x128xf32>
    %1174 = arith.addf %1169, %1171 : vector<16x128xf32>
    %1175 = arith.addf %1174, %1173 : vector<16x128xf32>
    %c3_299 = arith.constant 3 : index
    %c0_300 = arith.constant 0 : index
    %c0_301 = arith.constant 0 : index
    %1176 = vector.load %arg7[%c3_299, %c0_300, %c0_301] : memref<6x208x128xf32, #tpu.memory_space<vmem>>, vector<1x16x128xf32>
    %1177 = vector.shape_cast %1176 : vector<1x16x128xf32> to vector<16x128xf32>
    %1178 = vector.shape_cast %1175 : vector<16x128xf32> to vector<1x16x128xf32>
    tpu.vector_store %arg7[%c3_299, %c0_300, %c0_301], %1178 {strides = array<i32>} : memref<6x208x128xf32, #tpu.memory_space<vmem>>, vector<1x16x128xf32>,
    %1179 = arith.maximumf %1169, %1171 : vector<16x128xf32>
    %1180 = arith.maximumf %1179, %1173 : vector<16x128xf32>
    %c4_302 = arith.constant 4 : index
    %c0_303 = arith.constant 0 : index
    %c0_304 = arith.constant 0 : index
    %1181 = vector.load %arg7[%c4_302, %c0_303, %c0_304] : memref<6x208x128xf32, #tpu.memory_space<vmem>>, vector<1x16x128xf32>
    %1182 = vector.shape_cast %1181 : vector<1x16x128xf32> to vector<16x128xf32>
    %1183 = vector.shape_cast %1180 : vector<16x128xf32> to vector<1x16x128xf32>
    tpu.vector_store %arg7[%c4_302, %c0_303, %c0_304], %1183 {strides = array<i32>} : memref<6x208x128xf32, #tpu.memory_space<vmem>>, vector<1x16x128xf32>,
    %1184 = arith.minimumf %1169, %1171 : vector<16x128xf32>
    %1185 = arith.minimumf %1184, %1173 : vector<16x128xf32>
    %c5_305 = arith.constant 5 : index
    %c0_306 = arith.constant 0 : index
    %c0_307 = arith.constant 0 : index
    %1186 = vector.load %arg7[%c5_305, %c0_306, %c0_307] : memref<6x208x128xf32, #tpu.memory_space<vmem>>, vector<1x16x128xf32>
    %1187 = vector.shape_cast %1186 : vector<1x16x128xf32> to vector<16x128xf32>
    %1188 = vector.shape_cast %1185 : vector<16x128xf32> to vector<1x16x128xf32>
    tpu.vector_store %arg7[%c5_305, %c0_306, %c0_307], %1188 {strides = array<i32>} : memref<6x208x128xf32, #tpu.memory_space<vmem>>, vector<1x16x128xf32>,
    %c0_308 = arith.constant 0 : index
    %c16_309 = arith.constant 16 : index
    %c0_310 = arith.constant 0 : index
    %1189 = vector.load %arg7[%c0_308, %c16_309, %c0_310] : memref<6x208x128xf32, #tpu.memory_space<vmem>>, vector<1x16x128xf32>
    %1190 = vector.shape_cast %1189 : vector<1x16x128xf32> to vector<16x128xf32>
    %c1_311 = arith.constant 1 : index
    %c16_312 = arith.constant 16 : index
    %c0_313 = arith.constant 0 : index
    %1191 = vector.load %arg7[%c1_311, %c16_312, %c0_313] : memref<6x208x128xf32, #tpu.memory_space<vmem>>, vector<1x16x128xf32>
    %1192 = vector.shape_cast %1191 : vector<1x16x128xf32> to vector<16x128xf32>
    %c2_314 = arith.constant 2 : index
    %c16_315 = arith.constant 16 : index
    %c0_316 = arith.constant 0 : index
    %1193 = vector.load %arg7[%c2_314, %c16_315, %c0_316] : memref<6x208x128xf32, #tpu.memory_space<vmem>>, vector<1x16x128xf32>
    %1194 = vector.shape_cast %1193 : vector<1x16x128xf32> to vector<16x128xf32>
    %1195 = arith.addf %1190, %1192 : vector<16x128xf32>
    %1196 = arith.addf %1195, %1194 : vector<16x128xf32>
    %c3_317 = arith.constant 3 : index
    %c16_318 = arith.constant 16 : index
    %c0_319 = arith.constant 0 : index
    %1197 = vector.load %arg7[%c3_317, %c16_318, %c0_319] : memref<6x208x128xf32, #tpu.memory_space<vmem>>, vector<1x16x128xf32>
    %1198 = vector.shape_cast %1197 : vector<1x16x128xf32> to vector<16x128xf32>
    %1199 = vector.shape_cast %1196 : vector<16x128xf32> to vector<1x16x128xf32>
    tpu.vector_store %arg7[%c3_317, %c16_318, %c0_319], %1199 {strides = array<i32>} : memref<6x208x128xf32, #tpu.memory_space<vmem>>, vector<1x16x128xf32>,
    %1200 = arith.maximumf %1190, %1192 : vector<16x128xf32>
    %1201 = arith.maximumf %1200, %1194 : vector<16x128xf32>
    %c4_320 = arith.constant 4 : index
    %c16_321 = arith.constant 16 : index
    %c0_322 = arith.constant 0 : index
    %1202 = vector.load %arg7[%c4_320, %c16_321, %c0_322] : memref<6x208x128xf32, #tpu.memory_space<vmem>>, vector<1x16x128xf32>
    %1203 = vector.shape_cast %1202 : vector<1x16x128xf32> to vector<16x128xf32>
    %1204 = vector.shape_cast %1201 : vector<16x128xf32> to vector<1x16x128xf32>
    tpu.vector_store %arg7[%c4_320, %c16_321, %c0_322], %1204 {strides = array<i32>} : memref<6x208x128xf32, #tpu.memory_space<vmem>>, vector<1x16x128xf32>,
    %1205 = arith.minimumf %1190, %1192 : vector<16x128xf32>
    %1206 = arith.minimumf %1205, %1194 : vector<16x128xf32>
    %c5_323 = arith.constant 5 : index
    %c16_324 = arith.constant 16 : index
    %c0_325 = arith.constant 0 : index
    %1207 = vector.load %arg7[%c5_323, %c16_324, %c0_325] : memref<6x208x128xf32, #tpu.memory_space<vmem>>, vector<1x16x128xf32>
    %1208 = vector.shape_cast %1207 : vector<1x16x128xf32> to vector<16x128xf32>
    %1209 = vector.shape_cast %1206 : vector<16x128xf32> to vector<1x16x128xf32>
    tpu.vector_store %arg7[%c5_323, %c16_324, %c0_325], %1209 {strides = array<i32>} : memref<6x208x128xf32, #tpu.memory_space<vmem>>, vector<1x16x128xf32>,
    %c0_326 = arith.constant 0 : index
    %c32_327 = arith.constant 32 : index
    %c0_328 = arith.constant 0 : index
    %1210 = vector.load %arg7[%c0_326, %c32_327, %c0_328] : memref<6x208x128xf32, #tpu.memory_space<vmem>>, vector<1x16x128xf32>
    %1211 = vector.shape_cast %1210 : vector<1x16x128xf32> to vector<16x128xf32>
    %c1_329 = arith.constant 1 : index
    %c32_330 = arith.constant 32 : index
    %c0_331 = arith.constant 0 : index
    %1212 = vector.load %arg7[%c1_329, %c32_330, %c0_331] : memref<6x208x128xf32, #tpu.memory_space<vmem>>, vector<1x16x128xf32>
    %1213 = vector.shape_cast %1212 : vector<1x16x128xf32> to vector<16x128xf32>
    %c2_332 = arith.constant 2 : index
    %c32_333 = arith.constant 32 : index
    %c0_334 = arith.constant 0 : index
    %1214 = vector.load %arg7[%c2_332, %c32_333, %c0_334] : memref<6x208x128xf32, #tpu.memory_space<vmem>>, vector<1x16x128xf32>
    %1215 = vector.shape_cast %1214 : vector<1x16x128xf32> to vector<16x128xf32>
    %1216 = arith.addf %1211, %1213 : vector<16x128xf32>
    %1217 = arith.addf %1216, %1215 : vector<16x128xf32>
    %c3_335 = arith.constant 3 : index
    %c32_336 = arith.constant 32 : index
    %c0_337 = arith.constant 0 : index
    %1218 = vector.load %arg7[%c3_335, %c32_336, %c0_337] : memref<6x208x128xf32, #tpu.memory_space<vmem>>, vector<1x16x128xf32>
    %1219 = vector.shape_cast %1218 : vector<1x16x128xf32> to vector<16x128xf32>
    %1220 = vector.shape_cast %1217 : vector<16x128xf32> to vector<1x16x128xf32>
    tpu.vector_store %arg7[%c3_335, %c32_336, %c0_337], %1220 {strides = array<i32>} : memref<6x208x128xf32, #tpu.memory_space<vmem>>, vector<1x16x128xf32>,
    %1221 = arith.maximumf %1211, %1213 : vector<16x128xf32>
    %1222 = arith.maximumf %1221, %1215 : vector<16x128xf32>
    %c4_338 = arith.constant 4 : index
    %c32_339 = arith.constant 32 : index
    %c0_340 = arith.constant 0 : index
    %1223 = vector.load %arg7[%c4_338, %c32_339, %c0_340] : memref<6x208x128xf32, #tpu.memory_space<vmem>>, vector<1x16x128xf32>
    %1224 = vector.shape_cast %1223 : vector<1x16x128xf32> to vector<16x128xf32>
    %1225 = vector.shape_cast %1222 : vector<16x128xf32> to vector<1x16x128xf32>
    tpu.vector_store %arg7[%c4_338, %c32_339, %c0_340], %1225 {strides = array<i32>} : memref<6x208x128xf32, #tpu.memory_space<vmem>>, vector<1x16x128xf32>,
    %1226 = arith.minimumf %1211, %1213 : vector<16x128xf32>
    %1227 = arith.minimumf %1226, %1215 : vector<16x128xf32>
    %c5_341 = arith.constant 5 : index
    %c32_342 = arith.constant 32 : index
    %c0_343 = arith.constant 0 : index
    %1228 = vector.load %arg7[%c5_341, %c32_342, %c0_343] : memref<6x208x128xf32, #tpu.memory_space<vmem>>, vector<1x16x128xf32>
    %1229 = vector.shape_cast %1228 : vector<1x16x128xf32> to vector<16x128xf32>
    %1230 = vector.shape_cast %1227 : vector<16x128xf32> to vector<1x16x128xf32>
    tpu.vector_store %arg7[%c5_341, %c32_342, %c0_343], %1230 {strides = array<i32>} : memref<6x208x128xf32, #tpu.memory_space<vmem>>, vector<1x16x128xf32>,
    %c0_344 = arith.constant 0 : index
    %c48_345 = arith.constant 48 : index
    %c0_346 = arith.constant 0 : index
    %1231 = vector.load %arg7[%c0_344, %c48_345, %c0_346] : memref<6x208x128xf32, #tpu.memory_space<vmem>>, vector<1x16x128xf32>
    %1232 = vector.shape_cast %1231 : vector<1x16x128xf32> to vector<16x128xf32>
    %c1_347 = arith.constant 1 : index
    %c48_348 = arith.constant 48 : index
    %c0_349 = arith.constant 0 : index
    %1233 = vector.load %arg7[%c1_347, %c48_348, %c0_349] : memref<6x208x128xf32, #tpu.memory_space<vmem>>, vector<1x16x128xf32>
    %1234 = vector.shape_cast %1233 : vector<1x16x128xf32> to vector<16x128xf32>
    %c2_350 = arith.constant 2 : index
    %c48_351 = arith.constant 48 : index
    %c0_352 = arith.constant 0 : index
    %1235 = vector.load %arg7[%c2_350, %c48_351, %c0_352] : memref<6x208x128xf32, #tpu.memory_space<vmem>>, vector<1x16x128xf32>
    %1236 = vector.shape_cast %1235 : vector<1x16x128xf32> to vector<16x128xf32>
    %1237 = arith.addf %1232, %1234 : vector<16x128xf32>
    %1238 = arith.addf %1237, %1236 : vector<16x128xf32>
    %c3_353 = arith.constant 3 : index
    %c48_354 = arith.constant 48 : index
    %c0_355 = arith.constant 0 : index
    %1239 = vector.load %arg7[%c3_353, %c48_354, %c0_355] : memref<6x208x128xf32, #tpu.memory_space<vmem>>, vector<1x16x128xf32>
    %1240 = vector.shape_cast %1239 : vector<1x16x128xf32> to vector<16x128xf32>
    %1241 = vector.shape_cast %1238 : vector<16x128xf32> to vector<1x16x128xf32>
    tpu.vector_store %arg7[%c3_353, %c48_354, %c0_355], %1241 {strides = array<i32>} : memref<6x208x128xf32, #tpu.memory_space<vmem>>, vector<1x16x128xf32>,
    %1242 = arith.maximumf %1232, %1234 : vector<16x128xf32>
    %1243 = arith.maximumf %1242, %1236 : vector<16x128xf32>
    %c4_356 = arith.constant 4 : index
    %c48_357 = arith.constant 48 : index
    %c0_358 = arith.constant 0 : index
    %1244 = vector.load %arg7[%c4_356, %c48_357, %c0_358] : memref<6x208x128xf32, #tpu.memory_space<vmem>>, vector<1x16x128xf32>
    %1245 = vector.shape_cast %1244 : vector<1x16x128xf32> to vector<16x128xf32>
    %1246 = vector.shape_cast %1243 : vector<16x128xf32> to vector<1x16x128xf32>
    tpu.vector_store %arg7[%c4_356, %c48_357, %c0_358], %1246 {strides = array<i32>} : memref<6x208x128xf32, #tpu.memory_space<vmem>>, vector<1x16x128xf32>,
    %1247 = arith.minimumf %1232, %1234 : vector<16x128xf32>
    %1248 = arith.minimumf %1247, %1236 : vector<16x128xf32>
    %c5_359 = arith.constant 5 : index
    %c48_360 = arith.constant 48 : index
    %c0_361 = arith.constant 0 : index
    %1249 = vector.load %arg7[%c5_359, %c48_360, %c0_361] : memref<6x208x128xf32, #tpu.memory_space<vmem>>, vector<1x16x128xf32>
    %1250 = vector.shape_cast %1249 : vector<1x16x128xf32> to vector<16x128xf32>
    %1251 = vector.shape_cast %1248 : vector<16x128xf32> to vector<1x16x128xf32>
    tpu.vector_store %arg7[%c5_359, %c48_360, %c0_361], %1251 {strides = array<i32>} : memref<6x208x128xf32, #tpu.memory_space<vmem>>, vector<1x16x128xf32>,
    %c0_362 = arith.constant 0 : index
    %c64_363 = arith.constant 64 : index
    %c0_364 = arith.constant 0 : index
    %1252 = vector.load %arg7[%c0_362, %c64_363, %c0_364] : memref<6x208x128xf32, #tpu.memory_space<vmem>>, vector<1x16x128xf32>
    %1253 = vector.shape_cast %1252 : vector<1x16x128xf32> to vector<16x128xf32>
    %c1_365 = arith.constant 1 : index
    %c64_366 = arith.constant 64 : index
    %c0_367 = arith.constant 0 : index
    %1254 = vector.load %arg7[%c1_365, %c64_366, %c0_367] : memref<6x208x128xf32, #tpu.memory_space<vmem>>, vector<1x16x128xf32>
    %1255 = vector.shape_cast %1254 : vector<1x16x128xf32> to vector<16x128xf32>
    %c2_368 = arith.constant 2 : index
    %c64_369 = arith.constant 64 : index
    %c0_370 = arith.constant 0 : index
    %1256 = vector.load %arg7[%c2_368, %c64_369, %c0_370] : memref<6x208x128xf32, #tpu.memory_space<vmem>>, vector<1x16x128xf32>
    %1257 = vector.shape_cast %1256 : vector<1x16x128xf32> to vector<16x128xf32>
    %1258 = arith.addf %1253, %1255 : vector<16x128xf32>
    %1259 = arith.addf %1258, %1257 : vector<16x128xf32>
    %c3_371 = arith.constant 3 : index
    %c64_372 = arith.constant 64 : index
    %c0_373 = arith.constant 0 : index
    %1260 = vector.load %arg7[%c3_371, %c64_372, %c0_373] : memref<6x208x128xf32, #tpu.memory_space<vmem>>, vector<1x16x128xf32>
    %1261 = vector.shape_cast %1260 : vector<1x16x128xf32> to vector<16x128xf32>
    %1262 = vector.shape_cast %1259 : vector<16x128xf32> to vector<1x16x128xf32>
    tpu.vector_store %arg7[%c3_371, %c64_372, %c0_373], %1262 {strides = array<i32>} : memref<6x208x128xf32, #tpu.memory_space<vmem>>, vector<1x16x128xf32>,
    %1263 = arith.maximumf %1253, %1255 : vector<16x128xf32>
    %1264 = arith.maximumf %1263, %1257 : vector<16x128xf32>
    %c4_374 = arith.constant 4 : index
    %c64_375 = arith.constant 64 : index
    %c0_376 = arith.constant 0 : index
    %1265 = vector.load %arg7[%c4_374, %c64_375, %c0_376] : memref<6x208x128xf32, #tpu.memory_space<vmem>>, vector<1x16x128xf32>
    %1266 = vector.shape_cast %1265 : vector<1x16x128xf32> to vector<16x128xf32>
    %1267 = vector.shape_cast %1264 : vector<16x128xf32> to vector<1x16x128xf32>
    tpu.vector_store %arg7[%c4_374, %c64_375, %c0_376], %1267 {strides = array<i32>} : memref<6x208x128xf32, #tpu.memory_space<vmem>>, vector<1x16x128xf32>,
    %1268 = arith.minimumf %1253, %1255 : vector<16x128xf32>
    %1269 = arith.minimumf %1268, %1257 : vector<16x128xf32>
    %c5_377 = arith.constant 5 : index
    %c64_378 = arith.constant 64 : index
    %c0_379 = arith.constant 0 : index
    %1270 = vector.load %arg7[%c5_377, %c64_378, %c0_379] : memref<6x208x128xf32, #tpu.memory_space<vmem>>, vector<1x16x128xf32>
    %1271 = vector.shape_cast %1270 : vector<1x16x128xf32> to vector<16x128xf32>
    %1272 = vector.shape_cast %1269 : vector<16x128xf32> to vector<1x16x128xf32>
    tpu.vector_store %arg7[%c5_377, %c64_378, %c0_379], %1272 {strides = array<i32>} : memref<6x208x128xf32, #tpu.memory_space<vmem>>, vector<1x16x128xf32>,
    %c0_380 = arith.constant 0 : index
    %c80_381 = arith.constant 80 : index
    %c0_382 = arith.constant 0 : index
    %1273 = vector.load %arg7[%c0_380, %c80_381, %c0_382] : memref<6x208x128xf32, #tpu.memory_space<vmem>>, vector<1x16x128xf32>
    %1274 = vector.shape_cast %1273 : vector<1x16x128xf32> to vector<16x128xf32>
    %c1_383 = arith.constant 1 : index
    %c80_384 = arith.constant 80 : index
    %c0_385 = arith.constant 0 : index
    %1275 = vector.load %arg7[%c1_383, %c80_384, %c0_385] : memref<6x208x128xf32, #tpu.memory_space<vmem>>, vector<1x16x128xf32>
    %1276 = vector.shape_cast %1275 : vector<1x16x128xf32> to vector<16x128xf32>
    %c2_386 = arith.constant 2 : index
    %c80_387 = arith.constant 80 : index
    %c0_388 = arith.constant 0 : index
    %1277 = vector.load %arg7[%c2_386, %c80_387, %c0_388] : memref<6x208x128xf32, #tpu.memory_space<vmem>>, vector<1x16x128xf32>
    %1278 = vector.shape_cast %1277 : vector<1x16x128xf32> to vector<16x128xf32>
    %1279 = arith.addf %1274, %1276 : vector<16x128xf32>
    %1280 = arith.addf %1279, %1278 : vector<16x128xf32>
    %c3_389 = arith.constant 3 : index
    %c80_390 = arith.constant 80 : index
    %c0_391 = arith.constant 0 : index
    %1281 = vector.load %arg7[%c3_389, %c80_390, %c0_391] : memref<6x208x128xf32, #tpu.memory_space<vmem>>, vector<1x16x128xf32>
    %1282 = vector.shape_cast %1281 : vector<1x16x128xf32> to vector<16x128xf32>
    %1283 = vector.shape_cast %1280 : vector<16x128xf32> to vector<1x16x128xf32>
    tpu.vector_store %arg7[%c3_389, %c80_390, %c0_391], %1283 {strides = array<i32>} : memref<6x208x128xf32, #tpu.memory_space<vmem>>, vector<1x16x128xf32>,
    %1284 = arith.maximumf %1274, %1276 : vector<16x128xf32>
    %1285 = arith.maximumf %1284, %1278 : vector<16x128xf32>
    %c4_392 = arith.constant 4 : index
    %c80_393 = arith.constant 80 : index
    %c0_394 = arith.constant 0 : index
    %1286 = vector.load %arg7[%c4_392, %c80_393, %c0_394] : memref<6x208x128xf32, #tpu.memory_space<vmem>>, vector<1x16x128xf32>
    %1287 = vector.shape_cast %1286 : vector<1x16x128xf32> to vector<16x128xf32>
    %1288 = vector.shape_cast %1285 : vector<16x128xf32> to vector<1x16x128xf32>
    tpu.vector_store %arg7[%c4_392, %c80_393, %c0_394], %1288 {strides = array<i32>} : memref<6x208x128xf32, #tpu.memory_space<vmem>>, vector<1x16x128xf32>,
    %1289 = arith.minimumf %1274, %1276 : vector<16x128xf32>
    %1290 = arith.minimumf %1289, %1278 : vector<16x128xf32>
    %c5_395 = arith.constant 5 : index
    %c80_396 = arith.constant 80 : index
    %c0_397 = arith.constant 0 : index
    %1291 = vector.load %arg7[%c5_395, %c80_396, %c0_397] : memref<6x208x128xf32, #tpu.memory_space<vmem>>, vector<1x16x128xf32>
    %1292 = vector.shape_cast %1291 : vector<1x16x128xf32> to vector<16x128xf32>
    %1293 = vector.shape_cast %1290 : vector<16x128xf32> to vector<1x16x128xf32>
    tpu.vector_store %arg7[%c5_395, %c80_396, %c0_397], %1293 {strides = array<i32>} : memref<6x208x128xf32, #tpu.memory_space<vmem>>, vector<1x16x128xf32>,
    %c0_398 = arith.constant 0 : index
    %c96_399 = arith.constant 96 : index
    %c0_400 = arith.constant 0 : index
    %1294 = vector.load %arg7[%c0_398, %c96_399, %c0_400] : memref<6x208x128xf32, #tpu.memory_space<vmem>>, vector<1x16x128xf32>
    %1295 = vector.shape_cast %1294 : vector<1x16x128xf32> to vector<16x128xf32>
    %c1_401 = arith.constant 1 : index
    %c96_402 = arith.constant 96 : index
    %c0_403 = arith.constant 0 : index
    %1296 = vector.load %arg7[%c1_401, %c96_402, %c0_403] : memref<6x208x128xf32, #tpu.memory_space<vmem>>, vector<1x16x128xf32>
    %1297 = vector.shape_cast %1296 : vector<1x16x128xf32> to vector<16x128xf32>
    %c2_404 = arith.constant 2 : index
    %c96_405 = arith.constant 96 : index
    %c0_406 = arith.constant 0 : index
    %1298 = vector.load %arg7[%c2_404, %c96_405, %c0_406] : memref<6x208x128xf32, #tpu.memory_space<vmem>>, vector<1x16x128xf32>
    %1299 = vector.shape_cast %1298 : vector<1x16x128xf32> to vector<16x128xf32>
    %1300 = arith.addf %1295, %1297 : vector<16x128xf32>
    %1301 = arith.addf %1300, %1299 : vector<16x128xf32>
    %c3_407 = arith.constant 3 : index
    %c96_408 = arith.constant 96 : index
    %c0_409 = arith.constant 0 : index
    %1302 = vector.load %arg7[%c3_407, %c96_408, %c0_409] : memref<6x208x128xf32, #tpu.memory_space<vmem>>, vector<1x16x128xf32>
    %1303 = vector.shape_cast %1302 : vector<1x16x128xf32> to vector<16x128xf32>
    %1304 = vector.shape_cast %1301 : vector<16x128xf32> to vector<1x16x128xf32>
    tpu.vector_store %arg7[%c3_407, %c96_408, %c0_409], %1304 {strides = array<i32>} : memref<6x208x128xf32, #tpu.memory_space<vmem>>, vector<1x16x128xf32>,
    %1305 = arith.maximumf %1295, %1297 : vector<16x128xf32>
    %1306 = arith.maximumf %1305, %1299 : vector<16x128xf32>
    %c4_410 = arith.constant 4 : index
    %c96_411 = arith.constant 96 : index
    %c0_412 = arith.constant 0 : index
    %1307 = vector.load %arg7[%c4_410, %c96_411, %c0_412] : memref<6x208x128xf32, #tpu.memory_space<vmem>>, vector<1x16x128xf32>
    %1308 = vector.shape_cast %1307 : vector<1x16x128xf32> to vector<16x128xf32>
    %1309 = vector.shape_cast %1306 : vector<16x128xf32> to vector<1x16x128xf32>
    tpu.vector_store %arg7[%c4_410, %c96_411, %c0_412], %1309 {strides = array<i32>} : memref<6x208x128xf32, #tpu.memory_space<vmem>>, vector<1x16x128xf32>,
    %1310 = arith.minimumf %1295, %1297 : vector<16x128xf32>
    %1311 = arith.minimumf %1310, %1299 : vector<16x128xf32>
    %c5_413 = arith.constant 5 : index
    %c96_414 = arith.constant 96 : index
    %c0_415 = arith.constant 0 : index
    %1312 = vector.load %arg7[%c5_413, %c96_414, %c0_415] : memref<6x208x128xf32, #tpu.memory_space<vmem>>, vector<1x16x128xf32>
    %1313 = vector.shape_cast %1312 : vector<1x16x128xf32> to vector<16x128xf32>
    %1314 = vector.shape_cast %1311 : vector<16x128xf32> to vector<1x16x128xf32>
    tpu.vector_store %arg7[%c5_413, %c96_414, %c0_415], %1314 {strides = array<i32>} : memref<6x208x128xf32, #tpu.memory_space<vmem>>, vector<1x16x128xf32>,
    %c0_416 = arith.constant 0 : index
    %c112_417 = arith.constant 112 : index
    %c0_418 = arith.constant 0 : index
    %1315 = vector.load %arg7[%c0_416, %c112_417, %c0_418] : memref<6x208x128xf32, #tpu.memory_space<vmem>>, vector<1x16x128xf32>
    %1316 = vector.shape_cast %1315 : vector<1x16x128xf32> to vector<16x128xf32>
    %c1_419 = arith.constant 1 : index
    %c112_420 = arith.constant 112 : index
    %c0_421 = arith.constant 0 : index
    %1317 = vector.load %arg7[%c1_419, %c112_420, %c0_421] : memref<6x208x128xf32, #tpu.memory_space<vmem>>, vector<1x16x128xf32>
    %1318 = vector.shape_cast %1317 : vector<1x16x128xf32> to vector<16x128xf32>
    %c2_422 = arith.constant 2 : index
    %c112_423 = arith.constant 112 : index
    %c0_424 = arith.constant 0 : index
    %1319 = vector.load %arg7[%c2_422, %c112_423, %c0_424] : memref<6x208x128xf32, #tpu.memory_space<vmem>>, vector<1x16x128xf32>
    %1320 = vector.shape_cast %1319 : vector<1x16x128xf32> to vector<16x128xf32>
    %1321 = arith.addf %1316, %1318 : vector<16x128xf32>
    %1322 = arith.addf %1321, %1320 : vector<16x128xf32>
    %c3_425 = arith.constant 3 : index
    %c112_426 = arith.constant 112 : index
    %c0_427 = arith.constant 0 : index
    %1323 = vector.load %arg7[%c3_425, %c112_426, %c0_427] : memref<6x208x128xf32, #tpu.memory_space<vmem>>, vector<1x16x128xf32>
    %1324 = vector.shape_cast %1323 : vector<1x16x128xf32> to vector<16x128xf32>
    %1325 = vector.shape_cast %1322 : vector<16x128xf32> to vector<1x16x128xf32>
    tpu.vector_store %arg7[%c3_425, %c112_426, %c0_427], %1325 {strides = array<i32>} : memref<6x208x128xf32, #tpu.memory_space<vmem>>, vector<1x16x128xf32>,
    %1326 = arith.maximumf %1316, %1318 : vector<16x128xf32>
    %1327 = arith.maximumf %1326, %1320 : vector<16x128xf32>
    %c4_428 = arith.constant 4 : index
    %c112_429 = arith.constant 112 : index
    %c0_430 = arith.constant 0 : index
    %1328 = vector.load %arg7[%c4_428, %c112_429, %c0_430] : memref<6x208x128xf32, #tpu.memory_space<vmem>>, vector<1x16x128xf32>
    %1329 = vector.shape_cast %1328 : vector<1x16x128xf32> to vector<16x128xf32>
    %1330 = vector.shape_cast %1327 : vector<16x128xf32> to vector<1x16x128xf32>
    tpu.vector_store %arg7[%c4_428, %c112_429, %c0_430], %1330 {strides = array<i32>} : memref<6x208x128xf32, #tpu.memory_space<vmem>>, vector<1x16x128xf32>,
    %1331 = arith.minimumf %1316, %1318 : vector<16x128xf32>
    %1332 = arith.minimumf %1331, %1320 : vector<16x128xf32>
    %c5_431 = arith.constant 5 : index
    %c112_432 = arith.constant 112 : index
    %c0_433 = arith.constant 0 : index
    %1333 = vector.load %arg7[%c5_431, %c112_432, %c0_433] : memref<6x208x128xf32, #tpu.memory_space<vmem>>, vector<1x16x128xf32>
    %1334 = vector.shape_cast %1333 : vector<1x16x128xf32> to vector<16x128xf32>
    %1335 = vector.shape_cast %1332 : vector<16x128xf32> to vector<1x16x128xf32>
    tpu.vector_store %arg7[%c5_431, %c112_432, %c0_433], %1335 {strides = array<i32>} : memref<6x208x128xf32, #tpu.memory_space<vmem>>, vector<1x16x128xf32>,
    %c0_434 = arith.constant 0 : index
    %c128_435 = arith.constant 128 : index
    %c0_436 = arith.constant 0 : index
    %1336 = vector.load %arg7[%c0_434, %c128_435, %c0_436] : memref<6x208x128xf32, #tpu.memory_space<vmem>>, vector<1x16x128xf32>
    %1337 = vector.shape_cast %1336 : vector<1x16x128xf32> to vector<16x128xf32>
    %c1_437 = arith.constant 1 : index
    %c128_438 = arith.constant 128 : index
    %c0_439 = arith.constant 0 : index
    %1338 = vector.load %arg7[%c1_437, %c128_438, %c0_439] : memref<6x208x128xf32, #tpu.memory_space<vmem>>, vector<1x16x128xf32>
    %1339 = vector.shape_cast %1338 : vector<1x16x128xf32> to vector<16x128xf32>
    %c2_440 = arith.constant 2 : index
    %c128_441 = arith.constant 128 : index
    %c0_442 = arith.constant 0 : index
    %1340 = vector.load %arg7[%c2_440, %c128_441, %c0_442] : memref<6x208x128xf32, #tpu.memory_space<vmem>>, vector<1x16x128xf32>
    %1341 = vector.shape_cast %1340 : vector<1x16x128xf32> to vector<16x128xf32>
    %1342 = arith.addf %1337, %1339 : vector<16x128xf32>
    %1343 = arith.addf %1342, %1341 : vector<16x128xf32>
    %c3_443 = arith.constant 3 : index
    %c128_444 = arith.constant 128 : index
    %c0_445 = arith.constant 0 : index
    %1344 = vector.load %arg7[%c3_443, %c128_444, %c0_445] : memref<6x208x128xf32, #tpu.memory_space<vmem>>, vector<1x16x128xf32>
    %1345 = vector.shape_cast %1344 : vector<1x16x128xf32> to vector<16x128xf32>
    %1346 = vector.shape_cast %1343 : vector<16x128xf32> to vector<1x16x128xf32>
    tpu.vector_store %arg7[%c3_443, %c128_444, %c0_445], %1346 {strides = array<i32>} : memref<6x208x128xf32, #tpu.memory_space<vmem>>, vector<1x16x128xf32>,
    %1347 = arith.maximumf %1337, %1339 : vector<16x128xf32>
    %1348 = arith.maximumf %1347, %1341 : vector<16x128xf32>
    %c4_446 = arith.constant 4 : index
    %c128_447 = arith.constant 128 : index
    %c0_448 = arith.constant 0 : index
    %1349 = vector.load %arg7[%c4_446, %c128_447, %c0_448] : memref<6x208x128xf32, #tpu.memory_space<vmem>>, vector<1x16x128xf32>
    %1350 = vector.shape_cast %1349 : vector<1x16x128xf32> to vector<16x128xf32>
    %1351 = vector.shape_cast %1348 : vector<16x128xf32> to vector<1x16x128xf32>
    tpu.vector_store %arg7[%c4_446, %c128_447, %c0_448], %1351 {strides = array<i32>} : memref<6x208x128xf32, #tpu.memory_space<vmem>>, vector<1x16x128xf32>,
    %1352 = arith.minimumf %1337, %1339 : vector<16x128xf32>
    %1353 = arith.minimumf %1352, %1341 : vector<16x128xf32>
    %c5_449 = arith.constant 5 : index
    %c128_450 = arith.constant 128 : index
    %c0_451 = arith.constant 0 : index
    %1354 = vector.load %arg7[%c5_449, %c128_450, %c0_451] : memref<6x208x128xf32, #tpu.memory_space<vmem>>, vector<1x16x128xf32>
    %1355 = vector.shape_cast %1354 : vector<1x16x128xf32> to vector<16x128xf32>
    %1356 = vector.shape_cast %1353 : vector<16x128xf32> to vector<1x16x128xf32>
    tpu.vector_store %arg7[%c5_449, %c128_450, %c0_451], %1356 {strides = array<i32>} : memref<6x208x128xf32, #tpu.memory_space<vmem>>, vector<1x16x128xf32>,
    %c0_452 = arith.constant 0 : index
    %c144_453 = arith.constant 144 : index
    %c0_454 = arith.constant 0 : index
    %1357 = vector.load %arg7[%c0_452, %c144_453, %c0_454] : memref<6x208x128xf32, #tpu.memory_space<vmem>>, vector<1x16x128xf32>
    %1358 = vector.shape_cast %1357 : vector<1x16x128xf32> to vector<16x128xf32>
    %c1_455 = arith.constant 1 : index
    %c144_456 = arith.constant 144 : index
    %c0_457 = arith.constant 0 : index
    %1359 = vector.load %arg7[%c1_455, %c144_456, %c0_457] : memref<6x208x128xf32, #tpu.memory_space<vmem>>, vector<1x16x128xf32>
    %1360 = vector.shape_cast %1359 : vector<1x16x128xf32> to vector<16x128xf32>
    %c2_458 = arith.constant 2 : index
    %c144_459 = arith.constant 144 : index
    %c0_460 = arith.constant 0 : index
    %1361 = vector.load %arg7[%c2_458, %c144_459, %c0_460] : memref<6x208x128xf32, #tpu.memory_space<vmem>>, vector<1x16x128xf32>
    %1362 = vector.shape_cast %1361 : vector<1x16x128xf32> to vector<16x128xf32>
    %1363 = arith.addf %1358, %1360 : vector<16x128xf32>
    %1364 = arith.addf %1363, %1362 : vector<16x128xf32>
    %c3_461 = arith.constant 3 : index
    %c144_462 = arith.constant 144 : index
    %c0_463 = arith.constant 0 : index
    %1365 = vector.load %arg7[%c3_461, %c144_462, %c0_463] : memref<6x208x128xf32, #tpu.memory_space<vmem>>, vector<1x16x128xf32>
    %1366 = vector.shape_cast %1365 : vector<1x16x128xf32> to vector<16x128xf32>
    %1367 = vector.shape_cast %1364 : vector<16x128xf32> to vector<1x16x128xf32>
    tpu.vector_store %arg7[%c3_461, %c144_462, %c0_463], %1367 {strides = array<i32>} : memref<6x208x128xf32, #tpu.memory_space<vmem>>, vector<1x16x128xf32>,
    %1368 = arith.maximumf %1358, %1360 : vector<16x128xf32>
    %1369 = arith.maximumf %1368, %1362 : vector<16x128xf32>
    %c4_464 = arith.constant 4 : index
    %c144_465 = arith.constant 144 : index
    %c0_466 = arith.constant 0 : index
    %1370 = vector.load %arg7[%c4_464, %c144_465, %c0_466] : memref<6x208x128xf32, #tpu.memory_space<vmem>>, vector<1x16x128xf32>
    %1371 = vector.shape_cast %1370 : vector<1x16x128xf32> to vector<16x128xf32>
    %1372 = vector.shape_cast %1369 : vector<16x128xf32> to vector<1x16x128xf32>
    tpu.vector_store %arg7[%c4_464, %c144_465, %c0_466], %1372 {strides = array<i32>} : memref<6x208x128xf32, #tpu.memory_space<vmem>>, vector<1x16x128xf32>,
    %1373 = arith.minimumf %1358, %1360 : vector<16x128xf32>
    %1374 = arith.minimumf %1373, %1362 : vector<16x128xf32>
    %c5_467 = arith.constant 5 : index
    %c144_468 = arith.constant 144 : index
    %c0_469 = arith.constant 0 : index
    %1375 = vector.load %arg7[%c5_467, %c144_468, %c0_469] : memref<6x208x128xf32, #tpu.memory_space<vmem>>, vector<1x16x128xf32>
    %1376 = vector.shape_cast %1375 : vector<1x16x128xf32> to vector<16x128xf32>
    %1377 = vector.shape_cast %1374 : vector<16x128xf32> to vector<1x16x128xf32>
    tpu.vector_store %arg7[%c5_467, %c144_468, %c0_469], %1377 {strides = array<i32>} : memref<6x208x128xf32, #tpu.memory_space<vmem>>, vector<1x16x128xf32>,
    %c0_470 = arith.constant 0 : index
    %c160_471 = arith.constant 160 : index
    %c0_472 = arith.constant 0 : index
    %1378 = vector.load %arg7[%c0_470, %c160_471, %c0_472] : memref<6x208x128xf32, #tpu.memory_space<vmem>>, vector<1x16x128xf32>
    %1379 = vector.shape_cast %1378 : vector<1x16x128xf32> to vector<16x128xf32>
    %c1_473 = arith.constant 1 : index
    %c160_474 = arith.constant 160 : index
    %c0_475 = arith.constant 0 : index
    %1380 = vector.load %arg7[%c1_473, %c160_474, %c0_475] : memref<6x208x128xf32, #tpu.memory_space<vmem>>, vector<1x16x128xf32>
    %1381 = vector.shape_cast %1380 : vector<1x16x128xf32> to vector<16x128xf32>
    %c2_476 = arith.constant 2 : index
    %c160_477 = arith.constant 160 : index
    %c0_478 = arith.constant 0 : index
    %1382 = vector.load %arg7[%c2_476, %c160_477, %c0_478] : memref<6x208x128xf32, #tpu.memory_space<vmem>>, vector<1x16x128xf32>
    %1383 = vector.shape_cast %1382 : vector<1x16x128xf32> to vector<16x128xf32>
    %1384 = arith.addf %1379, %1381 : vector<16x128xf32>
    %1385 = arith.addf %1384, %1383 : vector<16x128xf32>
    %c3_479 = arith.constant 3 : index
    %c160_480 = arith.constant 160 : index
    %c0_481 = arith.constant 0 : index
    %1386 = vector.load %arg7[%c3_479, %c160_480, %c0_481] : memref<6x208x128xf32, #tpu.memory_space<vmem>>, vector<1x16x128xf32>
    %1387 = vector.shape_cast %1386 : vector<1x16x128xf32> to vector<16x128xf32>
    %1388 = vector.shape_cast %1385 : vector<16x128xf32> to vector<1x16x128xf32>
    tpu.vector_store %arg7[%c3_479, %c160_480, %c0_481], %1388 {strides = array<i32>} : memref<6x208x128xf32, #tpu.memory_space<vmem>>, vector<1x16x128xf32>,
    %1389 = arith.maximumf %1379, %1381 : vector<16x128xf32>
    %1390 = arith.maximumf %1389, %1383 : vector<16x128xf32>
    %c4_482 = arith.constant 4 : index
    %c160_483 = arith.constant 160 : index
    %c0_484 = arith.constant 0 : index
    %1391 = vector.load %arg7[%c4_482, %c160_483, %c0_484] : memref<6x208x128xf32, #tpu.memory_space<vmem>>, vector<1x16x128xf32>
    %1392 = vector.shape_cast %1391 : vector<1x16x128xf32> to vector<16x128xf32>
    %1393 = vector.shape_cast %1390 : vector<16x128xf32> to vector<1x16x128xf32>
    tpu.vector_store %arg7[%c4_482, %c160_483, %c0_484], %1393 {strides = array<i32>} : memref<6x208x128xf32, #tpu.memory_space<vmem>>, vector<1x16x128xf32>,
    %1394 = arith.minimumf %1379, %1381 : vector<16x128xf32>
    %1395 = arith.minimumf %1394, %1383 : vector<16x128xf32>
    %c5_485 = arith.constant 5 : index
    %c160_486 = arith.constant 160 : index
    %c0_487 = arith.constant 0 : index
    %1396 = vector.load %arg7[%c5_485, %c160_486, %c0_487] : memref<6x208x128xf32, #tpu.memory_space<vmem>>, vector<1x16x128xf32>
    %1397 = vector.shape_cast %1396 : vector<1x16x128xf32> to vector<16x128xf32>
    %1398 = vector.shape_cast %1395 : vector<16x128xf32> to vector<1x16x128xf32>
    tpu.vector_store %arg7[%c5_485, %c160_486, %c0_487], %1398 {strides = array<i32>} : memref<6x208x128xf32, #tpu.memory_space<vmem>>, vector<1x16x128xf32>,
    %c0_488 = arith.constant 0 : index
    %c176_489 = arith.constant 176 : index
    %c0_490 = arith.constant 0 : index
    %1399 = vector.load %arg7[%c0_488, %c176_489, %c0_490] : memref<6x208x128xf32, #tpu.memory_space<vmem>>, vector<1x16x128xf32>
    %1400 = vector.shape_cast %1399 : vector<1x16x128xf32> to vector<16x128xf32>
    %c1_491 = arith.constant 1 : index
    %c176_492 = arith.constant 176 : index
    %c0_493 = arith.constant 0 : index
    %1401 = vector.load %arg7[%c1_491, %c176_492, %c0_493] : memref<6x208x128xf32, #tpu.memory_space<vmem>>, vector<1x16x128xf32>
    %1402 = vector.shape_cast %1401 : vector<1x16x128xf32> to vector<16x128xf32>
    %c2_494 = arith.constant 2 : index
    %c176_495 = arith.constant 176 : index
    %c0_496 = arith.constant 0 : index
    %1403 = vector.load %arg7[%c2_494, %c176_495, %c0_496] : memref<6x208x128xf32, #tpu.memory_space<vmem>>, vector<1x16x128xf32>
    %1404 = vector.shape_cast %1403 : vector<1x16x128xf32> to vector<16x128xf32>
    %1405 = arith.addf %1400, %1402 : vector<16x128xf32>
    %1406 = arith.addf %1405, %1404 : vector<16x128xf32>
    %c3_497 = arith.constant 3 : index
    %c176_498 = arith.constant 176 : index
    %c0_499 = arith.constant 0 : index
    %1407 = vector.load %arg7[%c3_497, %c176_498, %c0_499] : memref<6x208x128xf32, #tpu.memory_space<vmem>>, vector<1x16x128xf32>
    %1408 = vector.shape_cast %1407 : vector<1x16x128xf32> to vector<16x128xf32>
    %1409 = vector.shape_cast %1406 : vector<16x128xf32> to vector<1x16x128xf32>
    tpu.vector_store %arg7[%c3_497, %c176_498, %c0_499], %1409 {strides = array<i32>} : memref<6x208x128xf32, #tpu.memory_space<vmem>>, vector<1x16x128xf32>,
    %1410 = arith.maximumf %1400, %1402 : vector<16x128xf32>
    %1411 = arith.maximumf %1410, %1404 : vector<16x128xf32>
    %c4_500 = arith.constant 4 : index
    %c176_501 = arith.constant 176 : index
    %c0_502 = arith.constant 0 : index
    %1412 = vector.load %arg7[%c4_500, %c176_501, %c0_502] : memref<6x208x128xf32, #tpu.memory_space<vmem>>, vector<1x16x128xf32>
    %1413 = vector.shape_cast %1412 : vector<1x16x128xf32> to vector<16x128xf32>
    %1414 = vector.shape_cast %1411 : vector<16x128xf32> to vector<1x16x128xf32>
    tpu.vector_store %arg7[%c4_500, %c176_501, %c0_502], %1414 {strides = array<i32>} : memref<6x208x128xf32, #tpu.memory_space<vmem>>, vector<1x16x128xf32>,
    %1415 = arith.minimumf %1400, %1402 : vector<16x128xf32>
    %1416 = arith.minimumf %1415, %1404 : vector<16x128xf32>
    %c5_503 = arith.constant 5 : index
    %c176_504 = arith.constant 176 : index
    %c0_505 = arith.constant 0 : index
    %1417 = vector.load %arg7[%c5_503, %c176_504, %c0_505] : memref<6x208x128xf32, #tpu.memory_space<vmem>>, vector<1x16x128xf32>
    %1418 = vector.shape_cast %1417 : vector<1x16x128xf32> to vector<16x128xf32>
    %1419 = vector.shape_cast %1416 : vector<16x128xf32> to vector<1x16x128xf32>
    tpu.vector_store %arg7[%c5_503, %c176_504, %c0_505], %1419 {strides = array<i32>} : memref<6x208x128xf32, #tpu.memory_space<vmem>>, vector<1x16x128xf32>,
    %c0_506 = arith.constant 0 : index
    %c192_507 = arith.constant 192 : index
    %c0_508 = arith.constant 0 : index
    %1420 = vector.load %arg7[%c0_506, %c192_507, %c0_508] : memref<6x208x128xf32, #tpu.memory_space<vmem>>, vector<1x16x128xf32>
    %1421 = vector.shape_cast %1420 : vector<1x16x128xf32> to vector<16x128xf32>
    %c1_509 = arith.constant 1 : index
    %c192_510 = arith.constant 192 : index
    %c0_511 = arith.constant 0 : index
    %1422 = vector.load %arg7[%c1_509, %c192_510, %c0_511] : memref<6x208x128xf32, #tpu.memory_space<vmem>>, vector<1x16x128xf32>
    %1423 = vector.shape_cast %1422 : vector<1x16x128xf32> to vector<16x128xf32>
    %c2_512 = arith.constant 2 : index
    %c192_513 = arith.constant 192 : index
    %c0_514 = arith.constant 0 : index
    %1424 = vector.load %arg7[%c2_512, %c192_513, %c0_514] : memref<6x208x128xf32, #tpu.memory_space<vmem>>, vector<1x16x128xf32>
    %1425 = vector.shape_cast %1424 : vector<1x16x128xf32> to vector<16x128xf32>
    %1426 = arith.addf %1421, %1423 : vector<16x128xf32>
    %1427 = arith.addf %1426, %1425 : vector<16x128xf32>
    %c3_515 = arith.constant 3 : index
    %c192_516 = arith.constant 192 : index
    %c0_517 = arith.constant 0 : index
    %1428 = vector.load %arg7[%c3_515, %c192_516, %c0_517] : memref<6x208x128xf32, #tpu.memory_space<vmem>>, vector<1x16x128xf32>
    %1429 = vector.shape_cast %1428 : vector<1x16x128xf32> to vector<16x128xf32>
    %1430 = vector.shape_cast %1427 : vector<16x128xf32> to vector<1x16x128xf32>
    tpu.vector_store %arg7[%c3_515, %c192_516, %c0_517], %1430 {strides = array<i32>} : memref<6x208x128xf32, #tpu.memory_space<vmem>>, vector<1x16x128xf32>,
    %1431 = arith.maximumf %1421, %1423 : vector<16x128xf32>
    %1432 = arith.maximumf %1431, %1425 : vector<16x128xf32>
    %c4_518 = arith.constant 4 : index
    %c192_519 = arith.constant 192 : index
    %c0_520 = arith.constant 0 : index
    %1433 = vector.load %arg7[%c4_518, %c192_519, %c0_520] : memref<6x208x128xf32, #tpu.memory_space<vmem>>, vector<1x16x128xf32>
    %1434 = vector.shape_cast %1433 : vector<1x16x128xf32> to vector<16x128xf32>
    %1435 = vector.shape_cast %1432 : vector<16x128xf32> to vector<1x16x128xf32>
    tpu.vector_store %arg7[%c4_518, %c192_519, %c0_520], %1435 {strides = array<i32>} : memref<6x208x128xf32, #tpu.memory_space<vmem>>, vector<1x16x128xf32>,
    %1436 = arith.minimumf %1421, %1423 : vector<16x128xf32>
    %1437 = arith.minimumf %1436, %1425 : vector<16x128xf32>
    %c5_521 = arith.constant 5 : index
    %c192_522 = arith.constant 192 : index
    %c0_523 = arith.constant 0 : index
    %1438 = vector.load %arg7[%c5_521, %c192_522, %c0_523] : memref<6x208x128xf32, #tpu.memory_space<vmem>>, vector<1x16x128xf32>
    %1439 = vector.shape_cast %1438 : vector<1x16x128xf32> to vector<16x128xf32>
    %1440 = vector.shape_cast %1437 : vector<16x128xf32> to vector<1x16x128xf32>
    tpu.vector_store %arg7[%c5_521, %c192_522, %c0_523], %1440 {strides = array<i32>} : memref<6x208x128xf32, #tpu.memory_space<vmem>>, vector<1x16x128xf32>,
    %c0_524 = arith.constant 0 : index
    %c0_525 = arith.constant 0 : index
    %c0_526 = arith.constant 0 : index
    %1441 = vector.load %arg2[%c0_524, %c0_525, %c0_526] : memref<6x30x208xf32, #tpu.memory_space<vmem>>, vector<1x30x208xf32>
    %1442 = vector.shape_cast %1441 : vector<1x30x208xf32> to vector<30x208xf32>
    %c0_527 = arith.constant 0 : index
    %c0_528 = arith.constant 0 : index
    %c0_529 = arith.constant 0 : index
    %1443 = vector.load %arg7[%c0_527, %c0_528, %c0_529] : memref<6x208x128xf32, #tpu.memory_space<vmem>>, vector<1x208x128xf32>
    %1444 = vector.shape_cast %1443 : vector<1x208x128xf32> to vector<208x128xf32>
    %cst_530 = arith.constant dense<0.000000e+00> : vector<30x128xf32>
    %1445 = tpu.matmul %1442, %1444, %cst_530 {dimension_numbers = #tpu.dot_dimension_numbers<[1], [0], [0], [1], [0, 0, 1, 1], [], []>} : vector<30x208xf32>, vector<208x128xf32>, vector<30x128xf32> -> vector<30x128xf32>
    %c1_531 = arith.constant 1 : index
    %c0_532 = arith.constant 0 : index
    %c0_533 = arith.constant 0 : index
    %1446 = vector.load %arg2[%c1_531, %c0_532, %c0_533] : memref<6x30x208xf32, #tpu.memory_space<vmem>>, vector<1x30x208xf32>
    %1447 = vector.shape_cast %1446 : vector<1x30x208xf32> to vector<30x208xf32>
    %c1_534 = arith.constant 1 : index
    %c0_535 = arith.constant 0 : index
    %c0_536 = arith.constant 0 : index
    %1448 = vector.load %arg7[%c1_534, %c0_535, %c0_536] : memref<6x208x128xf32, #tpu.memory_space<vmem>>, vector<1x208x128xf32>
    %1449 = vector.shape_cast %1448 : vector<1x208x128xf32> to vector<208x128xf32>
    %cst_537 = arith.constant dense<0.000000e+00> : vector<30x128xf32>
    %1450 = tpu.matmul %1447, %1449, %cst_537 {dimension_numbers = #tpu.dot_dimension_numbers<[1], [0], [0], [1], [0, 0, 1, 1], [], []>} : vector<30x208xf32>, vector<208x128xf32>, vector<30x128xf32> -> vector<30x128xf32>
    %1451 = arith.addf %1445, %1450 : vector<30x128xf32>
    %c2_538 = arith.constant 2 : index
    %c0_539 = arith.constant 0 : index
    %c0_540 = arith.constant 0 : index
    %1452 = vector.load %arg2[%c2_538, %c0_539, %c0_540] : memref<6x30x208xf32, #tpu.memory_space<vmem>>, vector<1x30x208xf32>
    %1453 = vector.shape_cast %1452 : vector<1x30x208xf32> to vector<30x208xf32>
    %c2_541 = arith.constant 2 : index
    %c0_542 = arith.constant 0 : index
    %c0_543 = arith.constant 0 : index
    %1454 = vector.load %arg7[%c2_541, %c0_542, %c0_543] : memref<6x208x128xf32, #tpu.memory_space<vmem>>, vector<1x208x128xf32>
    %1455 = vector.shape_cast %1454 : vector<1x208x128xf32> to vector<208x128xf32>
    %cst_544 = arith.constant dense<0.000000e+00> : vector<30x128xf32>
    %1456 = tpu.matmul %1453, %1455, %cst_544 {dimension_numbers = #tpu.dot_dimension_numbers<[1], [0], [0], [1], [0, 0, 1, 1], [], []>} : vector<30x208xf32>, vector<208x128xf32>, vector<30x128xf32> -> vector<30x128xf32>
    %1457 = arith.addf %1451, %1456 : vector<30x128xf32>
    %c3_545 = arith.constant 3 : index
    %c0_546 = arith.constant 0 : index
    %c0_547 = arith.constant 0 : index
    %1458 = vector.load %arg2[%c3_545, %c0_546, %c0_547] : memref<6x30x208xf32, #tpu.memory_space<vmem>>, vector<1x30x208xf32>
    %1459 = vector.shape_cast %1458 : vector<1x30x208xf32> to vector<30x208xf32>
    %c3_548 = arith.constant 3 : index
    %c0_549 = arith.constant 0 : index
    %c0_550 = arith.constant 0 : index
    %1460 = vector.load %arg7[%c3_548, %c0_549, %c0_550] : memref<6x208x128xf32, #tpu.memory_space<vmem>>, vector<1x208x128xf32>
    %1461 = vector.shape_cast %1460 : vector<1x208x128xf32> to vector<208x128xf32>
    %cst_551 = arith.constant dense<0.000000e+00> : vector<30x128xf32>
    %1462 = tpu.matmul %1459, %1461, %cst_551 {dimension_numbers = #tpu.dot_dimension_numbers<[1], [0], [0], [1], [0, 0, 1, 1], [], []>} : vector<30x208xf32>, vector<208x128xf32>, vector<30x128xf32> -> vector<30x128xf32>
    %1463 = arith.addf %1457, %1462 : vector<30x128xf32>
    %c4_552 = arith.constant 4 : index
    %c0_553 = arith.constant 0 : index
    %c0_554 = arith.constant 0 : index
    %1464 = vector.load %arg2[%c4_552, %c0_553, %c0_554] : memref<6x30x208xf32, #tpu.memory_space<vmem>>, vector<1x30x208xf32>
    %1465 = vector.shape_cast %1464 : vector<1x30x208xf32> to vector<30x208xf32>
    %c4_555 = arith.constant 4 : index
    %c0_556 = arith.constant 0 : index
    %c0_557 = arith.constant 0 : index
    %1466 = vector.load %arg7[%c4_555, %c0_556, %c0_557] : memref<6x208x128xf32, #tpu.memory_space<vmem>>, vector<1x208x128xf32>
    %1467 = vector.shape_cast %1466 : vector<1x208x128xf32> to vector<208x128xf32>
    %cst_558 = arith.constant dense<0.000000e+00> : vector<30x128xf32>
    %1468 = tpu.matmul %1465, %1467, %cst_558 {dimension_numbers = #tpu.dot_dimension_numbers<[1], [0], [0], [1], [0, 0, 1, 1], [], []>} : vector<30x208xf32>, vector<208x128xf32>, vector<30x128xf32> -> vector<30x128xf32>
    %1469 = arith.addf %1463, %1468 : vector<30x128xf32>
    %c5_559 = arith.constant 5 : index
    %c0_560 = arith.constant 0 : index
    %c0_561 = arith.constant 0 : index
    %1470 = vector.load %arg2[%c5_559, %c0_560, %c0_561] : memref<6x30x208xf32, #tpu.memory_space<vmem>>, vector<1x30x208xf32>
    %1471 = vector.shape_cast %1470 : vector<1x30x208xf32> to vector<30x208xf32>
    %c5_562 = arith.constant 5 : index
    %c0_563 = arith.constant 0 : index
    %c0_564 = arith.constant 0 : index
    %1472 = vector.load %arg7[%c5_562, %c0_563, %c0_564] : memref<6x208x128xf32, #tpu.memory_space<vmem>>, vector<1x208x128xf32>
    %1473 = vector.shape_cast %1472 : vector<1x208x128xf32> to vector<208x128xf32>
    %cst_565 = arith.constant dense<0.000000e+00> : vector<30x128xf32>
    %1474 = tpu.matmul %1471, %1473, %cst_565 {dimension_numbers = #tpu.dot_dimension_numbers<[1], [0], [0], [1], [0, 0, 1, 1], [], []>} : vector<30x208xf32>, vector<208x128xf32>, vector<30x128xf32> -> vector<30x128xf32>
    %1475 = arith.addf %1469, %1474 : vector<30x128xf32>
    %c0_566 = arith.constant 0 : index
    %c0_567 = arith.constant 0 : index
    %1476 = vector.load %arg3[%c0_566, %c0_567] : memref<30x1xf32, #tpu.memory_space<vmem>>, vector<30x1xf32>
    %1477 = vector.broadcast %1476 : vector<30x1xf32> to vector<30x128xf32>
    %1478 = arith.addf %1475, %1477 : vector<30x128xf32>
    %cst_568 = arith.constant 0.000000e+00 : f32
    %1479 = vector.broadcast %cst_568 : f32 to vector<30x128xf32>
    %1480 = arith.maximumf %1478, %1479 : vector<30x128xf32>
    %c0_569 = arith.constant 0 : index
    %c0_570 = arith.constant 0 : index
    %1481 = vector.load %arg4[%c0_569, %c0_570] : memref<1x30xf32, #tpu.memory_space<vmem>>, vector<1x30xf32>
    %cst_571 = arith.constant dense<0.000000e+00> : vector<1x128xf32>
    %1482 = tpu.matmul %1481, %1480, %cst_571 {dimension_numbers = #tpu.dot_dimension_numbers<[1], [0], [0], [1], [0, 0, 1, 1], [], []>} : vector<1x30xf32>, vector<30x128xf32>, vector<1x128xf32> -> vector<1x128xf32>
    %c0_572 = arith.constant 0 : index
    %c0_573 = arith.constant 0 : index
    %1483 = vector.load %arg5[%c0_572, %c0_573] : memref<1x1xf32, #tpu.memory_space<vmem>>, vector<1x1xf32>
    %1484 = vector.broadcast %1483 : vector<1x1xf32> to vector<1x128xf32>
    %1485 = arith.addf %1482, %1484 : vector<1x128xf32>
    %c0_574 = arith.constant 0 : index
    %c0_575 = arith.constant 0 : index
    %1486 = vector.load %arg6[%c0_574, %c0_575] : memref<1x128xf32, #tpu.memory_space<vmem>>, vector<1x128xf32>
    tpu.vector_store %arg6[%c0_574, %c0_575], %1485 {strides = array<i32>} : memref<1x128xf32, #tpu.memory_space<vmem>>, vector<1x128xf32>,
    return
  }
  func.func @transform_0(%arg0: i32) -> (i32, i32, i32, i32) {
    %c0_i32 = arith.constant 0 : i32
    %c0_i32_0 = arith.constant 0 : i32
    %c0_i32_1 = arith.constant 0 : i32
    %c0_i32_2 = arith.constant 0 : i32
    return %c0_i32, %c0_i32_0, %c0_i32_1, %arg0 : i32, i32, i32, i32
  }
  func.func @transform_1(%arg0: i32) -> (i32, i32, i32) {
    %c0_i32 = arith.constant 0 : i32
    %c0_i32_0 = arith.constant 0 : i32
    %c0_i32_1 = arith.constant 0 : i32
    %c0_i32_2 = arith.constant 0 : i32
    return %c0_i32, %c0_i32_0, %c0_i32_1 : i32, i32, i32
  }
  func.func @transform_2(%arg0: i32) -> (i32, i32) {
    %c0_i32 = arith.constant 0 : i32
    %c0_i32_0 = arith.constant 0 : i32
    %c0_i32_1 = arith.constant 0 : i32
    return %c0_i32, %c0_i32_0 : i32, i32
  }
  func.func @transform_3(%arg0: i32) -> (i32, i32) {
    %c0_i32 = arith.constant 0 : i32
    %c0_i32_0 = arith.constant 0 : i32
    %c0_i32_1 = arith.constant 0 : i32
    return %c0_i32, %c0_i32_0 : i32, i32
  }
  func.func @transform_4(%arg0: i32) -> (i32, i32) {
    %c0_i32 = arith.constant 0 : i32
    %c0_i32_0 = arith.constant 0 : i32
    %c0_i32_1 = arith.constant 0 : i32
    return %c0_i32, %c0_i32_0 : i32, i32
  }
  func.func @transform_5(%arg0: i32) -> (i32, i32) {
    %c0_i32 = arith.constant 0 : i32
    %c0_i32_0 = arith.constant 0 : i32
    return %c0_i32, %arg0 : i32, i32
  }
}

</mosaic_0001>

<llo_original>
// kernel: tpu_custom_call.1
$region0: #{tpu_custom_call.1}
  #allocation0 [shape = 'u32[]', space=smem, size = 0x4, offset = 0x4, fixed_abs, tag = 'smem constant byte address 0x4 - core index']
  #allocation1 [shape = 'u32[144,128]{1,0:T(1,128)}', space=vmem, size = 0x12000, scoped, tag = 'internal scratch']
  #allocation2 [shape = 'f32[6,208,128]{2,1,0:T(8,128)}', space=vmem, size = 0x9c000, scoped, tag = 'scratch operand']
  #allocation3 [shape = 'f32[1,1]{1,0:T(1,128)S(1)}', space=vmem, size = 0x200, scoped, tag = 'scoped memory for tpu_custom_call.1']
  %s0 = inlined_call_operand.vmem [shape: f32[3,10,9,128], index: 0, kind: input, shape index: {}]
  %s1 = inlined_call_operand.vmem [shape: f32[6,30,208], index: 1, kind: input, shape index: {}]
  %s2 = inlined_call_operand.vmem [shape: f32[30,1], index: 2, kind: input, shape index: {}]
  %s3 = inlined_call_operand.vmem [shape: f32[1,30], index: 3, kind: input, shape index: {}]
  %s4 = inlined_call_operand.<no memory space> [shape: f32[1,1], index: 4, kind: input, shape index: {}]
  %s5 = inlined_call_operand.hbm [shape: f32[1,128], index: 5, kind: output, shape index: {}]
  %s6 = sld [smem:[#allocation0]]
  $region30: #{tpu_custom_call.1} parent=0
    _
  %s8 = ssub.s32 1, %s6
  %s9 = scalar_select 0, %s8, %s6
  %v10 = vstv %s4
  %11 = vst [vmem:[#allocation3] sm:$0x1] %v10
  $region1: #{tpu_custom_call.1} parent=0
    #allocation4 [shape = 'u8[512]{0}', space=vmem, size = 0x400, scoped, tag = 'output window, operand 0, single buffered']
    #allocation5 [shape = 's32[1]{0}', space=sflag, size = 0x4, scoped, tag = 'scoped memory for tpu_custom_call.1']
    %12 = vsyncpa [#allocation5], 0
    // Predicated region
    $region2: #{tpu_custom_call.1} parent=1 // pred_check
      _
    $region3: #{tpu_custom_call.1} parent=1 // pred_check_branch
      %14 = sbr.rel (0) target = $region5
    $region4: #{tpu_custom_call.1} parent=1 // pred_region
      _
    $region5: #{tpu_custom_call.1} parent=1 // pred_fallthru
      _
    // Predicated region
    $region6: #{tpu_custom_call.1} parent=1 // pred_check
      _
    $region7: #{tpu_custom_call.1} parent=1 // pred_check_branch
      %16 = sbr.rel (0) target = $region9
    $region8: #{tpu_custom_call.1} parent=1 // pred_region
      _
    $region9: #{tpu_custom_call.1} parent=1 // pred_fallthru
      _
    // Predicated region
    $region10: #{tpu_custom_call.1} parent=1 // pred_check
      _
    $region11: #{tpu_custom_call.1} parent=1 // pred_check_branch
      %18 = sbr.rel (0) target = $region13
    $region12: #{tpu_custom_call.1} parent=1 // pred_region
      _
    $region13: #{tpu_custom_call.1} parent=1 // pred_fallthru
      _
    // Predicated region
    $region14: #{tpu_custom_call.1} parent=1 // pred_check
      _
    $region15: #{tpu_custom_call.1} parent=1 // pred_check_branch
      %20 = sbr.rel (0) target = $region17
    $region16: #{tpu_custom_call.1} parent=1 // pred_region
      _
    $region17: #{tpu_custom_call.1} parent=1 // pred_fallthru
      _
    // Predicated region
    $region18: #{tpu_custom_call.1} parent=1 // pred_check
      _
    $region19: #{tpu_custom_call.1} parent=1 // pred_check_branch
      %22 = sbr.rel (0) target = $region21
    $region20: #{tpu_custom_call.1} parent=1 // pred_region
      _
    $region21: #{tpu_custom_call.1} parent=1 // pred_fallthru
      _
    %v23 = vld [vmem:[%s0] sm:$0xff]
    %v24 = vld [vmem:[%s0 + $0x8] sm:$0x1]
    %v25 = vmul.f32 %v23, %v23
    %v26 = vmul.f32 %v24, %v24
    %v27 = vmul.f32 %v23, 0.018181818
    %v28 = vmul.f32 %v24, 0.018181818
    %vm31 = vcmask 1046528
    %v32 = vrot.slane %v23, 1
    %v33 = vrot.slane %v24, 1
    %v34 = vsel %vm31, %v32, %v33
    %v36 = vmul.f32 %v23, %v34
    %v37 = vmul.f32 %v24, %v23
    %vm38 = vcmask 1045504
    %v39 = vrot.slane %v23, 2
    %v40 = vrot.slane %v24, 2
    %v41 = vsel %vm38, %v39, %v40
    %v44 = vsel %vm31, %v41, %v32
    %v45 = vmul.f32 %v23, %v44
    %v46 = vmul.f32 %v24, %v32
    %vm47 = vcmask 1044480
    %v48 = vrot.slane %v23, 3
    %v49 = vrot.slane %v24, 3
    %v50 = vsel %vm47, %v48, %v49
    %v53 = vsel %vm38, %v50, %v39
    %v54 = vmul.f32 %v23, %v53
    %v55 = vmul.f32 %v24, %v39
    %vm56 = vcmask 1043456
    %v57 = vrot.slane %v23, 4
    %v58 = vrot.slane %v24, 4
    %v59 = vsel %vm56, %v57, %v58
    %v62 = vsel %vm47, %v59, %v48
    %v63 = vmul.f32 %v23, %v62
    %v64 = vmul.f32 %v24, %v48
    %s65 = scalar_lea.vmem %s0, 16
    %v66 = vld [vmem:[%s65] sm:$0xff]
    %v67 = vld [vmem:[%s65 + $0x8] sm:$0x1]
    %v68 = vadd.f32 %v23, %v66
    %v69 = vadd.f32 %v24, %v67
    %v70 = vmul.f32 %v66, %v66
    %v71 = vmul.f32 %v67, %v67
    %v72 = vadd.f32 %v25, %v70
    %v73 = vadd.f32 %v26, %v71
    %v74 = vmul.f32 %v66, 0.036363635
    %v75 = vmul.f32 %v67, 0.036363635
    %v76 = vadd.f32 %v27, %v74
    %v77 = vadd.f32 %v28, %v75
    %v80 = vrot.slane %v66, 1
    %v81 = vrot.slane %v67, 1
    %v82 = vsel %vm31, %v80, %v81
    %v84 = vmul.f32 %v66, %v82
    %v85 = vmul.f32 %v67, %v66
    %v86 = vadd.f32 %v36, %v84
    %v87 = vadd.f32 %v37, %v85
    %v88 = vrot.slane %v66, 2
    %v89 = vrot.slane %v67, 2
    %v90 = vsel %vm38, %v88, %v89
    %v93 = vsel %vm31, %v90, %v80
    %v94 = vmul.f32 %v66, %v93
    %v95 = vmul.f32 %v67, %v80
    %v96 = vadd.f32 %v45, %v94
    %v97 = vadd.f32 %v46, %v95
    %v98 = vrot.slane %v66, 3
    %v99 = vrot.slane %v67, 3
    %v100 = vsel %vm47, %v98, %v99
    %v103 = vsel %vm38, %v100, %v88
    %v104 = vmul.f32 %v66, %v103
    %v105 = vmul.f32 %v67, %v88
    %v106 = vadd.f32 %v54, %v104
    %v107 = vadd.f32 %v55, %v105
    %v108 = vrot.slane %v66, 4
    %v109 = vrot.slane %v67, 4
    %v110 = vsel %vm56, %v108, %v109
    %v113 = vsel %vm47, %v110, %v98
    %v114 = vmul.f32 %v66, %v113
    %v115 = vmul.f32 %v67, %v98
    %v116 = vadd.f32 %v63, %v114
    %v117 = vadd.f32 %v64, %v115
    %s118 = scalar_lea.vmem %s0, 32
    %v119 = vld [vmem:[%s118] sm:$0xff]
    %v120 = vld [vmem:[%s118 + $0x8] sm:$0x1]
    %v121 = vadd.f32 %v68, %v119
    %v122 = vadd.f32 %v69, %v120
    %v123 = vmul.f32 %v119, %v119
    %v124 = vmul.f32 %v120, %v120
    %v125 = vadd.f32 %v72, %v123
    %v126 = vadd.f32 %v73, %v124
    %v127 = vmul.f32 %v119, 0.054545455
    %v128 = vmul.f32 %v120, 0.054545455
    %v129 = vadd.f32 %v76, %v127
    %v130 = vadd.f32 %v77, %v128
    %v133 = vrot.slane %v119, 1
    %v134 = vrot.slane %v120, 1
    %v135 = vsel %vm31, %v133, %v134
    %v137 = vmul.f32 %v119, %v135
    %v138 = vmul.f32 %v120, %v119
    %v139 = vadd.f32 %v86, %v137
    %v140 = vadd.f32 %v87, %v138
    %v141 = vrot.slane %v119, 2
    %v142 = vrot.slane %v120, 2
    %v143 = vsel %vm38, %v141, %v142
    %v146 = vsel %vm31, %v143, %v133
    %v147 = vmul.f32 %v119, %v146
    %v148 = vmul.f32 %v120, %v133
    %v149 = vadd.f32 %v96, %v147
    %v150 = vadd.f32 %v97, %v148
    %v151 = vrot.slane %v119, 3
    %v152 = vrot.slane %v120, 3
    %v153 = vsel %vm47, %v151, %v152
    %v156 = vsel %vm38, %v153, %v141
    %v157 = vmul.f32 %v119, %v156
    %v158 = vmul.f32 %v120, %v141
    %v159 = vadd.f32 %v106, %v157
    %v160 = vadd.f32 %v107, %v158
    %v161 = vrot.slane %v119, 4
    %v162 = vrot.slane %v120, 4
    %v163 = vsel %vm56, %v161, %v162
    %v166 = vsel %vm47, %v163, %v151
    %v167 = vmul.f32 %v119, %v166
    %v168 = vmul.f32 %v120, %v151
    %v169 = vadd.f32 %v116, %v167
    %v170 = vadd.f32 %v117, %v168
    %s171 = scalar_lea.vmem %s0, 48
    %v172 = vld [vmem:[%s171] sm:$0xff]
    %v173 = vld [vmem:[%s171 + $0x8] sm:$0x1]
    %v174 = vadd.f32 %v121, %v172
    %v175 = vadd.f32 %v122, %v173
    %v176 = vmul.f32 %v172, %v172
    %v177 = vmul.f32 %v173, %v173
    %v178 = vadd.f32 %v125, %v176
    %v179 = vadd.f32 %v126, %v177
    %v180 = vmul.f32 %v172, 0.07272727
    %v181 = vmul.f32 %v173, 0.07272727
    %v182 = vadd.f32 %v129, %v180
    %v183 = vadd.f32 %v130, %v181
    %v186 = vrot.slane %v172, 1
    %v187 = vrot.slane %v173, 1
    %v188 = vsel %vm31, %v186, %v187
    %v190 = vmul.f32 %v172, %v188
    %v191 = vmul.f32 %v173, %v172
    %v192 = vadd.f32 %v139, %v190
    %v193 = vadd.f32 %v140, %v191
    %v194 = vrot.slane %v172, 2
    %v195 = vrot.slane %v173, 2
    %v196 = vsel %vm38, %v194, %v195
    %v199 = vsel %vm31, %v196, %v186
    %v200 = vmul.f32 %v172, %v199
    %v201 = vmul.f32 %v173, %v186
    %v202 = vadd.f32 %v149, %v200
    %v203 = vadd.f32 %v150, %v201
    %v204 = vrot.slane %v172, 3
    %v205 = vrot.slane %v173, 3
    %v206 = vsel %vm47, %v204, %v205
    %v209 = vsel %vm38, %v206, %v194
    %v210 = vmul.f32 %v172, %v209
    %v211 = vmul.f32 %v173, %v194
    %v212 = vadd.f32 %v159, %v210
    %v213 = vadd.f32 %v160, %v211
    %v214 = vrot.slane %v172, 4
    %v215 = vrot.slane %v173, 4
    %v216 = vsel %vm56, %v214, %v215
    %v219 = vsel %vm47, %v216, %v204
    %v220 = vmul.f32 %v172, %v219
    %v221 = vmul.f32 %v173, %v204
    %v222 = vadd.f32 %v169, %v220
    %v223 = vadd.f32 %v170, %v221
    %s224 = scalar_lea.vmem %s0, 64
    %v225 = vld [vmem:[%s224] sm:$0xff]
    %v226 = vld [vmem:[%s224 + $0x8] sm:$0x1]
    %v227 = vadd.f32 %v174, %v225
    %v228 = vadd.f32 %v175, %v226
    %v229 = vmul.f32 %v225, %v225
    %v230 = vmul.f32 %v226, %v226
    %v231 = vadd.f32 %v178, %v229
    %v232 = vadd.f32 %v179, %v230
    %v233 = vmul.f32 %v225, 0.09090909
    %v234 = vmul.f32 %v226, 0.09090909
    %v235 = vadd.f32 %v182, %v233
    %v236 = vadd.f32 %v183, %v234
    %v239 = vrot.slane %v225, 1
    %v240 = vrot.slane %v226, 1
    %v241 = vsel %vm31, %v239, %v240
    %v243 = vmul.f32 %v225, %v241
    %v244 = vmul.f32 %v226, %v225
    %v245 = vadd.f32 %v192, %v243
    %v246 = vadd.f32 %v193, %v244
    %v247 = vrot.slane %v225, 2
    %v248 = vrot.slane %v226, 2
    %v249 = vsel %vm38, %v247, %v248
    %v252 = vsel %vm31, %v249, %v239
    %v253 = vmul.f32 %v225, %v252
    %v254 = vmul.f32 %v226, %v239
    %v255 = vadd.f32 %v202, %v253
    %v256 = vadd.f32 %v203, %v254
    %v257 = vrot.slane %v225, 3
    %v258 = vrot.slane %v226, 3
    %v259 = vsel %vm47, %v257, %v258
    %v262 = vsel %vm38, %v259, %v247
    %v263 = vmul.f32 %v225, %v262
    %v264 = vmul.f32 %v226, %v247
    %v265 = vadd.f32 %v212, %v263
    %v266 = vadd.f32 %v213, %v264
    %v267 = vrot.slane %v225, 4
    %v268 = vrot.slane %v226, 4
    %v269 = vsel %vm56, %v267, %v268
    %v272 = vsel %vm47, %v269, %v257
    %v273 = vmul.f32 %v225, %v272
    %v274 = vmul.f32 %v226, %v257
    %v275 = vadd.f32 %v222, %v273
    %v276 = vadd.f32 %v223, %v274
    %s277 = scalar_lea.vmem %s0, 80
    %v278 = vld [vmem:[%s277] sm:$0xff]
    %v279 = vld [vmem:[%s277 + $0x8] sm:$0x1]
    %v280 = vadd.f32 %v227, %v278
    %v281 = vadd.f32 %v228, %v279
    %v282 = vmul.f32 %v278, %v278
    %v283 = vmul.f32 %v279, %v279
    %v284 = vadd.f32 %v231, %v282
    %v285 = vadd.f32 %v232, %v283
    %v286 = vmul.f32 %v278, 0.10909091
    %v287 = vmul.f32 %v279, 0.10909091
    %v288 = vadd.f32 %v235, %v286
    %v289 = vadd.f32 %v236, %v287
    %v292 = vrot.slane %v278, 1
    %v293 = vrot.slane %v279, 1
    %v294 = vsel %vm31, %v292, %v293
    %v296 = vmul.f32 %v278, %v294
    %v297 = vmul.f32 %v279, %v278
    %v298 = vadd.f32 %v245, %v296
    %v299 = vadd.f32 %v246, %v297
    %v300 = vrot.slane %v278, 2
    %v301 = vrot.slane %v279, 2
    %v302 = vsel %vm38, %v300, %v301
    %v305 = vsel %vm31, %v302, %v292
    %v306 = vmul.f32 %v278, %v305
    %v307 = vmul.f32 %v279, %v292
    %v308 = vadd.f32 %v255, %v306
    %v309 = vadd.f32 %v256, %v307
    %v310 = vrot.slane %v278, 3
    %v311 = vrot.slane %v279, 3
    %v312 = vsel %vm47, %v310, %v311
    %v315 = vsel %vm38, %v312, %v300
    %v316 = vmul.f32 %v278, %v315
    %v317 = vmul.f32 %v279, %v300
    %v318 = vadd.f32 %v265, %v316
    %v319 = vadd.f32 %v266, %v317
    %v320 = vrot.slane %v278, 4
    %v321 = vrot.slane %v279, 4
    %v322 = vsel %vm56, %v320, %v321
    %v325 = vsel %vm47, %v322, %v310
    %v326 = vmul.f32 %v278, %v325
    %v327 = vmul.f32 %v279, %v310
    %v328 = vadd.f32 %v275, %v326
    %v329 = vadd.f32 %v276, %v327
    %s330 = scalar_lea.vmem %s0, 96
    %v331 = vld [vmem:[%s330] sm:$0xff]
    %v332 = vld [vmem:[%s330 + $0x8] sm:$0x1]
    %v333 = vadd.f32 %v280, %v331
    %v334 = vadd.f32 %v281, %v332
    %v335 = vmul.f32 %v331, %v331
    %v336 = vmul.f32 %v332, %v332
    %v337 = vadd.f32 %v284, %v335
    %v338 = vadd.f32 %v285, %v336
    %v339 = vmul.f32 %v331, 0.12727273
    %v340 = vmul.f32 %v332, 0.12727273
    %v341 = vadd.f32 %v288, %v339
    %v342 = vadd.f32 %v289, %v340
    %v345 = vrot.slane %v331, 1
    %v346 = vrot.slane %v332, 1
    %v347 = vsel %vm31, %v345, %v346
    %v349 = vmul.f32 %v331, %v347
    %v350 = vmul.f32 %v332, %v331
    %v351 = vadd.f32 %v298, %v349
    %v352 = vadd.f32 %v299, %v350
    %v353 = vrot.slane %v331, 2
    %v354 = vrot.slane %v332, 2
    %v355 = vsel %vm38, %v353, %v354
    %v358 = vsel %vm31, %v355, %v345
    %v359 = vmul.f32 %v331, %v358
    %v360 = vmul.f32 %v332, %v345
    %v361 = vadd.f32 %v308, %v359
    %v362 = vadd.f32 %v309, %v360
    %v363 = vrot.slane %v331, 3
    %v364 = vrot.slane %v332, 3
    %v365 = vsel %vm47, %v363, %v364
    %v368 = vsel %vm38, %v365, %v353
    %v369 = vmul.f32 %v331, %v368
    %v370 = vmul.f32 %v332, %v353
    %v371 = vadd.f32 %v318, %v369
    %v372 = vadd.f32 %v319, %v370
    %v373 = vrot.slane %v331, 4
    %v374 = vrot.slane %v332, 4
    %v375 = vsel %vm56, %v373, %v374
    %v378 = vsel %vm47, %v375, %v363
    %v379 = vmul.f32 %v331, %v378
    %v380 = vmul.f32 %v332, %v363
    %v381 = vadd.f32 %v328, %v379
    %v382 = vadd.f32 %v329, %v380
    %s383 = scalar_lea.vmem %s0, 112
    %v384 = vld [vmem:[%s383] sm:$0xff]
    %v385 = vld [vmem:[%s383 + $0x8] sm:$0x1]
    %v386 = vadd.f32 %v333, %v384
    %v387 = vadd.f32 %v334, %v385
    %v388 = vmul.f32 %v384, %v384
    %v389 = vmul.f32 %v385, %v385
    %v390 = vadd.f32 %v337, %v388
    %v391 = vadd.f32 %v338, %v389
    %v392 = vmul.f32 %v384, 0.14545454
    %v393 = vmul.f32 %v385, 0.14545454
    %v394 = vadd.f32 %v341, %v392
    %v395 = vadd.f32 %v342, %v393
    %v398 = vrot.slane %v384, 1
    %v399 = vrot.slane %v385, 1
    %v400 = vsel %vm31, %v398, %v399
    %v402 = vmul.f32 %v384, %v400
    %v403 = vmul.f32 %v385, %v384
    %v404 = vadd.f32 %v351, %v402
    %v405 = vadd.f32 %v352, %v403
    %v406 = vrot.slane %v384, 2
    %v407 = vrot.slane %v385, 2
    %v408 = vsel %vm38, %v406, %v407
    %v411 = vsel %vm31, %v408, %v398
    %v412 = vmul.f32 %v384, %v411
    %v413 = vmul.f32 %v385, %v398
    %v414 = vadd.f32 %v361, %v412
    %v415 = vadd.f32 %v362, %v413
    %v416 = vrot.slane %v384, 3
    %v417 = vrot.slane %v385, 3
    %v418 = vsel %vm47, %v416, %v417
    %v421 = vsel %vm38, %v418, %v406
    %v422 = vmul.f32 %v384, %v421
    %v423 = vmul.f32 %v385, %v406
    %v424 = vadd.f32 %v371, %v422
    %v425 = vadd.f32 %v372, %v423
    %v426 = vrot.slane %v384, 4
    %v427 = vrot.slane %v385, 4
    %v428 = vsel %vm56, %v426, %v427
    %v431 = vsel %vm47, %v428, %v416
    %v432 = vmul.f32 %v384, %v431
    %v433 = vmul.f32 %v385, %v416
    %v434 = vadd.f32 %v381, %v432
    %v435 = vadd.f32 %v382, %v433
    %s436 = scalar_lea.vmem %s0, 128
    %v437 = vld [vmem:[%s436] sm:$0xff]
    %v438 = vld [vmem:[%s436 + $0x8] sm:$0x1]
    %v439 = vadd.f32 %v386, %v437
    %v440 = vadd.f32 %v387, %v438
    %v441 = vmul.f32 %v437, %v437
    %v442 = vmul.f32 %v438, %v438
    %v443 = vadd.f32 %v390, %v441
    %v444 = vadd.f32 %v391, %v442
    %v445 = vmul.f32 %v437, 0.16363636
    %v446 = vmul.f32 %v438, 0.16363636
    %v447 = vadd.f32 %v394, %v445
    %v448 = vadd.f32 %v395, %v446
    %v451 = vrot.slane %v437, 1
    %v452 = vrot.slane %v438, 1
    %v453 = vsel %vm31, %v451, %v452
    %v455 = vmul.f32 %v437, %v453
    %v456 = vmul.f32 %v438, %v437
    %v457 = vadd.f32 %v404, %v455
    %v458 = vadd.f32 %v405, %v456
    %v459 = vrot.slane %v437, 2
    %v460 = vrot.slane %v438, 2
    %v461 = vsel %vm38, %v459, %v460
    %v464 = vsel %vm31, %v461, %v451
    %v465 = vmul.f32 %v437, %v464
    %v466 = vmul.f32 %v438, %v451
    %v467 = vadd.f32 %v414, %v465
    %v468 = vadd.f32 %v415, %v466
    %v469 = vrot.slane %v437, 3
    %v470 = vrot.slane %v438, 3
    %v471 = vsel %vm47, %v469, %v470
    %v474 = vsel %vm38, %v471, %v459
    %v475 = vmul.f32 %v437, %v474
    %v476 = vmul.f32 %v438, %v459
    %v477 = vadd.f32 %v424, %v475
    %v478 = vadd.f32 %v425, %v476
    %v479 = vrot.slane %v437, 4
    %v480 = vrot.slane %v438, 4
    %v481 = vsel %vm56, %v479, %v480
    %v484 = vsel %vm47, %v481, %v469
    %v485 = vmul.f32 %v437, %v484
    %v486 = vmul.f32 %v438, %v469
    %v487 = vadd.f32 %v434, %v485
    %v488 = vadd.f32 %v435, %v486
    %s489 = scalar_lea.vmem %s0, 144
    %v490 = vld [vmem:[%s489] sm:$0xff]
    %v491 = vld [vmem:[%s489 + $0x8] sm:$0x1]
    %v492 = vadd.f32 %v439, %v490
    %v493 = vadd.f32 %v440, %v491
    %v494 = vmul.f32 %v490, %v490
    %v495 = vmul.f32 %v491, %v491
    %v496 = vadd.f32 %v443, %v494
    %v497 = vadd.f32 %v444, %v495
    %v498 = vmul.f32 %v490, 0.18181819
    %v499 = vmul.f32 %v491, 0.18181819
    %v500 = vadd.f32 %v447, %v498
    %v501 = vadd.f32 %v448, %v499
    %v504 = vrot.slane %v490, 1
    %v505 = vrot.slane %v491, 1
    %v506 = vsel %vm31, %v504, %v505
    %v508 = vmul.f32 %v490, %v506
    %v509 = vmul.f32 %v491, %v490
    %v510 = vadd.f32 %v457, %v508
    %v511 = vadd.f32 %v458, %v509
    %v512 = vrot.slane %v490, 2
    %v513 = vrot.slane %v491, 2
    %v514 = vsel %vm38, %v512, %v513
    %v517 = vsel %vm31, %v514, %v504
    %v518 = vmul.f32 %v490, %v517
    %v519 = vmul.f32 %v491, %v504
    %v520 = vadd.f32 %v467, %v518
    %v521 = vadd.f32 %v468, %v519
    %v522 = vrot.slane %v490, 3
    %v523 = vrot.slane %v491, 3
    %v524 = vsel %vm47, %v522, %v523
    %v527 = vsel %vm38, %v524, %v512
    %v528 = vmul.f32 %v490, %v527
    %v529 = vmul.f32 %v491, %v512
    %v530 = vadd.f32 %v477, %v528
    %v531 = vadd.f32 %v478, %v529
    %v532 = vrot.slane %v490, 4
    %v533 = vrot.slane %v491, 4
    %v534 = vsel %vm56, %v532, %v533
    %v537 = vsel %vm47, %v534, %v522
    %v538 = vmul.f32 %v490, %v537
    %v539 = vmul.f32 %v491, %v522
    %v540 = vadd.f32 %v487, %v538
    %v541 = vadd.f32 %v488, %v539
    %v542 = vmul.f32 %v492, 0.1
    %v543 = vmul.f32 %v493, 0.1
    %v544 = vmul.f32 %v496, 0.1
    %v545 = vmul.f32 %v497, 0.1
    %v546 = vmul.f32 %v542, %v542
    %v547 = vmul.f32 %v543, %v543
    %v548 = vsub.f32 %v544, %v546
    %v549 = vsub.f32 %v545, %v547
    %v550 = vrsqrt.pop %v548
    %v551 = vrsqrt.pop %v549
    %v552 = vmul.f32 %v548, %v550
    %v553 = vmul.f32 %v549, %v551
    %v554 = vmul.f32 %v542, %v550
    %v555 = vmul.f32 %v543, %v551
    %v556 = vrcp.pop %v23
    %v557 = vmul.f32 %v490, %v556
    %v558 = vrcp.pop %v24
    %v559 = vmul.f32 %v491, %v558
    %v560 = vsub.f32 %v557, 1.0
    %v561 = vsub.f32 %v559, 1.0
    %v564 = vrot.slane %v542, 1
    %v565 = vrot.slane %v543, 1
    %v566 = vsel %vm31, %v564, %v565
    %v570 = vrot.slane %v550, 1
    %v571 = vrot.slane %v551, 1
    %v572 = vsel %vm31, %v570, %v571
    %v574 = vmul.f32 %v510, 0.1
    %v575 = vmul.f32 %v511, 0.1
    %v576 = vmul.f32 %v542, %v566
    %v577 = vmul.f32 %v543, %v542
    %v578 = vsub.f32 %v574, %v576
    %v579 = vsub.f32 %v575, %v577
    %v580 = vmul.f32 %v550, %v572
    %v581 = vmul.f32 %v551, %v550
    %v582 = vmul.f32 %v578, %v580
    %v583 = vmul.f32 %v579, %v581
    %vm584 = vcmask 1040384
    %v585 = vsel %vm584, %v583, 0.0
    %586 = vst [vmem:[#allocation2] sm:$0xff] %v582
    %587 = vst [vmem:[#allocation2 + $0x8] sm:$0xff] %v585
    %v588 = vsel %vm584, %v579, 0.0
    %589 = vst [vmem:[#allocation2 + $0x40] sm:$0xff] %v578
    %590 = vst [vmem:[#allocation2 + $0x48] sm:$0xff] %v588
    %v591 = vrot.slane %v542, 2
    %v592 = vrot.slane %v543, 2
    %v593 = vsel %vm38, %v591, %v592
    %v596 = vsel %vm31, %v593, %v564
    %v597 = vrot.slane %v550, 2
    %v598 = vrot.slane %v551, 2
    %v599 = vsel %vm38, %v597, %v598
    %v602 = vsel %vm31, %v599, %v570
    %v603 = vmul.f32 %v520, 0.1
    %v604 = vmul.f32 %v521, 0.1
    %v605 = vmul.f32 %v542, %v596
    %v606 = vmul.f32 %v543, %v564
    %v607 = vsub.f32 %v603, %v605
    %v608 = vsub.f32 %v604, %v606
    %v609 = vmul.f32 %v550, %v602
    %v610 = vmul.f32 %v551, %v570
    %v611 = vmul.f32 %v607, %v609
    %v612 = vmul.f32 %v608, %v610
    %v613 = vsel %vm584, %v612, 0.0
    %614 = vst [vmem:[#allocation2 + $0x10] sm:$0xff] %v611
    %615 = vst [vmem:[#allocation2 + $0x18] sm:$0xff] %v613
    %v616 = vsel %vm584, %v608, 0.0
    %617 = vst [vmem:[#allocation2 + $0x50] sm:$0xff] %v607
    %618 = vst [vmem:[#allocation2 + $0x58] sm:$0xff] %v616
    %v619 = vrot.slane %v542, 3
    %v620 = vrot.slane %v543, 3
    %v621 = vsel %vm47, %v619, %v620
    %v624 = vsel %vm38, %v621, %v591
    %v625 = vrot.slane %v550, 3
    %v626 = vrot.slane %v551, 3
    %v627 = vsel %vm47, %v625, %v626
    %v630 = vsel %vm38, %v627, %v597
    %v631 = vmul.f32 %v530, 0.1
    %v632 = vmul.f32 %v531, 0.1
    %v633 = vmul.f32 %v542, %v624
    %v634 = vmul.f32 %v543, %v591
    %v635 = vsub.f32 %v631, %v633
    %v636 = vsub.f32 %v632, %v634
    %v637 = vmul.f32 %v550, %v630
    %v638 = vmul.f32 %v551, %v597
    %v639 = vmul.f32 %v635, %v637
    %v640 = vmul.f32 %v636, %v638
    %v641 = vsel %vm584, %v640, 0.0
    %642 = vst [vmem:[#allocation2 + $0x20] sm:$0xff] %v639
    %643 = vst [vmem:[#allocation2 + $0x28] sm:$0xff] %v641
    %v644 = vsel %vm584, %v636, 0.0
    %645 = vst [vmem:[#allocation2 + $0x60] sm:$0xff] %v635
    %646 = vst [vmem:[#allocation2 + $0x68] sm:$0xff] %v644
    %v647 = vrot.slane %v542, 4
    %v648 = vrot.slane %v543, 4
    %v649 = vsel %vm56, %v647, %v648
    %v652 = vsel %vm47, %v649, %v619
    %v653 = vrot.slane %v550, 4
    %v654 = vrot.slane %v551, 4
    %v655 = vsel %vm56, %v653, %v654
    %v658 = vsel %vm47, %v655, %v625
    %v659 = vmul.f32 %v540, 0.1
    %v660 = vmul.f32 %v541, 0.1
    %v661 = vmul.f32 %v542, %v652
    %v662 = vmul.f32 %v543, %v619
    %v663 = vsub.f32 %v659, %v661
    %v664 = vsub.f32 %v660, %v662
    %v665 = vmul.f32 %v550, %v658
    %v666 = vmul.f32 %v551, %v625
    %v667 = vmul.f32 %v663, %v665
    %v668 = vmul.f32 %v664, %v666
    %v669 = vsel %vm584, %v668, 0.0
    %670 = vst [vmem:[#allocation2 + $0x30] sm:$0xff] %v667
    %671 = vst [vmem:[#allocation2 + $0x38] sm:$0xff] %v669
    %v672 = vsel %vm584, %v664, 0.0
    %673 = vst [vmem:[#allocation2 + $0x70] sm:$0xff] %v663
    %674 = vst [vmem:[#allocation2 + $0x78] sm:$0xff] %v672
    %v675 = vsel %vm584, %v553, 0.0
    %676 = vst [vmem:[#allocation2 + $0x80] sm:$0xff] %v552
    %677 = vst [vmem:[#allocation2 + $0x88] sm:$0xff] %v675
    %v678 = vsel %vm584, %v555, 0.0
    %679 = vst [vmem:[#allocation2 + $0x90] sm:$0xff] %v554
    %680 = vst [vmem:[#allocation2 + $0x98] sm:$0xff] %v678
    %v681 = vsel %vm584, %v561, 0.0
    %682 = vst [vmem:[#allocation2 + $0xa0] sm:$0xff] %v560
    %683 = vst [vmem:[#allocation2 + $0xa8] sm:$0xff] %v681
    %v684 = vsel %vm584, %v501, 0.0
    %685 = vst [vmem:[#allocation2 + $0xb0] sm:$0xff] %v500
    %686 = vst [vmem:[#allocation2 + $0xb8] sm:$0xff] %v684
    %v687 = vsel %vm584, %v543, 0.0
    %688 = vst [vmem:[#allocation2 + $0xc0] sm:$0xff] %v542
    %689 = vst [vmem:[#allocation2 + $0xc8] sm:$0xff] %v687
    %s690 = scalar_lea.vmem %s0, 160
    %v691 = vld [vmem:[%s690] sm:$0xff]
    %v692 = vld [vmem:[%s690 + $0x8] sm:$0x1]
    %v693 = vmul.f32 %v691, %v691
    %v694 = vmul.f32 %v692, %v692
    %v695 = vmul.f32 %v691, 0.018181818
    %v696 = vmul.f32 %v692, 0.018181818
    %v699 = vrot.slane %v691, 1
    %v700 = vrot.slane %v692, 1
    %v701 = vsel %vm31, %v699, %v700
    %v703 = vmul.f32 %v691, %v701
    %v704 = vmul.f32 %v692, %v691
    %v705 = vrot.slane %v691, 2
    %v706 = vrot.slane %v692, 2
    %v707 = vsel %vm38, %v705, %v706
    %v710 = vsel %vm31, %v707, %v699
    %v711 = vmul.f32 %v691, %v710
    %v712 = vmul.f32 %v692, %v699
    %v713 = vrot.slane %v691, 3
    %v714 = vrot.slane %v692, 3
    %v715 = vsel %vm47, %v713, %v714
    %v718 = vsel %vm38, %v715, %v705
    %v719 = vmul.f32 %v691, %v718
    %v720 = vmul.f32 %v692, %v705
    %v721 = vrot.slane %v691, 4
    %v722 = vrot.slane %v692, 4
    %v723 = vsel %vm56, %v721, %v722
    %v726 = vsel %vm47, %v723, %v713
    %v727 = vmul.f32 %v691, %v726
    %v728 = vmul.f32 %v692, %v713
    %s729 = scalar_lea.vmem %s0, 176
    %v730 = vld [vmem:[%s729] sm:$0xff]
    %v731 = vld [vmem:[%s729 + $0x8] sm:$0x1]
    %v732 = vadd.f32 %v691, %v730
    %v733 = vadd.f32 %v692, %v731
    %v734 = vmul.f32 %v730, %v730
    %v735 = vmul.f32 %v731, %v731
    %v736 = vadd.f32 %v693, %v734
    %v737 = vadd.f32 %v694, %v735
    %v738 = vmul.f32 %v730, 0.036363635
    %v739 = vmul.f32 %v731, 0.036363635
    %v740 = vadd.f32 %v695, %v738
    %v741 = vadd.f32 %v696, %v739
    %v744 = vrot.slane %v730, 1
    %v745 = vrot.slane %v731, 1
    %v746 = vsel %vm31, %v744, %v745
    %v748 = vmul.f32 %v730, %v746
    %v749 = vmul.f32 %v731, %v730
    %v750 = vadd.f32 %v703, %v748
    %v751 = vadd.f32 %v704, %v749
    %v752 = vrot.slane %v730, 2
    %v753 = vrot.slane %v731, 2
    %v754 = vsel %vm38, %v752, %v753
    %v757 = vsel %vm31, %v754, %v744
    %v758 = vmul.f32 %v730, %v757
    %v759 = vmul.f32 %v731, %v744
    %v760 = vadd.f32 %v711, %v758
    %v761 = vadd.f32 %v712, %v759
    %v762 = vrot.slane %v730, 3
    %v763 = vrot.slane %v731, 3
    %v764 = vsel %vm47, %v762, %v763
    %v767 = vsel %vm38, %v764, %v752
    %v768 = vmul.f32 %v730, %v767
    %v769 = vmul.f32 %v731, %v752
    %v770 = vadd.f32 %v719, %v768
    %v771 = vadd.f32 %v720, %v769
    %v772 = vrot.slane %v730, 4
    %v773 = vrot.slane %v731, 4
    %v774 = vsel %vm56, %v772, %v773
    %v777 = vsel %vm47, %v774, %v762
    %v778 = vmul.f32 %v730, %v777
    %v779 = vmul.f32 %v731, %v762
    %v780 = vadd.f32 %v727, %v778
    %v781 = vadd.f32 %v728, %v779
    %s782 = scalar_lea.vmem %s0, 192
    %v783 = vld [vmem:[%s782] sm:$0xff]
    %v784 = vld [vmem:[%s782 + $0x8] sm:$0x1]
    %v785 = vadd.f32 %v732, %v783
    %v786 = vadd.f32 %v733, %v784
    %v787 = vmul.f32 %v783, %v783
    %v788 = vmul.f32 %v784, %v784
    %v789 = vadd.f32 %v736, %v787
    %v790 = vadd.f32 %v737, %v788
    %v791 = vmul.f32 %v783, 0.054545455
    %v792 = vmul.f32 %v784, 0.054545455
    %v793 = vadd.f32 %v740, %v791
    %v794 = vadd.f32 %v741, %v792
    %v797 = vrot.slane %v783, 1
    %v798 = vrot.slane %v784, 1
    %v799 = vsel %vm31, %v797, %v798
    %v801 = vmul.f32 %v783, %v799
    %v802 = vmul.f32 %v784, %v783
    %v803 = vadd.f32 %v750, %v801
    %v804 = vadd.f32 %v751, %v802
    %v805 = vrot.slane %v783, 2
    %v806 = vrot.slane %v784, 2
    %v807 = vsel %vm38, %v805, %v806
    %v810 = vsel %vm31, %v807, %v797
    %v811 = vmul.f32 %v783, %v810
    %v812 = vmul.f32 %v784, %v797
    %v813 = vadd.f32 %v760, %v811
    %v814 = vadd.f32 %v761, %v812
    %v815 = vrot.slane %v783, 3
    %v816 = vrot.slane %v784, 3
    %v817 = vsel %vm47, %v815, %v816
    %v820 = vsel %vm38, %v817, %v805
    %v821 = vmul.f32 %v783, %v820
    %v822 = vmul.f32 %v784, %v805
    %v823 = vadd.f32 %v770, %v821
    %v824 = vadd.f32 %v771, %v822
    %v825 = vrot.slane %v783, 4
    %v826 = vrot.slane %v784, 4
    %v827 = vsel %vm56, %v825, %v826
    %v830 = vsel %vm47, %v827, %v815
    %v831 = vmul.f32 %v783, %v830
    %v832 = vmul.f32 %v784, %v815
    %v833 = vadd.f32 %v780, %v831
    %v834 = vadd.f32 %v781, %v832
    %s835 = scalar_lea.vmem %s0, 208
    %v836 = vld [vmem:[%s835] sm:$0xff]
    %v837 = vld [vmem:[%s835 + $0x8] sm:$0x1]
    %v838 = vadd.f32 %v785, %v836
    %v839 = vadd.f32 %v786, %v837
    %v840 = vmul.f32 %v836, %v836
    %v841 = vmul.f32 %v837, %v837
    %v842 = vadd.f32 %v789, %v840
    %v843 = vadd.f32 %v790, %v841
    %v844 = vmul.f32 %v836, 0.07272727
    %v845 = vmul.f32 %v837, 0.07272727
    %v846 = vadd.f32 %v793, %v844
    %v847 = vadd.f32 %v794, %v845
    %v850 = vrot.slane %v836, 1
    %v851 = vrot.slane %v837, 1
    %v852 = vsel %vm31, %v850, %v851
    %v854 = vmul.f32 %v836, %v852
    %v855 = vmul.f32 %v837, %v836
    %v856 = vadd.f32 %v803, %v854
    %v857 = vadd.f32 %v804, %v855
    %v858 = vrot.slane %v836, 2
    %v859 = vrot.slane %v837, 2
    %v860 = vsel %vm38, %v858, %v859
    %v863 = vsel %vm31, %v860, %v850
    %v864 = vmul.f32 %v836, %v863
    %v865 = vmul.f32 %v837, %v850
    %v866 = vadd.f32 %v813, %v864
    %v867 = vadd.f32 %v814, %v865
    %v868 = vrot.slane %v836, 3
    %v869 = vrot.slane %v837, 3
    %v870 = vsel %vm47, %v868, %v869
    %v873 = vsel %vm38, %v870, %v858
    %v874 = vmul.f32 %v836, %v873
    %v875 = vmul.f32 %v837, %v858
    %v876 = vadd.f32 %v823, %v874
    %v877 = vadd.f32 %v824, %v875
    %v878 = vrot.slane %v836, 4
    %v879 = vrot.slane %v837, 4
    %v880 = vsel %vm56, %v878, %v879
    %v883 = vsel %vm47, %v880, %v868
    %v884 = vmul.f32 %v836, %v883
    %v885 = vmul.f32 %v837, %v868
    %v886 = vadd.f32 %v833, %v884
    %v887 = vadd.f32 %v834, %v885
    %s888 = scalar_lea.vmem %s0, 224
    %v889 = vld [vmem:[%s888] sm:$0xff]
    %v890 = vld [vmem:[%s888 + $0x8] sm:$0x1]
    %v891 = vadd.f32 %v838, %v889
    %v892 = vadd.f32 %v839, %v890
    %v893 = vmul.f32 %v889, %v889
    %v894 = vmul.f32 %v890, %v890
    %v895 = vadd.f32 %v842, %v893
    %v896 = vadd.f32 %v843, %v894
    %v897 = vmul.f32 %v889, 0.09090909
    %v898 = vmul.f32 %v890, 0.09090909
    %v899 = vadd.f32 %v846, %v897
    %v900 = vadd.f32 %v847, %v898
    %v903 = vrot.slane %v889, 1
    %v904 = vrot.slane %v890, 1
    %v905 = vsel %vm31, %v903, %v904
    %v907 = vmul.f32 %v889, %v905
    %v908 = vmul.f32 %v890, %v889
    %v909 = vadd.f32 %v856, %v907
    %v910 = vadd.f32 %v857, %v908
    %v911 = vrot.slane %v889, 2
    %v912 = vrot.slane %v890, 2
    %v913 = vsel %vm38, %v911, %v912
    %v916 = vsel %vm31, %v913, %v903
    %v917 = vmul.f32 %v889, %v916
    %v918 = vmul.f32 %v890, %v903
    %v919 = vadd.f32 %v866, %v917
    %v920 = vadd.f32 %v867, %v918
    %v921 = vrot.slane %v889, 3
    %v922 = vrot.slane %v890, 3
    %v923 = vsel %vm47, %v921, %v922
    %v926 = vsel %vm38, %v923, %v911
    %v927 = vmul.f32 %v889, %v926
    %v928 = vmul.f32 %v890, %v911
    %v929 = vadd.f32 %v876, %v927
    %v930 = vadd.f32 %v877, %v928
    %v931 = vrot.slane %v889, 4
    %v932 = vrot.slane %v890, 4
    %v933 = vsel %vm56, %v931, %v932
    %v936 = vsel %vm47, %v933, %v921
    %v937 = vmul.f32 %v889, %v936
    %v938 = vmul.f32 %v890, %v921
    %v939 = vadd.f32 %v886, %v937
    %v940 = vadd.f32 %v887, %v938
    %s941 = scalar_lea.vmem %s0, 240
    %v942 = vld [vmem:[%s941] sm:$0xff]
    %v943 = vld [vmem:[%s941 + $0x8] sm:$0x1]
    %v944 = vadd.f32 %v891, %v942
    %v945 = vadd.f32 %v892, %v943
    %v946 = vmul.f32 %v942, %v942
    %v947 = vmul.f32 %v943, %v943
    %v948 = vadd.f32 %v895, %v946
    %v949 = vadd.f32 %v896, %v947
    %v950 = vmul.f32 %v942, 0.10909091
    %v951 = vmul.f32 %v943, 0.10909091
    %v952 = vadd.f32 %v899, %v950
    %v953 = vadd.f32 %v900, %v951
    %v956 = vrot.slane %v942, 1
    %v957 = vrot.slane %v943, 1
    %v958 = vsel %vm31, %v956, %v957
    %v960 = vmul.f32 %v942, %v958
    %v961 = vmul.f32 %v943, %v942
    %v962 = vadd.f32 %v909, %v960
    %v963 = vadd.f32 %v910, %v961
    %v964 = vrot.slane %v942, 2
    %v965 = vrot.slane %v943, 2
    %v966 = vsel %vm38, %v964, %v965
    %v969 = vsel %vm31, %v966, %v956
    %v970 = vmul.f32 %v942, %v969
    %v971 = vmul.f32 %v943, %v956
    %v972 = vadd.f32 %v919, %v970
    %v973 = vadd.f32 %v920, %v971
    %v974 = vrot.slane %v942, 3
    %v975 = vrot.slane %v943, 3
    %v976 = vsel %vm47, %v974, %v975
    %v979 = vsel %vm38, %v976, %v964
    %v980 = vmul.f32 %v942, %v979
    %v981 = vmul.f32 %v943, %v964
    %v982 = vadd.f32 %v929, %v980
    %v983 = vadd.f32 %v930, %v981
    %v984 = vrot.slane %v942, 4
    %v985 = vrot.slane %v943, 4
    %v986 = vsel %vm56, %v984, %v985
    %v989 = vsel %vm47, %v986, %v974
    %v990 = vmul.f32 %v942, %v989
    %v991 = vmul.f32 %v943, %v974
    %v992 = vadd.f32 %v939, %v990
    %v993 = vadd.f32 %v940, %v991
    %s994 = scalar_lea.vmem %s0, 256
    %v995 = vld [vmem:[%s994] sm:$0xff]
    %v996 = vld [vmem:[%s994 + $0x8] sm:$0x1]
    %v997 = vadd.f32 %v944, %v995
    %v998 = vadd.f32 %v945, %v996
    %v999 = vmul.f32 %v995, %v995
    %v1000 = vmul.f32 %v996, %v996
    %v1001 = vadd.f32 %v948, %v999
    %v1002 = vadd.f32 %v949, %v1000
    %v1003 = vmul.f32 %v995, 0.12727273
    %v1004 = vmul.f32 %v996, 0.12727273
    %v1005 = vadd.f32 %v952, %v1003
    %v1006 = vadd.f32 %v953, %v1004
    %v1009 = vrot.slane %v995, 1
    %v1010 = vrot.slane %v996, 1
    %v1011 = vsel %vm31, %v1009, %v1010
    %v1013 = vmul.f32 %v995, %v1011
    %v1014 = vmul.f32 %v996, %v995
    %v1015 = vadd.f32 %v962, %v1013
    %v1016 = vadd.f32 %v963, %v1014
    %v1017 = vrot.slane %v995, 2
    %v1018 = vrot.slane %v996, 2
    %v1019 = vsel %vm38, %v1017, %v1018
    %v1022 = vsel %vm31, %v1019, %v1009
    %v1023 = vmul.f32 %v995, %v1022
    %v1024 = vmul.f32 %v996, %v1009
    %v1025 = vadd.f32 %v972, %v1023
    %v1026 = vadd.f32 %v973, %v1024
    %v1027 = vrot.slane %v995, 3
    %v1028 = vrot.slane %v996, 3
    %v1029 = vsel %vm47, %v1027, %v1028
    %v1032 = vsel %vm38, %v1029, %v1017
    %v1033 = vmul.f32 %v995, %v1032
    %v1034 = vmul.f32 %v996, %v1017
    %v1035 = vadd.f32 %v982, %v1033
    %v1036 = vadd.f32 %v983, %v1034
    %v1037 = vrot.slane %v995, 4
    %v1038 = vrot.slane %v996, 4
    %v1039 = vsel %vm56, %v1037, %v1038
    %v1042 = vsel %vm47, %v1039, %v1027
    %v1043 = vmul.f32 %v995, %v1042
    %v1044 = vmul.f32 %v996, %v1027
    %v1045 = vadd.f32 %v992, %v1043
    %v1046 = vadd.f32 %v993, %v1044
    %s1047 = scalar_lea.vmem %s0, 272
    %v1048 = vld [vmem:[%s1047] sm:$0xff]
    %v1049 = vld [vmem:[%s1047 + $0x8] sm:$0x1]
    %v1050 = vadd.f32 %v997, %v1048
    %v1051 = vadd.f32 %v998, %v1049
    %v1052 = vmul.f32 %v1048, %v1048
    %v1053 = vmul.f32 %v1049, %v1049
    %v1054 = vadd.f32 %v1001, %v1052
    %v1055 = vadd.f32 %v1002, %v1053
    %v1056 = vmul.f32 %v1048, 0.14545454
    %v1057 = vmul.f32 %v1049, 0.14545454
    %v1058 = vadd.f32 %v1005, %v1056
    %v1059 = vadd.f32 %v1006, %v1057
    %v1062 = vrot.slane %v1048, 1
    %v1063 = vrot.slane %v1049, 1
    %v1064 = vsel %vm31, %v1062, %v1063
    %v1066 = vmul.f32 %v1048, %v1064
    %v1067 = vmul.f32 %v1049, %v1048
    %v1068 = vadd.f32 %v1015, %v1066
    %v1069 = vadd.f32 %v1016, %v1067
    %v1070 = vrot.slane %v1048, 2
    %v1071 = vrot.slane %v1049, 2
    %v1072 = vsel %vm38, %v1070, %v1071
    %v1075 = vsel %vm31, %v1072, %v1062
    %v1076 = vmul.f32 %v1048, %v1075
    %v1077 = vmul.f32 %v1049, %v1062
    %v1078 = vadd.f32 %v1025, %v1076
    %v1079 = vadd.f32 %v1026, %v1077
    %v1080 = vrot.slane %v1048, 3
    %v1081 = vrot.slane %v1049, 3
    %v1082 = vsel %vm47, %v1080, %v1081
    %v1085 = vsel %vm38, %v1082, %v1070
    %v1086 = vmul.f32 %v1048, %v1085
    %v1087 = vmul.f32 %v1049, %v1070
    %v1088 = vadd.f32 %v1035, %v1086
    %v1089 = vadd.f32 %v1036, %v1087
    %v1090 = vrot.slane %v1048, 4
    %v1091 = vrot.slane %v1049, 4
    %v1092 = vsel %vm56, %v1090, %v1091
    %v1095 = vsel %vm47, %v1092, %v1080
    %v1096 = vmul.f32 %v1048, %v1095
    %v1097 = vmul.f32 %v1049, %v1080
    %v1098 = vadd.f32 %v1045, %v1096
    %v1099 = vadd.f32 %v1046, %v1097
    %s1100 = scalar_lea.vmem %s0, 288
    %v1101 = vld [vmem:[%s1100] sm:$0xff]
    %v1102 = vld [vmem:[%s1100 + $0x8] sm:$0x1]
    %v1103 = vadd.f32 %v1050, %v1101
    %v1104 = vadd.f32 %v1051, %v1102
    %v1105 = vmul.f32 %v1101, %v1101
    %v1106 = vmul.f32 %v1102, %v1102
    %v1107 = vadd.f32 %v1054, %v1105
    %v1108 = vadd.f32 %v1055, %v1106
    %v1109 = vmul.f32 %v1101, 0.16363636
    %v1110 = vmul.f32 %v1102, 0.16363636
    %v1111 = vadd.f32 %v1058, %v1109
    %v1112 = vadd.f32 %v1059, %v1110
    %v1115 = vrot.slane %v1101, 1
    %v1116 = vrot.slane %v1102, 1
    %v1117 = vsel %vm31, %v1115, %v1116
    %v1119 = vmul.f32 %v1101, %v1117
    %v1120 = vmul.f32 %v1102, %v1101
    %v1121 = vadd.f32 %v1068, %v1119
    %v1122 = vadd.f32 %v1069, %v1120
    %v1123 = vrot.slane %v1101, 2
    %v1124 = vrot.slane %v1102, 2
    %v1125 = vsel %vm38, %v1123, %v1124
    %v1128 = vsel %vm31, %v1125, %v1115
    %v1129 = vmul.f32 %v1101, %v1128
    %v1130 = vmul.f32 %v1102, %v1115
    %v1131 = vadd.f32 %v1078, %v1129
    %v1132 = vadd.f32 %v1079, %v1130
    %v1133 = vrot.slane %v1101, 3
    %v1134 = vrot.slane %v1102, 3
    %v1135 = vsel %vm47, %v1133, %v1134
    %v1138 = vsel %vm38, %v1135, %v1123
    %v1139 = vmul.f32 %v1101, %v1138
    %v1140 = vmul.f32 %v1102, %v1123
    %v1141 = vadd.f32 %v1088, %v1139
    %v1142 = vadd.f32 %v1089, %v1140
    %v1143 = vrot.slane %v1101, 4
    %v1144 = vrot.slane %v1102, 4
    %v1145 = vsel %vm56, %v1143, %v1144
    %v1148 = vsel %vm47, %v1145, %v1133
    %v1149 = vmul.f32 %v1101, %v1148
    %v1150 = vmul.f32 %v1102, %v1133
    %v1151 = vadd.f32 %v1098, %v1149
    %v1152 = vadd.f32 %v1099, %v1150
    %s1153 = scalar_lea.vmem %s0, 304
    %v1154 = vld [vmem:[%s1153] sm:$0xff]
    %v1155 = vld [vmem:[%s1153 + $0x8] sm:$0x1]
    %v1156 = vadd.f32 %v1103, %v1154
    %v1157 = vadd.f32 %v1104, %v1155
    %v1158 = vmul.f32 %v1154, %v1154
    %v1159 = vmul.f32 %v1155, %v1155
    %v1160 = vadd.f32 %v1107, %v1158
    %v1161 = vadd.f32 %v1108, %v1159
    %v1162 = vmul.f32 %v1154, 0.18181819
    %v1163 = vmul.f32 %v1155, 0.18181819
    %v1164 = vadd.f32 %v1111, %v1162
    %v1165 = vadd.f32 %v1112, %v1163
    %v1168 = vrot.slane %v1154, 1
    %v1169 = vrot.slane %v1155, 1
    %v1170 = vsel %vm31, %v1168, %v1169
    %v1172 = vmul.f32 %v1154, %v1170
    %v1173 = vmul.f32 %v1155, %v1154
    %v1174 = vadd.f32 %v1121, %v1172
    %v1175 = vadd.f32 %v1122, %v1173
    %v1176 = vrot.slane %v1154, 2
    %v1177 = vrot.slane %v1155, 2
    %v1178 = vsel %vm38, %v1176, %v1177
    %v1181 = vsel %vm31, %v1178, %v1168
    %v1182 = vmul.f32 %v1154, %v1181
    %v1183 = vmul.f32 %v1155, %v1168
    %v1184 = vadd.f32 %v1131, %v1182
    %v1185 = vadd.f32 %v1132, %v1183
    %v1186 = vrot.slane %v1154, 3
    %v1187 = vrot.slane %v1155, 3
    %v1188 = vsel %vm47, %v1186, %v1187
    %v1191 = vsel %vm38, %v1188, %v1176
    %v1192 = vmul.f32 %v1154, %v1191
    %v1193 = vmul.f32 %v1155, %v1176
    %v1194 = vadd.f32 %v1141, %v1192
    %v1195 = vadd.f32 %v1142, %v1193
    %v1196 = vrot.slane %v1154, 4
    %v1197 = vrot.slane %v1155, 4
    %v1198 = vsel %vm56, %v1196, %v1197
    %v1201 = vsel %vm47, %v1198, %v1186
    %v1202 = vmul.f32 %v1154, %v1201
    %v1203 = vmul.f32 %v1155, %v1186
    %v1204 = vadd.f32 %v1151, %v1202
    %v1205 = vadd.f32 %v1152, %v1203
    %v1206 = vmul.f32 %v1156, 0.1
    %v1207 = vmul.f32 %v1157, 0.1
    %v1208 = vmul.f32 %v1160, 0.1
    %v1209 = vmul.f32 %v1161, 0.1
    %v1210 = vmul.f32 %v1206, %v1206
    %v1211 = vmul.f32 %v1207, %v1207
    %v1212 = vsub.f32 %v1208, %v1210
    %v1213 = vsub.f32 %v1209, %v1211
    %v1214 = vrsqrt.pop %v1212
    %v1215 = vrsqrt.pop %v1213
    %v1216 = vmul.f32 %v1212, %v1214
    %v1217 = vmul.f32 %v1213, %v1215
    %v1218 = vmul.f32 %v1206, %v1214
    %v1219 = vmul.f32 %v1207, %v1215
    %v1220 = vrcp.pop %v691
    %v1221 = vmul.f32 %v1154, %v1220
    %v1222 = vrcp.pop %v692
    %v1223 = vmul.f32 %v1155, %v1222
    %v1224 = vsub.f32 %v1221, 1.0
    %v1225 = vsub.f32 %v1223, 1.0
    %v1228 = vrot.slane %v1206, 1
    %v1229 = vrot.slane %v1207, 1
    %v1230 = vsel %vm31, %v1228, %v1229
    %v1234 = vrot.slane %v1214, 1
    %v1235 = vrot.slane %v1215, 1
    %v1236 = vsel %vm31, %v1234, %v1235
    %v1238 = vmul.f32 %v1174, 0.1
    %v1239 = vmul.f32 %v1175, 0.1
    %v1240 = vmul.f32 %v1206, %v1230
    %v1241 = vmul.f32 %v1207, %v1206
    %v1242 = vsub.f32 %v1238, %v1240
    %v1243 = vsub.f32 %v1239, %v1241
    %v1244 = vmul.f32 %v1214, %v1236
    %v1245 = vmul.f32 %v1215, %v1214
    %v1246 = vmul.f32 %v1242, %v1244
    %v1247 = vmul.f32 %v1243, %v1245
    %v1248 = vsel %vm584, %v1247, 0.0
    %s1249 = scalar_lea.vmem [#allocation2], 208
    %1250 = vst [vmem:[%s1249] sm:$0xff] %v1246
    %1251 = vst [vmem:[%s1249 + $0x8] sm:$0xff] %v1248
    %v1252 = vsel %vm584, %v1243, 0.0
    %1253 = vst [vmem:[%s1249 + $0x40] sm:$0xff] %v1242
    %1254 = vst [vmem:[%s1249 + $0x48] sm:$0xff] %v1252
    %v1255 = vrot.slane %v1206, 2
    %v1256 = vrot.slane %v1207, 2
    %v1257 = vsel %vm38, %v1255, %v1256
    %v1260 = vsel %vm31, %v1257, %v1228
    %v1261 = vrot.slane %v1214, 2
    %v1262 = vrot.slane %v1215, 2
    %v1263 = vsel %vm38, %v1261, %v1262
    %v1266 = vsel %vm31, %v1263, %v1234
    %v1267 = vmul.f32 %v1184, 0.1
    %v1268 = vmul.f32 %v1185, 0.1
    %v1269 = vmul.f32 %v1206, %v1260
    %v1270 = vmul.f32 %v1207, %v1228
    %v1271 = vsub.f32 %v1267, %v1269
    %v1272 = vsub.f32 %v1268, %v1270
    %v1273 = vmul.f32 %v1214, %v1266
    %v1274 = vmul.f32 %v1215, %v1234
    %v1275 = vmul.f32 %v1271, %v1273
    %v1276 = vmul.f32 %v1272, %v1274
    %v1277 = vsel %vm584, %v1276, 0.0
    %1278 = vst [vmem:[%s1249 + $0x10] sm:$0xff] %v1275
    %1279 = vst [vmem:[%s1249 + $0x18] sm:$0xff] %v1277
    %v1280 = vsel %vm584, %v1272, 0.0
    %1281 = vst [vmem:[%s1249 + $0x50] sm:$0xff] %v1271
    %1282 = vst [vmem:[%s1249 + $0x58] sm:$0xff] %v1280
    %v1283 = vrot.slane %v1206, 3
    %v1284 = vrot.slane %v1207, 3
    %v1285 = vsel %vm47, %v1283, %v1284
    %v1288 = vsel %vm38, %v1285, %v1255
    %v1289 = vrot.slane %v1214, 3
    %v1290 = vrot.slane %v1215, 3
    %v1291 = vsel %vm47, %v1289, %v1290
    %v1294 = vsel %vm38, %v1291, %v1261
    %v1295 = vmul.f32 %v1194, 0.1
    %v1296 = vmul.f32 %v1195, 0.1
    %v1297 = vmul.f32 %v1206, %v1288
    %v1298 = vmul.f32 %v1207, %v1255
    %v1299 = vsub.f32 %v1295, %v1297
    %v1300 = vsub.f32 %v1296, %v1298
    %v1301 = vmul.f32 %v1214, %v1294
    %v1302 = vmul.f32 %v1215, %v1261
    %v1303 = vmul.f32 %v1299, %v1301
    %v1304 = vmul.f32 %v1300, %v1302
    %v1305 = vsel %vm584, %v1304, 0.0
    %1306 = vst [vmem:[%s1249 + $0x20] sm:$0xff] %v1303
    %1307 = vst [vmem:[%s1249 + $0x28] sm:$0xff] %v1305
    %v1308 = vsel %vm584, %v1300, 0.0
    %1309 = vst [vmem:[%s1249 + $0x60] sm:$0xff] %v1299
    %1310 = vst [vmem:[%s1249 + $0x68] sm:$0xff] %v1308
    %v1311 = vrot.slane %v1206, 4
    %v1312 = vrot.slane %v1207, 4
    %v1313 = vsel %vm56, %v1311, %v1312
    %v1316 = vsel %vm47, %v1313, %v1283
    %v1317 = vrot.slane %v1214, 4
    %v1318 = vrot.slane %v1215, 4
    %v1319 = vsel %vm56, %v1317, %v1318
    %v1322 = vsel %vm47, %v1319, %v1289
    %v1323 = vmul.f32 %v1204, 0.1
    %v1324 = vmul.f32 %v1205, 0.1
    %v1325 = vmul.f32 %v1206, %v1316
    %v1326 = vmul.f32 %v1207, %v1283
    %v1327 = vsub.f32 %v1323, %v1325
    %v1328 = vsub.f32 %v1324, %v1326
    %v1329 = vmul.f32 %v1214, %v1322
    %v1330 = vmul.f32 %v1215, %v1289
    %v1331 = vmul.f32 %v1327, %v1329
    %v1332 = vmul.f32 %v1328, %v1330
    %v1333 = vsel %vm584, %v1332, 0.0
    %1334 = vst [vmem:[%s1249 + $0x30] sm:$0xff] %v1331
    %1335 = vst [vmem:[%s1249 + $0x38] sm:$0xff] %v1333
    %v1336 = vsel %vm584, %v1328, 0.0
    %1337 = vst [vmem:[%s1249 + $0x70] sm:$0xff] %v1327
    %1338 = vst [vmem:[%s1249 + $0x78] sm:$0xff] %v1336
    %v1339 = vsel %vm584, %v1217, 0.0
    %1340 = vst [vmem:[%s1249 + $0x80] sm:$0xff] %v1216
    %1341 = vst [vmem:[%s1249 + $0x88] sm:$0xff] %v1339
    %v1342 = vsel %vm584, %v1219, 0.0
    %1343 = vst [vmem:[%s1249 + $0x90] sm:$0xff] %v1218
    %1344 = vst [vmem:[%s1249 + $0x98] sm:$0xff] %v1342
    %v1345 = vsel %vm584, %v1225, 0.0
    %1346 = vst [vmem:[%s1249 + $0xa0] sm:$0xff] %v1224
    %1347 = vst [vmem:[%s1249 + $0xa8] sm:$0xff] %v1345
    %v1348 = vsel %vm584, %v1165, 0.0
    %1349 = vst [vmem:[%s1249 + $0xb0] sm:$0xff] %v1164
    %1350 = vst [vmem:[%s1249 + $0xb8] sm:$0xff] %v1348
    %v1351 = vsel %vm584, %v1207, 0.0
    %1352 = vst [vmem:[%s1249 + $0xc0] sm:$0xff] %v1206
    %1353 = vst [vmem:[%s1249 + $0xc8] sm:$0xff] %v1351
    %s1354 = scalar_lea.vmem %s0, 320
    %v1355 = vld [vmem:[%s1354] sm:$0xff]
    %v1356 = vld [vmem:[%s1354 + $0x8] sm:$0x1]
    %v1357 = vmul.f32 %v1355, %v1355
    %v1358 = vmul.f32 %v1356, %v1356
    %v1359 = vmul.f32 %v1355, 0.018181818
    %v1360 = vmul.f32 %v1356, 0.018181818
    %v1363 = vrot.slane %v1355, 1
    %v1364 = vrot.slane %v1356, 1
    %v1365 = vsel %vm31, %v1363, %v1364
    %v1367 = vmul.f32 %v1355, %v1365
    %v1368 = vmul.f32 %v1356, %v1355
    %v1369 = vrot.slane %v1355, 2
    %v1370 = vrot.slane %v1356, 2
    %v1371 = vsel %vm38, %v1369, %v1370
    %v1374 = vsel %vm31, %v1371, %v1363
    %v1375 = vmul.f32 %v1355, %v1374
    %v1376 = vmul.f32 %v1356, %v1363
    %v1377 = vrot.slane %v1355, 3
    %v1378 = vrot.slane %v1356, 3
    %v1379 = vsel %vm47, %v1377, %v1378
    %v1382 = vsel %vm38, %v1379, %v1369
    %v1383 = vmul.f32 %v1355, %v1382
    %v1384 = vmul.f32 %v1356, %v1369
    %v1385 = vrot.slane %v1355, 4
    %v1386 = vrot.slane %v1356, 4
    %v1387 = vsel %vm56, %v1385, %v1386
    %v1390 = vsel %vm47, %v1387, %v1377
    %v1391 = vmul.f32 %v1355, %v1390
    %v1392 = vmul.f32 %v1356, %v1377
    %s1393 = scalar_lea.vmem %s0, 336
    %v1394 = vld [vmem:[%s1393] sm:$0xff]
    %v1395 = vld [vmem:[%s1393 + $0x8] sm:$0x1]
    %v1396 = vadd.f32 %v1355, %v1394
    %v1397 = vadd.f32 %v1356, %v1395
    %v1398 = vmul.f32 %v1394, %v1394
    %v1399 = vmul.f32 %v1395, %v1395
    %v1400 = vadd.f32 %v1357, %v1398
    %v1401 = vadd.f32 %v1358, %v1399
    %v1402 = vmul.f32 %v1394, 0.036363635
    %v1403 = vmul.f32 %v1395, 0.036363635
    %v1404 = vadd.f32 %v1359, %v1402
    %v1405 = vadd.f32 %v1360, %v1403
    %v1408 = vrot.slane %v1394, 1
    %v1409 = vrot.slane %v1395, 1
    %v1410 = vsel %vm31, %v1408, %v1409
    %v1412 = vmul.f32 %v1394, %v1410
    %v1413 = vmul.f32 %v1395, %v1394
    %v1414 = vadd.f32 %v1367, %v1412
    %v1415 = vadd.f32 %v1368, %v1413
    %v1416 = vrot.slane %v1394, 2
    %v1417 = vrot.slane %v1395, 2
    %v1418 = vsel %vm38, %v1416, %v1417
    %v1421 = vsel %vm31, %v1418, %v1408
    %v1422 = vmul.f32 %v1394, %v1421
    %v1423 = vmul.f32 %v1395, %v1408
    %v1424 = vadd.f32 %v1375, %v1422
    %v1425 = vadd.f32 %v1376, %v1423
    %v1426 = vrot.slane %v1394, 3
    %v1427 = vrot.slane %v1395, 3
    %v1428 = vsel %vm47, %v1426, %v1427
    %v1431 = vsel %vm38, %v1428, %v1416
    %v1432 = vmul.f32 %v1394, %v1431
    %v1433 = vmul.f32 %v1395, %v1416
    %v1434 = vadd.f32 %v1383, %v1432
    %v1435 = vadd.f32 %v1384, %v1433
    %v1436 = vrot.slane %v1394, 4
    %v1437 = vrot.slane %v1395, 4
    %v1438 = vsel %vm56, %v1436, %v1437
    %v1441 = vsel %vm47, %v1438, %v1426
    %v1442 = vmul.f32 %v1394, %v1441
    %v1443 = vmul.f32 %v1395, %v1426
    %v1444 = vadd.f32 %v1391, %v1442
    %v1445 = vadd.f32 %v1392, %v1443
    %s1446 = scalar_lea.vmem %s0, 352
    %v1447 = vld [vmem:[%s1446] sm:$0xff]
    %v1448 = vld [vmem:[%s1446 + $0x8] sm:$0x1]
    %v1449 = vadd.f32 %v1396, %v1447
    %v1450 = vadd.f32 %v1397, %v1448
    %v1451 = vmul.f32 %v1447, %v1447
    %v1452 = vmul.f32 %v1448, %v1448
    %v1453 = vadd.f32 %v1400, %v1451
    %v1454 = vadd.f32 %v1401, %v1452
    %v1455 = vmul.f32 %v1447, 0.054545455
    %v1456 = vmul.f32 %v1448, 0.054545455
    %v1457 = vadd.f32 %v1404, %v1455
    %v1458 = vadd.f32 %v1405, %v1456
    %v1461 = vrot.slane %v1447, 1
    %v1462 = vrot.slane %v1448, 1
    %v1463 = vsel %vm31, %v1461, %v1462
    %v1465 = vmul.f32 %v1447, %v1463
    %v1466 = vmul.f32 %v1448, %v1447
    %v1467 = vadd.f32 %v1414, %v1465
    %v1468 = vadd.f32 %v1415, %v1466
    %v1469 = vrot.slane %v1447, 2
    %v1470 = vrot.slane %v1448, 2
    %v1471 = vsel %vm38, %v1469, %v1470
    %v1474 = vsel %vm31, %v1471, %v1461
    %v1475 = vmul.f32 %v1447, %v1474
    %v1476 = vmul.f32 %v1448, %v1461
    %v1477 = vadd.f32 %v1424, %v1475
    %v1478 = vadd.f32 %v1425, %v1476
    %v1479 = vrot.slane %v1447, 3
    %v1480 = vrot.slane %v1448, 3
    %v1481 = vsel %vm47, %v1479, %v1480
    %v1484 = vsel %vm38, %v1481, %v1469
    %v1485 = vmul.f32 %v1447, %v1484
    %v1486 = vmul.f32 %v1448, %v1469
    %v1487 = vadd.f32 %v1434, %v1485
    %v1488 = vadd.f32 %v1435, %v1486
    %v1489 = vrot.slane %v1447, 4
    %v1490 = vrot.slane %v1448, 4
    %v1491 = vsel %vm56, %v1489, %v1490
    %v1494 = vsel %vm47, %v1491, %v1479
    %v1495 = vmul.f32 %v1447, %v1494
    %v1496 = vmul.f32 %v1448, %v1479
    %v1497 = vadd.f32 %v1444, %v1495
    %v1498 = vadd.f32 %v1445, %v1496
    %s1499 = scalar_lea.vmem %s0, 368
    %v1500 = vld [vmem:[%s1499] sm:$0xff]
    %v1501 = vld [vmem:[%s1499 + $0x8] sm:$0x1]
    %v1502 = vadd.f32 %v1449, %v1500
    %v1503 = vadd.f32 %v1450, %v1501
    %v1504 = vmul.f32 %v1500, %v1500
    %v1505 = vmul.f32 %v1501, %v1501
    %v1506 = vadd.f32 %v1453, %v1504
    %v1507 = vadd.f32 %v1454, %v1505
    %v1508 = vmul.f32 %v1500, 0.07272727
    %v1509 = vmul.f32 %v1501, 0.07272727
    %v1510 = vadd.f32 %v1457, %v1508
    %v1511 = vadd.f32 %v1458, %v1509
    %v1514 = vrot.slane %v1500, 1
    %v1515 = vrot.slane %v1501, 1
    %v1516 = vsel %vm31, %v1514, %v1515
    %v1518 = vmul.f32 %v1500, %v1516
    %v1519 = vmul.f32 %v1501, %v1500
    %v1520 = vadd.f32 %v1467, %v1518
    %v1521 = vadd.f32 %v1468, %v1519
    %v1522 = vrot.slane %v1500, 2
    %v1523 = vrot.slane %v1501, 2
    %v1524 = vsel %vm38, %v1522, %v1523
    %v1527 = vsel %vm31, %v1524, %v1514
    %v1528 = vmul.f32 %v1500, %v1527
    %v1529 = vmul.f32 %v1501, %v1514
    %v1530 = vadd.f32 %v1477, %v1528
    %v1531 = vadd.f32 %v1478, %v1529
    %v1532 = vrot.slane %v1500, 3
    %v1533 = vrot.slane %v1501, 3
    %v1534 = vsel %vm47, %v1532, %v1533
    %v1537 = vsel %vm38, %v1534, %v1522
    %v1538 = vmul.f32 %v1500, %v1537
    %v1539 = vmul.f32 %v1501, %v1522
    %v1540 = vadd.f32 %v1487, %v1538
    %v1541 = vadd.f32 %v1488, %v1539
    %v1542 = vrot.slane %v1500, 4
    %v1543 = vrot.slane %v1501, 4
    %v1544 = vsel %vm56, %v1542, %v1543
    %v1547 = vsel %vm47, %v1544, %v1532
    %v1548 = vmul.f32 %v1500, %v1547
    %v1549 = vmul.f32 %v1501, %v1532
    %v1550 = vadd.f32 %v1497, %v1548
    %v1551 = vadd.f32 %v1498, %v1549
    %s1552 = scalar_lea.vmem %s0, 384
    %v1553 = vld [vmem:[%s1552] sm:$0xff]
    %v1554 = vld [vmem:[%s1552 + $0x8] sm:$0x1]
    %v1555 = vadd.f32 %v1502, %v1553
    %v1556 = vadd.f32 %v1503, %v1554
    %v1557 = vmul.f32 %v1553, %v1553
    %v1558 = vmul.f32 %v1554, %v1554
    %v1559 = vadd.f32 %v1506, %v1557
    %v1560 = vadd.f32 %v1507, %v1558
    %v1561 = vmul.f32 %v1553, 0.09090909
    %v1562 = vmul.f32 %v1554, 0.09090909
    %v1563 = vadd.f32 %v1510, %v1561
    %v1564 = vadd.f32 %v1511, %v1562
    %v1567 = vrot.slane %v1553, 1
    %v1568 = vrot.slane %v1554, 1
    %v1569 = vsel %vm31, %v1567, %v1568
    %v1571 = vmul.f32 %v1553, %v1569
    %v1572 = vmul.f32 %v1554, %v1553
    %v1573 = vadd.f32 %v1520, %v1571
    %v1574 = vadd.f32 %v1521, %v1572
    %v1575 = vrot.slane %v1553, 2
    %v1576 = vrot.slane %v1554, 2
    %v1577 = vsel %vm38, %v1575, %v1576
    %v1580 = vsel %vm31, %v1577, %v1567
    %v1581 = vmul.f32 %v1553, %v1580
    %v1582 = vmul.f32 %v1554, %v1567
    %v1583 = vadd.f32 %v1530, %v1581
    %v1584 = vadd.f32 %v1531, %v1582
    %v1585 = vrot.slane %v1553, 3
    %v1586 = vrot.slane %v1554, 3
    %v1587 = vsel %vm47, %v1585, %v1586
    %v1590 = vsel %vm38, %v1587, %v1575
    %v1591 = vmul.f32 %v1553, %v1590
    %v1592 = vmul.f32 %v1554, %v1575
    %v1593 = vadd.f32 %v1540, %v1591
    %v1594 = vadd.f32 %v1541, %v1592
    %v1595 = vrot.slane %v1553, 4
    %v1596 = vrot.slane %v1554, 4
    %v1597 = vsel %vm56, %v1595, %v1596
    %v1600 = vsel %vm47, %v1597, %v1585
    %v1601 = vmul.f32 %v1553, %v1600
    %v1602 = vmul.f32 %v1554, %v1585
    %v1603 = vadd.f32 %v1550, %v1601
    %v1604 = vadd.f32 %v1551, %v1602
    %s1605 = scalar_lea.vmem %s0, 400
    %v1606 = vld [vmem:[%s1605] sm:$0xff]
    %v1607 = vld [vmem:[%s1605 + $0x8] sm:$0x1]
    %v1608 = vadd.f32 %v1555, %v1606
    %v1609 = vadd.f32 %v1556, %v1607
    %v1610 = vmul.f32 %v1606, %v1606
    %v1611 = vmul.f32 %v1607, %v1607
    %v1612 = vadd.f32 %v1559, %v1610
    %v1613 = vadd.f32 %v1560, %v1611
    %v1614 = vmul.f32 %v1606, 0.10909091
    %v1615 = vmul.f32 %v1607, 0.10909091
    %v1616 = vadd.f32 %v1563, %v1614
    %v1617 = vadd.f32 %v1564, %v1615
    %v1620 = vrot.slane %v1606, 1
    %v1621 = vrot.slane %v1607, 1
    %v1622 = vsel %vm31, %v1620, %v1621
    %v1624 = vmul.f32 %v1606, %v1622
    %v1625 = vmul.f32 %v1607, %v1606
    %v1626 = vadd.f32 %v1573, %v1624
    %v1627 = vadd.f32 %v1574, %v1625
    %v1628 = vrot.slane %v1606, 2
    %v1629 = vrot.slane %v1607, 2
    %v1630 = vsel %vm38, %v1628, %v1629
    %v1633 = vsel %vm31, %v1630, %v1620
    %v1634 = vmul.f32 %v1606, %v1633
    %v1635 = vmul.f32 %v1607, %v1620
    %v1636 = vadd.f32 %v1583, %v1634
    %v1637 = vadd.f32 %v1584, %v1635
    %v1638 = vrot.slane %v1606, 3
    %v1639 = vrot.slane %v1607, 3
    %v1640 = vsel %vm47, %v1638, %v1639
    %v1643 = vsel %vm38, %v1640, %v1628
    %v1644 = vmul.f32 %v1606, %v1643
    %v1645 = vmul.f32 %v1607, %v1628
    %v1646 = vadd.f32 %v1593, %v1644
    %v1647 = vadd.f32 %v1594, %v1645
    %v1648 = vrot.slane %v1606, 4
    %v1649 = vrot.slane %v1607, 4
    %v1650 = vsel %vm56, %v1648, %v1649
    %v1653 = vsel %vm47, %v1650, %v1638
    %v1654 = vmul.f32 %v1606, %v1653
    %v1655 = vmul.f32 %v1607, %v1638
    %v1656 = vadd.f32 %v1603, %v1654
    %v1657 = vadd.f32 %v1604, %v1655
    %s1658 = scalar_lea.vmem %s0, 416
    %v1659 = vld [vmem:[%s1658] sm:$0xff]
    %v1660 = vld [vmem:[%s1658 + $0x8] sm:$0x1]
    %v1661 = vadd.f32 %v1608, %v1659
    %v1662 = vadd.f32 %v1609, %v1660
    %v1663 = vmul.f32 %v1659, %v1659
    %v1664 = vmul.f32 %v1660, %v1660
    %v1665 = vadd.f32 %v1612, %v1663
    %v1666 = vadd.f32 %v1613, %v1664
    %v1667 = vmul.f32 %v1659, 0.12727273
    %v1668 = vmul.f32 %v1660, 0.12727273
    %v1669 = vadd.f32 %v1616, %v1667
    %v1670 = vadd.f32 %v1617, %v1668
    %v1673 = vrot.slane %v1659, 1
    %v1674 = vrot.slane %v1660, 1
    %v1675 = vsel %vm31, %v1673, %v1674
    %v1677 = vmul.f32 %v1659, %v1675
    %v1678 = vmul.f32 %v1660, %v1659
    %v1679 = vadd.f32 %v1626, %v1677
    %v1680 = vadd.f32 %v1627, %v1678
    %v1681 = vrot.slane %v1659, 2
    %v1682 = vrot.slane %v1660, 2
    %v1683 = vsel %vm38, %v1681, %v1682
    %v1686 = vsel %vm31, %v1683, %v1673
    %v1687 = vmul.f32 %v1659, %v1686
    %v1688 = vmul.f32 %v1660, %v1673
    %v1689 = vadd.f32 %v1636, %v1687
    %v1690 = vadd.f32 %v1637, %v1688
    %v1691 = vrot.slane %v1659, 3
    %v1692 = vrot.slane %v1660, 3
    %v1693 = vsel %vm47, %v1691, %v1692
    %v1696 = vsel %vm38, %v1693, %v1681
    %v1697 = vmul.f32 %v1659, %v1696
    %v1698 = vmul.f32 %v1660, %v1681
    %v1699 = vadd.f32 %v1646, %v1697
    %v1700 = vadd.f32 %v1647, %v1698
    %v1701 = vrot.slane %v1659, 4
    %v1702 = vrot.slane %v1660, 4
    %v1703 = vsel %vm56, %v1701, %v1702
    %v1706 = vsel %vm47, %v1703, %v1691
    %v1707 = vmul.f32 %v1659, %v1706
    %v1708 = vmul.f32 %v1660, %v1691
    %v1709 = vadd.f32 %v1656, %v1707
    %v1710 = vadd.f32 %v1657, %v1708
    %s1711 = scalar_lea.vmem %s0, 432
    %v1712 = vld [vmem:[%s1711] sm:$0xff]
    %v1713 = vld [vmem:[%s1711 + $0x8] sm:$0x1]
    %v1714 = vadd.f32 %v1661, %v1712
    %v1715 = vadd.f32 %v1662, %v1713
    %v1716 = vmul.f32 %v1712, %v1712
    %v1717 = vmul.f32 %v1713, %v1713
    %v1718 = vadd.f32 %v1665, %v1716
    %v1719 = vadd.f32 %v1666, %v1717
    %v1720 = vmul.f32 %v1712, 0.14545454
    %v1721 = vmul.f32 %v1713, 0.14545454
    %v1722 = vadd.f32 %v1669, %v1720
    %v1723 = vadd.f32 %v1670, %v1721
    %v1726 = vrot.slane %v1712, 1
    %v1727 = vrot.slane %v1713, 1
    %v1728 = vsel %vm31, %v1726, %v1727
    %v1730 = vmul.f32 %v1712, %v1728
    %v1731 = vmul.f32 %v1713, %v1712
    %v1732 = vadd.f32 %v1679, %v1730
    %v1733 = vadd.f32 %v1680, %v1731
    %v1734 = vrot.slane %v1712, 2
    %v1735 = vrot.slane %v1713, 2
    %v1736 = vsel %vm38, %v1734, %v1735
    %v1739 = vsel %vm31, %v1736, %v1726
    %v1740 = vmul.f32 %v1712, %v1739
    %v1741 = vmul.f32 %v1713, %v1726
    %v1742 = vadd.f32 %v1689, %v1740
    %v1743 = vadd.f32 %v1690, %v1741
    %v1744 = vrot.slane %v1712, 3
    %v1745 = vrot.slane %v1713, 3
    %v1746 = vsel %vm47, %v1744, %v1745
    %v1749 = vsel %vm38, %v1746, %v1734
    %v1750 = vmul.f32 %v1712, %v1749
    %v1751 = vmul.f32 %v1713, %v1734
    %v1752 = vadd.f32 %v1699, %v1750
    %v1753 = vadd.f32 %v1700, %v1751
    %v1754 = vrot.slane %v1712, 4
    %v1755 = vrot.slane %v1713, 4
    %v1756 = vsel %vm56, %v1754, %v1755
    %v1759 = vsel %vm47, %v1756, %v1744
    %v1760 = vmul.f32 %v1712, %v1759
    %v1761 = vmul.f32 %v1713, %v1744
    %v1762 = vadd.f32 %v1709, %v1760
    %v1763 = vadd.f32 %v1710, %v1761
    %s1764 = scalar_lea.vmem %s0, 448
    %v1765 = vld [vmem:[%s1764] sm:$0xff]
    %v1766 = vld [vmem:[%s1764 + $0x8] sm:$0x1]
    %v1767 = vadd.f32 %v1714, %v1765
    %v1768 = vadd.f32 %v1715, %v1766
    %v1769 = vmul.f32 %v1765, %v1765
    %v1770 = vmul.f32 %v1766, %v1766
    %v1771 = vadd.f32 %v1718, %v1769
    %v1772 = vadd.f32 %v1719, %v1770
    %v1773 = vmul.f32 %v1765, 0.16363636
    %v1774 = vmul.f32 %v1766, 0.16363636
    %v1775 = vadd.f32 %v1722, %v1773
    %v1776 = vadd.f32 %v1723, %v1774
    %v1779 = vrot.slane %v1765, 1
    %v1780 = vrot.slane %v1766, 1
    %v1781 = vsel %vm31, %v1779, %v1780
    %v1783 = vmul.f32 %v1765, %v1781
    %v1784 = vmul.f32 %v1766, %v1765
    %v1785 = vadd.f32 %v1732, %v1783
    %v1786 = vadd.f32 %v1733, %v1784
    %v1787 = vrot.slane %v1765, 2
    %v1788 = vrot.slane %v1766, 2
    %v1789 = vsel %vm38, %v1787, %v1788
    %v1792 = vsel %vm31, %v1789, %v1779
    %v1793 = vmul.f32 %v1765, %v1792
    %v1794 = vmul.f32 %v1766, %v1779
    %v1795 = vadd.f32 %v1742, %v1793
    %v1796 = vadd.f32 %v1743, %v1794
    %v1797 = vrot.slane %v1765, 3
    %v1798 = vrot.slane %v1766, 3
    %v1799 = vsel %vm47, %v1797, %v1798
    %v1802 = vsel %vm38, %v1799, %v1787
    %v1803 = vmul.f32 %v1765, %v1802
    %v1804 = vmul.f32 %v1766, %v1787
    %v1805 = vadd.f32 %v1752, %v1803
    %v1806 = vadd.f32 %v1753, %v1804
    %v1807 = vrot.slane %v1765, 4
    %v1808 = vrot.slane %v1766, 4
    %v1809 = vsel %vm56, %v1807, %v1808
    %v1812 = vsel %vm47, %v1809, %v1797
    %v1813 = vmul.f32 %v1765, %v1812
    %v1814 = vmul.f32 %v1766, %v1797
    %v1815 = vadd.f32 %v1762, %v1813
    %v1816 = vadd.f32 %v1763, %v1814
    %s1817 = scalar_lea.vmem %s0, 464
    %v1818 = vld [vmem:[%s1817] sm:$0xff]
    %v1819 = vld [vmem:[%s1817 + $0x8] sm:$0x1]
    %v1820 = vadd.f32 %v1767, %v1818
    %v1821 = vadd.f32 %v1768, %v1819
    %v1822 = vmul.f32 %v1818, %v1818
    %v1823 = vmul.f32 %v1819, %v1819
    %v1824 = vadd.f32 %v1771, %v1822
    %v1825 = vadd.f32 %v1772, %v1823
    %v1826 = vmul.f32 %v1818, 0.18181819
    %v1827 = vmul.f32 %v1819, 0.18181819
    %v1828 = vadd.f32 %v1775, %v1826
    %v1829 = vadd.f32 %v1776, %v1827
    %v1832 = vrot.slane %v1818, 1
    %v1833 = vrot.slane %v1819, 1
    %v1834 = vsel %vm31, %v1832, %v1833
    %v1836 = vmul.f32 %v1818, %v1834
    %v1837 = vmul.f32 %v1819, %v1818
    %v1838 = vadd.f32 %v1785, %v1836
    %v1839 = vadd.f32 %v1786, %v1837
    %v1840 = vrot.slane %v1818, 2
    %v1841 = vrot.slane %v1819, 2
    %v1842 = vsel %vm38, %v1840, %v1841
    %v1845 = vsel %vm31, %v1842, %v1832
    %v1846 = vmul.f32 %v1818, %v1845
    %v1847 = vmul.f32 %v1819, %v1832
    %v1848 = vadd.f32 %v1795, %v1846
    %v1849 = vadd.f32 %v1796, %v1847
    %v1850 = vrot.slane %v1818, 3
    %v1851 = vrot.slane %v1819, 3
    %v1852 = vsel %vm47, %v1850, %v1851
    %v1855 = vsel %vm38, %v1852, %v1840
    %v1856 = vmul.f32 %v1818, %v1855
    %v1857 = vmul.f32 %v1819, %v1840
    %v1858 = vadd.f32 %v1805, %v1856
    %v1859 = vadd.f32 %v1806, %v1857
    %v1860 = vrot.slane %v1818, 4
    %v1861 = vrot.slane %v1819, 4
    %v1862 = vsel %vm56, %v1860, %v1861
    %v1865 = vsel %vm47, %v1862, %v1850
    %v1866 = vmul.f32 %v1818, %v1865
    %v1867 = vmul.f32 %v1819, %v1850
    %v1868 = vadd.f32 %v1815, %v1866
    %v1869 = vadd.f32 %v1816, %v1867
    %v1870 = vmul.f32 %v1820, 0.1
    %v1871 = vmul.f32 %v1821, 0.1
    %v1872 = vmul.f32 %v1824, 0.1
    %v1873 = vmul.f32 %v1825, 0.1
    %v1874 = vmul.f32 %v1870, %v1870
    %v1875 = vmul.f32 %v1871, %v1871
    %v1876 = vsub.f32 %v1872, %v1874
    %v1877 = vsub.f32 %v1873, %v1875
    %v1878 = vrsqrt.pop %v1876
    %v1879 = vrsqrt.pop %v1877
    %v1880 = vmul.f32 %v1876, %v1878
    %v1881 = vmul.f32 %v1877, %v1879
    %v1882 = vmul.f32 %v1870, %v1878
    %v1883 = vmul.f32 %v1871, %v1879
    %v1884 = vrcp.pop %v1355
    %v1885 = vmul.f32 %v1818, %v1884
    %v1886 = vrcp.pop %v1356
    %v1887 = vmul.f32 %v1819, %v1886
    %v1888 = vsub.f32 %v1885, 1.0
    %v1889 = vsub.f32 %v1887, 1.0
    %v1892 = vrot.slane %v1870, 1
    %v1893 = vrot.slane %v1871, 1
    %v1894 = vsel %vm31, %v1892, %v1893
    %v1898 = vrot.slane %v1878, 1
    %v1899 = vrot.slane %v1879, 1
    %v1900 = vsel %vm31, %v1898, %v1899
    %v1902 = vmul.f32 %v1838, 0.1
    %v1903 = vmul.f32 %v1839, 0.1
    %v1904 = vmul.f32 %v1870, %v1894
    %v1905 = vmul.f32 %v1871, %v1870
    %v1906 = vsub.f32 %v1902, %v1904
    %v1907 = vsub.f32 %v1903, %v1905
    %v1908 = vmul.f32 %v1878, %v1900
    %v1909 = vmul.f32 %v1879, %v1878
    %v1910 = vmul.f32 %v1906, %v1908
    %v1911 = vmul.f32 %v1907, %v1909
    %v1912 = vsel %vm584, %v1911, 0.0
    %s1913 = scalar_lea.vmem [#allocation2], 416
    %1914 = vst [vmem:[%s1913] sm:$0xff] %v1910
    %1915 = vst [vmem:[%s1913 + $0x8] sm:$0xff] %v1912
    %v1916 = vsel %vm584, %v1907, 0.0
    %1917 = vst [vmem:[%s1913 + $0x40] sm:$0xff] %v1906
    %1918 = vst [vmem:[%s1913 + $0x48] sm:$0xff] %v1916
    %v1919 = vrot.slane %v1870, 2
    %v1920 = vrot.slane %v1871, 2
    %v1921 = vsel %vm38, %v1919, %v1920
    %v1924 = vsel %vm31, %v1921, %v1892
    %v1925 = vrot.slane %v1878, 2
    %v1926 = vrot.slane %v1879, 2
    %v1927 = vsel %vm38, %v1925, %v1926
    %v1930 = vsel %vm31, %v1927, %v1898
    %v1931 = vmul.f32 %v1848, 0.1
    %v1932 = vmul.f32 %v1849, 0.1
    %v1933 = vmul.f32 %v1870, %v1924
    %v1934 = vmul.f32 %v1871, %v1892
    %v1935 = vsub.f32 %v1931, %v1933
    %v1936 = vsub.f32 %v1932, %v1934
    %v1937 = vmul.f32 %v1878, %v1930
    %v1938 = vmul.f32 %v1879, %v1898
    %v1939 = vmul.f32 %v1935, %v1937
    %v1940 = vmul.f32 %v1936, %v1938
    %v1941 = vsel %vm584, %v1940, 0.0
    %1942 = vst [vmem:[%s1913 + $0x10] sm:$0xff] %v1939
    %1943 = vst [vmem:[%s1913 + $0x18] sm:$0xff] %v1941
    %v1944 = vsel %vm584, %v1936, 0.0
    %1945 = vst [vmem:[%s1913 + $0x50] sm:$0xff] %v1935
    %1946 = vst [vmem:[%s1913 + $0x58] sm:$0xff] %v1944
    %v1947 = vrot.slane %v1870, 3
    %v1948 = vrot.slane %v1871, 3
    %v1949 = vsel %vm47, %v1947, %v1948
    %v1952 = vsel %vm38, %v1949, %v1919
    %v1953 = vrot.slane %v1878, 3
    %v1954 = vrot.slane %v1879, 3
    %v1955 = vsel %vm47, %v1953, %v1954
    %v1958 = vsel %vm38, %v1955, %v1925
    %v1959 = vmul.f32 %v1858, 0.1
    %v1960 = vmul.f32 %v1859, 0.1
    %v1961 = vmul.f32 %v1870, %v1952
    %v1962 = vmul.f32 %v1871, %v1919
    %v1963 = vsub.f32 %v1959, %v1961
    %v1964 = vsub.f32 %v1960, %v1962
    %v1965 = vmul.f32 %v1878, %v1958
    %v1966 = vmul.f32 %v1879, %v1925
    %v1967 = vmul.f32 %v1963, %v1965
    %v1968 = vmul.f32 %v1964, %v1966
    %v1969 = vsel %vm584, %v1968, 0.0
    %1970 = vst [vmem:[%s1913 + $0x20] sm:$0xff] %v1967
    %1971 = vst [vmem:[%s1913 + $0x28] sm:$0xff] %v1969
    %v1972 = vsel %vm584, %v1964, 0.0
    %1973 = vst [vmem:[%s1913 + $0x60] sm:$0xff] %v1963
    %1974 = vst [vmem:[%s1913 + $0x68] sm:$0xff] %v1972
    %v1975 = vrot.slane %v1870, 4
    %v1976 = vrot.slane %v1871, 4
    %v1977 = vsel %vm56, %v1975, %v1976
    %v1980 = vsel %vm47, %v1977, %v1947
    %v1981 = vrot.slane %v1878, 4
    %v1982 = vrot.slane %v1879, 4
    %v1983 = vsel %vm56, %v1981, %v1982
    %v1986 = vsel %vm47, %v1983, %v1953
    %v1987 = vmul.f32 %v1868, 0.1
    %v1988 = vmul.f32 %v1869, 0.1
    %v1989 = vmul.f32 %v1870, %v1980
    %v1990 = vmul.f32 %v1871, %v1947
    %v1991 = vsub.f32 %v1987, %v1989
    %v1992 = vsub.f32 %v1988, %v1990
    %v1993 = vmul.f32 %v1878, %v1986
    %v1994 = vmul.f32 %v1879, %v1953
    %v1995 = vmul.f32 %v1991, %v1993
    %v1996 = vmul.f32 %v1992, %v1994
    %v1997 = vsel %vm584, %v1996, 0.0
    %1998 = vst [vmem:[%s1913 + $0x30] sm:$0xff] %v1995
    %1999 = vst [vmem:[%s1913 + $0x38] sm:$0xff] %v1997
    %v2000 = vsel %vm584, %v1992, 0.0
    %2001 = vst [vmem:[%s1913 + $0x70] sm:$0xff] %v1991
    %2002 = vst [vmem:[%s1913 + $0x78] sm:$0xff] %v2000
    %v2003 = vsel %vm584, %v1881, 0.0
    %2004 = vst [vmem:[%s1913 + $0x80] sm:$0xff] %v1880
    %2005 = vst [vmem:[%s1913 + $0x88] sm:$0xff] %v2003
    %v2006 = vsel %vm584, %v1883, 0.0
    %2007 = vst [vmem:[%s1913 + $0x90] sm:$0xff] %v1882
    %2008 = vst [vmem:[%s1913 + $0x98] sm:$0xff] %v2006
    %v2009 = vsel %vm584, %v1889, 0.0
    %2010 = vst [vmem:[%s1913 + $0xa0] sm:$0xff] %v1888
    %2011 = vst [vmem:[%s1913 + $0xa8] sm:$0xff] %v2009
    %v2012 = vsel %vm584, %v1829, 0.0
    %2013 = vst [vmem:[%s1913 + $0xb0] sm:$0xff] %v1828
    %2014 = vst [vmem:[%s1913 + $0xb8] sm:$0xff] %v2012
    %v2015 = vsel %vm584, %v1871, 0.0
    %2016 = vst [vmem:[%s1913 + $0xc0] sm:$0xff] %v1870
    %2017 = vst [vmem:[%s1913 + $0xc8] sm:$0xff] %v2015
    %v2018 = vld [vmem:[#allocation2] sm:$0xff]
    %v2019 = vld [vmem:[#allocation2 + $0x8] sm:$0xff]
    %v2020 = vld [vmem:[%s1249] sm:$0xff]
    %v2021 = vld [vmem:[%s1249 + $0x8] sm:$0xff]
    %v2022 = vld [vmem:[%s1913] sm:$0xff]
    %v2023 = vld [vmem:[%s1913 + $0x8] sm:$0xff]
    %v2024 = vadd.f32 %v2018, %v2020
    %v2025 = vadd.f32 %v2019, %v2021
    %v2026 = vadd.f32 %v2024, %v2022
    %v2027 = vadd.f32 %v2025, %v2023
    %s2028 = scalar_lea.vmem [#allocation2], 624
    %2029 = vst [vmem:[%s2028] sm:$0xff] %v2026
    %2030 = vst [vmem:[%s2028 + $0x8] sm:$0xff] %v2027
    %v2031 = vmax.f32 %v2018, %v2020
    %v2032 = vmax.f32 %v2019, %v2021
    %v2033 = vmax.f32 %v2031, %v2022
    %v2034 = vmax.f32 %v2032, %v2023
    %s2035 = scalar_lea.vmem [#allocation2], 832
    %2036 = vst [vmem:[%s2035] sm:$0xff] %v2033
    %2037 = vst [vmem:[%s2035 + $0x8] sm:$0xff] %v2034
    %v2038 = vmin.f32 %v2018, %v2020
    %v2039 = vmin.f32 %v2019, %v2021
    %v2040 = vmin.f32 %v2038, %v2022
    %v2041 = vmin.f32 %v2039, %v2023
    %s2042 = scalar_lea.vmem [#allocation2], 1040
    %2043 = vst [vmem:[%s2042] sm:$0xff] %v2040
    %2044 = vst [vmem:[%s2042 + $0x8] sm:$0xff] %v2041
    %v2045 = vld [vmem:[#allocation2 + $0x10] sm:$0xff]
    %v2046 = vld [vmem:[#allocation2 + $0x18] sm:$0xff]
    %v2047 = vld [vmem:[%s1249 + $0x10] sm:$0xff]
    %v2048 = vld [vmem:[%s1249 + $0x18] sm:$0xff]
    %v2049 = vld [vmem:[%s1913 + $0x10] sm:$0xff]
    %v2050 = vld [vmem:[%s1913 + $0x18] sm:$0xff]
    %v2051 = vadd.f32 %v2045, %v2047
    %v2052 = vadd.f32 %v2046, %v2048
    %v2053 = vadd.f32 %v2051, %v2049
    %v2054 = vadd.f32 %v2052, %v2050
    %2055 = vst [vmem:[%s2028 + $0x10] sm:$0xff] %v2053
    %2056 = vst [vmem:[%s2028 + $0x18] sm:$0xff] %v2054
    %v2057 = vmax.f32 %v2045, %v2047
    %v2058 = vmax.f32 %v2046, %v2048
    %v2059 = vmax.f32 %v2057, %v2049
    %v2060 = vmax.f32 %v2058, %v2050
    %2061 = vst [vmem:[%s2035 + $0x10] sm:$0xff] %v2059
    %2062 = vst [vmem:[%s2035 + $0x18] sm:$0xff] %v2060
    %v2063 = vmin.f32 %v2045, %v2047
    %v2064 = vmin.f32 %v2046, %v2048
    %v2065 = vmin.f32 %v2063, %v2049
    %v2066 = vmin.f32 %v2064, %v2050
    %2067 = vst [vmem:[%s2042 + $0x10] sm:$0xff] %v2065
    %2068 = vst [vmem:[%s2042 + $0x18] sm:$0xff] %v2066
    %v2069 = vld [vmem:[#allocation2 + $0x20] sm:$0xff]
    %v2070 = vld [vmem:[#allocation2 + $0x28] sm:$0xff]
    %v2071 = vld [vmem:[%s1249 + $0x20] sm:$0xff]
    %v2072 = vld [vmem:[%s1249 + $0x28] sm:$0xff]
    %v2073 = vld [vmem:[%s1913 + $0x20] sm:$0xff]
    %v2074 = vld [vmem:[%s1913 + $0x28] sm:$0xff]
    %v2075 = vadd.f32 %v2069, %v2071
    %v2076 = vadd.f32 %v2070, %v2072
    %v2077 = vadd.f32 %v2075, %v2073
    %v2078 = vadd.f32 %v2076, %v2074
    %2079 = vst [vmem:[%s2028 + $0x20] sm:$0xff] %v2077
    %2080 = vst [vmem:[%s2028 + $0x28] sm:$0xff] %v2078
    %v2081 = vmax.f32 %v2069, %v2071
    %v2082 = vmax.f32 %v2070, %v2072
    %v2083 = vmax.f32 %v2081, %v2073
    %v2084 = vmax.f32 %v2082, %v2074
    %2085 = vst [vmem:[%s2035 + $0x20] sm:$0xff] %v2083
    %2086 = vst [vmem:[%s2035 + $0x28] sm:$0xff] %v2084
    %v2087 = vmin.f32 %v2069, %v2071
    %v2088 = vmin.f32 %v2070, %v2072
    %v2089 = vmin.f32 %v2087, %v2073
    %v2090 = vmin.f32 %v2088, %v2074
    %2091 = vst [vmem:[%s2042 + $0x20] sm:$0xff] %v2089
    %2092 = vst [vmem:[%s2042 + $0x28] sm:$0xff] %v2090
    %v2093 = vld [vmem:[#allocation2 + $0x30] sm:$0xff]
    %v2094 = vld [vmem:[#allocation2 + $0x38] sm:$0xff]
    %v2095 = vld [vmem:[%s1249 + $0x30] sm:$0xff]
    %v2096 = vld [vmem:[%s1249 + $0x38] sm:$0xff]
    %v2097 = vld [vmem:[%s1913 + $0x30] sm:$0xff]
    %v2098 = vld [vmem:[%s1913 + $0x38] sm:$0xff]
    %v2099 = vadd.f32 %v2093, %v2095
    %v2100 = vadd.f32 %v2094, %v2096
    %v2101 = vadd.f32 %v2099, %v2097
    %v2102 = vadd.f32 %v2100, %v2098
    %2103 = vst [vmem:[%s2028 + $0x30] sm:$0xff] %v2101
    %2104 = vst [vmem:[%s2028 + $0x38] sm:$0xff] %v2102
    %v2105 = vmax.f32 %v2093, %v2095
    %v2106 = vmax.f32 %v2094, %v2096
    %v2107 = vmax.f32 %v2105, %v2097
    %v2108 = vmax.f32 %v2106, %v2098
    %2109 = vst [vmem:[%s2035 + $0x30] sm:$0xff] %v2107
    %2110 = vst [vmem:[%s2035 + $0x38] sm:$0xff] %v2108
    %v2111 = vmin.f32 %v2093, %v2095
    %v2112 = vmin.f32 %v2094, %v2096
    %v2113 = vmin.f32 %v2111, %v2097
    %v2114 = vmin.f32 %v2112, %v2098
    %2115 = vst [vmem:[%s2042 + $0x30] sm:$0xff] %v2113
    %2116 = vst [vmem:[%s2042 + $0x38] sm:$0xff] %v2114
    %v2117 = vld [vmem:[#allocation2 + $0x40] sm:$0xff]
    %v2118 = vld [vmem:[#allocation2 + $0x48] sm:$0xff]
    %v2119 = vld [vmem:[%s1249 + $0x40] sm:$0xff]
    %v2120 = vld [vmem:[%s1249 + $0x48] sm:$0xff]
    %v2121 = vld [vmem:[%s1913 + $0x40] sm:$0xff]
    %v2122 = vld [vmem:[%s1913 + $0x48] sm:$0xff]
    %v2123 = vadd.f32 %v2117, %v2119
    %v2124 = vadd.f32 %v2118, %v2120
    %v2125 = vadd.f32 %v2123, %v2121
    %v2126 = vadd.f32 %v2124, %v2122
    %2127 = vst [vmem:[%s2028 + $0x40] sm:$0xff] %v2125
    %2128 = vst [vmem:[%s2028 + $0x48] sm:$0xff] %v2126
    %v2129 = vmax.f32 %v2117, %v2119
    %v2130 = vmax.f32 %v2118, %v2120
    %v2131 = vmax.f32 %v2129, %v2121
    %v2132 = vmax.f32 %v2130, %v2122
    %2133 = vst [vmem:[%s2035 + $0x40] sm:$0xff] %v2131
    %2134 = vst [vmem:[%s2035 + $0x48] sm:$0xff] %v2132
    %v2135 = vmin.f32 %v2117, %v2119
    %v2136 = vmin.f32 %v2118, %v2120
    %v2137 = vmin.f32 %v2135, %v2121
    %v2138 = vmin.f32 %v2136, %v2122
    %2139 = vst [vmem:[%s2042 + $0x40] sm:$0xff] %v2137
    %2140 = vst [vmem:[%s2042 + $0x48] sm:$0xff] %v2138
    %v2141 = vld [vmem:[#allocation2 + $0x50] sm:$0xff]
    %v2142 = vld [vmem:[#allocation2 + $0x58] sm:$0xff]
    %v2143 = vld [vmem:[%s1249 + $0x50] sm:$0xff]
    %v2144 = vld [vmem:[%s1249 + $0x58] sm:$0xff]
    %v2145 = vld [vmem:[%s1913 + $0x50] sm:$0xff]
    %v2146 = vld [vmem:[%s1913 + $0x58] sm:$0xff]
    %v2147 = vadd.f32 %v2141, %v2143
    %v2148 = vadd.f32 %v2142, %v2144
    %v2149 = vadd.f32 %v2147, %v2145
    %v2150 = vadd.f32 %v2148, %v2146
    %2151 = vst [vmem:[%s2028 + $0x50] sm:$0xff] %v2149
    %2152 = vst [vmem:[%s2028 + $0x58] sm:$0xff] %v2150
    %v2153 = vmax.f32 %v2141, %v2143
    %v2154 = vmax.f32 %v2142, %v2144
    %v2155 = vmax.f32 %v2153, %v2145
    %v2156 = vmax.f32 %v2154, %v2146
    %2157 = vst [vmem:[%s2035 + $0x50] sm:$0xff] %v2155
    %2158 = vst [vmem:[%s2035 + $0x58] sm:$0xff] %v2156
    %v2159 = vmin.f32 %v2141, %v2143
    %v2160 = vmin.f32 %v2142, %v2144
    %v2161 = vmin.f32 %v2159, %v2145
    %v2162 = vmin.f32 %v2160, %v2146
    %2163 = vst [vmem:[%s2042 + $0x50] sm:$0xff] %v2161
    %2164 = vst [vmem:[%s2042 + $0x58] sm:$0xff] %v2162
    %v2165 = vld [vmem:[#allocation2 + $0x60] sm:$0xff]
    %v2166 = vld [vmem:[#allocation2 + $0x68] sm:$0xff]
    %v2167 = vld [vmem:[%s1249 + $0x60] sm:$0xff]
    %v2168 = vld [vmem:[%s1249 + $0x68] sm:$0xff]
    %v2169 = vld [vmem:[%s1913 + $0x60] sm:$0xff]
    %v2170 = vld [vmem:[%s1913 + $0x68] sm:$0xff]
    %v2171 = vadd.f32 %v2165, %v2167
    %v2172 = vadd.f32 %v2166, %v2168
    %v2173 = vadd.f32 %v2171, %v2169
    %v2174 = vadd.f32 %v2172, %v2170
    %2175 = vst [vmem:[%s2028 + $0x60] sm:$0xff] %v2173
    %2176 = vst [vmem:[%s2028 + $0x68] sm:$0xff] %v2174
    %v2177 = vmax.f32 %v2165, %v2167
    %v2178 = vmax.f32 %v2166, %v2168
    %v2179 = vmax.f32 %v2177, %v2169
    %v2180 = vmax.f32 %v2178, %v2170
    %2181 = vst [vmem:[%s2035 + $0x60] sm:$0xff] %v2179
    %2182 = vst [vmem:[%s2035 + $0x68] sm:$0xff] %v2180
    %v2183 = vmin.f32 %v2165, %v2167
    %v2184 = vmin.f32 %v2166, %v2168
    %v2185 = vmin.f32 %v2183, %v2169
    %v2186 = vmin.f32 %v2184, %v2170
    %2187 = vst [vmem:[%s2042 + $0x60] sm:$0xff] %v2185
    %2188 = vst [vmem:[%s2042 + $0x68] sm:$0xff] %v2186
    %v2189 = vld [vmem:[#allocation2 + $0x70] sm:$0xff]
    %v2190 = vld [vmem:[#allocation2 + $0x78] sm:$0xff]
    %v2191 = vld [vmem:[%s1249 + $0x70] sm:$0xff]
    %v2192 = vld [vmem:[%s1249 + $0x78] sm:$0xff]
    %v2193 = vld [vmem:[%s1913 + $0x70] sm:$0xff]
    %v2194 = vld [vmem:[%s1913 + $0x78] sm:$0xff]
    %v2195 = vadd.f32 %v2189, %v2191
    %v2196 = vadd.f32 %v2190, %v2192
    %v2197 = vadd.f32 %v2195, %v2193
    %v2198 = vadd.f32 %v2196, %v2194
    %2199 = vst [vmem:[%s2028 + $0x70] sm:$0xff] %v2197
    %2200 = vst [vmem:[%s2028 + $0x78] sm:$0xff] %v2198
    %v2201 = vmax.f32 %v2189, %v2191
    %v2202 = vmax.f32 %v2190, %v2192
    %v2203 = vmax.f32 %v2201, %v2193
    %v2204 = vmax.f32 %v2202, %v2194
    %2205 = vst [vmem:[%s2035 + $0x70] sm:$0xff] %v2203
    %2206 = vst [vmem:[%s2035 + $0x78] sm:$0xff] %v2204
    %v2207 = vmin.f32 %v2189, %v2191
    %v2208 = vmin.f32 %v2190, %v2192
    %v2209 = vmin.f32 %v2207, %v2193
    %v2210 = vmin.f32 %v2208, %v2194
    %2211 = vst [vmem:[%s2042 + $0x70] sm:$0xff] %v2209
    %2212 = vst [vmem:[%s2042 + $0x78] sm:$0xff] %v2210
    %v2213 = vld [vmem:[#allocation2 + $0x80] sm:$0xff]
    %v2214 = vld [vmem:[#allocation2 + $0x88] sm:$0xff]
    %v2215 = vld [vmem:[%s1249 + $0x80] sm:$0xff]
    %v2216 = vld [vmem:[%s1249 + $0x88] sm:$0xff]
    %v2217 = vld [vmem:[%s1913 + $0x80] sm:$0xff]
    %v2218 = vld [vmem:[%s1913 + $0x88] sm:$0xff]
    %v2219 = vadd.f32 %v2213, %v2215
    %v2220 = vadd.f32 %v2214, %v2216
    %v2221 = vadd.f32 %v2219, %v2217
    %v2222 = vadd.f32 %v2220, %v2218
    %2223 = vst [vmem:[%s2028 + $0x80] sm:$0xff] %v2221
    %2224 = vst [vmem:[%s2028 + $0x88] sm:$0xff] %v2222
    %v2225 = vmax.f32 %v2213, %v2215
    %v2226 = vmax.f32 %v2214, %v2216
    %v2227 = vmax.f32 %v2225, %v2217
    %v2228 = vmax.f32 %v2226, %v2218
    %2229 = vst [vmem:[%s2035 + $0x80] sm:$0xff] %v2227
    %2230 = vst [vmem:[%s2035 + $0x88] sm:$0xff] %v2228
    %v2231 = vmin.f32 %v2213, %v2215
    %v2232 = vmin.f32 %v2214, %v2216
    %v2233 = vmin.f32 %v2231, %v2217
    %v2234 = vmin.f32 %v2232, %v2218
    %2235 = vst [vmem:[%s2042 + $0x80] sm:$0xff] %v2233
    %2236 = vst [vmem:[%s2042 + $0x88] sm:$0xff] %v2234
    %v2237 = vld [vmem:[#allocation2 + $0x90] sm:$0xff]
    %v2238 = vld [vmem:[#allocation2 + $0x98] sm:$0xff]
    %v2239 = vld [vmem:[%s1249 + $0x90] sm:$0xff]
    %v2240 = vld [vmem:[%s1249 + $0x98] sm:$0xff]
    %v2241 = vld [vmem:[%s1913 + $0x90] sm:$0xff]
    %v2242 = vld [vmem:[%s1913 + $0x98] sm:$0xff]
    %v2243 = vadd.f32 %v2237, %v2239
    %v2244 = vadd.f32 %v2238, %v2240
    %v2245 = vadd.f32 %v2243, %v2241
    %v2246 = vadd.f32 %v2244, %v2242
    %2247 = vst [vmem:[%s2028 + $0x90] sm:$0xff] %v2245
    %2248 = vst [vmem:[%s2028 + $0x98] sm:$0xff] %v2246
    %v2249 = vmax.f32 %v2237, %v2239
    %v2250 = vmax.f32 %v2238, %v2240
    %v2251 = vmax.f32 %v2249, %v2241
    %v2252 = vmax.f32 %v2250, %v2242
    %2253 = vst [vmem:[%s2035 + $0x90] sm:$0xff] %v2251
    %2254 = vst [vmem:[%s2035 + $0x98] sm:$0xff] %v2252
    %v2255 = vmin.f32 %v2237, %v2239
    %v2256 = vmin.f32 %v2238, %v2240
    %v2257 = vmin.f32 %v2255, %v2241
    %v2258 = vmin.f32 %v2256, %v2242
    %2259 = vst [vmem:[%s2042 + $0x90] sm:$0xff] %v2257
    %2260 = vst [vmem:[%s2042 + $0x98] sm:$0xff] %v2258
    %v2261 = vld [vmem:[#allocation2 + $0xa0] sm:$0xff]
    %v2262 = vld [vmem:[#allocation2 + $0xa8] sm:$0xff]
    %v2263 = vld [vmem:[%s1249 + $0xa0] sm:$0xff]
    %v2264 = vld [vmem:[%s1249 + $0xa8] sm:$0xff]
    %v2265 = vld [vmem:[%s1913 + $0xa0] sm:$0xff]
    %v2266 = vld [vmem:[%s1913 + $0xa8] sm:$0xff]
    %v2267 = vadd.f32 %v2261, %v2263
    %v2268 = vadd.f32 %v2262, %v2264
    %v2269 = vadd.f32 %v2267, %v2265
    %v2270 = vadd.f32 %v2268, %v2266
    %2271 = vst [vmem:[%s2028 + $0xa0] sm:$0xff] %v2269
    %2272 = vst [vmem:[%s2028 + $0xa8] sm:$0xff] %v2270
    %v2273 = vmax.f32 %v2261, %v2263
    %v2274 = vmax.f32 %v2262, %v2264
    %v2275 = vmax.f32 %v2273, %v2265
    %v2276 = vmax.f32 %v2274, %v2266
    %2277 = vst [vmem:[%s2035 + $0xa0] sm:$0xff] %v2275
    %2278 = vst [vmem:[%s2035 + $0xa8] sm:$0xff] %v2276
    %v2279 = vmin.f32 %v2261, %v2263
    %v2280 = vmin.f32 %v2262, %v2264
    %v2281 = vmin.f32 %v2279, %v2265
    %v2282 = vmin.f32 %v2280, %v2266
    %2283 = vst [vmem:[%s2042 + $0xa0] sm:$0xff] %v2281
    %2284 = vst [vmem:[%s2042 + $0xa8] sm:$0xff] %v2282
    %v2285 = vld [vmem:[#allocation2 + $0xb0] sm:$0xff]
    %v2286 = vld [vmem:[#allocation2 + $0xb8] sm:$0xff]
    %v2287 = vld [vmem:[%s1249 + $0xb0] sm:$0xff]
    %v2288 = vld [vmem:[%s1249 + $0xb8] sm:$0xff]
    %v2289 = vld [vmem:[%s1913 + $0xb0] sm:$0xff]
    %v2290 = vld [vmem:[%s1913 + $0xb8] sm:$0xff]
    %v2291 = vadd.f32 %v2285, %v2287
    %v2292 = vadd.f32 %v2286, %v2288
    %v2293 = vadd.f32 %v2291, %v2289
    %v2294 = vadd.f32 %v2292, %v2290
    %2295 = vst [vmem:[%s2028 + $0xb0] sm:$0xff] %v2293
    %2296 = vst [vmem:[%s2028 + $0xb8] sm:$0xff] %v2294
    %v2297 = vmax.f32 %v2285, %v2287
    %v2298 = vmax.f32 %v2286, %v2288
    %v2299 = vmax.f32 %v2297, %v2289
    %v2300 = vmax.f32 %v2298, %v2290
    %2301 = vst [vmem:[%s2035 + $0xb0] sm:$0xff] %v2299
    %2302 = vst [vmem:[%s2035 + $0xb8] sm:$0xff] %v2300
    %v2303 = vmin.f32 %v2285, %v2287
    %v2304 = vmin.f32 %v2286, %v2288
    %v2305 = vmin.f32 %v2303, %v2289
    %v2306 = vmin.f32 %v2304, %v2290
    %2307 = vst [vmem:[%s2042 + $0xb0] sm:$0xff] %v2305
    %2308 = vst [vmem:[%s2042 + $0xb8] sm:$0xff] %v2306
    %v2309 = vld [vmem:[#allocation2 + $0xc0] sm:$0xff]
    %v2310 = vld [vmem:[#allocation2 + $0xc8] sm:$0xff]
    %v2311 = vld [vmem:[%s1249 + $0xc0] sm:$0xff]
    %v2312 = vld [vmem:[%s1249 + $0xc8] sm:$0xff]
    %v2313 = vld [vmem:[%s1913 + $0xc0] sm:$0xff]
    %v2314 = vld [vmem:[%s1913 + $0xc8] sm:$0xff]
    %v2315 = vadd.f32 %v2309, %v2311
    %v2316 = vadd.f32 %v2310, %v2312
    %v2317 = vadd.f32 %v2315, %v2313
    %v2318 = vadd.f32 %v2316, %v2314
    %2319 = vst [vmem:[%s2028 + $0xc0] sm:$0xff] %v2317
    %2320 = vst [vmem:[%s2028 + $0xc8] sm:$0xff] %v2318
    %v2321 = vmax.f32 %v2309, %v2311
    %v2322 = vmax.f32 %v2310, %v2312
    %v2323 = vmax.f32 %v2321, %v2313
    %v2324 = vmax.f32 %v2322, %v2314
    %2325 = vst [vmem:[%s2035 + $0xc0] sm:$0xff] %v2323
    %2326 = vst [vmem:[%s2035 + $0xc8] sm:$0xff] %v2324
    %v2327 = vmin.f32 %v2309, %v2311
    %v2328 = vmin.f32 %v2310, %v2312
    %v2329 = vmin.f32 %v2327, %v2313
    %v2330 = vmin.f32 %v2328, %v2314
    %2331 = vst [vmem:[%s2042 + $0xc0] sm:$0xff] %v2329
    %2332 = vst [vmem:[%s2042 + $0xc8] sm:$0xff] %v2330
    %v2333 = vld [vmem:[%s1] sm:$0xff]
    %v2334 = vld [vmem:[%s1 + $0x8] sm:$0xff]
    %v2335 = vld [vmem:[%s1 + $0x10] sm:$0xff]
    %v2336 = vld [vmem:[%s1 + $0x18] sm:$0xff]
    %v2337 = vld [vmem:[%s1 + $0x20] sm:$0xff]
    %v2338 = vld [vmem:[%s1 + $0x28] sm:$0xff]
    %v2339 = vld [vmem:[%s1 + $0x30] sm:$0x3f]
    %v2340 = vld [vmem:[%s1 + $0x38] sm:$0x3f]
    %v2341 = vld [vmem:[#allocation2] sm:$0xff]
    %v2342 = vld [vmem:[#allocation2 + $0x8] sm:$0xff]
    %v2343 = vld [vmem:[#allocation2 + $0x10] sm:$0xff]
    %v2344 = vld [vmem:[#allocation2 + $0x18] sm:$0xff]
    %v2345 = vld [vmem:[#allocation2 + $0x20] sm:$0xff]
    %v2346 = vld [vmem:[#allocation2 + $0x28] sm:$0xff]
    %v2347 = vld [vmem:[#allocation2 + $0x30] sm:$0xff]
    %v2348 = vld [vmem:[#allocation2 + $0x38] sm:$0xff]
    %v2349 = vld [vmem:[#allocation2 + $0x40] sm:$0xff]
    %v2350 = vld [vmem:[#allocation2 + $0x48] sm:$0xff]
    %v2351 = vld [vmem:[#allocation2 + $0x50] sm:$0xff]
    %v2352 = vld [vmem:[#allocation2 + $0x58] sm:$0xff]
    %v2353 = vld [vmem:[#allocation2 + $0x60] sm:$0xff]
    %v2354 = vld [vmem:[#allocation2 + $0x68] sm:$0xff]
    %v2355 = vld [vmem:[#allocation2 + $0x70] sm:$0xff]
    %v2356 = vld [vmem:[#allocation2 + $0x78] sm:$0xff]
    %v2357 = vld [vmem:[#allocation2 + $0x80] sm:$0xff]
    %v2358 = vld [vmem:[#allocation2 + $0x88] sm:$0xff]
    %v2359 = vld [vmem:[#allocation2 + $0x90] sm:$0xff]
    %v2360 = vld [vmem:[#allocation2 + $0x98] sm:$0xff]
    %v2361 = vld [vmem:[#allocation2 + $0xa0] sm:$0xff]
    %v2362 = vld [vmem:[#allocation2 + $0xa8] sm:$0xff]
    %v2363 = vld [vmem:[#allocation2 + $0xb0] sm:$0xff]
    %v2364 = vld [vmem:[#allocation2 + $0xb8] sm:$0xff]
    %v2365 = vld [vmem:[#allocation2 + $0xc0] sm:$0xff]
    %v2366 = vld [vmem:[#allocation2 + $0xc8] sm:$0xff]
    %s2367 = scalar_lea.vmem %s1, 64
    %v2368 = vld [vmem:[%s2367] sm:$0xff]
    %v2369 = vld [vmem:[%s2367 + $0x8] sm:$0xff]
    %v2370 = vld [vmem:[%s2367 + $0x10] sm:$0xff]
    %v2371 = vld [vmem:[%s2367 + $0x18] sm:$0xff]
    %v2372 = vld [vmem:[%s2367 + $0x20] sm:$0xff]
    %v2373 = vld [vmem:[%s2367 + $0x28] sm:$0xff]
    %v2374 = vld [vmem:[%s2367 + $0x30] sm:$0x3f]
    %v2375 = vld [vmem:[%s2367 + $0x38] sm:$0x3f]
    %v2376 = vld [vmem:[%s1249] sm:$0xff]
    %v2377 = vld [vmem:[%s1249 + $0x8] sm:$0xff]
    %v2378 = vld [vmem:[%s1249 + $0x10] sm:$0xff]
    %v2379 = vld [vmem:[%s1249 + $0x18] sm:$0xff]
    %v2380 = vld [vmem:[%s1249 + $0x20] sm:$0xff]
    %v2381 = vld [vmem:[%s1249 + $0x28] sm:$0xff]
    %v2382 = vld [vmem:[%s1249 + $0x30] sm:$0xff]
    %v2383 = vld [vmem:[%s1249 + $0x38] sm:$0xff]
    %v2384 = vld [vmem:[%s1249 + $0x40] sm:$0xff]
    %v2385 = vld [vmem:[%s1249 + $0x48] sm:$0xff]
    %v2386 = vld [vmem:[%s1249 + $0x50] sm:$0xff]
    %v2387 = vld [vmem:[%s1249 + $0x58] sm:$0xff]
    %v2388 = vld [vmem:[%s1249 + $0x60] sm:$0xff]
    %v2389 = vld [vmem:[%s1249 + $0x68] sm:$0xff]
    %v2390 = vld [vmem:[%s1249 + $0x70] sm:$0xff]
    %v2391 = vld [vmem:[%s1249 + $0x78] sm:$0xff]
    %v2392 = vld [vmem:[%s1249 + $0x80] sm:$0xff]
    %v2393 = vld [vmem:[%s1249 + $0x88] sm:$0xff]
    %v2394 = vld [vmem:[%s1249 + $0x90] sm:$0xff]
    %v2395 = vld [vmem:[%s1249 + $0x98] sm:$0xff]
    %v2396 = vld [vmem:[%s1249 + $0xa0] sm:$0xff]
    %v2397 = vld [vmem:[%s1249 + $0xa8] sm:$0xff]
    %v2398 = vld [vmem:[%s1249 + $0xb0] sm:$0xff]
    %v2399 = vld [vmem:[%s1249 + $0xb8] sm:$0xff]
    %v2400 = vld [vmem:[%s1249 + $0xc0] sm:$0xff]
    %v2401 = vld [vmem:[%s1249 + $0xc8] sm:$0xff]
    %vm2402 = vcmask 654336
    %v2404 = vsel %vm2402, %v2369, 0
    %v2407 = vsel %vm2402, %v2371, 0
    %v2410 = vsel %vm2402, %v2373, 0
    %v2413 = vsel %vm2402, %v2375, 0
    %2415 = vmatprep.subr.mxu0 0.0
    %2416 = vmatpush1.msra.mxu0 %v2376
    %2417 = vmatprep.subr.mxu0 0.0
    %2418 = vmatpush1.msra.mxu0 %v2377
    %2419 = vmatprep.subr.mxu0 0.0
    %2420 = vmatpush1.msra.mxu0 %v2378
    %2421 = vmatprep.subr.mxu0 0.0
    %2422 = vmatpush1.msra.mxu0 %v2379
    %2423 = vmatprep.subr.mxu0 0.0
    %2424 = vmatpush1.msra.mxu0 %v2380
    %2425 = vmatprep.subr.mxu0 0.0
    %2426 = vmatpush1.msra.mxu0 %v2381
    %2427 = vmatprep.subr.mxu0 0.0
    %2428 = vmatpush1.msra.mxu0 %v2382
    %2429 = vmatprep.subr.mxu0 0.0
    %2430 = vmatpush1.msra.mxu0 %v2383
    %2431 = vmatprep.subr.mxu0 0.0
    %2432 = vmatpush1.msra.mxu0 %v2384
    %2433 = vmatprep.subr.mxu0 0.0
    %2434 = vmatpush1.msra.mxu0 %v2385
    %2435 = vmatprep.subr.mxu0 0.0
    %2436 = vmatpush1.msra.mxu0 %v2386
    %2437 = vmatprep.subr.mxu0 0.0
    %2438 = vmatpush1.msra.mxu0 %v2387
    %2439 = vmatprep.subr.mxu0 0.0
    %2440 = vmatpush1.msra.mxu0 %v2388
    %2441 = vmatprep.subr.mxu0 0.0
    %2442 = vmatpush1.msra.mxu0 %v2389
    %2443 = vmatprep.subr.mxu0 0.0
    %2444 = vmatpush1.msra.mxu0 %v2390
    %2445 = vmatprep.subr.mxu0 0.0
    %2446 = vmatpush1.msra.mxu0 %v2391
    %2447 = vmatprep.subr.mxu0 0.0
    %2448 = vmatpush1.msra.mxu0 %v2392
    %2449 = vmatprep.subr.mxu0 0.0
    %2450 = vmatpush1.msra.mxu0 %v2393
    %2451 = vmatprep.subr.mxu0 0.0
    %2452 = vmatpush1.msra.mxu0 %v2394
    %2453 = vmatprep.subr.mxu0 0.0
    %2454 = vmatpush1.msra.mxu0 %v2395
    %2455 = vmatprep.subr.mxu0 0.0
    %2456 = vmatpush1.msra.mxu0 %v2396
    %2457 = vmatprep.subr.mxu0 0.0
    %2458 = vmatpush1.msra.mxu0 %v2397
    %2459 = vmatprep.subr.mxu0 0.0
    %2460 = vmatpush1.msra.mxu0 %v2398
    %2461 = vmatprep.subr.mxu0 0.0
    %2462 = vmatpush1.msra.mxu0 %v2399
    %2463 = vmatprep.subr.mxu0 0.0
    %2464 = vmatpush1.msra.mxu0 %v2400
    %2465 = vmatprep.subr.mxu0 0.0
    %2466 = vmatpush1.msra.mxu0 %v2401
    %2467 = vmatprep.subr.mxu0 0.0
    %2468 = vmatpush1.msra.mxu0 0.0
    %2469 = vmatprep.subr.mxu0 0.0
    %2470 = vmatpush1.msra.mxu0 0.0
    %2471 = vmatprep.subr.mxu0 0.0
    %2472 = vmatpush1.msra.mxu0 0.0
    %2473 = vmatprep.subr.mxu0 0.0
    %2474 = vmatpush1.msra.mxu0 0.0
    %2475 = vmatprep.subr.mxu0 0.0
    %2476 = vmatpush1.msra.mxu0 0.0
    %2477 = vmatprep.subr.mxu0 0.0
    %2478 = vmatpush1.msra.mxu0 0.0
    %2479 = vmatprep.mubr.f32.mxu0 %v2404
    %2480 = vmatmul.mubr.f32.gmra.mrb[0].mxu0 %v2368
    %v2481 = vpop.f32.mrb[0].mxu0
    %v2482 = vadd.f32 0.0, %v2481
    %v2483 = vpop.f32.mrb[0].mxu0
    %2484 = vmatprep.mubr.f32.mxu0 %v2407
    %2485 = vmatmul.mubr.f32.gmra.mrb[0].mxu0 %v2370
    %v2486 = vpop.f32.mrb[0].mxu0
    %v2487 = vadd.f32 0.0, %v2486
    %v2488 = vpop.f32.mrb[0].mxu0
    %2489 = vmatprep.mubr.f32.mxu0 %v2410
    %2490 = vmatmul.mubr.f32.gmra.mrb[0].mxu0 %v2372
    %v2491 = vpop.f32.mrb[0].mxu0
    %v2492 = vadd.f32 0.0, %v2491
    %v2493 = vpop.f32.mrb[0].mxu0
    %2494 = vmatprep.mubr.f32.mxu0 %v2413
    %2495 = vmatmul.mubr.f32.gmra.mrb[0].mxu0 %v2374
    %v2496 = vpop.f32.mrb[0].mxu0
    %v2497 = vadd.f32 0.0, %v2496
    %v2498 = vpop.f32.mrb[0].mxu0
    %2499 = vdwg.mxu0
    %v2501 = vsel %vm2402, %v2334, 0
    %v2504 = vsel %vm2402, %v2336, 0
    %v2507 = vsel %vm2402, %v2338, 0
    %v2510 = vsel %vm2402, %v2340, 0
    %2512 = vmatprep.subr.mxu0 0.0
    %2513 = vmatpush1.msra.mxu0 %v2341
    %2514 = vmatprep.subr.mxu0 0.0
    %2515 = vmatpush1.msra.mxu0 %v2342
    %2516 = vmatprep.subr.mxu0 0.0
    %2517 = vmatpush1.msra.mxu0 %v2343
    %2518 = vmatprep.subr.mxu0 0.0
    %2519 = vmatpush1.msra.mxu0 %v2344
    %2520 = vmatprep.subr.mxu0 0.0
    %2521 = vmatpush1.msra.mxu0 %v2345
    %2522 = vmatprep.subr.mxu0 0.0
    %2523 = vmatpush1.msra.mxu0 %v2346
    %2524 = vmatprep.subr.mxu0 0.0
    %2525 = vmatpush1.msra.mxu0 %v2347
    %2526 = vmatprep.subr.mxu0 0.0
    %2527 = vmatpush1.msra.mxu0 %v2348
    %2528 = vmatprep.subr.mxu0 0.0
    %2529 = vmatpush1.msra.mxu0 %v2349
    %2530 = vmatprep.subr.mxu0 0.0
    %2531 = vmatpush1.msra.mxu0 %v2350
    %2532 = vmatprep.subr.mxu0 0.0
    %2533 = vmatpush1.msra.mxu0 %v2351
    %2534 = vmatprep.subr.mxu0 0.0
    %2535 = vmatpush1.msra.mxu0 %v2352
    %2536 = vmatprep.subr.mxu0 0.0
    %2537 = vmatpush1.msra.mxu0 %v2353
    %2538 = vmatprep.subr.mxu0 0.0
    %2539 = vmatpush1.msra.mxu0 %v2354
    %2540 = vmatprep.subr.mxu0 0.0
    %2541 = vmatpush1.msra.mxu0 %v2355
    %2542 = vmatprep.subr.mxu0 0.0
    %2543 = vmatpush1.msra.mxu0 %v2356
    %2544 = vmatprep.subr.mxu0 0.0
    %2545 = vmatpush1.msra.mxu0 %v2357
    %2546 = vmatprep.subr.mxu0 0.0
    %2547 = vmatpush1.msra.mxu0 %v2358
    %2548 = vmatprep.subr.mxu0 0.0
    %2549 = vmatpush1.msra.mxu0 %v2359
    %2550 = vmatprep.subr.mxu0 0.0
    %2551 = vmatpush1.msra.mxu0 %v2360
    %2552 = vmatprep.subr.mxu0 0.0
    %2553 = vmatpush1.msra.mxu0 %v2361
    %2554 = vmatprep.subr.mxu0 0.0
    %2555 = vmatpush1.msra.mxu0 %v2362
    %2556 = vmatprep.subr.mxu0 0.0
    %2557 = vmatpush1.msra.mxu0 %v2363
    %2558 = vmatprep.subr.mxu0 0.0
    %2559 = vmatpush1.msra.mxu0 %v2364
    %2560 = vmatprep.subr.mxu0 0.0
    %2561 = vmatpush1.msra.mxu0 %v2365
    %2562 = vmatprep.subr.mxu0 0.0
    %2563 = vmatpush1.msra.mxu0 %v2366
    %2564 = vmatprep.subr.mxu0 0.0
    %2565 = vmatpush1.msra.mxu0 0.0
    %2566 = vmatprep.subr.mxu0 0.0
    %2567 = vmatpush1.msra.mxu0 0.0
    %2568 = vmatprep.subr.mxu0 0.0
    %2569 = vmatpush1.msra.mxu0 0.0
    %2570 = vmatprep.subr.mxu0 0.0
    %2571 = vmatpush1.msra.mxu0 0.0
    %2572 = vmatprep.subr.mxu0 0.0
    %2573 = vmatpush1.msra.mxu0 0.0
    %2574 = vmatprep.subr.mxu0 0.0
    %2575 = vmatpush1.msra.mxu0 0.0
    %2576 = vmatprep.mubr.f32.mxu0 %v2501
    %2577 = vmatmul.mubr.f32.gmra.mrb[0].mxu0 %v2333
    %v2578 = vpop.f32.mrb[0].mxu0
    %v2579 = vadd.f32 %v2482, %v2578
    %v2580 = vpop.f32.mrb[0].mxu0
    %2581 = vmatprep.mubr.f32.mxu0 %v2504
    %2582 = vmatmul.mubr.f32.gmra.mrb[0].mxu0 %v2335
    %v2583 = vpop.f32.mrb[0].mxu0
    %v2584 = vadd.f32 %v2487, %v2583
    %v2585 = vpop.f32.mrb[0].mxu0
    %2586 = vmatprep.mubr.f32.mxu0 %v2507
    %2587 = vmatmul.mubr.f32.gmra.mrb[0].mxu0 %v2337
    %v2588 = vpop.f32.mrb[0].mxu0
    %v2589 = vadd.f32 %v2492, %v2588
    %v2590 = vpop.f32.mrb[0].mxu0
    %2591 = vmatprep.mubr.f32.mxu0 %v2510
    %2592 = vmatmul.mubr.f32.gmra.mrb[0].mxu0 %v2339
    %v2593 = vpop.f32.mrb[0].mxu0
    %v2594 = vadd.f32 %v2497, %v2593
    %v2595 = vpop.f32.mrb[0].mxu0
    %2596 = vdwg.mxu0
    %s2597 = scalar_lea.vmem %s1, 128
    %v2598 = vld [vmem:[%s2597] sm:$0xff]
    %v2599 = vld [vmem:[%s2597 + $0x8] sm:$0xff]
    %v2600 = vld [vmem:[%s2597 + $0x10] sm:$0xff]
    %v2601 = vld [vmem:[%s2597 + $0x18] sm:$0xff]
    %v2602 = vld [vmem:[%s2597 + $0x20] sm:$0xff]
    %v2603 = vld [vmem:[%s2597 + $0x28] sm:$0xff]
    %v2604 = vld [vmem:[%s2597 + $0x30] sm:$0x3f]
    %v2605 = vld [vmem:[%s2597 + $0x38] sm:$0x3f]
    %v2606 = vld [vmem:[%s1913] sm:$0xff]
    %v2607 = vld [vmem:[%s1913 + $0x8] sm:$0xff]
    %v2608 = vld [vmem:[%s1913 + $0x10] sm:$0xff]
    %v2609 = vld [vmem:[%s1913 + $0x18] sm:$0xff]
    %v2610 = vld [vmem:[%s1913 + $0x20] sm:$0xff]
    %v2611 = vld [vmem:[%s1913 + $0x28] sm:$0xff]
    %v2612 = vld [vmem:[%s1913 + $0x30] sm:$0xff]
    %v2613 = vld [vmem:[%s1913 + $0x38] sm:$0xff]
    %v2614 = vld [vmem:[%s1913 + $0x40] sm:$0xff]
    %v2615 = vld [vmem:[%s1913 + $0x48] sm:$0xff]
    %v2616 = vld [vmem:[%s1913 + $0x50] sm:$0xff]
    %v2617 = vld [vmem:[%s1913 + $0x58] sm:$0xff]
    %v2618 = vld [vmem:[%s1913 + $0x60] sm:$0xff]
    %v2619 = vld [vmem:[%s1913 + $0x68] sm:$0xff]
    %v2620 = vld [vmem:[%s1913 + $0x70] sm:$0xff]
    %v2621 = vld [vmem:[%s1913 + $0x78] sm:$0xff]
    %v2622 = vld [vmem:[%s1913 + $0x80] sm:$0xff]
    %v2623 = vld [vmem:[%s1913 + $0x88] sm:$0xff]
    %v2624 = vld [vmem:[%s1913 + $0x90] sm:$0xff]
    %v2625 = vld [vmem:[%s1913 + $0x98] sm:$0xff]
    %v2626 = vld [vmem:[%s1913 + $0xa0] sm:$0xff]
    %v2627 = vld [vmem:[%s1913 + $0xa8] sm:$0xff]
    %v2628 = vld [vmem:[%s1913 + $0xb0] sm:$0xff]
    %v2629 = vld [vmem:[%s1913 + $0xb8] sm:$0xff]
    %v2630 = vld [vmem:[%s1913 + $0xc0] sm:$0xff]
    %v2631 = vld [vmem:[%s1913 + $0xc8] sm:$0xff]
    %v2633 = vsel %vm2402, %v2599, 0
    %v2636 = vsel %vm2402, %v2601, 0
    %v2639 = vsel %vm2402, %v2603, 0
    %v2642 = vsel %vm2402, %v2605, 0
    %2644 = vmatprep.subr.mxu0 0.0
    %2645 = vmatpush1.msra.mxu0 %v2606
    %2646 = vmatprep.subr.mxu0 0.0
    %2647 = vmatpush1.msra.mxu0 %v2607
    %2648 = vmatprep.subr.mxu0 0.0
    %2649 = vmatpush1.msra.mxu0 %v2608
    %2650 = vmatprep.subr.mxu0 0.0
    %2651 = vmatpush1.msra.mxu0 %v2609
    %2652 = vmatprep.subr.mxu0 0.0
    %2653 = vmatpush1.msra.mxu0 %v2610
    %2654 = vmatprep.subr.mxu0 0.0
    %2655 = vmatpush1.msra.mxu0 %v2611
    %2656 = vmatprep.subr.mxu0 0.0
    %2657 = vmatpush1.msra.mxu0 %v2612
    %2658 = vmatprep.subr.mxu0 0.0
    %2659 = vmatpush1.msra.mxu0 %v2613
    %2660 = vmatprep.subr.mxu0 0.0
    %2661 = vmatpush1.msra.mxu0 %v2614
    %2662 = vmatprep.subr.mxu0 0.0
    %2663 = vmatpush1.msra.mxu0 %v2615
    %2664 = vmatprep.subr.mxu0 0.0
    %2665 = vmatpush1.msra.mxu0 %v2616
    %2666 = vmatprep.subr.mxu0 0.0
    %2667 = vmatpush1.msra.mxu0 %v2617
    %2668 = vmatprep.subr.mxu0 0.0
    %2669 = vmatpush1.msra.mxu0 %v2618
    %2670 = vmatprep.subr.mxu0 0.0
    %2671 = vmatpush1.msra.mxu0 %v2619
    %2672 = vmatprep.subr.mxu0 0.0
    %2673 = vmatpush1.msra.mxu0 %v2620
    %2674 = vmatprep.subr.mxu0 0.0
    %2675 = vmatpush1.msra.mxu0 %v2621
    %2676 = vmatprep.subr.mxu0 0.0
    %2677 = vmatpush1.msra.mxu0 %v2622
    %2678 = vmatprep.subr.mxu0 0.0
    %2679 = vmatpush1.msra.mxu0 %v2623
    %2680 = vmatprep.subr.mxu0 0.0
    %2681 = vmatpush1.msra.mxu0 %v2624
    %2682 = vmatprep.subr.mxu0 0.0
    %2683 = vmatpush1.msra.mxu0 %v2625
    %2684 = vmatprep.subr.mxu0 0.0
    %2685 = vmatpush1.msra.mxu0 %v2626
    %2686 = vmatprep.subr.mxu0 0.0
    %2687 = vmatpush1.msra.mxu0 %v2627
    %2688 = vmatprep.subr.mxu0 0.0
    %2689 = vmatpush1.msra.mxu0 %v2628
    %2690 = vmatprep.subr.mxu0 0.0
    %2691 = vmatpush1.msra.mxu0 %v2629
    %2692 = vmatprep.subr.mxu0 0.0
    %2693 = vmatpush1.msra.mxu0 %v2630
    %2694 = vmatprep.subr.mxu0 0.0
    %2695 = vmatpush1.msra.mxu0 %v2631
    %2696 = vmatprep.subr.mxu0 0.0
    %2697 = vmatpush1.msra.mxu0 0.0
    %2698 = vmatprep.subr.mxu0 0.0
    %2699 = vmatpush1.msra.mxu0 0.0
    %2700 = vmatprep.subr.mxu0 0.0
    %2701 = vmatpush1.msra.mxu0 0.0
    %2702 = vmatprep.subr.mxu0 0.0
    %2703 = vmatpush1.msra.mxu0 0.0
    %2704 = vmatprep.subr.mxu0 0.0
    %2705 = vmatpush1.msra.mxu0 0.0
    %2706 = vmatprep.subr.mxu0 0.0
    %2707 = vmatpush1.msra.mxu0 0.0
    %2708 = vmatprep.mubr.f32.mxu0 %v2633
    %2709 = vmatmul.mubr.f32.gmra.mrb[0].mxu0 %v2598
    %v2710 = vpop.f32.mrb[0].mxu0
    %v2711 = vadd.f32 0.0, %v2710
    %v2712 = vpop.f32.mrb[0].mxu0
    %2713 = vmatprep.mubr.f32.mxu0 %v2636
    %2714 = vmatmul.mubr.f32.gmra.mrb[0].mxu0 %v2600
    %v2715 = vpop.f32.mrb[0].mxu0
    %v2716 = vadd.f32 0.0, %v2715
    %v2717 = vpop.f32.mrb[0].mxu0
    %2718 = vmatprep.mubr.f32.mxu0 %v2639
    %2719 = vmatmul.mubr.f32.gmra.mrb[0].mxu0 %v2602
    %v2720 = vpop.f32.mrb[0].mxu0
    %v2721 = vadd.f32 0.0, %v2720
    %v2722 = vpop.f32.mrb[0].mxu0
    %2723 = vmatprep.mubr.f32.mxu0 %v2642
    %2724 = vmatmul.mubr.f32.gmra.mrb[0].mxu0 %v2604
    %v2725 = vpop.f32.mrb[0].mxu0
    %v2726 = vadd.f32 0.0, %v2725
    %v2727 = vpop.f32.mrb[0].mxu0
    %2728 = vdwg.mxu0
    %v2729 = vadd.f32 %v2579, %v2711
    %v2730 = vadd.f32 %v2584, %v2716
    %v2731 = vadd.f32 %v2589, %v2721
    %v2732 = vadd.f32 %v2594, %v2726
    %s2733 = scalar_lea.vmem %s1, 192
    %v2734 = vld [vmem:[%s2733] sm:$0xff]
    %v2735 = vld [vmem:[%s2733 + $0x8] sm:$0xff]
    %v2736 = vld [vmem:[%s2733 + $0x10] sm:$0xff]
    %v2737 = vld [vmem:[%s2733 + $0x18] sm:$0xff]
    %v2738 = vld [vmem:[%s2733 + $0x20] sm:$0xff]
    %v2739 = vld [vmem:[%s2733 + $0x28] sm:$0xff]
    %v2740 = vld [vmem:[%s2733 + $0x30] sm:$0x3f]
    %v2741 = vld [vmem:[%s2733 + $0x38] sm:$0x3f]
    %v2742 = vld [vmem:[%s2028] sm:$0xff]
    %v2743 = vld [vmem:[%s2028 + $0x8] sm:$0xff]
    %v2744 = vld [vmem:[%s2028 + $0x10] sm:$0xff]
    %v2745 = vld [vmem:[%s2028 + $0x18] sm:$0xff]
    %v2746 = vld [vmem:[%s2028 + $0x20] sm:$0xff]
    %v2747 = vld [vmem:[%s2028 + $0x28] sm:$0xff]
    %v2748 = vld [vmem:[%s2028 + $0x30] sm:$0xff]
    %v2749 = vld [vmem:[%s2028 + $0x38] sm:$0xff]
    %v2750 = vld [vmem:[%s2028 + $0x40] sm:$0xff]
    %v2751 = vld [vmem:[%s2028 + $0x48] sm:$0xff]
    %v2752 = vld [vmem:[%s2028 + $0x50] sm:$0xff]
    %v2753 = vld [vmem:[%s2028 + $0x58] sm:$0xff]
    %v2754 = vld [vmem:[%s2028 + $0x60] sm:$0xff]
    %v2755 = vld [vmem:[%s2028 + $0x68] sm:$0xff]
    %v2756 = vld [vmem:[%s2028 + $0x70] sm:$0xff]
    %v2757 = vld [vmem:[%s2028 + $0x78] sm:$0xff]
    %v2758 = vld [vmem:[%s2028 + $0x80] sm:$0xff]
    %v2759 = vld [vmem:[%s2028 + $0x88] sm:$0xff]
    %v2760 = vld [vmem:[%s2028 + $0x90] sm:$0xff]
    %v2761 = vld [vmem:[%s2028 + $0x98] sm:$0xff]
    %v2762 = vld [vmem:[%s2028 + $0xa0] sm:$0xff]
    %v2763 = vld [vmem:[%s2028 + $0xa8] sm:$0xff]
    %v2764 = vld [vmem:[%s2028 + $0xb0] sm:$0xff]
    %v2765 = vld [vmem:[%s2028 + $0xb8] sm:$0xff]
    %v2766 = vld [vmem:[%s2028 + $0xc0] sm:$0xff]
    %v2767 = vld [vmem:[%s2028 + $0xc8] sm:$0xff]
    %v2769 = vsel %vm2402, %v2735, 0
    %v2772 = vsel %vm2402, %v2737, 0
    %v2775 = vsel %vm2402, %v2739, 0
    %v2778 = vsel %vm2402, %v2741, 0
    %2780 = vmatprep.subr.mxu0 0.0
    %2781 = vmatpush1.msra.mxu0 %v2742
    %2782 = vmatprep.subr.mxu0 0.0
    %2783 = vmatpush1.msra.mxu0 %v2743
    %2784 = vmatprep.subr.mxu0 0.0
    %2785 = vmatpush1.msra.mxu0 %v2744
    %2786 = vmatprep.subr.mxu0 0.0
    %2787 = vmatpush1.msra.mxu0 %v2745
    %2788 = vmatprep.subr.mxu0 0.0
    %2789 = vmatpush1.msra.mxu0 %v2746
    %2790 = vmatprep.subr.mxu0 0.0
    %2791 = vmatpush1.msra.mxu0 %v2747
    %2792 = vmatprep.subr.mxu0 0.0
    %2793 = vmatpush1.msra.mxu0 %v2748
    %2794 = vmatprep.subr.mxu0 0.0
    %2795 = vmatpush1.msra.mxu0 %v2749
    %2796 = vmatprep.subr.mxu0 0.0
    %2797 = vmatpush1.msra.mxu0 %v2750
    %2798 = vmatprep.subr.mxu0 0.0
    %2799 = vmatpush1.msra.mxu0 %v2751
    %2800 = vmatprep.subr.mxu0 0.0
    %2801 = vmatpush1.msra.mxu0 %v2752
    %2802 = vmatprep.subr.mxu0 0.0
    %2803 = vmatpush1.msra.mxu0 %v2753
    %2804 = vmatprep.subr.mxu0 0.0
    %2805 = vmatpush1.msra.mxu0 %v2754
    %2806 = vmatprep.subr.mxu0 0.0
    %2807 = vmatpush1.msra.mxu0 %v2755
    %2808 = vmatprep.subr.mxu0 0.0
    %2809 = vmatpush1.msra.mxu0 %v2756
    %2810 = vmatprep.subr.mxu0 0.0
    %2811 = vmatpush1.msra.mxu0 %v2757
    %2812 = vmatprep.subr.mxu0 0.0
    %2813 = vmatpush1.msra.mxu0 %v2758
    %2814 = vmatprep.subr.mxu0 0.0
    %2815 = vmatpush1.msra.mxu0 %v2759
    %2816 = vmatprep.subr.mxu0 0.0
    %2817 = vmatpush1.msra.mxu0 %v2760
    %2818 = vmatprep.subr.mxu0 0.0
    %2819 = vmatpush1.msra.mxu0 %v2761
    %2820 = vmatprep.subr.mxu0 0.0
    %2821 = vmatpush1.msra.mxu0 %v2762
    %2822 = vmatprep.subr.mxu0 0.0
    %2823 = vmatpush1.msra.mxu0 %v2763
    %2824 = vmatprep.subr.mxu0 0.0
    %2825 = vmatpush1.msra.mxu0 %v2764
    %2826 = vmatprep.subr.mxu0 0.0
    %2827 = vmatpush1.msra.mxu0 %v2765
    %2828 = vmatprep.subr.mxu0 0.0
    %2829 = vmatpush1.msra.mxu0 %v2766
    %2830 = vmatprep.subr.mxu0 0.0
    %2831 = vmatpush1.msra.mxu0 %v2767
    %2832 = vmatprep.subr.mxu0 0.0
    %2833 = vmatpush1.msra.mxu0 0.0
    %2834 = vmatprep.subr.mxu0 0.0
    %2835 = vmatpush1.msra.mxu0 0.0
    %2836 = vmatprep.subr.mxu0 0.0
    %2837 = vmatpush1.msra.mxu0 0.0
    %2838 = vmatprep.subr.mxu0 0.0
    %2839 = vmatpush1.msra.mxu0 0.0
    %2840 = vmatprep.subr.mxu0 0.0
    %2841 = vmatpush1.msra.mxu0 0.0
    %2842 = vmatprep.subr.mxu0 0.0
    %2843 = vmatpush1.msra.mxu0 0.0
    %2844 = vmatprep.mubr.f32.mxu0 %v2769
    %2845 = vmatmul.mubr.f32.gmra.mrb[0].mxu0 %v2734
    %v2846 = vpop.f32.mrb[0].mxu0
    %v2847 = vadd.f32 0.0, %v2846
    %v2848 = vpop.f32.mrb[0].mxu0
    %2849 = vmatprep.mubr.f32.mxu0 %v2772
    %2850 = vmatmul.mubr.f32.gmra.mrb[0].mxu0 %v2736
    %v2851 = vpop.f32.mrb[0].mxu0
    %v2852 = vadd.f32 0.0, %v2851
    %v2853 = vpop.f32.mrb[0].mxu0
    %2854 = vmatprep.mubr.f32.mxu0 %v2775
    %2855 = vmatmul.mubr.f32.gmra.mrb[0].mxu0 %v2738
    %v2856 = vpop.f32.mrb[0].mxu0
    %v2857 = vadd.f32 0.0, %v2856
    %v2858 = vpop.f32.mrb[0].mxu0
    %2859 = vmatprep.mubr.f32.mxu0 %v2778
    %2860 = vmatmul.mubr.f32.gmra.mrb[0].mxu0 %v2740
    %v2861 = vpop.f32.mrb[0].mxu0
    %v2862 = vadd.f32 0.0, %v2861
    %v2863 = vpop.f32.mrb[0].mxu0
    %2864 = vdwg.mxu0
    %v2865 = vadd.f32 %v2729, %v2847
    %v2866 = vadd.f32 %v2730, %v2852
    %v2867 = vadd.f32 %v2731, %v2857
    %v2868 = vadd.f32 %v2732, %v2862
    %s2869 = scalar_lea.vmem %s1, 256
    %v2870 = vld [vmem:[%s2869] sm:$0xff]
    %v2871 = vld [vmem:[%s2869 + $0x8] sm:$0xff]
    %v2872 = vld [vmem:[%s2869 + $0x10] sm:$0xff]
    %v2873 = vld [vmem:[%s2869 + $0x18] sm:$0xff]
    %v2874 = vld [vmem:[%s2869 + $0x20] sm:$0xff]
    %v2875 = vld [vmem:[%s2869 + $0x28] sm:$0xff]
    %v2876 = vld [vmem:[%s2869 + $0x30] sm:$0x3f]
    %v2877 = vld [vmem:[%s2869 + $0x38] sm:$0x3f]
    %v2878 = vld [vmem:[%s2035] sm:$0xff]
    %v2879 = vld [vmem:[%s2035 + $0x8] sm:$0xff]
    %v2880 = vld [vmem:[%s2035 + $0x10] sm:$0xff]
    %v2881 = vld [vmem:[%s2035 + $0x18] sm:$0xff]
    %v2882 = vld [vmem:[%s2035 + $0x20] sm:$0xff]
    %v2883 = vld [vmem:[%s2035 + $0x28] sm:$0xff]
    %v2884 = vld [vmem:[%s2035 + $0x30] sm:$0xff]
    %v2885 = vld [vmem:[%s2035 + $0x38] sm:$0xff]
    %v2886 = vld [vmem:[%s2035 + $0x40] sm:$0xff]
    %v2887 = vld [vmem:[%s2035 + $0x48] sm:$0xff]
    %v2888 = vld [vmem:[%s2035 + $0x50] sm:$0xff]
    %v2889 = vld [vmem:[%s2035 + $0x58] sm:$0xff]
    %v2890 = vld [vmem:[%s2035 + $0x60] sm:$0xff]
    %v2891 = vld [vmem:[%s2035 + $0x68] sm:$0xff]
    %v2892 = vld [vmem:[%s2035 + $0x70] sm:$0xff]
    %v2893 = vld [vmem:[%s2035 + $0x78] sm:$0xff]
    %v2894 = vld [vmem:[%s2035 + $0x80] sm:$0xff]
    %v2895 = vld [vmem:[%s2035 + $0x88] sm:$0xff]
    %v2896 = vld [vmem:[%s2035 + $0x90] sm:$0xff]
    %v2897 = vld [vmem:[%s2035 + $0x98] sm:$0xff]
    %v2898 = vld [vmem:[%s2035 + $0xa0] sm:$0xff]
    %v2899 = vld [vmem:[%s2035 + $0xa8] sm:$0xff]
    %v2900 = vld [vmem:[%s2035 + $0xb0] sm:$0xff]
    %v2901 = vld [vmem:[%s2035 + $0xb8] sm:$0xff]
    %v2902 = vld [vmem:[%s2035 + $0xc0] sm:$0xff]
    %v2903 = vld [vmem:[%s2035 + $0xc8] sm:$0xff]
    %v2905 = vsel %vm2402, %v2871, 0
    %v2908 = vsel %vm2402, %v2873, 0
    %v2911 = vsel %vm2402, %v2875, 0
    %v2914 = vsel %vm2402, %v2877, 0
    %2916 = vmatprep.subr.mxu0 0.0
    %2917 = vmatpush1.msra.mxu0 %v2878
    %2918 = vmatprep.subr.mxu0 0.0
    %2919 = vmatpush1.msra.mxu0 %v2879
    %2920 = vmatprep.subr.mxu0 0.0
    %2921 = vmatpush1.msra.mxu0 %v2880
    %2922 = vmatprep.subr.mxu0 0.0
    %2923 = vmatpush1.msra.mxu0 %v2881
    %2924 = vmatprep.subr.mxu0 0.0
    %2925 = vmatpush1.msra.mxu0 %v2882
    %2926 = vmatprep.subr.mxu0 0.0
    %2927 = vmatpush1.msra.mxu0 %v2883
    %2928 = vmatprep.subr.mxu0 0.0
    %2929 = vmatpush1.msra.mxu0 %v2884
    %2930 = vmatprep.subr.mxu0 0.0
    %2931 = vmatpush1.msra.mxu0 %v2885
    %2932 = vmatprep.subr.mxu0 0.0
    %2933 = vmatpush1.msra.mxu0 %v2886
    %2934 = vmatprep.subr.mxu0 0.0
    %2935 = vmatpush1.msra.mxu0 %v2887
    %2936 = vmatprep.subr.mxu0 0.0
    %2937 = vmatpush1.msra.mxu0 %v2888
    %2938 = vmatprep.subr.mxu0 0.0
    %2939 = vmatpush1.msra.mxu0 %v2889
    %2940 = vmatprep.subr.mxu0 0.0
    %2941 = vmatpush1.msra.mxu0 %v2890
    %2942 = vmatprep.subr.mxu0 0.0
    %2943 = vmatpush1.msra.mxu0 %v2891
    %2944 = vmatprep.subr.mxu0 0.0
    %2945 = vmatpush1.msra.mxu0 %v2892
    %2946 = vmatprep.subr.mxu0 0.0
    %2947 = vmatpush1.msra.mxu0 %v2893
    %2948 = vmatprep.subr.mxu0 0.0
    %2949 = vmatpush1.msra.mxu0 %v2894
    %2950 = vmatprep.subr.mxu0 0.0
    %2951 = vmatpush1.msra.mxu0 %v2895
    %2952 = vmatprep.subr.mxu0 0.0
    %2953 = vmatpush1.msra.mxu0 %v2896
    %2954 = vmatprep.subr.mxu0 0.0
    %2955 = vmatpush1.msra.mxu0 %v2897
    %2956 = vmatprep.subr.mxu0 0.0
    %2957 = vmatpush1.msra.mxu0 %v2898
    %2958 = vmatprep.subr.mxu0 0.0
    %2959 = vmatpush1.msra.mxu0 %v2899
    %2960 = vmatprep.subr.mxu0 0.0
    %2961 = vmatpush1.msra.mxu0 %v2900
    %2962 = vmatprep.subr.mxu0 0.0
    %2963 = vmatpush1.msra.mxu0 %v2901
    %2964 = vmatprep.subr.mxu0 0.0
    %2965 = vmatpush1.msra.mxu0 %v2902
    %2966 = vmatprep.subr.mxu0 0.0
    %2967 = vmatpush1.msra.mxu0 %v2903
    %2968 = vmatprep.subr.mxu0 0.0
    %2969 = vmatpush1.msra.mxu0 0.0
    %2970 = vmatprep.subr.mxu0 0.0
    %2971 = vmatpush1.msra.mxu0 0.0
    %2972 = vmatprep.subr.mxu0 0.0
    %2973 = vmatpush1.msra.mxu0 0.0
    %2974 = vmatprep.subr.mxu0 0.0
    %2975 = vmatpush1.msra.mxu0 0.0
    %2976 = vmatprep.subr.mxu0 0.0
    %2977 = vmatpush1.msra.mxu0 0.0
    %2978 = vmatprep.subr.mxu0 0.0
    %2979 = vmatpush1.msra.mxu0 0.0
    %2980 = vmatprep.mubr.f32.mxu0 %v2905
    %2981 = vmatmul.mubr.f32.gmra.mrb[0].mxu0 %v2870
    %v2982 = vpop.f32.mrb[0].mxu0
    %v2983 = vadd.f32 0.0, %v2982
    %v2984 = vpop.f32.mrb[0].mxu0
    %2985 = vmatprep.mubr.f32.mxu0 %v2908
    %2986 = vmatmul.mubr.f32.gmra.mrb[0].mxu0 %v2872
    %v2987 = vpop.f32.mrb[0].mxu0
    %v2988 = vadd.f32 0.0, %v2987
    %v2989 = vpop.f32.mrb[0].mxu0
    %2990 = vmatprep.mubr.f32.mxu0 %v2911
    %2991 = vmatmul.mubr.f32.gmra.mrb[0].mxu0 %v2874
    %v2992 = vpop.f32.mrb[0].mxu0
    %v2993 = vadd.f32 0.0, %v2992
    %v2994 = vpop.f32.mrb[0].mxu0
    %2995 = vmatprep.mubr.f32.mxu0 %v2914
    %2996 = vmatmul.mubr.f32.gmra.mrb[0].mxu0 %v2876
    %v2997 = vpop.f32.mrb[0].mxu0
    %v2998 = vadd.f32 0.0, %v2997
    %v2999 = vpop.f32.mrb[0].mxu0
    %3000 = vdwg.mxu0
    %v3001 = vadd.f32 %v2865, %v2983
    %v3002 = vadd.f32 %v2866, %v2988
    %v3003 = vadd.f32 %v2867, %v2993
    %v3004 = vadd.f32 %v2868, %v2998
    %s3005 = scalar_lea.vmem %s1, 320
    %v3006 = vld [vmem:[%s3005] sm:$0xff]
    %v3007 = vld [vmem:[%s3005 + $0x8] sm:$0xff]
    %v3008 = vld [vmem:[%s3005 + $0x10] sm:$0xff]
    %v3009 = vld [vmem:[%s3005 + $0x18] sm:$0xff]
    %v3010 = vld [vmem:[%s3005 + $0x20] sm:$0xff]
    %v3011 = vld [vmem:[%s3005 + $0x28] sm:$0xff]
    %v3012 = vld [vmem:[%s3005 + $0x30] sm:$0x3f]
    %v3013 = vld [vmem:[%s3005 + $0x38] sm:$0x3f]
    %v3014 = vld [vmem:[%s2042] sm:$0xff]
    %v3015 = vld [vmem:[%s2042 + $0x8] sm:$0xff]
    %v3016 = vld [vmem:[%s2042 + $0x10] sm:$0xff]
    %v3017 = vld [vmem:[%s2042 + $0x18] sm:$0xff]
    %v3018 = vld [vmem:[%s2042 + $0x20] sm:$0xff]
    %v3019 = vld [vmem:[%s2042 + $0x28] sm:$0xff]
    %v3020 = vld [vmem:[%s2042 + $0x30] sm:$0xff]
    %v3021 = vld [vmem:[%s2042 + $0x38] sm:$0xff]
    %v3022 = vld [vmem:[%s2042 + $0x40] sm:$0xff]
    %v3023 = vld [vmem:[%s2042 + $0x48] sm:$0xff]
    %v3024 = vld [vmem:[%s2042 + $0x50] sm:$0xff]
    %v3025 = vld [vmem:[%s2042 + $0x58] sm:$0xff]
    %v3026 = vld [vmem:[%s2042 + $0x60] sm:$0xff]
    %v3027 = vld [vmem:[%s2042 + $0x68] sm:$0xff]
    %v3028 = vld [vmem:[%s2042 + $0x70] sm:$0xff]
    %v3029 = vld [vmem:[%s2042 + $0x78] sm:$0xff]
    %v3030 = vld [vmem:[%s2042 + $0x80] sm:$0xff]
    %v3031 = vld [vmem:[%s2042 + $0x88] sm:$0xff]
    %v3032 = vld [vmem:[%s2042 + $0x90] sm:$0xff]
    %v3033 = vld [vmem:[%s2042 + $0x98] sm:$0xff]
    %v3034 = vld [vmem:[%s2042 + $0xa0] sm:$0xff]
    %v3035 = vld [vmem:[%s2042 + $0xa8] sm:$0xff]
    %v3036 = vld [vmem:[%s2042 + $0xb0] sm:$0xff]
    %v3037 = vld [vmem:[%s2042 + $0xb8] sm:$0xff]
    %v3038 = vld [vmem:[%s2042 + $0xc0] sm:$0xff]
    %v3039 = vld [vmem:[%s2042 + $0xc8] sm:$0xff]
    %v3041 = vsel %vm2402, %v3007, 0
    %v3044 = vsel %vm2402, %v3009, 0
    %v3047 = vsel %vm2402, %v3011, 0
    %v3050 = vsel %vm2402, %v3013, 0
    %3052 = vmatprep.subr.mxu0 0.0
    %3053 = vmatpush1.msra.mxu0 %v3014
    %3054 = vmatprep.subr.mxu0 0.0
    %3055 = vmatpush1.msra.mxu0 %v3015
    %3056 = vmatprep.subr.mxu0 0.0
    %3057 = vmatpush1.msra.mxu0 %v3016
    %3058 = vmatprep.subr.mxu0 0.0
    %3059 = vmatpush1.msra.mxu0 %v3017
    %3060 = vmatprep.subr.mxu0 0.0
    %3061 = vmatpush1.msra.mxu0 %v3018
    %3062 = vmatprep.subr.mxu0 0.0
    %3063 = vmatpush1.msra.mxu0 %v3019
    %3064 = vmatprep.subr.mxu0 0.0
    %3065 = vmatpush1.msra.mxu0 %v3020
    %3066 = vmatprep.subr.mxu0 0.0
    %3067 = vmatpush1.msra.mxu0 %v3021
    %3068 = vmatprep.subr.mxu0 0.0
    %3069 = vmatpush1.msra.mxu0 %v3022
    %3070 = vmatprep.subr.mxu0 0.0
    %3071 = vmatpush1.msra.mxu0 %v3023
    %3072 = vmatprep.subr.mxu0 0.0
    %3073 = vmatpush1.msra.mxu0 %v3024
    %3074 = vmatprep.subr.mxu0 0.0
    %3075 = vmatpush1.msra.mxu0 %v3025
    %3076 = vmatprep.subr.mxu0 0.0
    %3077 = vmatpush1.msra.mxu0 %v3026
    %3078 = vmatprep.subr.mxu0 0.0
    %3079 = vmatpush1.msra.mxu0 %v3027
    %3080 = vmatprep.subr.mxu0 0.0
    %3081 = vmatpush1.msra.mxu0 %v3028
    %3082 = vmatprep.subr.mxu0 0.0
    %3083 = vmatpush1.msra.mxu0 %v3029
    %3084 = vmatprep.subr.mxu0 0.0
    %3085 = vmatpush1.msra.mxu0 %v3030
    %3086 = vmatprep.subr.mxu0 0.0
    %3087 = vmatpush1.msra.mxu0 %v3031
    %3088 = vmatprep.subr.mxu0 0.0
    %3089 = vmatpush1.msra.mxu0 %v3032
    %3090 = vmatprep.subr.mxu0 0.0
    %3091 = vmatpush1.msra.mxu0 %v3033
    %3092 = vmatprep.subr.mxu0 0.0
    %3093 = vmatpush1.msra.mxu0 %v3034
    %3094 = vmatprep.subr.mxu0 0.0
    %3095 = vmatpush1.msra.mxu0 %v3035
    %3096 = vmatprep.subr.mxu0 0.0
    %3097 = vmatpush1.msra.mxu0 %v3036
    %3098 = vmatprep.subr.mxu0 0.0
    %3099 = vmatpush1.msra.mxu0 %v3037
    %3100 = vmatprep.subr.mxu0 0.0
    %3101 = vmatpush1.msra.mxu0 %v3038
    %3102 = vmatprep.subr.mxu0 0.0
    %3103 = vmatpush1.msra.mxu0 %v3039
    %3104 = vmatprep.subr.mxu0 0.0
    %3105 = vmatpush1.msra.mxu0 0.0
    %3106 = vmatprep.subr.mxu0 0.0
    %3107 = vmatpush1.msra.mxu0 0.0
    %3108 = vmatprep.subr.mxu0 0.0
    %3109 = vmatpush1.msra.mxu0 0.0
    %3110 = vmatprep.subr.mxu0 0.0
    %3111 = vmatpush1.msra.mxu0 0.0
    %3112 = vmatprep.subr.mxu0 0.0
    %3113 = vmatpush1.msra.mxu0 0.0
    %3114 = vmatprep.subr.mxu0 0.0
    %3115 = vmatpush1.msra.mxu0 0.0
    %3116 = vmatprep.mubr.f32.mxu0 %v3041
    %3117 = vmatmul.mubr.f32.gmra.mrb[0].mxu0 %v3006
    %v3118 = vpop.f32.mrb[0].mxu0
    %v3119 = vadd.f32 0.0, %v3118
    %v3120 = vpop.f32.mrb[0].mxu0
    %3121 = vmatprep.mubr.f32.mxu0 %v3044
    %3122 = vmatmul.mubr.f32.gmra.mrb[0].mxu0 %v3008
    %v3123 = vpop.f32.mrb[0].mxu0
    %v3124 = vadd.f32 0.0, %v3123
    %v3125 = vpop.f32.mrb[0].mxu0
    %3126 = vmatprep.mubr.f32.mxu0 %v3047
    %3127 = vmatmul.mubr.f32.gmra.mrb[0].mxu0 %v3010
    %v3128 = vpop.f32.mrb[0].mxu0
    %v3129 = vadd.f32 0.0, %v3128
    %v3130 = vpop.f32.mrb[0].mxu0
    %3131 = vmatprep.mubr.f32.mxu0 %v3050
    %3132 = vmatmul.mubr.f32.gmra.mrb[0].mxu0 %v3012
    %v3133 = vpop.f32.mrb[0].mxu0
    %v3134 = vadd.f32 0.0, %v3133
    %v3135 = vpop.f32.mrb[0].mxu0
    %3136 = vdwg.mxu0
    %v3137 = vadd.f32 %v3001, %v3119
    %v3138 = vadd.f32 %v3002, %v3124
    %v3139 = vadd.f32 %v3003, %v3129
    %v3140 = vadd.f32 %v3004, %v3134
    %v3141 = vld [vmem:[%s2] sm:$0xff]
    %v3142 = vld [vmem:[%s2 + $0x8] sm:$0xff]
    %v3143 = vld [vmem:[%s2 + $0x10] sm:$0xff]
    %v3144 = vld [vmem:[%s2 + $0x18] sm:$0x3f]
    %3146 = vset.pattern.permute.xlu0 0
    %3147 = vperm.xlu0 %3146, %v3141
    %v3148 = vpop.permute.xlu0 %3147
    %3151 = vset.pattern.permute.xlu0 0
    %3152 = vperm.xlu0 %3151, %v3142
    %v3153 = vpop.permute.xlu0 %3152
    %3156 = vset.pattern.permute.xlu0 0
    %3157 = vperm.xlu0 %3156, %v3143
    %v3158 = vpop.permute.xlu0 %3157
    %3161 = vset.pattern.permute.xlu0 0
    %3162 = vperm.xlu0 %3161, %v3144
    %v3163 = vpop.permute.xlu0 %3162
    %v3165 = vadd.f32 %v3137, %v3148
    %v3166 = vadd.f32 %v3138, %v3153
    %v3167 = vadd.f32 %v3139, %v3158
    %v3168 = vadd.f32 %v3140, %v3163
    %v3169 = vmax.f32 %v3165, 0.0
    %v3170 = vmax.f32 %v3166, 0.0
    %v3171 = vmax.f32 %v3167, 0.0
    %v3172 = vmax.f32 %v3168, 0.0
    %v3173 = vld [vmem:[%s3] sm:$0x1]
    %v3174 = vld [vmem:[#allocation3] sm:$0x1]
    %3176 = vset.pattern.permute.xlu0 0
    %3177 = vperm.xlu0 %3176, %v3174
    %v3178 = vpop.permute.xlu0 %3177
    %v3180 = vlaneseq
    %v3181 = vshrl.u32 %v3180, 7
    %v3182 = vsub.s32 0, %v3181
    %v3183 = vrot.slane %v3178, %v3182
    %vm3184 = vcmask 244736
    %v3186 = vsel %vm3184, %v3173, 0
    %v3189 = vsel %vm38, %v3172, 0
    %3191 = vmatprep.subr.mxu0 0.0
    %3192 = vmatpush1.msra.mxu0 %v3169
    %3193 = vmatprep.subr.mxu0 0.0
    %3194 = vmatpush1.msra.mxu0 %v3170
    %3195 = vmatprep.subr.mxu0 0.0
    %3196 = vmatpush1.msra.mxu0 %v3171
    %3197 = vmatprep.subr.mxu0 0.0
    %3198 = vmatpush1.msra.mxu0 %v3189
    %3199 = vmatprep.subr.mxu0 0.0
    %3200 = vmatpush1.msra.mxu0 0.0
    %3201 = vmatprep.subr.mxu0 0.0
    %3202 = vmatpush1.msra.mxu0 0.0
    %3203 = vmatprep.subr.mxu0 0.0
    %3204 = vmatpush1.msra.mxu0 0.0
    %3205 = vmatprep.subr.mxu0 0.0
    %3206 = vmatpush1.msra.mxu0 0.0
    %3207 = vmatprep.subr.mxu0 0.0
    %3208 = vmatpush1.msra.mxu0 0.0
    %3209 = vmatprep.subr.mxu0 0.0
    %3210 = vmatpush1.msra.mxu0 0.0
    %3211 = vmatprep.subr.mxu0 0.0
    %3212 = vmatpush1.msra.mxu0 0.0
    %3213 = vmatprep.subr.mxu0 0.0
    %3214 = vmatpush1.msra.mxu0 0.0
    %3215 = vmatprep.subr.mxu0 0.0
    %3216 = vmatpush1.msra.mxu0 0.0
    %3217 = vmatprep.subr.mxu0 0.0
    %3218 = vmatpush1.msra.mxu0 0.0
    %3219 = vmatprep.subr.mxu0 0.0
    %3220 = vmatpush1.msra.mxu0 0.0
    %3221 = vmatprep.subr.mxu0 0.0
    %3222 = vmatpush1.msra.mxu0 0.0
    %3223 = vmatprep.subr.mxu0 0.0
    %3224 = vmatpush1.msra.mxu0 0.0
    %3225 = vmatprep.subr.mxu0 0.0
    %3226 = vmatpush1.msra.mxu0 0.0
    %3227 = vmatprep.subr.mxu0 0.0
    %3228 = vmatpush1.msra.mxu0 0.0
    %3229 = vmatprep.subr.mxu0 0.0
    %3230 = vmatpush1.msra.mxu0 0.0
    %3231 = vmatprep.subr.mxu0 0.0
    %3232 = vmatpush1.msra.mxu0 0.0
    %3233 = vmatprep.subr.mxu0 0.0
    %3234 = vmatpush1.msra.mxu0 0.0
    %3235 = vmatprep.subr.mxu0 0.0
    %3236 = vmatpush1.msra.mxu0 0.0
    %3237 = vmatprep.subr.mxu0 0.0
    %3238 = vmatpush1.msra.mxu0 0.0
    %3239 = vmatprep.subr.mxu0 0.0
    %3240 = vmatpush1.msra.mxu0 0.0
    %3241 = vmatprep.subr.mxu0 0.0
    %3242 = vmatpush1.msra.mxu0 0.0
    %3243 = vmatprep.subr.mxu0 0.0
    %3244 = vmatpush1.msra.mxu0 0.0
    %3245 = vmatprep.subr.mxu0 0.0
    %3246 = vmatpush1.msra.mxu0 0.0
    %3247 = vmatprep.subr.mxu0 0.0
    %3248 = vmatpush1.msra.mxu0 0.0
    %3249 = vmatprep.subr.mxu0 0.0
    %3250 = vmatpush1.msra.mxu0 0.0
    %3251 = vmatprep.subr.mxu0 0.0
    %3252 = vmatpush1.msra.mxu0 0.0
    %3253 = vmatprep.subr.mxu0 0.0
    %3254 = vmatpush1.msra.mxu0 0.0
    %3255 = vmatprep.mubr.f32.mxu0 0.0
    %3256 = vmatmul.mubr.f32.gmra.mrb[0].mxu0 %v3186
    %v3257 = vpop.f32.mrb[0].mxu0
    %v3258 = vadd.f32 %v3183, %v3257
    %v3259 = vpop.f32.mrb[0].mxu0
    %3260 = vdwg.mxu0
    %3261 = vst [vmem:[#allocation4] sm:$0x1] %v3258
    // Predicated region
    $region22: #{tpu_custom_call.1} parent=1 // pred_check
      _
    $region23: #{tpu_custom_call.1} parent=1 // pred_check_branch
      %3263 = sbr.rel (0) target = $region25
    $region24: #{tpu_custom_call.1} parent=1 // pred_region
      %s3265 = ssub.s32 16, 16
      %3266 = vsyncadd [#allocation5], %s3265
      %s3268 = sshll.u32 [#allocation4], 4
      %s3269 = int_to_ptr.vmem [resolvable:$true] %s3268
      %3271 = dma.vmem_to_hbm [thread:$0]  %s3269, 16, %s5, [#allocation5]
    $region25: #{tpu_custom_call.1} parent=1 // pred_fallthru
      _
    // Predicated region
    $region26: #{tpu_custom_call.1} parent=1 // pred_check
      _
    $region27: #{tpu_custom_call.1} parent=1 // pred_check_branch
      %3273 = sbr.rel (0) target = $region29
    $region28: #{tpu_custom_call.1} parent=1 // pred_region
      %3274 = dma.done [#allocation5], 16
    $region29: #{tpu_custom_call.1} parent=1 // pred_fallthru
      _
    %3275 = vsyncpa [#allocation5], 1

</llo_original>
